<compile_context>
chip_gen: v7x
topology: tpu7x:2x2x1
jax: 0.10.0
libtpu: 0.0.40
codegen_flags: <defaults>
</compile_context>

<pallas_src>
import jax
import jax.numpy as jnp
from jax.experimental import pallas as pl
from jax.experimental.pallas import tpu as pltpu

D_IN   = 129600            # 360 * 360
D_H1   = 900
D_H1P  = 1024              # 900 padded to a lane-dense multiple of 128
D_H2   = 64
D_OUT  = 16                # len(char_lookup)

TK    = 8192               # K-tile of the Linear1 reduction (16 MiB W1 tile)
TN    = 512                # N-tile of the Linear1 output (2 tiles -> 2 TCs on v7x)
N_K   = pl.cdiv(D_IN, TK)  # 16
K_PAD = N_K * TK           # 131072
N_N   = D_H1P // TN        # 2


def _linear1_kernel(x_ref, w1_ref, b1_ref, h1_ref, acc_ref):
    """Split-K / split-N  x @ W1^T  accumulation; bias + ReLU on finalize."""
    k = pl.program_id(1)

    @pl.when(k == 0)
    def _():
        acc_ref[...] = jnp.zeros_like(acc_ref)

    # Hot path: MXU matmul on the streamed W1 tile.
    acc_ref[...] += jnp.dot(x_ref[...], w1_ref[...],
                            preferred_element_type=jnp.float32)

    @pl.when(k == pl.num_programs(1) - 1)
    def _():
        h1_ref[...] = jnp.maximum(acc_ref[...] + b1_ref[...], 0.0)


def _tail_kernel(h1_ref, w2_ref, b2_ref, w3_ref, b3_ref, o_ref):
    """Linear2 -> ReLU -> Linear3 (+bias); entirely VMEM-resident."""
    h2 = jnp.dot(h1_ref[...], w2_ref[...], preferred_element_type=jnp.float32)
    h2 = jnp.maximum(h2 + b2_ref[...], 0.0)
    out = jnp.dot(h2, w3_ref[...], preferred_element_type=jnp.float32)
    o_ref[...] = (out + b3_ref[...]).astype(o_ref.dtype)


@jax.jit
def network_forward(x, w1p, b1p, w2p, b2, w3, b3):
    """x: [B, 1, 360, 360] f32 (NCHW). Returns [B, 16] logits.

    Weights are the pre-padded parameters from init_params():
      w1p: [K_PAD, D_H1P]   b1p: [1, D_H1P]
      w2p: [D_H1P, D_H2]    b2:  [1, D_H2]
      w3:  [D_H2, D_OUT]    b3:  [1, D_OUT]
    """
    B = x.shape[0]
    x_flat = x.reshape(B, -1)                 # flatten (plain-JAX glue)
    assert x_flat.shape[1] == D_IN
    # Only the (small, per-call) activation is padded here; W1 is pre-padded.
    x_p = jnp.pad(x_flat, ((0, 0), (0, K_PAD - D_IN)))

    # ---- Kernel 1: Linear1 + bias + ReLU (HBM-bandwidth bound on W1) ------
    h1 = pl.pallas_call(
        _linear1_kernel,
        out_shape=jax.ShapeDtypeStruct((B, D_H1P), jnp.float32),
        grid_spec=pltpu.PrefetchScalarGridSpec(
            num_scalar_prefetch=0,
            grid=(N_N, N_K),                                     # (parallel N, reduce K)
            in_specs=[
                pl.BlockSpec((B, TK),   lambda n, k: (0, k)),    # x K-tile
                pl.BlockSpec((TK, TN),  lambda n, k: (k, n)),    # W1^T (K,N)-tile
                pl.BlockSpec((1, TN),   lambda n, k: (0, n)),    # b1 N-tile
            ],
            out_specs=pl.BlockSpec((B, TN), lambda n, k: (0, n)),
            scratch_shapes=[pltpu.VMEM((B, TN), jnp.float32)],
        ),
        compiler_params=pltpu.CompilerParams(
            dimension_semantics=("parallel", "arbitrary"),
            vmem_limit_bytes=48 << 20,   # 2x16 MiB W1 buffers + activations
        ),
    )(x_p, w1p, b1p)

    # ---- Kernel 2: tiny fused tail ----------------------------------------
    out = pl.pallas_call(
        _tail_kernel,
        out_shape=jax.ShapeDtypeStruct((B, D_OUT), jnp.float32),
        grid_spec=pltpu.PrefetchScalarGridSpec(
            num_scalar_prefetch=0,
            grid=(1,),
            in_specs=[
                pl.BlockSpec((B, D_H1P),    lambda i: (0, 0)),   # h1 (post-ReLU)
                pl.BlockSpec((D_H1P, D_H2), lambda i: (0, 0)),   # W2^T
                pl.BlockSpec((1, D_H2),     lambda i: (0, 0)),   # b2
                pl.BlockSpec((D_H2, D_OUT), lambda i: (0, 0)),   # W3^T
                pl.BlockSpec((1, D_OUT),    lambda i: (0, 0)),   # b3
            ],
            out_specs=pl.BlockSpec((B, D_OUT), lambda i: (0, 0)),
        ),
        compiler_params=pltpu.CompilerParams(
            dimension_semantics=("arbitrary",),
        ),
    )(h1, w2p, b2, w3, b3)
    return out


def init_params(key):
    """Deterministic synthetic params, PyTorch-Linear-style U(-1/sqrt(fan_in), +).

    Padding is done ONCE here (hoisted out of the per-call forward path):
      * W1 rows padded K: 129600 -> 131072 with zeros,
      * hidden dim 900 -> 1024 padded with zeros in W1 cols / b1 / W2 rows.
    All pads are zero, so the padded network computes exactly the same logits
    as the original 129600 -> 900 -> 64 -> 16 module.
    """
    ks = jax.random.split(key, 6)

    def uni(k, shape, fan_in):
        bound = 1.0 / jnp.sqrt(jnp.float32(fan_in))
        return jax.random.uniform(k, shape, jnp.float32, -bound, bound)

    # Stored as [in, out] (i.e. W^T) so the kernel does x @ W^T directly.
    w1t = uni(ks[0], (D_IN, D_H1), D_IN)
    b1  = uni(ks[1], (1, D_H1),    D_IN)
    w2t = uni(ks[2], (D_H1, D_H2), D_H1)
    b2  = uni(ks[3], (1, D_H2),    D_H1)
    w3t = uni(ks[4], (D_H2, D_OUT), D_H2)
    b3  = uni(ks[5], (1, D_OUT),    D_H2)

    w1p = jnp.pad(w1t, ((0, K_PAD - D_IN), (0, D_H1P - D_H1)))
    b1p = jnp.pad(b1,  ((0, 0),            (0, D_H1P - D_H1)))
    w2p = jnp.pad(w2t, ((0, D_H1P - D_H1), (0, 0)))
    return w1p, b1p, w2p, b2, w3t, b3


def reference_forward(x, w1p, b1p, w2p, b2, w3, b3):
    """Plain-JAX reference on the (zero-)padded params; numerically identical
    to the original unpadded module."""
    xf = x.reshape(x.shape[0], -1)
    xf = jnp.pad(xf, ((0, 0), (0, K_PAD - D_IN)))
    h1 = jnp.maximum(xf @ w1p + b1p, 0.0)
    h2 = jnp.maximum(h1 @ w2p + b2, 0.0)
    return h2 @ w3 + b3


if __name__ == "__main__":
    key = jax.random.PRNGKey(0)
    kx, kp = jax.random.split(key)

    batch = 2
    x = jax.random.normal(kx, (batch, 1, 360, 360), jnp.float32)  # NCHW
    params = init_params(kp)
    params = jax.tree_util.tree_map(jax.block_until_ready, params)

    out = network_forward(x, *params)
    out = jax.block_until_ready(out)

    ref = reference_forward(x, *params)
    assert out.shape == (batch, D_OUT), out.shape
    max_err = float(jnp.max(jnp.abs(out - ref)))
    assert jnp.allclose(out, ref, atol=2e-3, rtol=2e-3), max_err

    print("KERNEL_OK")
</pallas_src>

<mosaic_0001>
module attributes {stable_mosaic.version = 11 : i64} {
  func.func @_linear1_kernel(%arg0: i32, %arg1: i32, %arg2: memref<2x8192xf32, #tpu.memory_space<vmem>>, %arg3: memref<8192x512xf32, #tpu.memory_space<vmem>>, %arg4: memref<1x512xf32, #tpu.memory_space<vmem>>, %arg5: memref<2x512xf32, #tpu.memory_space<vmem>>, %arg6: memref<2x512xf32, #tpu.memory_space<vmem>>) attributes {dimension_semantics = [#tpu.dimension_semantics<parallel>, #tpu.dimension_semantics<arbitrary>], iteration_bounds = array<i64: 2, 16>, scalar_prefetch = 0 : i64, scratch_operands = 1 : i64, tpu.core_type = #tpu.core_type<tc>, window_params = [{transform_indices = @transform_0, window_bounds = array<i64: 2, 8192>}, {transform_indices = @transform_1, window_bounds = array<i64: 8192, 512>}, {transform_indices = @transform_2, window_bounds = array<i64: 1, 512>}, {transform_indices = @transform_3, window_bounds = array<i64: 2, 512>}]} {
    %c0_i32 = arith.constant 0 : i32
    %0 = arith.cmpi eq, %arg1, %c0_i32 : i32
    %1 = arith.extui %0 : i1 to i32
    %c0_i32_0 = arith.constant 0 : i32
    %2 = arith.cmpi ne, %1, %c0_i32_0 : i32
    scf.if %2 {
      %cst_9 = arith.constant 0.000000e+00 : f32
      %12 = vector.broadcast %cst_9 : f32 to vector<2x512xf32>
      %c0_10 = arith.constant 0 : index
      %c0_11 = arith.constant 0 : index
      %13 = vector.load %arg6[%c0_10, %c0_11] : memref<2x512xf32, #tpu.memory_space<vmem>>, vector<2x512xf32>
      tpu.vector_store %arg6[%c0_10, %c0_11], %12 {strides = array<i32>} : memref<2x512xf32, #tpu.memory_space<vmem>>, vector<2x512xf32>,
    } else {
    }
    %c0 = arith.constant 0 : index
    %c0_1 = arith.constant 0 : index
    %3 = vector.load %arg6[%c0, %c0_1] : memref<2x512xf32, #tpu.memory_space<vmem>>, vector<2x512xf32>
    %c0_2 = arith.constant 0 : index
    %c0_3 = arith.constant 0 : index
    %4 = vector.load %arg2[%c0_2, %c0_3] : memref<2x8192xf32, #tpu.memory_space<vmem>>, vector<2x8192xf32>
    %c0_4 = arith.constant 0 : index
    %c0_5 = arith.constant 0 : index
    %5 = vector.load %arg3[%c0_4, %c0_5] : memref<8192x512xf32, #tpu.memory_space<vmem>>, vector<8192x512xf32>
    %cst = arith.constant dense<0.000000e+00> : vector<2x512xf32>
    %6 = tpu.matmul %4, %5, %cst {dimension_numbers = #tpu.dot_dimension_numbers<[1], [0], [0], [1], [0, 0, 1, 1], [], []>} : vector<2x8192xf32>, vector<8192x512xf32>, vector<2x512xf32> -> vector<2x512xf32>
    %7 = arith.addf %3, %6 : vector<2x512xf32>
    %c0_6 = arith.constant 0 : index
    %c0_7 = arith.constant 0 : index
    %8 = vector.load %arg6[%c0_6, %c0_7] : memref<2x512xf32, #tpu.memory_space<vmem>>, vector<2x512xf32>
    tpu.vector_store %arg6[%c0_6, %c0_7], %7 {strides = array<i32>} : memref<2x512xf32, #tpu.memory_space<vmem>>, vector<2x512xf32>,
    %c15_i32 = arith.constant 15 : i32
    %9 = arith.cmpi eq, %arg1, %c15_i32 : i32
    %10 = arith.extui %9 : i1 to i32
    %c0_i32_8 = arith.constant 0 : i32
    %11 = arith.cmpi ne, %10, %c0_i32_8 : i32
    scf.if %11 {
      %c0_9 = arith.constant 0 : index
      %c0_10 = arith.constant 0 : index
      %12 = vector.load %arg6[%c0_9, %c0_10] : memref<2x512xf32, #tpu.memory_space<vmem>>, vector<2x512xf32>
      %c0_11 = arith.constant 0 : index
      %c0_12 = arith.constant 0 : index
      %13 = vector.load %arg4[%c0_11, %c0_12] : memref<1x512xf32, #tpu.memory_space<vmem>>, vector<1x512xf32>
      %14 = vector.broadcast %13 : vector<1x512xf32> to vector<2x512xf32>
      %15 = arith.addf %12, %14 : vector<2x512xf32>
      %cst_13 = arith.constant 0.000000e+00 : f32
      %16 = vector.broadcast %cst_13 : f32 to vector<2x512xf32>
      %17 = arith.maximumf %15, %16 : vector<2x512xf32>
      %c0_14 = arith.constant 0 : index
      %c0_15 = arith.constant 0 : index
      %18 = vector.load %arg5[%c0_14, %c0_15] : memref<2x512xf32, #tpu.memory_space<vmem>>, vector<2x512xf32>
      tpu.vector_store %arg5[%c0_14, %c0_15], %17 {strides = array<i32>} : memref<2x512xf32, #tpu.memory_space<vmem>>, vector<2x512xf32>,
    } else {
    }
    return
  }
  func.func @transform_0(%arg0: i32, %arg1: i32) -> (i32, i32) {
    %c0_i32 = arith.constant 0 : i32
    %c0_i32_0 = arith.constant 0 : i32
    return %c0_i32, %arg1 : i32, i32
  }
  func.func @transform_1(%arg0: i32, %arg1: i32) -> (i32, i32) {
    %c0_i32 = arith.constant 0 : i32
    return %arg1, %arg0 : i32, i32
  }
  func.func @transform_2(%arg0: i32, %arg1: i32) -> (i32, i32) {
    %c0_i32 = arith.constant 0 : i32
    %c0_i32_0 = arith.constant 0 : i32
    return %c0_i32, %arg0 : i32, i32
  }
  func.func @transform_3(%arg0: i32, %arg1: i32) -> (i32, i32) {
    %c0_i32 = arith.constant 0 : i32
    %c0_i32_0 = arith.constant 0 : i32
    return %c0_i32, %arg0 : i32, i32
  }
}

module attributes {stable_mosaic.version = 11 : i64} {
  func.func @_tail_kernel(%arg0: i32, %arg1: memref<2x1024xf32, #tpu.memory_space<vmem>>, %arg2: memref<1024x64xf32, #tpu.memory_space<vmem>>, %arg3: memref<1x64xf32, #tpu.memory_space<vmem>>, %arg4: memref<64x16xf32, #tpu.memory_space<vmem>>, %arg5: memref<1x16xf32, #tpu.memory_space<vmem>>, %arg6: memref<2x16xf32, #tpu.memory_space<vmem>>) attributes {dimension_semantics = [#tpu.dimension_semantics<arbitrary>], iteration_bounds = array<i64: 1>, scalar_prefetch = 0 : i64, scratch_operands = 0 : i64, tpu.core_type = #tpu.core_type<tc>, window_params = [{pipeline_mode = #tpu.pipeline_mode<synchronous>, transform_indices = @transform_0, window_bounds = array<i64: 2, 1024>}, {pipeline_mode = #tpu.pipeline_mode<synchronous>, transform_indices = @transform_1, window_bounds = array<i64: 1024, 64>}, {pipeline_mode = #tpu.pipeline_mode<synchronous>, transform_indices = @transform_2, window_bounds = array<i64: 1, 64>}, {pipeline_mode = #tpu.pipeline_mode<synchronous>, transform_indices = @transform_3, window_bounds = array<i64: 64, 16>}, {pipeline_mode = #tpu.pipeline_mode<synchronous>, transform_indices = @transform_4, window_bounds = array<i64: 1, 16>}, {pipeline_mode = #tpu.pipeline_mode<synchronous>, transform_indices = @transform_5, window_bounds = array<i64: 2, 16>}]} {
    %c0 = arith.constant 0 : index
    %c0_0 = arith.constant 0 : index
    %0 = vector.load %arg1[%c0, %c0_0] : memref<2x1024xf32, #tpu.memory_space<vmem>>, vector<2x1024xf32>
    %c0_1 = arith.constant 0 : index
    %c0_2 = arith.constant 0 : index
    %1 = vector.load %arg2[%c0_1, %c0_2] : memref<1024x64xf32, #tpu.memory_space<vmem>>, vector<1024x64xf32>
    %cst = arith.constant dense<0.000000e+00> : vector<2x64xf32>
    %2 = tpu.matmul %0, %1, %cst {dimension_numbers = #tpu.dot_dimension_numbers<[1], [0], [0], [1], [0, 0, 1, 1], [], []>} : vector<2x1024xf32>, vector<1024x64xf32>, vector<2x64xf32> -> vector<2x64xf32>
    %c0_3 = arith.constant 0 : index
    %c0_4 = arith.constant 0 : index
    %3 = vector.load %arg3[%c0_3, %c0_4] : memref<1x64xf32, #tpu.memory_space<vmem>>, vector<1x64xf32>
    %4 = vector.broadcast %3 : vector<1x64xf32> to vector<2x64xf32>
    %5 = arith.addf %2, %4 : vector<2x64xf32>
    %cst_5 = arith.constant 0.000000e+00 : f32
    %6 = vector.broadcast %cst_5 : f32 to vector<2x64xf32>
    %7 = arith.maximumf %5, %6 : vector<2x64xf32>
    %c0_6 = arith.constant 0 : index
    %c0_7 = arith.constant 0 : index
    %8 = vector.load %arg4[%c0_6, %c0_7] : memref<64x16xf32, #tpu.memory_space<vmem>>, vector<64x16xf32>
    %cst_8 = arith.constant dense<0.000000e+00> : vector<2x16xf32>
    %9 = tpu.matmul %7, %8, %cst_8 {dimension_numbers = #tpu.dot_dimension_numbers<[1], [0], [0], [1], [0, 0, 1, 1], [], []>} : vector<2x64xf32>, vector<64x16xf32>, vector<2x16xf32> -> vector<2x16xf32>
    %c0_9 = arith.constant 0 : index
    %c0_10 = arith.constant 0 : index
    %10 = vector.load %arg5[%c0_9, %c0_10] : memref<1x16xf32, #tpu.memory_space<vmem>>, vector<1x16xf32>
    %11 = vector.broadcast %10 : vector<1x16xf32> to vector<2x16xf32>
    %12 = arith.addf %9, %11 : vector<2x16xf32>
    %c0_11 = arith.constant 0 : index
    %c0_12 = arith.constant 0 : index
    %13 = vector.load %arg6[%c0_11, %c0_12] : memref<2x16xf32, #tpu.memory_space<vmem>>, vector<2x16xf32>
    tpu.vector_store %arg6[%c0_11, %c0_12], %12 {strides = array<i32>} : memref<2x16xf32, #tpu.memory_space<vmem>>, vector<2x16xf32>,
    return
  }
  func.func @transform_0(%arg0: i32) -> (i32, i32) {
    %c0_i32 = arith.constant 0 : i32
    %c0_i32_0 = arith.constant 0 : i32
    %c0_i32_1 = arith.constant 0 : i32
    return %c0_i32, %c0_i32_0 : i32, i32
  }
  func.func @transform_1(%arg0: i32) -> (i32, i32) {
    %c0_i32 = arith.constant 0 : i32
    %c0_i32_0 = arith.constant 0 : i32
    %c0_i32_1 = arith.constant 0 : i32
    return %c0_i32, %c0_i32_0 : i32, i32
  }
  func.func @transform_2(%arg0: i32) -> (i32, i32) {
    %c0_i32 = arith.constant 0 : i32
    %c0_i32_0 = arith.constant 0 : i32
    %c0_i32_1 = arith.constant 0 : i32
    return %c0_i32, %c0_i32_0 : i32, i32
  }
  func.func @transform_3(%arg0: i32) -> (i32, i32) {
    %c0_i32 = arith.constant 0 : i32
    %c0_i32_0 = arith.constant 0 : i32
    %c0_i32_1 = arith.constant 0 : i32
    return %c0_i32, %c0_i32_0 : i32, i32
  }
  func.func @transform_4(%arg0: i32) -> (i32, i32) {
    %c0_i32 = arith.constant 0 : i32
    %c0_i32_0 = arith.constant 0 : i32
    %c0_i32_1 = arith.constant 0 : i32
    return %c0_i32, %c0_i32_0 : i32, i32
  }
  func.func @transform_5(%arg0: i32) -> (i32, i32) {
    %c0_i32 = arith.constant 0 : i32
    %c0_i32_0 = arith.constant 0 : i32
    %c0_i32_1 = arith.constant 0 : i32
    return %c0_i32, %c0_i32_0 : i32, i32
  }
}

</mosaic_0001>

<llo_original>
// kernel: network_forward.3
$region0: #{network_forward.3}
  #allocation0 [shape = 'u32[]', space=smem, size = 0x4, offset = 0x4, fixed_abs, tag = 'smem constant byte address 0x4 - core index']
  #allocation1 [shape = 'u32[144,128]{1,0:T(1,128)}', space=vmem, size = 0x12000, scoped, tag = 'internal scratch']
  %s0 = inlined_call_operand.vmem [shape: f32[2,1024], index: 0, kind: input, shape index: {}]
  %s1 = inlined_call_operand.vmem [shape: f32[1024,64], index: 1, kind: input, shape index: {}]
  %s2 = inlined_call_operand.vmem [shape: f32[1,64], index: 2, kind: input, shape index: {}]
  %s3 = inlined_call_operand.vmem [shape: f32[64,16], index: 3, kind: input, shape index: {}]
  %s4 = inlined_call_operand.vmem [shape: f32[1,16], index: 4, kind: input, shape index: {}]
  %s5 = inlined_call_operand.hbm [shape: f32[2,16], index: 5, kind: output, shape index: {}]
  %s6 = sld [smem:[#allocation0]]
  $region30: #{network_forward.3} parent=0
    _
  %s8 = ssub.s32 1, %s6
  %s9 = scalar_select 0, %s8, %s6
  $region1: #{network_forward.3} parent=0
    #allocation2 [shape = 'u8[1024]{0}', space=vmem, size = 0x400, scoped, tag = 'output window, operand 0, single buffered']
    #allocation3 [shape = 's32[1]{0}', space=sflag, size = 0x4, scoped, tag = 'scoped memory for network_forward.3']
    %10 = vsyncpa [#allocation3], 0
    // Predicated region
    $region2: #{network_forward.3} parent=1 // pred_check
      _
    $region3: #{network_forward.3} parent=1 // pred_check_branch
      %12 = sbr.rel (0) target = $region5
    $region4: #{network_forward.3} parent=1 // pred_region
      _
    $region5: #{network_forward.3} parent=1 // pred_fallthru
      _
    // Predicated region
    $region6: #{network_forward.3} parent=1 // pred_check
      _
    $region7: #{network_forward.3} parent=1 // pred_check_branch
      %14 = sbr.rel (0) target = $region9
    $region8: #{network_forward.3} parent=1 // pred_region
      _
    $region9: #{network_forward.3} parent=1 // pred_fallthru
      _
    // Predicated region
    $region10: #{network_forward.3} parent=1 // pred_check
      _
    $region11: #{network_forward.3} parent=1 // pred_check_branch
      %16 = sbr.rel (0) target = $region13
    $region12: #{network_forward.3} parent=1 // pred_region
      _
    $region13: #{network_forward.3} parent=1 // pred_fallthru
      _
    // Predicated region
    $region14: #{network_forward.3} parent=1 // pred_check
      _
    $region15: #{network_forward.3} parent=1 // pred_check_branch
      %18 = sbr.rel (0) target = $region17
    $region16: #{network_forward.3} parent=1 // pred_region
      _
    $region17: #{network_forward.3} parent=1 // pred_fallthru
      _
    // Predicated region
    $region18: #{network_forward.3} parent=1 // pred_check
      _
    $region19: #{network_forward.3} parent=1 // pred_check_branch
      %20 = sbr.rel (0) target = $region21
    $region20: #{network_forward.3} parent=1 // pred_region
      _
    $region21: #{network_forward.3} parent=1 // pred_fallthru
      _
    %v21 = vld [vmem:[%s0] sm:$0xff]
    %v22 = vld [vmem:[%s0 + $0x8] sm:$0xff]
    %v23 = vld [vmem:[%s1] sm:$0xff]
    %v24 = vld [vmem:[%s1 + $0x8] sm:$0xff]
    %v25 = vld [vmem:[%s1 + $0x10] sm:$0xff]
    %v26 = vld [vmem:[%s1 + $0x18] sm:$0xff]
    %v27 = vld [vmem:[%s1 + $0x20] sm:$0xff]
    %v28 = vld [vmem:[%s1 + $0x28] sm:$0xff]
    %v29 = vld [vmem:[%s1 + $0x30] sm:$0xff]
    %v30 = vld [vmem:[%s1 + $0x38] sm:$0xff]
    %v31 = vld [vmem:[%s1 + $0x40] sm:$0xff]
    %v32 = vld [vmem:[%s1 + $0x48] sm:$0xff]
    %v33 = vld [vmem:[%s1 + $0x50] sm:$0xff]
    %v34 = vld [vmem:[%s1 + $0x58] sm:$0xff]
    %v35 = vld [vmem:[%s1 + $0x60] sm:$0xff]
    %v36 = vld [vmem:[%s1 + $0x68] sm:$0xff]
    %v37 = vld [vmem:[%s1 + $0x70] sm:$0xff]
    %v38 = vld [vmem:[%s1 + $0x78] sm:$0xff]
    %v39 = vld [vmem:[%s1 + $0x80] sm:$0xff]
    %v40 = vld [vmem:[%s1 + $0x88] sm:$0xff]
    %v41 = vld [vmem:[%s1 + $0x90] sm:$0xff]
    %v42 = vld [vmem:[%s1 + $0x98] sm:$0xff]
    %v43 = vld [vmem:[%s1 + $0xa0] sm:$0xff]
    %v44 = vld [vmem:[%s1 + $0xa8] sm:$0xff]
    %v45 = vld [vmem:[%s1 + $0xb0] sm:$0xff]
    %v46 = vld [vmem:[%s1 + $0xb8] sm:$0xff]
    %v47 = vld [vmem:[%s1 + $0xc0] sm:$0xff]
    %v48 = vld [vmem:[%s1 + $0xc8] sm:$0xff]
    %v49 = vld [vmem:[%s1 + $0xd0] sm:$0xff]
    %v50 = vld [vmem:[%s1 + $0xd8] sm:$0xff]
    %v51 = vld [vmem:[%s1 + $0xe0] sm:$0xff]
    %v52 = vld [vmem:[%s1 + $0xe8] sm:$0xff]
    %v53 = vld [vmem:[%s1 + $0xf0] sm:$0xff]
    %v54 = vld [vmem:[%s1 + $0xf8] sm:$0xff]
    %v55 = vld [vmem:[%s1 + $0x100] sm:$0xff]
    %v56 = vld [vmem:[%s1 + $0x108] sm:$0xff]
    %v57 = vld [vmem:[%s1 + $0x110] sm:$0xff]
    %v58 = vld [vmem:[%s1 + $0x118] sm:$0xff]
    %v59 = vld [vmem:[%s1 + $0x120] sm:$0xff]
    %v60 = vld [vmem:[%s1 + $0x128] sm:$0xff]
    %v61 = vld [vmem:[%s1 + $0x130] sm:$0xff]
    %v62 = vld [vmem:[%s1 + $0x138] sm:$0xff]
    %v63 = vld [vmem:[%s1 + $0x140] sm:$0xff]
    %v64 = vld [vmem:[%s1 + $0x148] sm:$0xff]
    %v65 = vld [vmem:[%s1 + $0x150] sm:$0xff]
    %v66 = vld [vmem:[%s1 + $0x158] sm:$0xff]
    %v67 = vld [vmem:[%s1 + $0x160] sm:$0xff]
    %v68 = vld [vmem:[%s1 + $0x168] sm:$0xff]
    %v69 = vld [vmem:[%s1 + $0x170] sm:$0xff]
    %v70 = vld [vmem:[%s1 + $0x178] sm:$0xff]
    %v71 = vld [vmem:[%s1 + $0x180] sm:$0xff]
    %v72 = vld [vmem:[%s1 + $0x188] sm:$0xff]
    %v73 = vld [vmem:[%s1 + $0x190] sm:$0xff]
    %v74 = vld [vmem:[%s1 + $0x198] sm:$0xff]
    %v75 = vld [vmem:[%s1 + $0x1a0] sm:$0xff]
    %v76 = vld [vmem:[%s1 + $0x1a8] sm:$0xff]
    %v77 = vld [vmem:[%s1 + $0x1b0] sm:$0xff]
    %v78 = vld [vmem:[%s1 + $0x1b8] sm:$0xff]
    %v79 = vld [vmem:[%s1 + $0x1c0] sm:$0xff]
    %v80 = vld [vmem:[%s1 + $0x1c8] sm:$0xff]
    %v81 = vld [vmem:[%s1 + $0x1d0] sm:$0xff]
    %v82 = vld [vmem:[%s1 + $0x1d8] sm:$0xff]
    %v83 = vld [vmem:[%s1 + $0x1e0] sm:$0xff]
    %v84 = vld [vmem:[%s1 + $0x1e8] sm:$0xff]
    %v85 = vld [vmem:[%s1 + $0x1f0] sm:$0xff]
    %v86 = vld [vmem:[%s1 + $0x1f8] sm:$0xff]
    %v87 = vld [vmem:[%s1 + $0x200] sm:$0xff]
    %v88 = vld [vmem:[%s1 + $0x208] sm:$0xff]
    %v89 = vld [vmem:[%s1 + $0x210] sm:$0xff]
    %v90 = vld [vmem:[%s1 + $0x218] sm:$0xff]
    %v91 = vld [vmem:[%s1 + $0x220] sm:$0xff]
    %v92 = vld [vmem:[%s1 + $0x228] sm:$0xff]
    %v93 = vld [vmem:[%s1 + $0x230] sm:$0xff]
    %v94 = vld [vmem:[%s1 + $0x238] sm:$0xff]
    %v95 = vld [vmem:[%s1 + $0x240] sm:$0xff]
    %v96 = vld [vmem:[%s1 + $0x248] sm:$0xff]
    %v97 = vld [vmem:[%s1 + $0x250] sm:$0xff]
    %v98 = vld [vmem:[%s1 + $0x258] sm:$0xff]
    %v99 = vld [vmem:[%s1 + $0x260] sm:$0xff]
    %v100 = vld [vmem:[%s1 + $0x268] sm:$0xff]
    %v101 = vld [vmem:[%s1 + $0x270] sm:$0xff]
    %v102 = vld [vmem:[%s1 + $0x278] sm:$0xff]
    %v103 = vld [vmem:[%s1 + $0x280] sm:$0xff]
    %v104 = vld [vmem:[%s1 + $0x288] sm:$0xff]
    %v105 = vld [vmem:[%s1 + $0x290] sm:$0xff]
    %v106 = vld [vmem:[%s1 + $0x298] sm:$0xff]
    %v107 = vld [vmem:[%s1 + $0x2a0] sm:$0xff]
    %v108 = vld [vmem:[%s1 + $0x2a8] sm:$0xff]
    %v109 = vld [vmem:[%s1 + $0x2b0] sm:$0xff]
    %v110 = vld [vmem:[%s1 + $0x2b8] sm:$0xff]
    %v111 = vld [vmem:[%s1 + $0x2c0] sm:$0xff]
    %v112 = vld [vmem:[%s1 + $0x2c8] sm:$0xff]
    %v113 = vld [vmem:[%s1 + $0x2d0] sm:$0xff]
    %v114 = vld [vmem:[%s1 + $0x2d8] sm:$0xff]
    %v115 = vld [vmem:[%s1 + $0x2e0] sm:$0xff]
    %v116 = vld [vmem:[%s1 + $0x2e8] sm:$0xff]
    %v117 = vld [vmem:[%s1 + $0x2f0] sm:$0xff]
    %v118 = vld [vmem:[%s1 + $0x2f8] sm:$0xff]
    %v119 = vld [vmem:[%s1 + $0x300] sm:$0xff]
    %v120 = vld [vmem:[%s1 + $0x308] sm:$0xff]
    %v121 = vld [vmem:[%s1 + $0x310] sm:$0xff]
    %v122 = vld [vmem:[%s1 + $0x318] sm:$0xff]
    %v123 = vld [vmem:[%s1 + $0x320] sm:$0xff]
    %v124 = vld [vmem:[%s1 + $0x328] sm:$0xff]
    %v125 = vld [vmem:[%s1 + $0x330] sm:$0xff]
    %v126 = vld [vmem:[%s1 + $0x338] sm:$0xff]
    %v127 = vld [vmem:[%s1 + $0x340] sm:$0xff]
    %v128 = vld [vmem:[%s1 + $0x348] sm:$0xff]
    %v129 = vld [vmem:[%s1 + $0x350] sm:$0xff]
    %v130 = vld [vmem:[%s1 + $0x358] sm:$0xff]
    %v131 = vld [vmem:[%s1 + $0x360] sm:$0xff]
    %v132 = vld [vmem:[%s1 + $0x368] sm:$0xff]
    %v133 = vld [vmem:[%s1 + $0x370] sm:$0xff]
    %v134 = vld [vmem:[%s1 + $0x378] sm:$0xff]
    %v135 = vld [vmem:[%s1 + $0x380] sm:$0xff]
    %v136 = vld [vmem:[%s1 + $0x388] sm:$0xff]
    %v137 = vld [vmem:[%s1 + $0x390] sm:$0xff]
    %v138 = vld [vmem:[%s1 + $0x398] sm:$0xff]
    %v139 = vld [vmem:[%s1 + $0x3a0] sm:$0xff]
    %v140 = vld [vmem:[%s1 + $0x3a8] sm:$0xff]
    %v141 = vld [vmem:[%s1 + $0x3b0] sm:$0xff]
    %v142 = vld [vmem:[%s1 + $0x3b8] sm:$0xff]
    %v143 = vld [vmem:[%s1 + $0x3c0] sm:$0xff]
    %v144 = vld [vmem:[%s1 + $0x3c8] sm:$0xff]
    %v145 = vld [vmem:[%s1 + $0x3d0] sm:$0xff]
    %v146 = vld [vmem:[%s1 + $0x3d8] sm:$0xff]
    %v147 = vld [vmem:[%s1 + $0x3e0] sm:$0xff]
    %v148 = vld [vmem:[%s1 + $0x3e8] sm:$0xff]
    %v149 = vld [vmem:[%s1 + $0x3f0] sm:$0xff]
    %v150 = vld [vmem:[%s1 + $0x3f8] sm:$0xff]
    %v151 = vld [vmem:[%s2] sm:$0x1]
    %v153 = vlaneseq
    %v154 = vshrl.u32 %v153, 7
    %v155 = vsub.s32 0, %v154
    %v156 = vrot.slane %v151, %v155
    %v160 = vcombine.high %v21, %v21
    %v162 = vunpack.c.l.s4 1983009808
    %v163 = vunpack.c.0.s8 %v162
    %v164 = vlaneseq
    %v165 = vshrl.u32 %v164, 7
    %v166 = vsub.s32 %v163, %v165
    %v167 = vrot.slane %v21, %v166
    %v169 = vunpack.c.l.s4 1983009808
    %v170 = vunpack.c.0.s8 %v169
    %v171 = vlaneseq
    %v172 = vshrl.u32 %v171, 7
    %v173 = vsub.s32 %v170, %v172
    %v174 = vrot.slane %v160, %v173
    %v175 = vcombine.high %v167, %v167
    %v176 = vcombine.high %v174, %v174
    %v177 = vcombine.high %v22, %v22
    %v179 = vunpack.c.l.s4 1983009808
    %v180 = vunpack.c.0.s8 %v179
    %v181 = vlaneseq
    %v182 = vshrl.u32 %v181, 7
    %v183 = vsub.s32 %v180, %v182
    %v184 = vrot.slane %v22, %v183
    %v186 = vunpack.c.l.s4 1983009808
    %v187 = vunpack.c.0.s8 %v186
    %v188 = vlaneseq
    %v189 = vshrl.u32 %v188, 7
    %v190 = vsub.s32 %v187, %v189
    %v191 = vrot.slane %v177, %v190
    %v192 = vcombine.high %v184, %v184
    %v193 = vcombine.high %v191, %v191
    %202 = vmatprep.subr.mxu0 0.0
    %203 = vmatpush1.msra.mxu0 %v23
    %204 = vmatprep.subr.mxu0 0.0
    %205 = vmatpush1.msra.mxu0 %v24
    %206 = vmatprep.subr.mxu0 0.0
    %207 = vmatpush1.msra.mxu0 %v25
    %208 = vmatprep.subr.mxu0 0.0
    %209 = vmatpush1.msra.mxu0 %v26
    %210 = vmatprep.subr.mxu0 0.0
    %211 = vmatpush1.msra.mxu0 %v27
    %212 = vmatprep.subr.mxu0 0.0
    %213 = vmatpush1.msra.mxu0 %v28
    %214 = vmatprep.subr.mxu0 0.0
    %215 = vmatpush1.msra.mxu0 %v29
    %216 = vmatprep.subr.mxu0 0.0
    %217 = vmatpush1.msra.mxu0 %v30
    %218 = vmatprep.subr.mxu0 0.0
    %219 = vmatpush1.msra.mxu0 %v31
    %220 = vmatprep.subr.mxu0 0.0
    %221 = vmatpush1.msra.mxu0 %v32
    %222 = vmatprep.subr.mxu0 0.0
    %223 = vmatpush1.msra.mxu0 %v33
    %224 = vmatprep.subr.mxu0 0.0
    %225 = vmatpush1.msra.mxu0 %v34
    %226 = vmatprep.subr.mxu0 0.0
    %227 = vmatpush1.msra.mxu0 %v35
    %228 = vmatprep.subr.mxu0 0.0
    %229 = vmatpush1.msra.mxu0 %v36
    %230 = vmatprep.subr.mxu0 0.0
    %231 = vmatpush1.msra.mxu0 %v37
    %232 = vmatprep.subr.mxu0 0.0
    %233 = vmatpush1.msra.mxu0 %v38
    %234 = vmatprep.subr.mxu0 0.0
    %235 = vmatpush1.msra.mxu0 %v39
    %236 = vmatprep.subr.mxu0 0.0
    %237 = vmatpush1.msra.mxu0 %v40
    %238 = vmatprep.subr.mxu0 0.0
    %239 = vmatpush1.msra.mxu0 %v41
    %240 = vmatprep.subr.mxu0 0.0
    %241 = vmatpush1.msra.mxu0 %v42
    %242 = vmatprep.subr.mxu0 0.0
    %243 = vmatpush1.msra.mxu0 %v43
    %244 = vmatprep.subr.mxu0 0.0
    %245 = vmatpush1.msra.mxu0 %v44
    %246 = vmatprep.subr.mxu0 0.0
    %247 = vmatpush1.msra.mxu0 %v45
    %248 = vmatprep.subr.mxu0 0.0
    %249 = vmatpush1.msra.mxu0 %v46
    %250 = vmatprep.subr.mxu0 0.0
    %251 = vmatpush1.msra.mxu0 %v47
    %252 = vmatprep.subr.mxu0 0.0
    %253 = vmatpush1.msra.mxu0 %v48
    %254 = vmatprep.subr.mxu0 0.0
    %255 = vmatpush1.msra.mxu0 %v49
    %256 = vmatprep.subr.mxu0 0.0
    %257 = vmatpush1.msra.mxu0 %v50
    %258 = vmatprep.subr.mxu0 0.0
    %259 = vmatpush1.msra.mxu0 %v51
    %260 = vmatprep.subr.mxu0 0.0
    %261 = vmatpush1.msra.mxu0 %v52
    %262 = vmatprep.subr.mxu0 0.0
    %263 = vmatpush1.msra.mxu0 %v53
    %264 = vmatprep.subr.mxu0 0.0
    %265 = vmatpush1.msra.mxu0 %v54
    %266 = vmatprep.mubr.f32.mxu0 %v175
    %267 = vmatmul.mubr.f32.gmra.mrb[0].mxu0 %v167
    %v268 = vpop.f32.mrb[0].mxu0
    %v269 = vadd.f32 %v156, %v268
    %v270 = vpop.f32.mrb[0].mxu0
    %271 = vdwg.mxu0
    %272 = vmatprep.subr.mxu0 0.0
    %273 = vmatpush1.msra.mxu0 %v55
    %274 = vmatprep.subr.mxu0 0.0
    %275 = vmatpush1.msra.mxu0 %v56
    %276 = vmatprep.subr.mxu0 0.0
    %277 = vmatpush1.msra.mxu0 %v57
    %278 = vmatprep.subr.mxu0 0.0
    %279 = vmatpush1.msra.mxu0 %v58
    %280 = vmatprep.subr.mxu0 0.0
    %281 = vmatpush1.msra.mxu0 %v59
    %282 = vmatprep.subr.mxu0 0.0
    %283 = vmatpush1.msra.mxu0 %v60
    %284 = vmatprep.subr.mxu0 0.0
    %285 = vmatpush1.msra.mxu0 %v61
    %286 = vmatprep.subr.mxu0 0.0
    %287 = vmatpush1.msra.mxu0 %v62
    %288 = vmatprep.subr.mxu0 0.0
    %289 = vmatpush1.msra.mxu0 %v63
    %290 = vmatprep.subr.mxu0 0.0
    %291 = vmatpush1.msra.mxu0 %v64
    %292 = vmatprep.subr.mxu0 0.0
    %293 = vmatpush1.msra.mxu0 %v65
    %294 = vmatprep.subr.mxu0 0.0
    %295 = vmatpush1.msra.mxu0 %v66
    %296 = vmatprep.subr.mxu0 0.0
    %297 = vmatpush1.msra.mxu0 %v67
    %298 = vmatprep.subr.mxu0 0.0
    %299 = vmatpush1.msra.mxu0 %v68
    %300 = vmatprep.subr.mxu0 0.0
    %301 = vmatpush1.msra.mxu0 %v69
    %302 = vmatprep.subr.mxu0 0.0
    %303 = vmatpush1.msra.mxu0 %v70
    %304 = vmatprep.subr.mxu0 0.0
    %305 = vmatpush1.msra.mxu0 %v71
    %306 = vmatprep.subr.mxu0 0.0
    %307 = vmatpush1.msra.mxu0 %v72
    %308 = vmatprep.subr.mxu0 0.0
    %309 = vmatpush1.msra.mxu0 %v73
    %310 = vmatprep.subr.mxu0 0.0
    %311 = vmatpush1.msra.mxu0 %v74
    %312 = vmatprep.subr.mxu0 0.0
    %313 = vmatpush1.msra.mxu0 %v75
    %314 = vmatprep.subr.mxu0 0.0
    %315 = vmatpush1.msra.mxu0 %v76
    %316 = vmatprep.subr.mxu0 0.0
    %317 = vmatpush1.msra.mxu0 %v77
    %318 = vmatprep.subr.mxu0 0.0
    %319 = vmatpush1.msra.mxu0 %v78
    %320 = vmatprep.subr.mxu0 0.0
    %321 = vmatpush1.msra.mxu0 %v79
    %322 = vmatprep.subr.mxu0 0.0
    %323 = vmatpush1.msra.mxu0 %v80
    %324 = vmatprep.subr.mxu0 0.0
    %325 = vmatpush1.msra.mxu0 %v81
    %326 = vmatprep.subr.mxu0 0.0
    %327 = vmatpush1.msra.mxu0 %v82
    %328 = vmatprep.subr.mxu0 0.0
    %329 = vmatpush1.msra.mxu0 %v83
    %330 = vmatprep.subr.mxu0 0.0
    %331 = vmatpush1.msra.mxu0 %v84
    %332 = vmatprep.subr.mxu0 0.0
    %333 = vmatpush1.msra.mxu0 %v85
    %334 = vmatprep.subr.mxu0 0.0
    %335 = vmatpush1.msra.mxu0 %v86
    %336 = vmatprep.mubr.f32.mxu0 %v176
    %337 = vmatmul.mubr.f32.gmra.mrb[0].mxu0 %v174
    %v338 = vpop.f32.mrb[0].mxu0
    %v339 = vadd.f32 %v269, %v338
    %v340 = vpop.f32.mrb[0].mxu0
    %341 = vdwg.mxu0
    %342 = vmatprep.subr.mxu0 0.0
    %343 = vmatpush1.msra.mxu0 %v87
    %344 = vmatprep.subr.mxu0 0.0
    %345 = vmatpush1.msra.mxu0 %v88
    %346 = vmatprep.subr.mxu0 0.0
    %347 = vmatpush1.msra.mxu0 %v89
    %348 = vmatprep.subr.mxu0 0.0
    %349 = vmatpush1.msra.mxu0 %v90
    %350 = vmatprep.subr.mxu0 0.0
    %351 = vmatpush1.msra.mxu0 %v91
    %352 = vmatprep.subr.mxu0 0.0
    %353 = vmatpush1.msra.mxu0 %v92
    %354 = vmatprep.subr.mxu0 0.0
    %355 = vmatpush1.msra.mxu0 %v93
    %356 = vmatprep.subr.mxu0 0.0
    %357 = vmatpush1.msra.mxu0 %v94
    %358 = vmatprep.subr.mxu0 0.0
    %359 = vmatpush1.msra.mxu0 %v95
    %360 = vmatprep.subr.mxu0 0.0
    %361 = vmatpush1.msra.mxu0 %v96
    %362 = vmatprep.subr.mxu0 0.0
    %363 = vmatpush1.msra.mxu0 %v97
    %364 = vmatprep.subr.mxu0 0.0
    %365 = vmatpush1.msra.mxu0 %v98
    %366 = vmatprep.subr.mxu0 0.0
    %367 = vmatpush1.msra.mxu0 %v99
    %368 = vmatprep.subr.mxu0 0.0
    %369 = vmatpush1.msra.mxu0 %v100
    %370 = vmatprep.subr.mxu0 0.0
    %371 = vmatpush1.msra.mxu0 %v101
    %372 = vmatprep.subr.mxu0 0.0
    %373 = vmatpush1.msra.mxu0 %v102
    %374 = vmatprep.subr.mxu0 0.0
    %375 = vmatpush1.msra.mxu0 %v103
    %376 = vmatprep.subr.mxu0 0.0
    %377 = vmatpush1.msra.mxu0 %v104
    %378 = vmatprep.subr.mxu0 0.0
    %379 = vmatpush1.msra.mxu0 %v105
    %380 = vmatprep.subr.mxu0 0.0
    %381 = vmatpush1.msra.mxu0 %v106
    %382 = vmatprep.subr.mxu0 0.0
    %383 = vmatpush1.msra.mxu0 %v107
    %384 = vmatprep.subr.mxu0 0.0
    %385 = vmatpush1.msra.mxu0 %v108
    %386 = vmatprep.subr.mxu0 0.0
    %387 = vmatpush1.msra.mxu0 %v109
    %388 = vmatprep.subr.mxu0 0.0
    %389 = vmatpush1.msra.mxu0 %v110
    %390 = vmatprep.subr.mxu0 0.0
    %391 = vmatpush1.msra.mxu0 %v111
    %392 = vmatprep.subr.mxu0 0.0
    %393 = vmatpush1.msra.mxu0 %v112
    %394 = vmatprep.subr.mxu0 0.0
    %395 = vmatpush1.msra.mxu0 %v113
    %396 = vmatprep.subr.mxu0 0.0
    %397 = vmatpush1.msra.mxu0 %v114
    %398 = vmatprep.subr.mxu0 0.0
    %399 = vmatpush1.msra.mxu0 %v115
    %400 = vmatprep.subr.mxu0 0.0
    %401 = vmatpush1.msra.mxu0 %v116
    %402 = vmatprep.subr.mxu0 0.0
    %403 = vmatpush1.msra.mxu0 %v117
    %404 = vmatprep.subr.mxu0 0.0
    %405 = vmatpush1.msra.mxu0 %v118
    %406 = vmatprep.mubr.f32.mxu0 %v192
    %407 = vmatmul.mubr.f32.gmra.mrb[0].mxu0 %v184
    %v408 = vpop.f32.mrb[0].mxu0
    %v409 = vadd.f32 %v339, %v408
    %v410 = vpop.f32.mrb[0].mxu0
    %411 = vdwg.mxu0
    %412 = vmatprep.subr.mxu0 0.0
    %413 = vmatpush1.msra.mxu0 %v119
    %414 = vmatprep.subr.mxu0 0.0
    %415 = vmatpush1.msra.mxu0 %v120
    %416 = vmatprep.subr.mxu0 0.0
    %417 = vmatpush1.msra.mxu0 %v121
    %418 = vmatprep.subr.mxu0 0.0
    %419 = vmatpush1.msra.mxu0 %v122
    %420 = vmatprep.subr.mxu0 0.0
    %421 = vmatpush1.msra.mxu0 %v123
    %422 = vmatprep.subr.mxu0 0.0
    %423 = vmatpush1.msra.mxu0 %v124
    %424 = vmatprep.subr.mxu0 0.0
    %425 = vmatpush1.msra.mxu0 %v125
    %426 = vmatprep.subr.mxu0 0.0
    %427 = vmatpush1.msra.mxu0 %v126
    %428 = vmatprep.subr.mxu0 0.0
    %429 = vmatpush1.msra.mxu0 %v127
    %430 = vmatprep.subr.mxu0 0.0
    %431 = vmatpush1.msra.mxu0 %v128
    %432 = vmatprep.subr.mxu0 0.0
    %433 = vmatpush1.msra.mxu0 %v129
    %434 = vmatprep.subr.mxu0 0.0
    %435 = vmatpush1.msra.mxu0 %v130
    %436 = vmatprep.subr.mxu0 0.0
    %437 = vmatpush1.msra.mxu0 %v131
    %438 = vmatprep.subr.mxu0 0.0
    %439 = vmatpush1.msra.mxu0 %v132
    %440 = vmatprep.subr.mxu0 0.0
    %441 = vmatpush1.msra.mxu0 %v133
    %442 = vmatprep.subr.mxu0 0.0
    %443 = vmatpush1.msra.mxu0 %v134
    %444 = vmatprep.subr.mxu0 0.0
    %445 = vmatpush1.msra.mxu0 %v135
    %446 = vmatprep.subr.mxu0 0.0
    %447 = vmatpush1.msra.mxu0 %v136
    %448 = vmatprep.subr.mxu0 0.0
    %449 = vmatpush1.msra.mxu0 %v137
    %450 = vmatprep.subr.mxu0 0.0
    %451 = vmatpush1.msra.mxu0 %v138
    %452 = vmatprep.subr.mxu0 0.0
    %453 = vmatpush1.msra.mxu0 %v139
    %454 = vmatprep.subr.mxu0 0.0
    %455 = vmatpush1.msra.mxu0 %v140
    %456 = vmatprep.subr.mxu0 0.0
    %457 = vmatpush1.msra.mxu0 %v141
    %458 = vmatprep.subr.mxu0 0.0
    %459 = vmatpush1.msra.mxu0 %v142
    %460 = vmatprep.subr.mxu0 0.0
    %461 = vmatpush1.msra.mxu0 %v143
    %462 = vmatprep.subr.mxu0 0.0
    %463 = vmatpush1.msra.mxu0 %v144
    %464 = vmatprep.subr.mxu0 0.0
    %465 = vmatpush1.msra.mxu0 %v145
    %466 = vmatprep.subr.mxu0 0.0
    %467 = vmatpush1.msra.mxu0 %v146
    %468 = vmatprep.subr.mxu0 0.0
    %469 = vmatpush1.msra.mxu0 %v147
    %470 = vmatprep.subr.mxu0 0.0
    %471 = vmatpush1.msra.mxu0 %v148
    %472 = vmatprep.subr.mxu0 0.0
    %473 = vmatpush1.msra.mxu0 %v149
    %474 = vmatprep.subr.mxu0 0.0
    %475 = vmatpush1.msra.mxu0 %v150
    %476 = vmatprep.mubr.f32.mxu0 %v193
    %477 = vmatmul.mubr.f32.gmra.mrb[0].mxu0 %v191
    %v478 = vpop.f32.mrb[0].mxu0
    %v479 = vadd.f32 %v409, %v478
    %v480 = vpop.f32.mrb[0].mxu0
    %481 = vdwg.mxu0
    %v482 = vmax.f32 %v479, 0.0
    %v483 = vld [vmem:[%s3] sm:$0xff]
    %v484 = vld [vmem:[%s3 + $0x8] sm:$0xff]
    %v485 = vld [vmem:[%s3 + $0x10] sm:$0xff]
    %v486 = vld [vmem:[%s3 + $0x18] sm:$0xff]
    %v487 = vld [vmem:[%s3 + $0x20] sm:$0xff]
    %v488 = vld [vmem:[%s3 + $0x28] sm:$0xff]
    %v489 = vld [vmem:[%s3 + $0x30] sm:$0xff]
    %v490 = vld [vmem:[%s3 + $0x38] sm:$0xff]
    %v491 = vld [vmem:[%s4] sm:$0x1]
    %v493 = vlaneseq
    %v494 = vshrl.u32 %v493, 7
    %v495 = vsub.s32 0, %v494
    %v496 = vrot.slane %v491, %v495
    %vm498 = vcmask 523264
    %v500 = vsel %vm498, %v482, 0
    %502 = vmatprep.subr.mxu0 0.0
    %503 = vmatpush1.msra.mxu0 %v483
    %504 = vmatprep.subr.mxu0 0.0
    %505 = vmatpush1.msra.mxu0 %v484
    %506 = vmatprep.subr.mxu0 0.0
    %507 = vmatpush1.msra.mxu0 %v485
    %508 = vmatprep.subr.mxu0 0.0
    %509 = vmatpush1.msra.mxu0 %v486
    %510 = vmatprep.subr.mxu0 0.0
    %511 = vmatpush1.msra.mxu0 %v487
    %512 = vmatprep.subr.mxu0 0.0
    %513 = vmatpush1.msra.mxu0 %v488
    %514 = vmatprep.subr.mxu0 0.0
    %515 = vmatpush1.msra.mxu0 %v489
    %516 = vmatprep.subr.mxu0 0.0
    %517 = vmatpush1.msra.mxu0 %v490
    %518 = vmatprep.subr.mxu0 0.0
    %519 = vmatpush1.msra.mxu0 0.0
    %520 = vmatprep.subr.mxu0 0.0
    %521 = vmatpush1.msra.mxu0 0.0
    %522 = vmatprep.subr.mxu0 0.0
    %523 = vmatpush1.msra.mxu0 0.0
    %524 = vmatprep.subr.mxu0 0.0
    %525 = vmatpush1.msra.mxu0 0.0
    %526 = vmatprep.subr.mxu0 0.0
    %527 = vmatpush1.msra.mxu0 0.0
    %528 = vmatprep.subr.mxu0 0.0
    %529 = vmatpush1.msra.mxu0 0.0
    %530 = vmatprep.subr.mxu0 0.0
    %531 = vmatpush1.msra.mxu0 0.0
    %532 = vmatprep.subr.mxu0 0.0
    %533 = vmatpush1.msra.mxu0 0.0
    %534 = vmatprep.subr.mxu0 0.0
    %535 = vmatpush1.msra.mxu0 0.0
    %536 = vmatprep.subr.mxu0 0.0
    %537 = vmatpush1.msra.mxu0 0.0
    %538 = vmatprep.subr.mxu0 0.0
    %539 = vmatpush1.msra.mxu0 0.0
    %540 = vmatprep.subr.mxu0 0.0
    %541 = vmatpush1.msra.mxu0 0.0
    %542 = vmatprep.subr.mxu0 0.0
    %543 = vmatpush1.msra.mxu0 0.0
    %544 = vmatprep.subr.mxu0 0.0
    %545 = vmatpush1.msra.mxu0 0.0
    %546 = vmatprep.subr.mxu0 0.0
    %547 = vmatpush1.msra.mxu0 0.0
    %548 = vmatprep.subr.mxu0 0.0
    %549 = vmatpush1.msra.mxu0 0.0
    %550 = vmatprep.subr.mxu0 0.0
    %551 = vmatpush1.msra.mxu0 0.0
    %552 = vmatprep.subr.mxu0 0.0
    %553 = vmatpush1.msra.mxu0 0.0
    %554 = vmatprep.subr.mxu0 0.0
    %555 = vmatpush1.msra.mxu0 0.0
    %556 = vmatprep.subr.mxu0 0.0
    %557 = vmatpush1.msra.mxu0 0.0
    %558 = vmatprep.subr.mxu0 0.0
    %559 = vmatpush1.msra.mxu0 0.0
    %560 = vmatprep.subr.mxu0 0.0
    %561 = vmatpush1.msra.mxu0 0.0
    %562 = vmatprep.subr.mxu0 0.0
    %563 = vmatpush1.msra.mxu0 0.0
    %564 = vmatprep.subr.mxu0 0.0
    %565 = vmatpush1.msra.mxu0 0.0
    %566 = vmatprep.mubr.f32.mxu0 0.0
    %567 = vmatmul.mubr.f32.gmra.mrb[0].mxu0 %v500
    %v568 = vpop.f32.mrb[0].mxu0
    %v569 = vadd.f32 %v496, %v568
    %v570 = vpop.f32.mrb[0].mxu0
    %571 = vdwg.mxu0
    %vm572 = vcmask 123904
    %573 = vst.msk [vmem:[#allocation2] sm:$0x3] %vm572, %v569
    // Predicated region
    $region22: #{network_forward.3} parent=1 // pred_check
      _
    $region23: #{network_forward.3} parent=1 // pred_check_branch
      %575 = sbr.rel (0) target = $region25
    $region24: #{network_forward.3} parent=1 // pred_region
      %s577 = ssub.s32 32, 32
      %578 = vsyncadd [#allocation3], %s577
      %s580 = sshll.u32 [#allocation2], 4
      %s581 = int_to_ptr.vmem [resolvable:$true] %s580
      %583 = dma.vmem_to_hbm [thread:$0]  %s581, 32, %s5, [#allocation3]
    $region25: #{network_forward.3} parent=1 // pred_fallthru
      _
    // Predicated region
    $region26: #{network_forward.3} parent=1 // pred_check
      _
    $region27: #{network_forward.3} parent=1 // pred_check_branch
      %585 = sbr.rel (0) target = $region29
    $region28: #{network_forward.3} parent=1 // pred_region
      %586 = dma.done [#allocation3], 32
    $region29: #{network_forward.3} parent=1 // pred_fallthru
      _
    %587 = vsyncpa [#allocation3], 1

// kernel: network_forward.2
$region0: #{network_forward.2}
  #allocation0 [shape = 'u32[]', space=smem, size = 0x4, offset = 0x4, fixed_abs, tag = 'smem constant byte address 0x4 - core index']
  #allocation1 [shape = 'u32[144,128]{1,0:T(1,128)}', space=vmem, size = 0x12000, scoped, tag = 'internal scratch']
  #allocation2 [shape = 'f32[2,512]{1,0:T(2,128)}', space=vmem, size = 0x1000, scoped, tag = 'scratch operand']
  %s0 = inlined_call_operand.vmem [shape: f32[2,131072], index: 0, kind: input, shape index: {}]
  %s1 = inlined_call_operand.hbm [shape: f32[131072,1024], index: 1, kind: input, shape index: {}]
  %s2 = inlined_call_operand.hbm [shape: f32[1,1024], index: 2, kind: input, shape index: {}]
  %s3 = inlined_call_operand.vmem [shape: f32[2,1024], index: 3, kind: output, shape index: {}]
  %s4 = sld [smem:[#allocation0]]
  $region61: #{network_forward.2} parent=0
    _
  %s6 = ssub.s32 1, %s4
  %s7 = scalar_select 0, %s6, %s4
  $region1: #{network_forward.2} parent=0
    #allocation3 [shape = 'u8[33554432]{0}', space=vmem, size = 0x2000000, scoped, tag = 'input window, operand 1']
    #allocation4 [shape = 's32[2]{0}', space=sflag, size = 0x8, scoped, tag = 'scoped memory for network_forward.2']
    #allocation5 [shape = 'u8[4096]{0}', space=vmem, size = 0x1000, scoped, tag = 'input window, operand 2']
    #allocation6 [shape = 's32[2]{0}', space=sflag, size = 0x8, scoped, tag = 'scoped memory for network_forward.2']
    %8 = vsyncpa [#allocation4], 0
    %s9 = scalar_lea.sflag [#allocation4], 1
    %10 = vsyncpa %s9, 0
    %11 = vsyncpa [#allocation6], 0
    %s12 = scalar_lea.sflag [#allocation6], 1
    %13 = vsyncpa %s12, 0
    loop: start=0, step=1, limit=34
    $region2: #{network_forward.2} parent=1 // loop_pre_header
      _
    $region3: #{network_forward.2} parent=1 // loop_header
      %s15 = sphi 0, %s19
      %p16 = scmp.ge.s32.totalorder %s15, 34
      %s22 = sphi 0, %s34
      %s23 = sphi 0, %s30
      %s24 = sphi 0, %s22
      %s25 = sphi 0, %s23
      %s26 = sphi 0, %s24
      %s27 = sphi 0, %s25
      %s37 = sphi 0, %s39
      %s40 = sphi 0, %s37
      %s41 = sphi 0, %s40
      %s57 = sphi 0, %s41
      %s65 = sphi 0, %s67
      %s68 = sphi 0, %s65
      %s69 = sphi 0, %s68
      %s85 = sphi 0, %s69
      %s91 = sphi 0, %s93
      %s94 = sphi 0, %s91
      %s95 = sphi 0, %s94
      %s111 = sphi 0, %s95
      %s117 = sphi 0, %s119
      %s120 = sphi 0, %s117
      %s121 = sphi 0, %s120
      %s137 = sphi 0, %s121
    $region4: #{network_forward.2} parent=1 // loop_header_branch
      %18 = sbr.rel (%p16) target = $region8
    $region5: #{network_forward.2} parent=1 // loop_body
      %s20 = ssub.s32 %s15, 1
      %s21 = ssub.s32 %s15, 2
      %s28 = sadd.s32 1, %s23
      %p29 = scmp.ge.s32.totalorder %s28, 16
      %s30 = scalar_select %p29, 0, %s28
      %s31 = sadd.s32 1, %s22
      %s32 = scalar_select %p29, %s31, %s22
      %p33 = scmp.ge.s32.totalorder %s32, 2
      %s34 = scalar_select %p33, 0, %s32
      %s35 = ssub.s32 %s23, %s30
      %p36 = scmp.eq.s32.totalorder %s35, 0
      %s38 = sadd.s32 %s37, 1
      %s39 = scalar_select %p36, %s37, %s38
      %p42 = pneg %p36
      %p43 = scmp.eq.s32.totalorder %s15, 31
      %p44 = por %p42, %p43
      %p45 = scmp.ne.s32.totalorder %s37, %s40
      %p46 = scmp.eq.s32.totalorder %s15, 0
      %p47 = por %p45, %p46
      %p48 = scmp.ne.s32.totalorder %s37, %s40
      %p49 = scmp.eq.s32.totalorder %s20, 31
      %p50 = por %p48, %p49
      %p51 = scmp.ne.s32.totalorder %s40, %s41
      %p52 = scmp.eq.s32.totalorder %s20, 0
      %p53 = por %p51, %p52
      %p54 = scmp.ne.s32.totalorder %s40, %s41
      %p55 = scmp.eq.s32.totalorder %s21, 31
      %p56 = por %p54, %p55
      %p58 = scmp.ne.s32.totalorder %s41, %s57
      %p59 = scmp.eq.s32.totalorder %s21, 0
      %p60 = por %p58, %p59
      %s61 = ssub.s32 %s23, %s30
      %s62 = ssub.s32 %s22, %s34
      %s63 = sor.u32 %s61, %s62
      %p64 = scmp.eq.s32.totalorder %s63, 0
      %s66 = sadd.s32 %s65, 1
      %s67 = scalar_select %p64, %s65, %s66
      %p70 = pneg %p64
      %p71 = scmp.eq.s32.totalorder %s15, 31
      %p72 = por %p70, %p71
      %p73 = scmp.ne.s32.totalorder %s65, %s68
      %p74 = scmp.eq.s32.totalorder %s15, 0
      %p75 = por %p73, %p74
      %p76 = scmp.ne.s32.totalorder %s65, %s68
      %p77 = scmp.eq.s32.totalorder %s20, 31
      %p78 = por %p76, %p77
      %p79 = scmp.ne.s32.totalorder %s68, %s69
      %p80 = scmp.eq.s32.totalorder %s20, 0
      %p81 = por %p79, %p80
      %p82 = scmp.ne.s32.totalorder %s68, %s69
      %p83 = scmp.eq.s32.totalorder %s21, 31
      %p84 = por %p82, %p83
      %p86 = scmp.ne.s32.totalorder %s69, %s85
      %p87 = scmp.eq.s32.totalorder %s21, 0
      %p88 = por %p86, %p87
      %s89 = ssub.s32 %s22, %s34
      %p90 = scmp.eq.s32.totalorder %s89, 0
      %s92 = sadd.s32 %s91, 1
      %s93 = scalar_select %p90, %s91, %s92
      %p96 = pneg %p90
      %p97 = scmp.eq.s32.totalorder %s15, 31
      %p98 = por %p96, %p97
      %p99 = scmp.ne.s32.totalorder %s91, %s94
      %p100 = scmp.eq.s32.totalorder %s15, 0
      %p101 = por %p99, %p100
      %p102 = scmp.ne.s32.totalorder %s91, %s94
      %p103 = scmp.eq.s32.totalorder %s20, 31
      %p104 = por %p102, %p103
      %p105 = scmp.ne.s32.totalorder %s94, %s95
      %p106 = scmp.eq.s32.totalorder %s20, 0
      %p107 = por %p105, %p106
      %p108 = scmp.ne.s32.totalorder %s94, %s95
      %p109 = scmp.eq.s32.totalorder %s21, 31
      %p110 = por %p108, %p109
      %p112 = scmp.ne.s32.totalorder %s95, %s111
      %p113 = scmp.eq.s32.totalorder %s21, 0
      %p114 = por %p112, %p113
      %s115 = ssub.s32 %s22, %s34
      %p116 = scmp.eq.s32.totalorder %s115, 0
      %s118 = sadd.s32 %s117, 1
      %s119 = scalar_select %p116, %s117, %s118
      %p122 = pneg %p116
      %p123 = scmp.eq.s32.totalorder %s15, 31
      %p124 = por %p122, %p123
      %p125 = scmp.ne.s32.totalorder %s117, %s120
      %p126 = scmp.eq.s32.totalorder %s15, 0
      %p127 = por %p125, %p126
      %p128 = scmp.ne.s32.totalorder %s117, %s120
      %p129 = scmp.eq.s32.totalorder %s20, 31
      %p130 = por %p128, %p129
      %p131 = scmp.ne.s32.totalorder %s120, %s121
      %p132 = scmp.eq.s32.totalorder %s20, 0
      %p133 = por %p131, %p132
      %p134 = scmp.ne.s32.totalorder %s120, %s121
      %p135 = scmp.eq.s32.totalorder %s21, 31
      %p136 = por %p134, %p135
      %p138 = scmp.ne.s32.totalorder %s121, %s137
      %p139 = scmp.eq.s32.totalorder %s21, 0
      %p140 = por %p138, %p139
      %p141 = scmp.le.s32.totalorder 1, %s15
      %p142 = scmp.lt.s32.totalorder %s15, 33
      %p143 = pnand %p141, %p142
      %p144 = pneg %p143
      // Predicated region
      $region9: #{network_forward.2} parent=5 // pred_check
        _
      $region10: #{network_forward.2} parent=5 // pred_check_branch
        %146 = sbr.rel (%p143) target = $region12
      $region11: #{network_forward.2} parent=5 // pred_region
        %s147 = ssub.s32 %s15, 1
      $region12: #{network_forward.2} parent=5 // pred_fallthru
        _
      %p148 = scmp.lt.s32.totalorder %s15, 32
      // Predicated region
      $region13: #{network_forward.2} parent=5 // pred_check
        %p149 = pneg %p148
      $region14: #{network_forward.2} parent=5 // pred_check_branch
        %151 = sbr.rel (%p149) target = $region16
      $region15: #{network_forward.2} parent=5 // pred_region
        // Predicated region
        $region17: #{network_forward.2} parent=15 // pred_check
          %p152 = pneg %p47
        $region18: #{network_forward.2} parent=15 // pred_check_branch
          %154 = sbr.rel (%p152) target = $region20
        $region19: #{network_forward.2} parent=15 // pred_region
          %s155 = smul.u32 64, %s23
          %p156 = scmp.lt.s32.totalorder %s155, 1023
          %s157 = scalar_select %p156, %s155, 1023
          %s158 = smul.addr %s157, 2
          %s159 = scalar_lea.vmem %s0, %s158
          %s160 = smul.u32 64, %s23
        $region20: #{network_forward.2} parent=15 // pred_fallthru
          _
        // Predicated region
        $region21: #{network_forward.2} parent=15 // pred_check
          %p161 = pneg %p75
        $region22: #{network_forward.2} parent=15 // pred_check_branch
          %163 = sbr.rel (%p161) target = $region24
        $region23: #{network_forward.2} parent=15 // pred_region
          %s164 = sand.u32 %s65, 1
          %s165 = scalar_lea.sflag [#allocation4], %s164
          %s166 = sand.u32 %s65, 1
          %s167 = smul.addr %s166, 32768
          %s168 = scalar_lea.vmem [#allocation3], %s167
          %s169 = smul.u32 1024, %s23
          %s170 = smul.u32 4, %s22
          %s172 = ssub.s32 524288, 524288
          %173 = vsyncadd %s165, %s172
          %s174 = smul.addr %s169, 8
          %s175 = sadd.s32 %s170, %s174
          %s176 = smul.addr %s175, 128
          %s177 = scalar_lea.hbm %s1, %s176
          %s178 = sshll.u32 %s168, 4
          %s179 = int_to_ptr.vmem [resolvable:$true] %s178
          %184 = dma.hbm_to_vmem [thread:$0]  %s177, 524288, %s179, %s165, 1024, 512, 32
        $region24: #{network_forward.2} parent=15 // pred_fallthru
          _
        // Predicated region
        $region25: #{network_forward.2} parent=15 // pred_check
          %p185 = pneg %p101
        $region26: #{network_forward.2} parent=15 // pred_check_branch
          %187 = sbr.rel (%p185) target = $region28
        $region27: #{network_forward.2} parent=15 // pred_region
          %s188 = sand.u32 %s91, 1
          %s189 = scalar_lea.sflag [#allocation6], %s188
          %s190 = sand.u32 %s91, 1
          %s191 = smul.addr %s190, 4
          %s192 = scalar_lea.vmem [#allocation5], %s191
          %s193 = smul.u32 4, %s22
          %s195 = ssub.s32 64, 64
          %196 = vsyncadd %s189, %s195
          %s197 = smul.addr %s193, 16
          %s198 = scalar_lea.hbm %s2, %s197
          %s200 = sshll.u32 %s192, 4
          %s201 = int_to_ptr.vmem [resolvable:$true] %s200
          %203 = dma.hbm_to_vmem [thread:$0]  %s198, 64, %s201, %s189
        $region28: #{network_forward.2} parent=15 // pred_fallthru
          _
      $region16: #{network_forward.2} parent=5 // pred_fallthru
        _
      %p204 = scmp.le.s32.totalorder 1, %s15
      %p205 = scmp.lt.s32.totalorder %s15, 33
      %p206 = pnand %p204, %p205
      %p207 = pneg %p206
      // Predicated region
      $region29: #{network_forward.2} parent=5 // pred_check
        _
      $region30: #{network_forward.2} parent=5 // pred_check_branch
        %209 = sbr.rel (%p206) target = $region32
      $region31: #{network_forward.2} parent=5 // pred_region
        %s210 = ssub.s32 %s15, 1
        %s211 = sand.u32 %s68, 1
        %s212 = scalar_lea.sflag [#allocation4], %s211
        %s213 = sand.u32 %s68, 1
        %s214 = smul.addr %s213, 32768
        %s215 = scalar_lea.vmem [#allocation3], %s214
        // Predicated region
        $region33: #{network_forward.2} parent=31 // pred_check
          %p216 = pneg %p81
        $region34: #{network_forward.2} parent=31 // pred_check_branch
          %218 = sbr.rel (%p216) target = $region36
        $region35: #{network_forward.2} parent=31 // pred_region
          %219 = dma.done %s212, 524288
        $region36: #{network_forward.2} parent=31 // pred_fallthru
          _
        %s220 = sand.u32 %s94, 1
        %s221 = scalar_lea.sflag [#allocation6], %s220
        %s222 = sand.u32 %s94, 1
        %s223 = smul.addr %s222, 4
        %s224 = scalar_lea.vmem [#allocation5], %s223
        // Predicated region
        $region37: #{network_forward.2} parent=31 // pred_check
          %p225 = pneg %p107
        $region38: #{network_forward.2} parent=31 // pred_check_branch
          %227 = sbr.rel (%p225) target = $region40
        $region39: #{network_forward.2} parent=31 // pred_region
          %228 = dma.done %s221, 64
        $region40: #{network_forward.2} parent=31 // pred_fallthru
          _
        %s229 = smul.u32 64, %s25
        %p230 = scmp.lt.s32.totalorder %s229, 1023
        %s231 = scalar_select %p230, %s229, 1023
        %s232 = smul.addr %s231, 2
        %s233 = scalar_lea.vmem %s0, %s232
        %p234 = pneg %p53
        %p235 = pneg %p50
        %s236 = sand.u32 %s68, 1
        %s237 = scalar_lea.sflag [#allocation4], %s236
        %s238 = sand.u32 %s68, 1
        %s239 = smul.addr %s238, 32768
        %s240 = scalar_lea.vmem [#allocation3], %s239
        %p241 = pneg %p81
        %p242 = pneg %p78
        %s243 = sand.u32 %s94, 1
        %s244 = scalar_lea.sflag [#allocation6], %s243
        %s245 = sand.u32 %s94, 1
        %s246 = smul.addr %s245, 4
        %s247 = scalar_lea.vmem [#allocation5], %s246
        %p248 = pneg %p107
        %p249 = pneg %p104
        %p250 = pneg %p133
        %p251 = pneg %p130
        %s252 = smul.u32 4, %s24
        %p253 = scmp.lt.s32.totalorder %s252, 7
        %s254 = scalar_select %p253, %s252, 7
        %s255 = smul.addr %s254, 2
        %s256 = scalar_lea.vmem %s3, %s255
        %s257 = smul.u32 64, %s25
        %p258 = scmp.lt.s32.totalorder %s257, 1023
        %s259 = scalar_select %p258, %s257, 1023
        %s260 = smul.addr %s259, 2
        %s261 = scalar_lea.vmem %s0, %s260
        %s262 = smul.u32 64, %s25
        %s263 = smul.u32 1024, %s25
        %s264 = smul.u32 4, %s24
        %s265 = smul.u32 4, %s24
        %s266 = smul.u32 4, %s24
        %p267 = scmp.lt.s32.totalorder %s266, 7
        %s268 = scalar_select %p267, %s266, 7
        %s269 = smul.addr %s268, 2
        %s270 = scalar_lea.vmem %s3, %s269
        %s271 = smul.u32 4, %s24
        %p272 = scmp.eq.s32.totalorder %s25, 0
        // Predicated region
        $region41: #{network_forward.2} parent=31 // pred_check
          %p273 = pneg %p272
        $region42: #{network_forward.2} parent=31 // pred_check_branch
          %275 = sbr.rel (%p273) target = $region44
        $region43: #{network_forward.2} parent=31 // pred_region
          %276 = vst [vmem:[#allocation2] sm:$0xff] 0.0
        $region44: #{network_forward.2} parent=31 // pred_fallthru
          _
        %v277 = vld [vmem:[#allocation2] sm:$0xff]
        %v278 = vld [vmem:[%s261] sm:$0xff]
        %v279 = vld [vmem:[%s261 + $0x8] sm:$0xff]
        %v280 = vld [vmem:[%s261 + $0x10] sm:$0xff]
        %v281 = vld [vmem:[%s261 + $0x18] sm:$0xff]
        %v282 = vld [vmem:[%s261 + $0x20] sm:$0xff]
        %v283 = vld [vmem:[%s261 + $0x28] sm:$0xff]
        %v284 = vld [vmem:[%s261 + $0x30] sm:$0xff]
        %v285 = vld [vmem:[%s261 + $0x38] sm:$0xff]
        %v286 = vld [vmem:[%s261 + $0x40] sm:$0xff]
        %v287 = vld [vmem:[%s261 + $0x48] sm:$0xff]
        %v288 = vld [vmem:[%s261 + $0x50] sm:$0xff]
        %v289 = vld [vmem:[%s261 + $0x58] sm:$0xff]
        %v290 = vld [vmem:[%s261 + $0x60] sm:$0xff]
        %v291 = vld [vmem:[%s261 + $0x68] sm:$0xff]
        %v292 = vld [vmem:[%s261 + $0x70] sm:$0xff]
        %v293 = vld [vmem:[%s261 + $0x78] sm:$0xff]
        %v294 = vld [vmem:[%s215] sm:$0xff]
        %v295 = vld [vmem:[%s215 + $0x8] sm:$0xff]
        %v296 = vld [vmem:[%s215 + $0x10] sm:$0xff]
        %v297 = vld [vmem:[%s215 + $0x18] sm:$0xff]
        %v298 = vld [vmem:[%s215 + $0x20] sm:$0xff]
        %v299 = vld [vmem:[%s215 + $0x28] sm:$0xff]
        %v300 = vld [vmem:[%s215 + $0x30] sm:$0xff]
        %v301 = vld [vmem:[%s215 + $0x38] sm:$0xff]
        %v302 = vld [vmem:[%s215 + $0x40] sm:$0xff]
        %v303 = vld [vmem:[%s215 + $0x48] sm:$0xff]
        %v304 = vld [vmem:[%s215 + $0x50] sm:$0xff]
        %v305 = vld [vmem:[%s215 + $0x58] sm:$0xff]
        %v306 = vld [vmem:[%s215 + $0x60] sm:$0xff]
        %v307 = vld [vmem:[%s215 + $0x68] sm:$0xff]
        %v308 = vld [vmem:[%s215 + $0x70] sm:$0xff]
        %v309 = vld [vmem:[%s215 + $0x78] sm:$0xff]
        %v310 = vld [vmem:[%s215 + $0x80] sm:$0xff]
        %v311 = vld [vmem:[%s215 + $0x88] sm:$0xff]
        %v312 = vld [vmem:[%s215 + $0x90] sm:$0xff]
        %v313 = vld [vmem:[%s215 + $0x98] sm:$0xff]
        %v314 = vld [vmem:[%s215 + $0xa0] sm:$0xff]
        %v315 = vld [vmem:[%s215 + $0xa8] sm:$0xff]
        %v316 = vld [vmem:[%s215 + $0xb0] sm:$0xff]
        %v317 = vld [vmem:[%s215 + $0xb8] sm:$0xff]
        %v318 = vld [vmem:[%s215 + $0xc0] sm:$0xff]
        %v319 = vld [vmem:[%s215 + $0xc8] sm:$0xff]
        %v320 = vld [vmem:[%s215 + $0xd0] sm:$0xff]
        %v321 = vld [vmem:[%s215 + $0xd8] sm:$0xff]
        %v322 = vld [vmem:[%s215 + $0xe0] sm:$0xff]
        %v323 = vld [vmem:[%s215 + $0xe8] sm:$0xff]
        %v324 = vld [vmem:[%s215 + $0xf0] sm:$0xff]
        %v325 = vld [vmem:[%s215 + $0xf8] sm:$0xff]
        %v326 = vld [vmem:[%s215 + $0x100] sm:$0xff]
        %v327 = vld [vmem:[%s215 + $0x108] sm:$0xff]
        %v328 = vld [vmem:[%s215 + $0x110] sm:$0xff]
        %v329 = vld [vmem:[%s215 + $0x118] sm:$0xff]
        %v330 = vld [vmem:[%s215 + $0x120] sm:$0xff]
        %v331 = vld [vmem:[%s215 + $0x128] sm:$0xff]
        %v332 = vld [vmem:[%s215 + $0x130] sm:$0xff]
        %v333 = vld [vmem:[%s215 + $0x138] sm:$0xff]
        %v334 = vld [vmem:[%s215 + $0x140] sm:$0xff]
        %v335 = vld [vmem:[%s215 + $0x148] sm:$0xff]
        %v336 = vld [vmem:[%s215 + $0x150] sm:$0xff]
        %v337 = vld [vmem:[%s215 + $0x158] sm:$0xff]
        %v338 = vld [vmem:[%s215 + $0x160] sm:$0xff]
        %v339 = vld [vmem:[%s215 + $0x168] sm:$0xff]
        %v340 = vld [vmem:[%s215 + $0x170] sm:$0xff]
        %v341 = vld [vmem:[%s215 + $0x178] sm:$0xff]
        %v342 = vld [vmem:[%s215 + $0x180] sm:$0xff]
        %v343 = vld [vmem:[%s215 + $0x188] sm:$0xff]
        %v344 = vld [vmem:[%s215 + $0x190] sm:$0xff]
        %v345 = vld [vmem:[%s215 + $0x198] sm:$0xff]
        %v346 = vld [vmem:[%s215 + $0x1a0] sm:$0xff]
        %v347 = vld [vmem:[%s215 + $0x1a8] sm:$0xff]
        %v348 = vld [vmem:[%s215 + $0x1b0] sm:$0xff]
        %v349 = vld [vmem:[%s215 + $0x1b8] sm:$0xff]
        %v350 = vld [vmem:[%s215 + $0x1c0] sm:$0xff]
        %v351 = vld [vmem:[%s215 + $0x1c8] sm:$0xff]
        %v352 = vld [vmem:[%s215 + $0x1d0] sm:$0xff]
        %v353 = vld [vmem:[%s215 + $0x1d8] sm:$0xff]
        %v354 = vld [vmem:[%s215 + $0x1e0] sm:$0xff]
        %v355 = vld [vmem:[%s215 + $0x1e8] sm:$0xff]
        %v356 = vld [vmem:[%s215 + $0x1f0] sm:$0xff]
        %v357 = vld [vmem:[%s215 + $0x1f8] sm:$0xff]
        %v358 = vld [vmem:[%s215 + $0x200] sm:$0xff]
        %v359 = vld [vmem:[%s215 + $0x208] sm:$0xff]
        %v360 = vld [vmem:[%s215 + $0x210] sm:$0xff]
        %v361 = vld [vmem:[%s215 + $0x218] sm:$0xff]
        %v362 = vld [vmem:[%s215 + $0x220] sm:$0xff]
        %v363 = vld [vmem:[%s215 + $0x228] sm:$0xff]
        %v364 = vld [vmem:[%s215 + $0x230] sm:$0xff]
        %v365 = vld [vmem:[%s215 + $0x238] sm:$0xff]
        %v366 = vld [vmem:[%s215 + $0x240] sm:$0xff]
        %v367 = vld [vmem:[%s215 + $0x248] sm:$0xff]
        %v368 = vld [vmem:[%s215 + $0x250] sm:$0xff]
        %v369 = vld [vmem:[%s215 + $0x258] sm:$0xff]
        %v370 = vld [vmem:[%s215 + $0x260] sm:$0xff]
        %v371 = vld [vmem:[%s215 + $0x268] sm:$0xff]
        %v372 = vld [vmem:[%s215 + $0x270] sm:$0xff]
        %v373 = vld [vmem:[%s215 + $0x278] sm:$0xff]
        %v374 = vld [vmem:[%s215 + $0x280] sm:$0xff]
        %v375 = vld [vmem:[%s215 + $0x288] sm:$0xff]
        %v376 = vld [vmem:[%s215 + $0x290] sm:$0xff]
        %v377 = vld [vmem:[%s215 + $0x298] sm:$0xff]
        %v378 = vld [vmem:[%s215 + $0x2a0] sm:$0xff]
        %v379 = vld [vmem:[%s215 + $0x2a8] sm:$0xff]
        %v380 = vld [vmem:[%s215 + $0x2b0] sm:$0xff]
        %v381 = vld [vmem:[%s215 + $0x2b8] sm:$0xff]
        %v382 = vld [vmem:[%s215 + $0x2c0] sm:$0xff]
        %v383 = vld [vmem:[%s215 + $0x2c8] sm:$0xff]
        %v384 = vld [vmem:[%s215 + $0x2d0] sm:$0xff]
        %v385 = vld [vmem:[%s215 + $0x2d8] sm:$0xff]
        %v386 = vld [vmem:[%s215 + $0x2e0] sm:$0xff]
        %v387 = vld [vmem:[%s215 + $0x2e8] sm:$0xff]
        %v388 = vld [vmem:[%s215 + $0x2f0] sm:$0xff]
        %v389 = vld [vmem:[%s215 + $0x2f8] sm:$0xff]
        %v390 = vld [vmem:[%s215 + $0x300] sm:$0xff]
        %v391 = vld [vmem:[%s215 + $0x308] sm:$0xff]
        %v392 = vld [vmem:[%s215 + $0x310] sm:$0xff]
        %v393 = vld [vmem:[%s215 + $0x318] sm:$0xff]
        %v394 = vld [vmem:[%s215 + $0x320] sm:$0xff]
        %v395 = vld [vmem:[%s215 + $0x328] sm:$0xff]
        %v396 = vld [vmem:[%s215 + $0x330] sm:$0xff]
        %v397 = vld [vmem:[%s215 + $0x338] sm:$0xff]
        %v398 = vld [vmem:[%s215 + $0x340] sm:$0xff]
        %v399 = vld [vmem:[%s215 + $0x348] sm:$0xff]
        %v400 = vld [vmem:[%s215 + $0x350] sm:$0xff]
        %v401 = vld [vmem:[%s215 + $0x358] sm:$0xff]
        %v402 = vld [vmem:[%s215 + $0x360] sm:$0xff]
        %v403 = vld [vmem:[%s215 + $0x368] sm:$0xff]
        %v404 = vld [vmem:[%s215 + $0x370] sm:$0xff]
        %v405 = vld [vmem:[%s215 + $0x378] sm:$0xff]
        %v406 = vld [vmem:[%s215 + $0x380] sm:$0xff]
        %v407 = vld [vmem:[%s215 + $0x388] sm:$0xff]
        %v408 = vld [vmem:[%s215 + $0x390] sm:$0xff]
        %v409 = vld [vmem:[%s215 + $0x398] sm:$0xff]
        %v410 = vld [vmem:[%s215 + $0x3a0] sm:$0xff]
        %v411 = vld [vmem:[%s215 + $0x3a8] sm:$0xff]
        %v412 = vld [vmem:[%s215 + $0x3b0] sm:$0xff]
        %v413 = vld [vmem:[%s215 + $0x3b8] sm:$0xff]
        %v414 = vld [vmem:[%s215 + $0x3c0] sm:$0xff]
        %v415 = vld [vmem:[%s215 + $0x3c8] sm:$0xff]
        %v416 = vld [vmem:[%s215 + $0x3d0] sm:$0xff]
        %v417 = vld [vmem:[%s215 + $0x3d8] sm:$0xff]
        %v418 = vld [vmem:[%s215 + $0x3e0] sm:$0xff]
        %v419 = vld [vmem:[%s215 + $0x3e8] sm:$0xff]
        %v420 = vld [vmem:[%s215 + $0x3f0] sm:$0xff]
        %v421 = vld [vmem:[%s215 + $0x3f8] sm:$0xff]
        %v422 = vld [vmem:[%s215 + $0x400] sm:$0xff]
        %v423 = vld [vmem:[%s215 + $0x408] sm:$0xff]
        %v424 = vld [vmem:[%s215 + $0x410] sm:$0xff]
        %v425 = vld [vmem:[%s215 + $0x418] sm:$0xff]
        %v426 = vld [vmem:[%s215 + $0x420] sm:$0xff]
        %v427 = vld [vmem:[%s215 + $0x428] sm:$0xff]
        %v428 = vld [vmem:[%s215 + $0x430] sm:$0xff]
        %v429 = vld [vmem:[%s215 + $0x438] sm:$0xff]
        %v430 = vld [vmem:[%s215 + $0x440] sm:$0xff]
        %v431 = vld [vmem:[%s215 + $0x448] sm:$0xff]
        %v432 = vld [vmem:[%s215 + $0x450] sm:$0xff]
        %v433 = vld [vmem:[%s215 + $0x458] sm:$0xff]
        %v434 = vld [vmem:[%s215 + $0x460] sm:$0xff]
        %v435 = vld [vmem:[%s215 + $0x468] sm:$0xff]
        %v436 = vld [vmem:[%s215 + $0x470] sm:$0xff]
        %v437 = vld [vmem:[%s215 + $0x478] sm:$0xff]
        %v438 = vld [vmem:[%s215 + $0x480] sm:$0xff]
        %v439 = vld [vmem:[%s215 + $0x488] sm:$0xff]
        %v440 = vld [vmem:[%s215 + $0x490] sm:$0xff]
        %v441 = vld [vmem:[%s215 + $0x498] sm:$0xff]
        %v442 = vld [vmem:[%s215 + $0x4a0] sm:$0xff]
        %v443 = vld [vmem:[%s215 + $0x4a8] sm:$0xff]
        %v444 = vld [vmem:[%s215 + $0x4b0] sm:$0xff]
        %v445 = vld [vmem:[%s215 + $0x4b8] sm:$0xff]
        %v446 = vld [vmem:[%s215 + $0x4c0] sm:$0xff]
        %v447 = vld [vmem:[%s215 + $0x4c8] sm:$0xff]
        %v448 = vld [vmem:[%s215 + $0x4d0] sm:$0xff]
        %v449 = vld [vmem:[%s215 + $0x4d8] sm:$0xff]
        %v450 = vld [vmem:[%s215 + $0x4e0] sm:$0xff]
        %v451 = vld [vmem:[%s215 + $0x4e8] sm:$0xff]
        %v452 = vld [vmem:[%s215 + $0x4f0] sm:$0xff]
        %v453 = vld [vmem:[%s215 + $0x4f8] sm:$0xff]
        %v454 = vld [vmem:[%s215 + $0x500] sm:$0xff]
        %v455 = vld [vmem:[%s215 + $0x508] sm:$0xff]
        %v456 = vld [vmem:[%s215 + $0x510] sm:$0xff]
        %v457 = vld [vmem:[%s215 + $0x518] sm:$0xff]
        %v458 = vld [vmem:[%s215 + $0x520] sm:$0xff]
        %v459 = vld [vmem:[%s215 + $0x528] sm:$0xff]
        %v460 = vld [vmem:[%s215 + $0x530] sm:$0xff]
        %v461 = vld [vmem:[%s215 + $0x538] sm:$0xff]
        %v462 = vld [vmem:[%s215 + $0x540] sm:$0xff]
        %v463 = vld [vmem:[%s215 + $0x548] sm:$0xff]
        %v464 = vld [vmem:[%s215 + $0x550] sm:$0xff]
        %v465 = vld [vmem:[%s215 + $0x558] sm:$0xff]
        %v466 = vld [vmem:[%s215 + $0x560] sm:$0xff]
        %v467 = vld [vmem:[%s215 + $0x568] sm:$0xff]
        %v468 = vld [vmem:[%s215 + $0x570] sm:$0xff]
        %v469 = vld [vmem:[%s215 + $0x578] sm:$0xff]
        %v470 = vld [vmem:[%s215 + $0x580] sm:$0xff]
        %v471 = vld [vmem:[%s215 + $0x588] sm:$0xff]
        %v472 = vld [vmem:[%s215 + $0x590] sm:$0xff]
        %v473 = vld [vmem:[%s215 + $0x598] sm:$0xff]
        %v474 = vld [vmem:[%s215 + $0x5a0] sm:$0xff]
        %v475 = vld [vmem:[%s215 + $0x5a8] sm:$0xff]
        %v476 = vld [vmem:[%s215 + $0x5b0] sm:$0xff]
        %v477 = vld [vmem:[%s215 + $0x5b8] sm:$0xff]
        %v478 = vld [vmem:[%s215 + $0x5c0] sm:$0xff]
        %v479 = vld [vmem:[%s215 + $0x5c8] sm:$0xff]
        %v480 = vld [vmem:[%s215 + $0x5d0] sm:$0xff]
        %v481 = vld [vmem:[%s215 + $0x5d8] sm:$0xff]
        %v482 = vld [vmem:[%s215 + $0x5e0] sm:$0xff]
        %v483 = vld [vmem:[%s215 + $0x5e8] sm:$0xff]
        %v484 = vld [vmem:[%s215 + $0x5f0] sm:$0xff]
        %v485 = vld [vmem:[%s215 + $0x5f8] sm:$0xff]
        %v486 = vld [vmem:[%s215 + $0x600] sm:$0xff]
        %v487 = vld [vmem:[%s215 + $0x608] sm:$0xff]
        %v488 = vld [vmem:[%s215 + $0x610] sm:$0xff]
        %v489 = vld [vmem:[%s215 + $0x618] sm:$0xff]
        %v490 = vld [vmem:[%s215 + $0x620] sm:$0xff]
        %v491 = vld [vmem:[%s215 + $0x628] sm:$0xff]
        %v492 = vld [vmem:[%s215 + $0x630] sm:$0xff]
        %v493 = vld [vmem:[%s215 + $0x638] sm:$0xff]
        %v494 = vld [vmem:[%s215 + $0x640] sm:$0xff]
        %v495 = vld [vmem:[%s215 + $0x648] sm:$0xff]
        %v496 = vld [vmem:[%s215 + $0x650] sm:$0xff]
        %v497 = vld [vmem:[%s215 + $0x658] sm:$0xff]
        %v498 = vld [vmem:[%s215 + $0x660] sm:$0xff]
        %v499 = vld [vmem:[%s215 + $0x668] sm:$0xff]
        %v500 = vld [vmem:[%s215 + $0x670] sm:$0xff]
        %v501 = vld [vmem:[%s215 + $0x678] sm:$0xff]
        %v502 = vld [vmem:[%s215 + $0x680] sm:$0xff]
        %v503 = vld [vmem:[%s215 + $0x688] sm:$0xff]
        %v504 = vld [vmem:[%s215 + $0x690] sm:$0xff]
        %v505 = vld [vmem:[%s215 + $0x698] sm:$0xff]
        %v506 = vld [vmem:[%s215 + $0x6a0] sm:$0xff]
        %v507 = vld [vmem:[%s215 + $0x6a8] sm:$0xff]
        %v508 = vld [vmem:[%s215 + $0x6b0] sm:$0xff]
        %v509 = vld [vmem:[%s215 + $0x6b8] sm:$0xff]
        %v510 = vld [vmem:[%s215 + $0x6c0] sm:$0xff]
        %v511 = vld [vmem:[%s215 + $0x6c8] sm:$0xff]
        %v512 = vld [vmem:[%s215 + $0x6d0] sm:$0xff]
        %v513 = vld [vmem:[%s215 + $0x6d8] sm:$0xff]
        %v514 = vld [vmem:[%s215 + $0x6e0] sm:$0xff]
        %v515 = vld [vmem:[%s215 + $0x6e8] sm:$0xff]
        %v516 = vld [vmem:[%s215 + $0x6f0] sm:$0xff]
        %v517 = vld [vmem:[%s215 + $0x6f8] sm:$0xff]
        %v518 = vld [vmem:[%s215 + $0x700] sm:$0xff]
        %v519 = vld [vmem:[%s215 + $0x708] sm:$0xff]
        %v520 = vld [vmem:[%s215 + $0x710] sm:$0xff]
        %v521 = vld [vmem:[%s215 + $0x718] sm:$0xff]
        %v522 = vld [vmem:[%s215 + $0x720] sm:$0xff]
        %v523 = vld [vmem:[%s215 + $0x728] sm:$0xff]
        %v524 = vld [vmem:[%s215 + $0x730] sm:$0xff]
        %v525 = vld [vmem:[%s215 + $0x738] sm:$0xff]
        %v526 = vld [vmem:[%s215 + $0x740] sm:$0xff]
        %v527 = vld [vmem:[%s215 + $0x748] sm:$0xff]
        %v528 = vld [vmem:[%s215 + $0x750] sm:$0xff]
        %v529 = vld [vmem:[%s215 + $0x758] sm:$0xff]
        %v530 = vld [vmem:[%s215 + $0x760] sm:$0xff]
        %v531 = vld [vmem:[%s215 + $0x768] sm:$0xff]
        %v532 = vld [vmem:[%s215 + $0x770] sm:$0xff]
        %v533 = vld [vmem:[%s215 + $0x778] sm:$0xff]
        %v534 = vld [vmem:[%s215 + $0x780] sm:$0xff]
        %v535 = vld [vmem:[%s215 + $0x788] sm:$0xff]
        %v536 = vld [vmem:[%s215 + $0x790] sm:$0xff]
        %v537 = vld [vmem:[%s215 + $0x798] sm:$0xff]
        %v538 = vld [vmem:[%s215 + $0x7a0] sm:$0xff]
        %v539 = vld [vmem:[%s215 + $0x7a8] sm:$0xff]
        %v540 = vld [vmem:[%s215 + $0x7b0] sm:$0xff]
        %v541 = vld [vmem:[%s215 + $0x7b8] sm:$0xff]
        %v542 = vld [vmem:[%s215 + $0x7c0] sm:$0xff]
        %v543 = vld [vmem:[%s215 + $0x7c8] sm:$0xff]
        %v544 = vld [vmem:[%s215 + $0x7d0] sm:$0xff]
        %v545 = vld [vmem:[%s215 + $0x7d8] sm:$0xff]
        %v546 = vld [vmem:[%s215 + $0x7e0] sm:$0xff]
        %v547 = vld [vmem:[%s215 + $0x7e8] sm:$0xff]
        %v548 = vld [vmem:[%s215 + $0x7f0] sm:$0xff]
        %v549 = vld [vmem:[%s215 + $0x7f8] sm:$0xff]
        %v550 = vld [vmem:[%s215 + $0x800] sm:$0xff]
        %v551 = vld [vmem:[%s215 + $0x808] sm:$0xff]
        %v552 = vld [vmem:[%s215 + $0x810] sm:$0xff]
        %v553 = vld [vmem:[%s215 + $0x818] sm:$0xff]
        %v554 = vld [vmem:[%s215 + $0x820] sm:$0xff]
        %v555 = vld [vmem:[%s215 + $0x828] sm:$0xff]
        %v556 = vld [vmem:[%s215 + $0x830] sm:$0xff]
        %v557 = vld [vmem:[%s215 + $0x838] sm:$0xff]
        %v558 = vld [vmem:[%s215 + $0x840] sm:$0xff]
        %v559 = vld [vmem:[%s215 + $0x848] sm:$0xff]
        %v560 = vld [vmem:[%s215 + $0x850] sm:$0xff]
        %v561 = vld [vmem:[%s215 + $0x858] sm:$0xff]
        %v562 = vld [vmem:[%s215 + $0x860] sm:$0xff]
        %v563 = vld [vmem:[%s215 + $0x868] sm:$0xff]
        %v564 = vld [vmem:[%s215 + $0x870] sm:$0xff]
        %v565 = vld [vmem:[%s215 + $0x878] sm:$0xff]
        %v566 = vld [vmem:[%s215 + $0x880] sm:$0xff]
        %v567 = vld [vmem:[%s215 + $0x888] sm:$0xff]
        %v568 = vld [vmem:[%s215 + $0x890] sm:$0xff]
        %v569 = vld [vmem:[%s215 + $0x898] sm:$0xff]
        %v570 = vld [vmem:[%s215 + $0x8a0] sm:$0xff]
        %v571 = vld [vmem:[%s215 + $0x8a8] sm:$0xff]
        %v572 = vld [vmem:[%s215 + $0x8b0] sm:$0xff]
        %v573 = vld [vmem:[%s215 + $0x8b8] sm:$0xff]
        %v574 = vld [vmem:[%s215 + $0x8c0] sm:$0xff]
        %v575 = vld [vmem:[%s215 + $0x8c8] sm:$0xff]
        %v576 = vld [vmem:[%s215 + $0x8d0] sm:$0xff]
        %v577 = vld [vmem:[%s215 + $0x8d8] sm:$0xff]
        %v578 = vld [vmem:[%s215 + $0x8e0] sm:$0xff]
        %v579 = vld [vmem:[%s215 + $0x8e8] sm:$0xff]
        %v580 = vld [vmem:[%s215 + $0x8f0] sm:$0xff]
        %v581 = vld [vmem:[%s215 + $0x8f8] sm:$0xff]
        %v582 = vld [vmem:[%s215 + $0x900] sm:$0xff]
        %v583 = vld [vmem:[%s215 + $0x908] sm:$0xff]
        %v584 = vld [vmem:[%s215 + $0x910] sm:$0xff]
        %v585 = vld [vmem:[%s215 + $0x918] sm:$0xff]
        %v586 = vld [vmem:[%s215 + $0x920] sm:$0xff]
        %v587 = vld [vmem:[%s215 + $0x928] sm:$0xff]
        %v588 = vld [vmem:[%s215 + $0x930] sm:$0xff]
        %v589 = vld [vmem:[%s215 + $0x938] sm:$0xff]
        %v590 = vld [vmem:[%s215 + $0x940] sm:$0xff]
        %v591 = vld [vmem:[%s215 + $0x948] sm:$0xff]
        %v592 = vld [vmem:[%s215 + $0x950] sm:$0xff]
        %v593 = vld [vmem:[%s215 + $0x958] sm:$0xff]
        %v594 = vld [vmem:[%s215 + $0x960] sm:$0xff]
        %v595 = vld [vmem:[%s215 + $0x968] sm:$0xff]
        %v596 = vld [vmem:[%s215 + $0x970] sm:$0xff]
        %v597 = vld [vmem:[%s215 + $0x978] sm:$0xff]
        %v598 = vld [vmem:[%s215 + $0x980] sm:$0xff]
        %v599 = vld [vmem:[%s215 + $0x988] sm:$0xff]
        %v600 = vld [vmem:[%s215 + $0x990] sm:$0xff]
        %v601 = vld [vmem:[%s215 + $0x998] sm:$0xff]
        %v602 = vld [vmem:[%s215 + $0x9a0] sm:$0xff]
        %v603 = vld [vmem:[%s215 + $0x9a8] sm:$0xff]
        %v604 = vld [vmem:[%s215 + $0x9b0] sm:$0xff]
        %v605 = vld [vmem:[%s215 + $0x9b8] sm:$0xff]
        %v606 = vld [vmem:[%s215 + $0x9c0] sm:$0xff]
        %v607 = vld [vmem:[%s215 + $0x9c8] sm:$0xff]
        %v608 = vld [vmem:[%s215 + $0x9d0] sm:$0xff]
        %v609 = vld [vmem:[%s215 + $0x9d8] sm:$0xff]
        %v610 = vld [vmem:[%s215 + $0x9e0] sm:$0xff]
        %v611 = vld [vmem:[%s215 + $0x9e8] sm:$0xff]
        %v612 = vld [vmem:[%s215 + $0x9f0] sm:$0xff]
        %v613 = vld [vmem:[%s215 + $0x9f8] sm:$0xff]
        %v614 = vld [vmem:[%s215 + $0xa00] sm:$0xff]
        %v615 = vld [vmem:[%s215 + $0xa08] sm:$0xff]
        %v616 = vld [vmem:[%s215 + $0xa10] sm:$0xff]
        %v617 = vld [vmem:[%s215 + $0xa18] sm:$0xff]
        %v618 = vld [vmem:[%s215 + $0xa20] sm:$0xff]
        %v619 = vld [vmem:[%s215 + $0xa28] sm:$0xff]
        %v620 = vld [vmem:[%s215 + $0xa30] sm:$0xff]
        %v621 = vld [vmem:[%s215 + $0xa38] sm:$0xff]
        %v622 = vld [vmem:[%s215 + $0xa40] sm:$0xff]
        %v623 = vld [vmem:[%s215 + $0xa48] sm:$0xff]
        %v624 = vld [vmem:[%s215 + $0xa50] sm:$0xff]
        %v625 = vld [vmem:[%s215 + $0xa58] sm:$0xff]
        %v626 = vld [vmem:[%s215 + $0xa60] sm:$0xff]
        %v627 = vld [vmem:[%s215 + $0xa68] sm:$0xff]
        %v628 = vld [vmem:[%s215 + $0xa70] sm:$0xff]
        %v629 = vld [vmem:[%s215 + $0xa78] sm:$0xff]
        %v630 = vld [vmem:[%s215 + $0xa80] sm:$0xff]
        %v631 = vld [vmem:[%s215 + $0xa88] sm:$0xff]
        %v632 = vld [vmem:[%s215 + $0xa90] sm:$0xff]
        %v633 = vld [vmem:[%s215 + $0xa98] sm:$0xff]
        %v634 = vld [vmem:[%s215 + $0xaa0] sm:$0xff]
        %v635 = vld [vmem:[%s215 + $0xaa8] sm:$0xff]
        %v636 = vld [vmem:[%s215 + $0xab0] sm:$0xff]
        %v637 = vld [vmem:[%s215 + $0xab8] sm:$0xff]
        %v638 = vld [vmem:[%s215 + $0xac0] sm:$0xff]
        %v639 = vld [vmem:[%s215 + $0xac8] sm:$0xff]
        %v640 = vld [vmem:[%s215 + $0xad0] sm:$0xff]
        %v641 = vld [vmem:[%s215 + $0xad8] sm:$0xff]
        %v642 = vld [vmem:[%s215 + $0xae0] sm:$0xff]
        %v643 = vld [vmem:[%s215 + $0xae8] sm:$0xff]
        %v644 = vld [vmem:[%s215 + $0xaf0] sm:$0xff]
        %v645 = vld [vmem:[%s215 + $0xaf8] sm:$0xff]
        %v646 = vld [vmem:[%s215 + $0xb00] sm:$0xff]
        %v647 = vld [vmem:[%s215 + $0xb08] sm:$0xff]
        %v648 = vld [vmem:[%s215 + $0xb10] sm:$0xff]
        %v649 = vld [vmem:[%s215 + $0xb18] sm:$0xff]
        %v650 = vld [vmem:[%s215 + $0xb20] sm:$0xff]
        %v651 = vld [vmem:[%s215 + $0xb28] sm:$0xff]
        %v652 = vld [vmem:[%s215 + $0xb30] sm:$0xff]
        %v653 = vld [vmem:[%s215 + $0xb38] sm:$0xff]
        %v654 = vld [vmem:[%s215 + $0xb40] sm:$0xff]
        %v655 = vld [vmem:[%s215 + $0xb48] sm:$0xff]
        %v656 = vld [vmem:[%s215 + $0xb50] sm:$0xff]
        %v657 = vld [vmem:[%s215 + $0xb58] sm:$0xff]
        %v658 = vld [vmem:[%s215 + $0xb60] sm:$0xff]
        %v659 = vld [vmem:[%s215 + $0xb68] sm:$0xff]
        %v660 = vld [vmem:[%s215 + $0xb70] sm:$0xff]
        %v661 = vld [vmem:[%s215 + $0xb78] sm:$0xff]
        %v662 = vld [vmem:[%s215 + $0xb80] sm:$0xff]
        %v663 = vld [vmem:[%s215 + $0xb88] sm:$0xff]
        %v664 = vld [vmem:[%s215 + $0xb90] sm:$0xff]
        %v665 = vld [vmem:[%s215 + $0xb98] sm:$0xff]
        %v666 = vld [vmem:[%s215 + $0xba0] sm:$0xff]
        %v667 = vld [vmem:[%s215 + $0xba8] sm:$0xff]
        %v668 = vld [vmem:[%s215 + $0xbb0] sm:$0xff]
        %v669 = vld [vmem:[%s215 + $0xbb8] sm:$0xff]
        %v670 = vld [vmem:[%s215 + $0xbc0] sm:$0xff]
        %v671 = vld [vmem:[%s215 + $0xbc8] sm:$0xff]
        %v672 = vld [vmem:[%s215 + $0xbd0] sm:$0xff]
        %v673 = vld [vmem:[%s215 + $0xbd8] sm:$0xff]
        %v674 = vld [vmem:[%s215 + $0xbe0] sm:$0xff]
        %v675 = vld [vmem:[%s215 + $0xbe8] sm:$0xff]
        %v676 = vld [vmem:[%s215 + $0xbf0] sm:$0xff]
        %v677 = vld [vmem:[%s215 + $0xbf8] sm:$0xff]
        %v678 = vld [vmem:[%s215 + $0xc00] sm:$0xff]
        %v679 = vld [vmem:[%s215 + $0xc08] sm:$0xff]
        %v680 = vld [vmem:[%s215 + $0xc10] sm:$0xff]
        %v681 = vld [vmem:[%s215 + $0xc18] sm:$0xff]
        %v682 = vld [vmem:[%s215 + $0xc20] sm:$0xff]
        %v683 = vld [vmem:[%s215 + $0xc28] sm:$0xff]
        %v684 = vld [vmem:[%s215 + $0xc30] sm:$0xff]
        %v685 = vld [vmem:[%s215 + $0xc38] sm:$0xff]
        %v686 = vld [vmem:[%s215 + $0xc40] sm:$0xff]
        %v687 = vld [vmem:[%s215 + $0xc48] sm:$0xff]
        %v688 = vld [vmem:[%s215 + $0xc50] sm:$0xff]
        %v689 = vld [vmem:[%s215 + $0xc58] sm:$0xff]
        %v690 = vld [vmem:[%s215 + $0xc60] sm:$0xff]
        %v691 = vld [vmem:[%s215 + $0xc68] sm:$0xff]
        %v692 = vld [vmem:[%s215 + $0xc70] sm:$0xff]
        %v693 = vld [vmem:[%s215 + $0xc78] sm:$0xff]
        %v694 = vld [vmem:[%s215 + $0xc80] sm:$0xff]
        %v695 = vld [vmem:[%s215 + $0xc88] sm:$0xff]
        %v696 = vld [vmem:[%s215 + $0xc90] sm:$0xff]
        %v697 = vld [vmem:[%s215 + $0xc98] sm:$0xff]
        %v698 = vld [vmem:[%s215 + $0xca0] sm:$0xff]
        %v699 = vld [vmem:[%s215 + $0xca8] sm:$0xff]
        %v700 = vld [vmem:[%s215 + $0xcb0] sm:$0xff]
        %v701 = vld [vmem:[%s215 + $0xcb8] sm:$0xff]
        %v702 = vld [vmem:[%s215 + $0xcc0] sm:$0xff]
        %v703 = vld [vmem:[%s215 + $0xcc8] sm:$0xff]
        %v704 = vld [vmem:[%s215 + $0xcd0] sm:$0xff]
        %v705 = vld [vmem:[%s215 + $0xcd8] sm:$0xff]
        %v706 = vld [vmem:[%s215 + $0xce0] sm:$0xff]
        %v707 = vld [vmem:[%s215 + $0xce8] sm:$0xff]
        %v708 = vld [vmem:[%s215 + $0xcf0] sm:$0xff]
        %v709 = vld [vmem:[%s215 + $0xcf8] sm:$0xff]
        %v710 = vld [vmem:[%s215 + $0xd00] sm:$0xff]
        %v711 = vld [vmem:[%s215 + $0xd08] sm:$0xff]
        %v712 = vld [vmem:[%s215 + $0xd10] sm:$0xff]
        %v713 = vld [vmem:[%s215 + $0xd18] sm:$0xff]
        %v714 = vld [vmem:[%s215 + $0xd20] sm:$0xff]
        %v715 = vld [vmem:[%s215 + $0xd28] sm:$0xff]
        %v716 = vld [vmem:[%s215 + $0xd30] sm:$0xff]
        %v717 = vld [vmem:[%s215 + $0xd38] sm:$0xff]
        %v718 = vld [vmem:[%s215 + $0xd40] sm:$0xff]
        %v719 = vld [vmem:[%s215 + $0xd48] sm:$0xff]
        %v720 = vld [vmem:[%s215 + $0xd50] sm:$0xff]
        %v721 = vld [vmem:[%s215 + $0xd58] sm:$0xff]
        %v722 = vld [vmem:[%s215 + $0xd60] sm:$0xff]
        %v723 = vld [vmem:[%s215 + $0xd68] sm:$0xff]
        %v724 = vld [vmem:[%s215 + $0xd70] sm:$0xff]
        %v725 = vld [vmem:[%s215 + $0xd78] sm:$0xff]
        %v726 = vld [vmem:[%s215 + $0xd80] sm:$0xff]
        %v727 = vld [vmem:[%s215 + $0xd88] sm:$0xff]
        %v728 = vld [vmem:[%s215 + $0xd90] sm:$0xff]
        %v729 = vld [vmem:[%s215 + $0xd98] sm:$0xff]
        %v730 = vld [vmem:[%s215 + $0xda0] sm:$0xff]
        %v731 = vld [vmem:[%s215 + $0xda8] sm:$0xff]
        %v732 = vld [vmem:[%s215 + $0xdb0] sm:$0xff]
        %v733 = vld [vmem:[%s215 + $0xdb8] sm:$0xff]
        %v734 = vld [vmem:[%s215 + $0xdc0] sm:$0xff]
        %v735 = vld [vmem:[%s215 + $0xdc8] sm:$0xff]
        %v736 = vld [vmem:[%s215 + $0xdd0] sm:$0xff]
        %v737 = vld [vmem:[%s215 + $0xdd8] sm:$0xff]
        %v738 = vld [vmem:[%s215 + $0xde0] sm:$0xff]
        %v739 = vld [vmem:[%s215 + $0xde8] sm:$0xff]
        %v740 = vld [vmem:[%s215 + $0xdf0] sm:$0xff]
        %v741 = vld [vmem:[%s215 + $0xdf8] sm:$0xff]
        %v742 = vld [vmem:[%s215 + $0xe00] sm:$0xff]
        %v743 = vld [vmem:[%s215 + $0xe08] sm:$0xff]
        %v744 = vld [vmem:[%s215 + $0xe10] sm:$0xff]
        %v745 = vld [vmem:[%s215 + $0xe18] sm:$0xff]
        %v746 = vld [vmem:[%s215 + $0xe20] sm:$0xff]
        %v747 = vld [vmem:[%s215 + $0xe28] sm:$0xff]
        %v748 = vld [vmem:[%s215 + $0xe30] sm:$0xff]
        %v749 = vld [vmem:[%s215 + $0xe38] sm:$0xff]
        %v750 = vld [vmem:[%s215 + $0xe40] sm:$0xff]
        %v751 = vld [vmem:[%s215 + $0xe48] sm:$0xff]
        %v752 = vld [vmem:[%s215 + $0xe50] sm:$0xff]
        %v753 = vld [vmem:[%s215 + $0xe58] sm:$0xff]
        %v754 = vld [vmem:[%s215 + $0xe60] sm:$0xff]
        %v755 = vld [vmem:[%s215 + $0xe68] sm:$0xff]
        %v756 = vld [vmem:[%s215 + $0xe70] sm:$0xff]
        %v757 = vld [vmem:[%s215 + $0xe78] sm:$0xff]
        %v758 = vld [vmem:[%s215 + $0xe80] sm:$0xff]
        %v759 = vld [vmem:[%s215 + $0xe88] sm:$0xff]
        %v760 = vld [vmem:[%s215 + $0xe90] sm:$0xff]
        %v761 = vld [vmem:[%s215 + $0xe98] sm:$0xff]
        %v762 = vld [vmem:[%s215 + $0xea0] sm:$0xff]
        %v763 = vld [vmem:[%s215 + $0xea8] sm:$0xff]
        %v764 = vld [vmem:[%s215 + $0xeb0] sm:$0xff]
        %v765 = vld [vmem:[%s215 + $0xeb8] sm:$0xff]
        %v766 = vld [vmem:[%s215 + $0xec0] sm:$0xff]
        %v767 = vld [vmem:[%s215 + $0xec8] sm:$0xff]
        %v768 = vld [vmem:[%s215 + $0xed0] sm:$0xff]
        %v769 = vld [vmem:[%s215 + $0xed8] sm:$0xff]
        %v770 = vld [vmem:[%s215 + $0xee0] sm:$0xff]
        %v771 = vld [vmem:[%s215 + $0xee8] sm:$0xff]
        %v772 = vld [vmem:[%s215 + $0xef0] sm:$0xff]
        %v773 = vld [vmem:[%s215 + $0xef8] sm:$0xff]
        %v774 = vld [vmem:[%s215 + $0xf00] sm:$0xff]
        %v775 = vld [vmem:[%s215 + $0xf08] sm:$0xff]
        %v776 = vld [vmem:[%s215 + $0xf10] sm:$0xff]
        %v777 = vld [vmem:[%s215 + $0xf18] sm:$0xff]
        %v778 = vld [vmem:[%s215 + $0xf20] sm:$0xff]
        %v779 = vld [vmem:[%s215 + $0xf28] sm:$0xff]
        %v780 = vld [vmem:[%s215 + $0xf30] sm:$0xff]
        %v781 = vld [vmem:[%s215 + $0xf38] sm:$0xff]
        %v782 = vld [vmem:[%s215 + $0xf40] sm:$0xff]
        %v783 = vld [vmem:[%s215 + $0xf48] sm:$0xff]
        %v784 = vld [vmem:[%s215 + $0xf50] sm:$0xff]
        %v785 = vld [vmem:[%s215 + $0xf58] sm:$0xff]
        %v786 = vld [vmem:[%s215 + $0xf60] sm:$0xff]
        %v787 = vld [vmem:[%s215 + $0xf68] sm:$0xff]
        %v788 = vld [vmem:[%s215 + $0xf70] sm:$0xff]
        %v789 = vld [vmem:[%s215 + $0xf78] sm:$0xff]
        %v790 = vld [vmem:[%s215 + $0xf80] sm:$0xff]
        %v791 = vld [vmem:[%s215 + $0xf88] sm:$0xff]
        %v792 = vld [vmem:[%s215 + $0xf90] sm:$0xff]
        %v793 = vld [vmem:[%s215 + $0xf98] sm:$0xff]
        %v794 = vld [vmem:[%s215 + $0xfa0] sm:$0xff]
        %v795 = vld [vmem:[%s215 + $0xfa8] sm:$0xff]
        %v796 = vld [vmem:[%s215 + $0xfb0] sm:$0xff]
        %v797 = vld [vmem:[%s215 + $0xfb8] sm:$0xff]
        %v798 = vld [vmem:[%s215 + $0xfc0] sm:$0xff]
        %v799 = vld [vmem:[%s215 + $0xfc8] sm:$0xff]
        %v800 = vld [vmem:[%s215 + $0xfd0] sm:$0xff]
        %v801 = vld [vmem:[%s215 + $0xfd8] sm:$0xff]
        %v802 = vld [vmem:[%s215 + $0xfe0] sm:$0xff]
        %v803 = vld [vmem:[%s215 + $0xfe8] sm:$0xff]
        %v804 = vld [vmem:[%s215 + $0xff0] sm:$0xff]
        %v805 = vld [vmem:[%s215 + $0xff8] sm:$0xff]
        %v806 = vld [vmem:[%s215 + $0x1000] sm:$0xff]
        %v807 = vld [vmem:[%s215 + $0x1008] sm:$0xff]
        %v808 = vld [vmem:[%s215 + $0x1010] sm:$0xff]
        %v809 = vld [vmem:[%s215 + $0x1018] sm:$0xff]
        %v810 = vld [vmem:[%s215 + $0x1020] sm:$0xff]
        %v811 = vld [vmem:[%s215 + $0x1028] sm:$0xff]
        %v812 = vld [vmem:[%s215 + $0x1030] sm:$0xff]
        %v813 = vld [vmem:[%s215 + $0x1038] sm:$0xff]
        %v814 = vld [vmem:[%s215 + $0x1040] sm:$0xff]
        %v815 = vld [vmem:[%s215 + $0x1048] sm:$0xff]
        %v816 = vld [vmem:[%s215 + $0x1050] sm:$0xff]
        %v817 = vld [vmem:[%s215 + $0x1058] sm:$0xff]
        %v818 = vld [vmem:[%s215 + $0x1060] sm:$0xff]
        %v819 = vld [vmem:[%s215 + $0x1068] sm:$0xff]
        %v820 = vld [vmem:[%s215 + $0x1070] sm:$0xff]
        %v821 = vld [vmem:[%s215 + $0x1078] sm:$0xff]
        %v822 = vld [vmem:[%s215 + $0x1080] sm:$0xff]
        %v823 = vld [vmem:[%s215 + $0x1088] sm:$0xff]
        %v824 = vld [vmem:[%s215 + $0x1090] sm:$0xff]
        %v825 = vld [vmem:[%s215 + $0x1098] sm:$0xff]
        %v826 = vld [vmem:[%s215 + $0x10a0] sm:$0xff]
        %v827 = vld [vmem:[%s215 + $0x10a8] sm:$0xff]
        %v828 = vld [vmem:[%s215 + $0x10b0] sm:$0xff]
        %v829 = vld [vmem:[%s215 + $0x10b8] sm:$0xff]
        %v830 = vld [vmem:[%s215 + $0x10c0] sm:$0xff]
        %v831 = vld [vmem:[%s215 + $0x10c8] sm:$0xff]
        %v832 = vld [vmem:[%s215 + $0x10d0] sm:$0xff]
        %v833 = vld [vmem:[%s215 + $0x10d8] sm:$0xff]
        %v834 = vld [vmem:[%s215 + $0x10e0] sm:$0xff]
        %v835 = vld [vmem:[%s215 + $0x10e8] sm:$0xff]
        %v836 = vld [vmem:[%s215 + $0x10f0] sm:$0xff]
        %v837 = vld [vmem:[%s215 + $0x10f8] sm:$0xff]
        %v838 = vld [vmem:[%s215 + $0x1100] sm:$0xff]
        %v839 = vld [vmem:[%s215 + $0x1108] sm:$0xff]
        %v840 = vld [vmem:[%s215 + $0x1110] sm:$0xff]
        %v841 = vld [vmem:[%s215 + $0x1118] sm:$0xff]
        %v842 = vld [vmem:[%s215 + $0x1120] sm:$0xff]
        %v843 = vld [vmem:[%s215 + $0x1128] sm:$0xff]
        %v844 = vld [vmem:[%s215 + $0x1130] sm:$0xff]
        %v845 = vld [vmem:[%s215 + $0x1138] sm:$0xff]
        %v846 = vld [vmem:[%s215 + $0x1140] sm:$0xff]
        %v847 = vld [vmem:[%s215 + $0x1148] sm:$0xff]
        %v848 = vld [vmem:[%s215 + $0x1150] sm:$0xff]
        %v849 = vld [vmem:[%s215 + $0x1158] sm:$0xff]
        %v850 = vld [vmem:[%s215 + $0x1160] sm:$0xff]
        %v851 = vld [vmem:[%s215 + $0x1168] sm:$0xff]
        %v852 = vld [vmem:[%s215 + $0x1170] sm:$0xff]
        %v853 = vld [vmem:[%s215 + $0x1178] sm:$0xff]
        %v854 = vld [vmem:[%s215 + $0x1180] sm:$0xff]
        %v855 = vld [vmem:[%s215 + $0x1188] sm:$0xff]
        %v856 = vld [vmem:[%s215 + $0x1190] sm:$0xff]
        %v857 = vld [vmem:[%s215 + $0x1198] sm:$0xff]
        %v858 = vld [vmem:[%s215 + $0x11a0] sm:$0xff]
        %v859 = vld [vmem:[%s215 + $0x11a8] sm:$0xff]
        %v860 = vld [vmem:[%s215 + $0x11b0] sm:$0xff]
        %v861 = vld [vmem:[%s215 + $0x11b8] sm:$0xff]
        %v862 = vld [vmem:[%s215 + $0x11c0] sm:$0xff]
        %v863 = vld [vmem:[%s215 + $0x11c8] sm:$0xff]
        %v864 = vld [vmem:[%s215 + $0x11d0] sm:$0xff]
        %v865 = vld [vmem:[%s215 + $0x11d8] sm:$0xff]
        %v866 = vld [vmem:[%s215 + $0x11e0] sm:$0xff]
        %v867 = vld [vmem:[%s215 + $0x11e8] sm:$0xff]
        %v868 = vld [vmem:[%s215 + $0x11f0] sm:$0xff]
        %v869 = vld [vmem:[%s215 + $0x11f8] sm:$0xff]
        %v870 = vld [vmem:[%s215 + $0x1200] sm:$0xff]
        %v871 = vld [vmem:[%s215 + $0x1208] sm:$0xff]
        %v872 = vld [vmem:[%s215 + $0x1210] sm:$0xff]
        %v873 = vld [vmem:[%s215 + $0x1218] sm:$0xff]
        %v874 = vld [vmem:[%s215 + $0x1220] sm:$0xff]
        %v875 = vld [vmem:[%s215 + $0x1228] sm:$0xff]
        %v876 = vld [vmem:[%s215 + $0x1230] sm:$0xff]
        %v877 = vld [vmem:[%s215 + $0x1238] sm:$0xff]
        %v878 = vld [vmem:[%s215 + $0x1240] sm:$0xff]
        %v879 = vld [vmem:[%s215 + $0x1248] sm:$0xff]
        %v880 = vld [vmem:[%s215 + $0x1250] sm:$0xff]
        %v881 = vld [vmem:[%s215 + $0x1258] sm:$0xff]
        %v882 = vld [vmem:[%s215 + $0x1260] sm:$0xff]
        %v883 = vld [vmem:[%s215 + $0x1268] sm:$0xff]
        %v884 = vld [vmem:[%s215 + $0x1270] sm:$0xff]
        %v885 = vld [vmem:[%s215 + $0x1278] sm:$0xff]
        %v886 = vld [vmem:[%s215 + $0x1280] sm:$0xff]
        %v887 = vld [vmem:[%s215 + $0x1288] sm:$0xff]
        %v888 = vld [vmem:[%s215 + $0x1290] sm:$0xff]
        %v889 = vld [vmem:[%s215 + $0x1298] sm:$0xff]
        %v890 = vld [vmem:[%s215 + $0x12a0] sm:$0xff]
        %v891 = vld [vmem:[%s215 + $0x12a8] sm:$0xff]
        %v892 = vld [vmem:[%s215 + $0x12b0] sm:$0xff]
        %v893 = vld [vmem:[%s215 + $0x12b8] sm:$0xff]
        %v894 = vld [vmem:[%s215 + $0x12c0] sm:$0xff]
        %v895 = vld [vmem:[%s215 + $0x12c8] sm:$0xff]
        %v896 = vld [vmem:[%s215 + $0x12d0] sm:$0xff]
        %v897 = vld [vmem:[%s215 + $0x12d8] sm:$0xff]
        %v898 = vld [vmem:[%s215 + $0x12e0] sm:$0xff]
        %v899 = vld [vmem:[%s215 + $0x12e8] sm:$0xff]
        %v900 = vld [vmem:[%s215 + $0x12f0] sm:$0xff]
        %v901 = vld [vmem:[%s215 + $0x12f8] sm:$0xff]
        %v902 = vld [vmem:[%s215 + $0x1300] sm:$0xff]
        %v903 = vld [vmem:[%s215 + $0x1308] sm:$0xff]
        %v904 = vld [vmem:[%s215 + $0x1310] sm:$0xff]
        %v905 = vld [vmem:[%s215 + $0x1318] sm:$0xff]
        %v906 = vld [vmem:[%s215 + $0x1320] sm:$0xff]
        %v907 = vld [vmem:[%s215 + $0x1328] sm:$0xff]
        %v908 = vld [vmem:[%s215 + $0x1330] sm:$0xff]
        %v909 = vld [vmem:[%s215 + $0x1338] sm:$0xff]
        %v910 = vld [vmem:[%s215 + $0x1340] sm:$0xff]
        %v911 = vld [vmem:[%s215 + $0x1348] sm:$0xff]
        %v912 = vld [vmem:[%s215 + $0x1350] sm:$0xff]
        %v913 = vld [vmem:[%s215 + $0x1358] sm:$0xff]
        %v914 = vld [vmem:[%s215 + $0x1360] sm:$0xff]
        %v915 = vld [vmem:[%s215 + $0x1368] sm:$0xff]
        %v916 = vld [vmem:[%s215 + $0x1370] sm:$0xff]
        %v917 = vld [vmem:[%s215 + $0x1378] sm:$0xff]
        %v918 = vld [vmem:[%s215 + $0x1380] sm:$0xff]
        %v919 = vld [vmem:[%s215 + $0x1388] sm:$0xff]
        %v920 = vld [vmem:[%s215 + $0x1390] sm:$0xff]
        %v921 = vld [vmem:[%s215 + $0x1398] sm:$0xff]
        %v922 = vld [vmem:[%s215 + $0x13a0] sm:$0xff]
        %v923 = vld [vmem:[%s215 + $0x13a8] sm:$0xff]
        %v924 = vld [vmem:[%s215 + $0x13b0] sm:$0xff]
        %v925 = vld [vmem:[%s215 + $0x13b8] sm:$0xff]
        %v926 = vld [vmem:[%s215 + $0x13c0] sm:$0xff]
        %v927 = vld [vmem:[%s215 + $0x13c8] sm:$0xff]
        %v928 = vld [vmem:[%s215 + $0x13d0] sm:$0xff]
        %v929 = vld [vmem:[%s215 + $0x13d8] sm:$0xff]
        %v930 = vld [vmem:[%s215 + $0x13e0] sm:$0xff]
        %v931 = vld [vmem:[%s215 + $0x13e8] sm:$0xff]
        %v932 = vld [vmem:[%s215 + $0x13f0] sm:$0xff]
        %v933 = vld [vmem:[%s215 + $0x13f8] sm:$0xff]
        %v934 = vld [vmem:[%s215 + $0x1400] sm:$0xff]
        %v935 = vld [vmem:[%s215 + $0x1408] sm:$0xff]
        %v936 = vld [vmem:[%s215 + $0x1410] sm:$0xff]
        %v937 = vld [vmem:[%s215 + $0x1418] sm:$0xff]
        %v938 = vld [vmem:[%s215 + $0x1420] sm:$0xff]
        %v939 = vld [vmem:[%s215 + $0x1428] sm:$0xff]
        %v940 = vld [vmem:[%s215 + $0x1430] sm:$0xff]
        %v941 = vld [vmem:[%s215 + $0x1438] sm:$0xff]
        %v942 = vld [vmem:[%s215 + $0x1440] sm:$0xff]
        %v943 = vld [vmem:[%s215 + $0x1448] sm:$0xff]
        %v944 = vld [vmem:[%s215 + $0x1450] sm:$0xff]
        %v945 = vld [vmem:[%s215 + $0x1458] sm:$0xff]
        %v946 = vld [vmem:[%s215 + $0x1460] sm:$0xff]
        %v947 = vld [vmem:[%s215 + $0x1468] sm:$0xff]
        %v948 = vld [vmem:[%s215 + $0x1470] sm:$0xff]
        %v949 = vld [vmem:[%s215 + $0x1478] sm:$0xff]
        %v950 = vld [vmem:[%s215 + $0x1480] sm:$0xff]
        %v951 = vld [vmem:[%s215 + $0x1488] sm:$0xff]
        %v952 = vld [vmem:[%s215 + $0x1490] sm:$0xff]
        %v953 = vld [vmem:[%s215 + $0x1498] sm:$0xff]
        %v954 = vld [vmem:[%s215 + $0x14a0] sm:$0xff]
        %v955 = vld [vmem:[%s215 + $0x14a8] sm:$0xff]
        %v956 = vld [vmem:[%s215 + $0x14b0] sm:$0xff]
        %v957 = vld [vmem:[%s215 + $0x14b8] sm:$0xff]
        %v958 = vld [vmem:[%s215 + $0x14c0] sm:$0xff]
        %v959 = vld [vmem:[%s215 + $0x14c8] sm:$0xff]
        %v960 = vld [vmem:[%s215 + $0x14d0] sm:$0xff]
        %v961 = vld [vmem:[%s215 + $0x14d8] sm:$0xff]
        %v962 = vld [vmem:[%s215 + $0x14e0] sm:$0xff]
        %v963 = vld [vmem:[%s215 + $0x14e8] sm:$0xff]
        %v964 = vld [vmem:[%s215 + $0x14f0] sm:$0xff]
        %v965 = vld [vmem:[%s215 + $0x14f8] sm:$0xff]
        %v966 = vld [vmem:[%s215 + $0x1500] sm:$0xff]
        %v967 = vld [vmem:[%s215 + $0x1508] sm:$0xff]
        %v968 = vld [vmem:[%s215 + $0x1510] sm:$0xff]
        %v969 = vld [vmem:[%s215 + $0x1518] sm:$0xff]
        %v970 = vld [vmem:[%s215 + $0x1520] sm:$0xff]
        %v971 = vld [vmem:[%s215 + $0x1528] sm:$0xff]
        %v972 = vld [vmem:[%s215 + $0x1530] sm:$0xff]
        %v973 = vld [vmem:[%s215 + $0x1538] sm:$0xff]
        %v974 = vld [vmem:[%s215 + $0x1540] sm:$0xff]
        %v975 = vld [vmem:[%s215 + $0x1548] sm:$0xff]
        %v976 = vld [vmem:[%s215 + $0x1550] sm:$0xff]
        %v977 = vld [vmem:[%s215 + $0x1558] sm:$0xff]
        %v978 = vld [vmem:[%s215 + $0x1560] sm:$0xff]
        %v979 = vld [vmem:[%s215 + $0x1568] sm:$0xff]
        %v980 = vld [vmem:[%s215 + $0x1570] sm:$0xff]
        %v981 = vld [vmem:[%s215 + $0x1578] sm:$0xff]
        %v982 = vld [vmem:[%s215 + $0x1580] sm:$0xff]
        %v983 = vld [vmem:[%s215 + $0x1588] sm:$0xff]
        %v984 = vld [vmem:[%s215 + $0x1590] sm:$0xff]
        %v985 = vld [vmem:[%s215 + $0x1598] sm:$0xff]
        %v986 = vld [vmem:[%s215 + $0x15a0] sm:$0xff]
        %v987 = vld [vmem:[%s215 + $0x15a8] sm:$0xff]
        %v988 = vld [vmem:[%s215 + $0x15b0] sm:$0xff]
        %v989 = vld [vmem:[%s215 + $0x15b8] sm:$0xff]
        %v990 = vld [vmem:[%s215 + $0x15c0] sm:$0xff]
        %v991 = vld [vmem:[%s215 + $0x15c8] sm:$0xff]
        %v992 = vld [vmem:[%s215 + $0x15d0] sm:$0xff]
        %v993 = vld [vmem:[%s215 + $0x15d8] sm:$0xff]
        %v994 = vld [vmem:[%s215 + $0x15e0] sm:$0xff]
        %v995 = vld [vmem:[%s215 + $0x15e8] sm:$0xff]
        %v996 = vld [vmem:[%s215 + $0x15f0] sm:$0xff]
        %v997 = vld [vmem:[%s215 + $0x15f8] sm:$0xff]
        %v998 = vld [vmem:[%s215 + $0x1600] sm:$0xff]
        %v999 = vld [vmem:[%s215 + $0x1608] sm:$0xff]
        %v1000 = vld [vmem:[%s215 + $0x1610] sm:$0xff]
        %v1001 = vld [vmem:[%s215 + $0x1618] sm:$0xff]
        %v1002 = vld [vmem:[%s215 + $0x1620] sm:$0xff]
        %v1003 = vld [vmem:[%s215 + $0x1628] sm:$0xff]
        %v1004 = vld [vmem:[%s215 + $0x1630] sm:$0xff]
        %v1005 = vld [vmem:[%s215 + $0x1638] sm:$0xff]
        %v1006 = vld [vmem:[%s215 + $0x1640] sm:$0xff]
        %v1007 = vld [vmem:[%s215 + $0x1648] sm:$0xff]
        %v1008 = vld [vmem:[%s215 + $0x1650] sm:$0xff]
        %v1009 = vld [vmem:[%s215 + $0x1658] sm:$0xff]
        %v1010 = vld [vmem:[%s215 + $0x1660] sm:$0xff]
        %v1011 = vld [vmem:[%s215 + $0x1668] sm:$0xff]
        %v1012 = vld [vmem:[%s215 + $0x1670] sm:$0xff]
        %v1013 = vld [vmem:[%s215 + $0x1678] sm:$0xff]
        %v1014 = vld [vmem:[%s215 + $0x1680] sm:$0xff]
        %v1015 = vld [vmem:[%s215 + $0x1688] sm:$0xff]
        %v1016 = vld [vmem:[%s215 + $0x1690] sm:$0xff]
        %v1017 = vld [vmem:[%s215 + $0x1698] sm:$0xff]
        %v1018 = vld [vmem:[%s215 + $0x16a0] sm:$0xff]
        %v1019 = vld [vmem:[%s215 + $0x16a8] sm:$0xff]
        %v1020 = vld [vmem:[%s215 + $0x16b0] sm:$0xff]
        %v1021 = vld [vmem:[%s215 + $0x16b8] sm:$0xff]
        %v1022 = vld [vmem:[%s215 + $0x16c0] sm:$0xff]
        %v1023 = vld [vmem:[%s215 + $0x16c8] sm:$0xff]
        %v1024 = vld [vmem:[%s215 + $0x16d0] sm:$0xff]
        %v1025 = vld [vmem:[%s215 + $0x16d8] sm:$0xff]
        %v1026 = vld [vmem:[%s215 + $0x16e0] sm:$0xff]
        %v1027 = vld [vmem:[%s215 + $0x16e8] sm:$0xff]
        %v1028 = vld [vmem:[%s215 + $0x16f0] sm:$0xff]
        %v1029 = vld [vmem:[%s215 + $0x16f8] sm:$0xff]
        %v1030 = vld [vmem:[%s215 + $0x1700] sm:$0xff]
        %v1031 = vld [vmem:[%s215 + $0x1708] sm:$0xff]
        %v1032 = vld [vmem:[%s215 + $0x1710] sm:$0xff]
        %v1033 = vld [vmem:[%s215 + $0x1718] sm:$0xff]
        %v1034 = vld [vmem:[%s215 + $0x1720] sm:$0xff]
        %v1035 = vld [vmem:[%s215 + $0x1728] sm:$0xff]
        %v1036 = vld [vmem:[%s215 + $0x1730] sm:$0xff]
        %v1037 = vld [vmem:[%s215 + $0x1738] sm:$0xff]
        %v1038 = vld [vmem:[%s215 + $0x1740] sm:$0xff]
        %v1039 = vld [vmem:[%s215 + $0x1748] sm:$0xff]
        %v1040 = vld [vmem:[%s215 + $0x1750] sm:$0xff]
        %v1041 = vld [vmem:[%s215 + $0x1758] sm:$0xff]
        %v1042 = vld [vmem:[%s215 + $0x1760] sm:$0xff]
        %v1043 = vld [vmem:[%s215 + $0x1768] sm:$0xff]
        %v1044 = vld [vmem:[%s215 + $0x1770] sm:$0xff]
        %v1045 = vld [vmem:[%s215 + $0x1778] sm:$0xff]
        %v1046 = vld [vmem:[%s215 + $0x1780] sm:$0xff]
        %v1047 = vld [vmem:[%s215 + $0x1788] sm:$0xff]
        %v1048 = vld [vmem:[%s215 + $0x1790] sm:$0xff]
        %v1049 = vld [vmem:[%s215 + $0x1798] sm:$0xff]
        %v1050 = vld [vmem:[%s215 + $0x17a0] sm:$0xff]
        %v1051 = vld [vmem:[%s215 + $0x17a8] sm:$0xff]
        %v1052 = vld [vmem:[%s215 + $0x17b0] sm:$0xff]
        %v1053 = vld [vmem:[%s215 + $0x17b8] sm:$0xff]
        %v1054 = vld [vmem:[%s215 + $0x17c0] sm:$0xff]
        %v1055 = vld [vmem:[%s215 + $0x17c8] sm:$0xff]
        %v1056 = vld [vmem:[%s215 + $0x17d0] sm:$0xff]
        %v1057 = vld [vmem:[%s215 + $0x17d8] sm:$0xff]
        %v1058 = vld [vmem:[%s215 + $0x17e0] sm:$0xff]
        %v1059 = vld [vmem:[%s215 + $0x17e8] sm:$0xff]
        %v1060 = vld [vmem:[%s215 + $0x17f0] sm:$0xff]
        %v1061 = vld [vmem:[%s215 + $0x17f8] sm:$0xff]
        %v1062 = vld [vmem:[%s215 + $0x1800] sm:$0xff]
        %v1063 = vld [vmem:[%s215 + $0x1808] sm:$0xff]
        %v1064 = vld [vmem:[%s215 + $0x1810] sm:$0xff]
        %v1065 = vld [vmem:[%s215 + $0x1818] sm:$0xff]
        %v1066 = vld [vmem:[%s215 + $0x1820] sm:$0xff]
        %v1067 = vld [vmem:[%s215 + $0x1828] sm:$0xff]
        %v1068 = vld [vmem:[%s215 + $0x1830] sm:$0xff]
        %v1069 = vld [vmem:[%s215 + $0x1838] sm:$0xff]
        %v1070 = vld [vmem:[%s215 + $0x1840] sm:$0xff]
        %v1071 = vld [vmem:[%s215 + $0x1848] sm:$0xff]
        %v1072 = vld [vmem:[%s215 + $0x1850] sm:$0xff]
        %v1073 = vld [vmem:[%s215 + $0x1858] sm:$0xff]
        %v1074 = vld [vmem:[%s215 + $0x1860] sm:$0xff]
        %v1075 = vld [vmem:[%s215 + $0x1868] sm:$0xff]
        %v1076 = vld [vmem:[%s215 + $0x1870] sm:$0xff]
        %v1077 = vld [vmem:[%s215 + $0x1878] sm:$0xff]
        %v1078 = vld [vmem:[%s215 + $0x1880] sm:$0xff]
        %v1079 = vld [vmem:[%s215 + $0x1888] sm:$0xff]
        %v1080 = vld [vmem:[%s215 + $0x1890] sm:$0xff]
        %v1081 = vld [vmem:[%s215 + $0x1898] sm:$0xff]
        %v1082 = vld [vmem:[%s215 + $0x18a0] sm:$0xff]
        %v1083 = vld [vmem:[%s215 + $0x18a8] sm:$0xff]
        %v1084 = vld [vmem:[%s215 + $0x18b0] sm:$0xff]
        %v1085 = vld [vmem:[%s215 + $0x18b8] sm:$0xff]
        %v1086 = vld [vmem:[%s215 + $0x18c0] sm:$0xff]
        %v1087 = vld [vmem:[%s215 + $0x18c8] sm:$0xff]
        %v1088 = vld [vmem:[%s215 + $0x18d0] sm:$0xff]
        %v1089 = vld [vmem:[%s215 + $0x18d8] sm:$0xff]
        %v1090 = vld [vmem:[%s215 + $0x18e0] sm:$0xff]
        %v1091 = vld [vmem:[%s215 + $0x18e8] sm:$0xff]
        %v1092 = vld [vmem:[%s215 + $0x18f0] sm:$0xff]
        %v1093 = vld [vmem:[%s215 + $0x18f8] sm:$0xff]
        %v1094 = vld [vmem:[%s215 + $0x1900] sm:$0xff]
        %v1095 = vld [vmem:[%s215 + $0x1908] sm:$0xff]
        %v1096 = vld [vmem:[%s215 + $0x1910] sm:$0xff]
        %v1097 = vld [vmem:[%s215 + $0x1918] sm:$0xff]
        %v1098 = vld [vmem:[%s215 + $0x1920] sm:$0xff]
        %v1099 = vld [vmem:[%s215 + $0x1928] sm:$0xff]
        %v1100 = vld [vmem:[%s215 + $0x1930] sm:$0xff]
        %v1101 = vld [vmem:[%s215 + $0x1938] sm:$0xff]
        %v1102 = vld [vmem:[%s215 + $0x1940] sm:$0xff]
        %v1103 = vld [vmem:[%s215 + $0x1948] sm:$0xff]
        %v1104 = vld [vmem:[%s215 + $0x1950] sm:$0xff]
        %v1105 = vld [vmem:[%s215 + $0x1958] sm:$0xff]
        %v1106 = vld [vmem:[%s215 + $0x1960] sm:$0xff]
        %v1107 = vld [vmem:[%s215 + $0x1968] sm:$0xff]
        %v1108 = vld [vmem:[%s215 + $0x1970] sm:$0xff]
        %v1109 = vld [vmem:[%s215 + $0x1978] sm:$0xff]
        %v1110 = vld [vmem:[%s215 + $0x1980] sm:$0xff]
        %v1111 = vld [vmem:[%s215 + $0x1988] sm:$0xff]
        %v1112 = vld [vmem:[%s215 + $0x1990] sm:$0xff]
        %v1113 = vld [vmem:[%s215 + $0x1998] sm:$0xff]
        %v1114 = vld [vmem:[%s215 + $0x19a0] sm:$0xff]
        %v1115 = vld [vmem:[%s215 + $0x19a8] sm:$0xff]
        %v1116 = vld [vmem:[%s215 + $0x19b0] sm:$0xff]
        %v1117 = vld [vmem:[%s215 + $0x19b8] sm:$0xff]
        %v1118 = vld [vmem:[%s215 + $0x19c0] sm:$0xff]
        %v1119 = vld [vmem:[%s215 + $0x19c8] sm:$0xff]
        %v1120 = vld [vmem:[%s215 + $0x19d0] sm:$0xff]
        %v1121 = vld [vmem:[%s215 + $0x19d8] sm:$0xff]
        %v1122 = vld [vmem:[%s215 + $0x19e0] sm:$0xff]
        %v1123 = vld [vmem:[%s215 + $0x19e8] sm:$0xff]
        %v1124 = vld [vmem:[%s215 + $0x19f0] sm:$0xff]
        %v1125 = vld [vmem:[%s215 + $0x19f8] sm:$0xff]
        %v1126 = vld [vmem:[%s215 + $0x1a00] sm:$0xff]
        %v1127 = vld [vmem:[%s215 + $0x1a08] sm:$0xff]
        %v1128 = vld [vmem:[%s215 + $0x1a10] sm:$0xff]
        %v1129 = vld [vmem:[%s215 + $0x1a18] sm:$0xff]
        %v1130 = vld [vmem:[%s215 + $0x1a20] sm:$0xff]
        %v1131 = vld [vmem:[%s215 + $0x1a28] sm:$0xff]
        %v1132 = vld [vmem:[%s215 + $0x1a30] sm:$0xff]
        %v1133 = vld [vmem:[%s215 + $0x1a38] sm:$0xff]
        %v1134 = vld [vmem:[%s215 + $0x1a40] sm:$0xff]
        %v1135 = vld [vmem:[%s215 + $0x1a48] sm:$0xff]
        %v1136 = vld [vmem:[%s215 + $0x1a50] sm:$0xff]
        %v1137 = vld [vmem:[%s215 + $0x1a58] sm:$0xff]
        %v1138 = vld [vmem:[%s215 + $0x1a60] sm:$0xff]
        %v1139 = vld [vmem:[%s215 + $0x1a68] sm:$0xff]
        %v1140 = vld [vmem:[%s215 + $0x1a70] sm:$0xff]
        %v1141 = vld [vmem:[%s215 + $0x1a78] sm:$0xff]
        %v1142 = vld [vmem:[%s215 + $0x1a80] sm:$0xff]
        %v1143 = vld [vmem:[%s215 + $0x1a88] sm:$0xff]
        %v1144 = vld [vmem:[%s215 + $0x1a90] sm:$0xff]
        %v1145 = vld [vmem:[%s215 + $0x1a98] sm:$0xff]
        %v1146 = vld [vmem:[%s215 + $0x1aa0] sm:$0xff]
        %v1147 = vld [vmem:[%s215 + $0x1aa8] sm:$0xff]
        %v1148 = vld [vmem:[%s215 + $0x1ab0] sm:$0xff]
        %v1149 = vld [vmem:[%s215 + $0x1ab8] sm:$0xff]
        %v1150 = vld [vmem:[%s215 + $0x1ac0] sm:$0xff]
        %v1151 = vld [vmem:[%s215 + $0x1ac8] sm:$0xff]
        %v1152 = vld [vmem:[%s215 + $0x1ad0] sm:$0xff]
        %v1153 = vld [vmem:[%s215 + $0x1ad8] sm:$0xff]
        %v1154 = vld [vmem:[%s215 + $0x1ae0] sm:$0xff]
        %v1155 = vld [vmem:[%s215 + $0x1ae8] sm:$0xff]
        %v1156 = vld [vmem:[%s215 + $0x1af0] sm:$0xff]
        %v1157 = vld [vmem:[%s215 + $0x1af8] sm:$0xff]
        %v1158 = vld [vmem:[%s215 + $0x1b00] sm:$0xff]
        %v1159 = vld [vmem:[%s215 + $0x1b08] sm:$0xff]
        %v1160 = vld [vmem:[%s215 + $0x1b10] sm:$0xff]
        %v1161 = vld [vmem:[%s215 + $0x1b18] sm:$0xff]
        %v1162 = vld [vmem:[%s215 + $0x1b20] sm:$0xff]
        %v1163 = vld [vmem:[%s215 + $0x1b28] sm:$0xff]
        %v1164 = vld [vmem:[%s215 + $0x1b30] sm:$0xff]
        %v1165 = vld [vmem:[%s215 + $0x1b38] sm:$0xff]
        %v1166 = vld [vmem:[%s215 + $0x1b40] sm:$0xff]
        %v1167 = vld [vmem:[%s215 + $0x1b48] sm:$0xff]
        %v1168 = vld [vmem:[%s215 + $0x1b50] sm:$0xff]
        %v1169 = vld [vmem:[%s215 + $0x1b58] sm:$0xff]
        %v1170 = vld [vmem:[%s215 + $0x1b60] sm:$0xff]
        %v1171 = vld [vmem:[%s215 + $0x1b68] sm:$0xff]
        %v1172 = vld [vmem:[%s215 + $0x1b70] sm:$0xff]
        %v1173 = vld [vmem:[%s215 + $0x1b78] sm:$0xff]
        %v1174 = vld [vmem:[%s215 + $0x1b80] sm:$0xff]
        %v1175 = vld [vmem:[%s215 + $0x1b88] sm:$0xff]
        %v1176 = vld [vmem:[%s215 + $0x1b90] sm:$0xff]
        %v1177 = vld [vmem:[%s215 + $0x1b98] sm:$0xff]
        %v1178 = vld [vmem:[%s215 + $0x1ba0] sm:$0xff]
        %v1179 = vld [vmem:[%s215 + $0x1ba8] sm:$0xff]
        %v1180 = vld [vmem:[%s215 + $0x1bb0] sm:$0xff]
        %v1181 = vld [vmem:[%s215 + $0x1bb8] sm:$0xff]
        %v1182 = vld [vmem:[%s215 + $0x1bc0] sm:$0xff]
        %v1183 = vld [vmem:[%s215 + $0x1bc8] sm:$0xff]
        %v1184 = vld [vmem:[%s215 + $0x1bd0] sm:$0xff]
        %v1185 = vld [vmem:[%s215 + $0x1bd8] sm:$0xff]
        %v1186 = vld [vmem:[%s215 + $0x1be0] sm:$0xff]
        %v1187 = vld [vmem:[%s215 + $0x1be8] sm:$0xff]
        %v1188 = vld [vmem:[%s215 + $0x1bf0] sm:$0xff]
        %v1189 = vld [vmem:[%s215 + $0x1bf8] sm:$0xff]
        %v1190 = vld [vmem:[%s215 + $0x1c00] sm:$0xff]
        %v1191 = vld [vmem:[%s215 + $0x1c08] sm:$0xff]
        %v1192 = vld [vmem:[%s215 + $0x1c10] sm:$0xff]
        %v1193 = vld [vmem:[%s215 + $0x1c18] sm:$0xff]
        %v1194 = vld [vmem:[%s215 + $0x1c20] sm:$0xff]
        %v1195 = vld [vmem:[%s215 + $0x1c28] sm:$0xff]
        %v1196 = vld [vmem:[%s215 + $0x1c30] sm:$0xff]
        %v1197 = vld [vmem:[%s215 + $0x1c38] sm:$0xff]
        %v1198 = vld [vmem:[%s215 + $0x1c40] sm:$0xff]
        %v1199 = vld [vmem:[%s215 + $0x1c48] sm:$0xff]
        %v1200 = vld [vmem:[%s215 + $0x1c50] sm:$0xff]
        %v1201 = vld [vmem:[%s215 + $0x1c58] sm:$0xff]
        %v1202 = vld [vmem:[%s215 + $0x1c60] sm:$0xff]
        %v1203 = vld [vmem:[%s215 + $0x1c68] sm:$0xff]
        %v1204 = vld [vmem:[%s215 + $0x1c70] sm:$0xff]
        %v1205 = vld [vmem:[%s215 + $0x1c78] sm:$0xff]
        %v1206 = vld [vmem:[%s215 + $0x1c80] sm:$0xff]
        %v1207 = vld [vmem:[%s215 + $0x1c88] sm:$0xff]
        %v1208 = vld [vmem:[%s215 + $0x1c90] sm:$0xff]
        %v1209 = vld [vmem:[%s215 + $0x1c98] sm:$0xff]
        %v1210 = vld [vmem:[%s215 + $0x1ca0] sm:$0xff]
        %v1211 = vld [vmem:[%s215 + $0x1ca8] sm:$0xff]
        %v1212 = vld [vmem:[%s215 + $0x1cb0] sm:$0xff]
        %v1213 = vld [vmem:[%s215 + $0x1cb8] sm:$0xff]
        %v1214 = vld [vmem:[%s215 + $0x1cc0] sm:$0xff]
        %v1215 = vld [vmem:[%s215 + $0x1cc8] sm:$0xff]
        %v1216 = vld [vmem:[%s215 + $0x1cd0] sm:$0xff]
        %v1217 = vld [vmem:[%s215 + $0x1cd8] sm:$0xff]
        %v1218 = vld [vmem:[%s215 + $0x1ce0] sm:$0xff]
        %v1219 = vld [vmem:[%s215 + $0x1ce8] sm:$0xff]
        %v1220 = vld [vmem:[%s215 + $0x1cf0] sm:$0xff]
        %v1221 = vld [vmem:[%s215 + $0x1cf8] sm:$0xff]
        %v1222 = vld [vmem:[%s215 + $0x1d00] sm:$0xff]
        %v1223 = vld [vmem:[%s215 + $0x1d08] sm:$0xff]
        %v1224 = vld [vmem:[%s215 + $0x1d10] sm:$0xff]
        %v1225 = vld [vmem:[%s215 + $0x1d18] sm:$0xff]
        %v1226 = vld [vmem:[%s215 + $0x1d20] sm:$0xff]
        %v1227 = vld [vmem:[%s215 + $0x1d28] sm:$0xff]
        %v1228 = vld [vmem:[%s215 + $0x1d30] sm:$0xff]
        %v1229 = vld [vmem:[%s215 + $0x1d38] sm:$0xff]
        %v1230 = vld [vmem:[%s215 + $0x1d40] sm:$0xff]
        %v1231 = vld [vmem:[%s215 + $0x1d48] sm:$0xff]
        %v1232 = vld [vmem:[%s215 + $0x1d50] sm:$0xff]
        %v1233 = vld [vmem:[%s215 + $0x1d58] sm:$0xff]
        %v1234 = vld [vmem:[%s215 + $0x1d60] sm:$0xff]
        %v1235 = vld [vmem:[%s215 + $0x1d68] sm:$0xff]
        %v1236 = vld [vmem:[%s215 + $0x1d70] sm:$0xff]
        %v1237 = vld [vmem:[%s215 + $0x1d78] sm:$0xff]
        %v1238 = vld [vmem:[%s215 + $0x1d80] sm:$0xff]
        %v1239 = vld [vmem:[%s215 + $0x1d88] sm:$0xff]
        %v1240 = vld [vmem:[%s215 + $0x1d90] sm:$0xff]
        %v1241 = vld [vmem:[%s215 + $0x1d98] sm:$0xff]
        %v1242 = vld [vmem:[%s215 + $0x1da0] sm:$0xff]
        %v1243 = vld [vmem:[%s215 + $0x1da8] sm:$0xff]
        %v1244 = vld [vmem:[%s215 + $0x1db0] sm:$0xff]
        %v1245 = vld [vmem:[%s215 + $0x1db8] sm:$0xff]
        %v1246 = vld [vmem:[%s215 + $0x1dc0] sm:$0xff]
        %v1247 = vld [vmem:[%s215 + $0x1dc8] sm:$0xff]
        %v1248 = vld [vmem:[%s215 + $0x1dd0] sm:$0xff]
        %v1249 = vld [vmem:[%s215 + $0x1dd8] sm:$0xff]
        %v1250 = vld [vmem:[%s215 + $0x1de0] sm:$0xff]
        %v1251 = vld [vmem:[%s215 + $0x1de8] sm:$0xff]
        %v1252 = vld [vmem:[%s215 + $0x1df0] sm:$0xff]
        %v1253 = vld [vmem:[%s215 + $0x1df8] sm:$0xff]
        %v1254 = vld [vmem:[%s215 + $0x1e00] sm:$0xff]
        %v1255 = vld [vmem:[%s215 + $0x1e08] sm:$0xff]
        %v1256 = vld [vmem:[%s215 + $0x1e10] sm:$0xff]
        %v1257 = vld [vmem:[%s215 + $0x1e18] sm:$0xff]
        %v1258 = vld [vmem:[%s215 + $0x1e20] sm:$0xff]
        %v1259 = vld [vmem:[%s215 + $0x1e28] sm:$0xff]
        %v1260 = vld [vmem:[%s215 + $0x1e30] sm:$0xff]
        %v1261 = vld [vmem:[%s215 + $0x1e38] sm:$0xff]
        %v1262 = vld [vmem:[%s215 + $0x1e40] sm:$0xff]
        %v1263 = vld [vmem:[%s215 + $0x1e48] sm:$0xff]
        %v1264 = vld [vmem:[%s215 + $0x1e50] sm:$0xff]
        %v1265 = vld [vmem:[%s215 + $0x1e58] sm:$0xff]
        %v1266 = vld [vmem:[%s215 + $0x1e60] sm:$0xff]
        %v1267 = vld [vmem:[%s215 + $0x1e68] sm:$0xff]
        %v1268 = vld [vmem:[%s215 + $0x1e70] sm:$0xff]
        %v1269 = vld [vmem:[%s215 + $0x1e78] sm:$0xff]
        %v1270 = vld [vmem:[%s215 + $0x1e80] sm:$0xff]
        %v1271 = vld [vmem:[%s215 + $0x1e88] sm:$0xff]
        %v1272 = vld [vmem:[%s215 + $0x1e90] sm:$0xff]
        %v1273 = vld [vmem:[%s215 + $0x1e98] sm:$0xff]
        %v1274 = vld [vmem:[%s215 + $0x1ea0] sm:$0xff]
        %v1275 = vld [vmem:[%s215 + $0x1ea8] sm:$0xff]
        %v1276 = vld [vmem:[%s215 + $0x1eb0] sm:$0xff]
        %v1277 = vld [vmem:[%s215 + $0x1eb8] sm:$0xff]
        %v1278 = vld [vmem:[%s215 + $0x1ec0] sm:$0xff]
        %v1279 = vld [vmem:[%s215 + $0x1ec8] sm:$0xff]
        %v1280 = vld [vmem:[%s215 + $0x1ed0] sm:$0xff]
        %v1281 = vld [vmem:[%s215 + $0x1ed8] sm:$0xff]
        %v1282 = vld [vmem:[%s215 + $0x1ee0] sm:$0xff]
        %v1283 = vld [vmem:[%s215 + $0x1ee8] sm:$0xff]
        %v1284 = vld [vmem:[%s215 + $0x1ef0] sm:$0xff]
        %v1285 = vld [vmem:[%s215 + $0x1ef8] sm:$0xff]
        %v1286 = vld [vmem:[%s215 + $0x1f00] sm:$0xff]
        %v1287 = vld [vmem:[%s215 + $0x1f08] sm:$0xff]
        %v1288 = vld [vmem:[%s215 + $0x1f10] sm:$0xff]
        %v1289 = vld [vmem:[%s215 + $0x1f18] sm:$0xff]
        %v1290 = vld [vmem:[%s215 + $0x1f20] sm:$0xff]
        %v1291 = vld [vmem:[%s215 + $0x1f28] sm:$0xff]
        %v1292 = vld [vmem:[%s215 + $0x1f30] sm:$0xff]
        %v1293 = vld [vmem:[%s215 + $0x1f38] sm:$0xff]
        %v1294 = vld [vmem:[%s215 + $0x1f40] sm:$0xff]
        %v1295 = vld [vmem:[%s215 + $0x1f48] sm:$0xff]
        %v1296 = vld [vmem:[%s215 + $0x1f50] sm:$0xff]
        %v1297 = vld [vmem:[%s215 + $0x1f58] sm:$0xff]
        %v1298 = vld [vmem:[%s215 + $0x1f60] sm:$0xff]
        %v1299 = vld [vmem:[%s215 + $0x1f68] sm:$0xff]
        %v1300 = vld [vmem:[%s215 + $0x1f70] sm:$0xff]
        %v1301 = vld [vmem:[%s215 + $0x1f78] sm:$0xff]
        %v1302 = vld [vmem:[%s215 + $0x1f80] sm:$0xff]
        %v1303 = vld [vmem:[%s215 + $0x1f88] sm:$0xff]
        %v1304 = vld [vmem:[%s215 + $0x1f90] sm:$0xff]
        %v1305 = vld [vmem:[%s215 + $0x1f98] sm:$0xff]
        %v1306 = vld [vmem:[%s215 + $0x1fa0] sm:$0xff]
        %v1307 = vld [vmem:[%s215 + $0x1fa8] sm:$0xff]
        %v1308 = vld [vmem:[%s215 + $0x1fb0] sm:$0xff]
        %v1309 = vld [vmem:[%s215 + $0x1fb8] sm:$0xff]
        %v1310 = vld [vmem:[%s215 + $0x1fc0] sm:$0xff]
        %v1311 = vld [vmem:[%s215 + $0x1fc8] sm:$0xff]
        %v1312 = vld [vmem:[%s215 + $0x1fd0] sm:$0xff]
        %v1313 = vld [vmem:[%s215 + $0x1fd8] sm:$0xff]
        %v1314 = vld [vmem:[%s215 + $0x1fe0] sm:$0xff]
        %v1315 = vld [vmem:[%s215 + $0x1fe8] sm:$0xff]
        %v1316 = vld [vmem:[%s215 + $0x1ff0] sm:$0xff]
        %v1317 = vld [vmem:[%s215 + $0x1ff8] sm:$0xff]
        %v1318 = vld [vmem:[%s215 + $0x2000] sm:$0xff]
        %v1319 = vld [vmem:[%s215 + $0x2008] sm:$0xff]
        %v1320 = vld [vmem:[%s215 + $0x2010] sm:$0xff]
        %v1321 = vld [vmem:[%s215 + $0x2018] sm:$0xff]
        %v1322 = vld [vmem:[%s215 + $0x2020] sm:$0xff]
        %v1323 = vld [vmem:[%s215 + $0x2028] sm:$0xff]
        %v1324 = vld [vmem:[%s215 + $0x2030] sm:$0xff]
        %v1325 = vld [vmem:[%s215 + $0x2038] sm:$0xff]
        %v1326 = vld [vmem:[%s215 + $0x2040] sm:$0xff]
        %v1327 = vld [vmem:[%s215 + $0x2048] sm:$0xff]
        %v1328 = vld [vmem:[%s215 + $0x2050] sm:$0xff]
        %v1329 = vld [vmem:[%s215 + $0x2058] sm:$0xff]
        %v1330 = vld [vmem:[%s215 + $0x2060] sm:$0xff]
        %v1331 = vld [vmem:[%s215 + $0x2068] sm:$0xff]
        %v1332 = vld [vmem:[%s215 + $0x2070] sm:$0xff]
        %v1333 = vld [vmem:[%s215 + $0x2078] sm:$0xff]
        %v1334 = vld [vmem:[%s215 + $0x2080] sm:$0xff]
        %v1335 = vld [vmem:[%s215 + $0x2088] sm:$0xff]
        %v1336 = vld [vmem:[%s215 + $0x2090] sm:$0xff]
        %v1337 = vld [vmem:[%s215 + $0x2098] sm:$0xff]
        %v1338 = vld [vmem:[%s215 + $0x20a0] sm:$0xff]
        %v1339 = vld [vmem:[%s215 + $0x20a8] sm:$0xff]
        %v1340 = vld [vmem:[%s215 + $0x20b0] sm:$0xff]
        %v1341 = vld [vmem:[%s215 + $0x20b8] sm:$0xff]
        %v1342 = vld [vmem:[%s215 + $0x20c0] sm:$0xff]
        %v1343 = vld [vmem:[%s215 + $0x20c8] sm:$0xff]
        %v1344 = vld [vmem:[%s215 + $0x20d0] sm:$0xff]
        %v1345 = vld [vmem:[%s215 + $0x20d8] sm:$0xff]
        %v1346 = vld [vmem:[%s215 + $0x20e0] sm:$0xff]
        %v1347 = vld [vmem:[%s215 + $0x20e8] sm:$0xff]
        %v1348 = vld [vmem:[%s215 + $0x20f0] sm:$0xff]
        %v1349 = vld [vmem:[%s215 + $0x20f8] sm:$0xff]
        %v1350 = vld [vmem:[%s215 + $0x2100] sm:$0xff]
        %v1351 = vld [vmem:[%s215 + $0x2108] sm:$0xff]
        %v1352 = vld [vmem:[%s215 + $0x2110] sm:$0xff]
        %v1353 = vld [vmem:[%s215 + $0x2118] sm:$0xff]
        %v1354 = vld [vmem:[%s215 + $0x2120] sm:$0xff]
        %v1355 = vld [vmem:[%s215 + $0x2128] sm:$0xff]
        %v1356 = vld [vmem:[%s215 + $0x2130] sm:$0xff]
        %v1357 = vld [vmem:[%s215 + $0x2138] sm:$0xff]
        %v1358 = vld [vmem:[%s215 + $0x2140] sm:$0xff]
        %v1359 = vld [vmem:[%s215 + $0x2148] sm:$0xff]
        %v1360 = vld [vmem:[%s215 + $0x2150] sm:$0xff]
        %v1361 = vld [vmem:[%s215 + $0x2158] sm:$0xff]
        %v1362 = vld [vmem:[%s215 + $0x2160] sm:$0xff]
        %v1363 = vld [vmem:[%s215 + $0x2168] sm:$0xff]
        %v1364 = vld [vmem:[%s215 + $0x2170] sm:$0xff]
        %v1365 = vld [vmem:[%s215 + $0x2178] sm:$0xff]
        %v1366 = vld [vmem:[%s215 + $0x2180] sm:$0xff]
        %v1367 = vld [vmem:[%s215 + $0x2188] sm:$0xff]
        %v1368 = vld [vmem:[%s215 + $0x2190] sm:$0xff]
        %v1369 = vld [vmem:[%s215 + $0x2198] sm:$0xff]
        %v1370 = vld [vmem:[%s215 + $0x21a0] sm:$0xff]
        %v1371 = vld [vmem:[%s215 + $0x21a8] sm:$0xff]
        %v1372 = vld [vmem:[%s215 + $0x21b0] sm:$0xff]
        %v1373 = vld [vmem:[%s215 + $0x21b8] sm:$0xff]
        %v1374 = vld [vmem:[%s215 + $0x21c0] sm:$0xff]
        %v1375 = vld [vmem:[%s215 + $0x21c8] sm:$0xff]
        %v1376 = vld [vmem:[%s215 + $0x21d0] sm:$0xff]
        %v1377 = vld [vmem:[%s215 + $0x21d8] sm:$0xff]
        %v1378 = vld [vmem:[%s215 + $0x21e0] sm:$0xff]
        %v1379 = vld [vmem:[%s215 + $0x21e8] sm:$0xff]
        %v1380 = vld [vmem:[%s215 + $0x21f0] sm:$0xff]
        %v1381 = vld [vmem:[%s215 + $0x21f8] sm:$0xff]
        %v1382 = vld [vmem:[%s215 + $0x2200] sm:$0xff]
        %v1383 = vld [vmem:[%s215 + $0x2208] sm:$0xff]
        %v1384 = vld [vmem:[%s215 + $0x2210] sm:$0xff]
        %v1385 = vld [vmem:[%s215 + $0x2218] sm:$0xff]
        %v1386 = vld [vmem:[%s215 + $0x2220] sm:$0xff]
        %v1387 = vld [vmem:[%s215 + $0x2228] sm:$0xff]
        %v1388 = vld [vmem:[%s215 + $0x2230] sm:$0xff]
        %v1389 = vld [vmem:[%s215 + $0x2238] sm:$0xff]
        %v1390 = vld [vmem:[%s215 + $0x2240] sm:$0xff]
        %v1391 = vld [vmem:[%s215 + $0x2248] sm:$0xff]
        %v1392 = vld [vmem:[%s215 + $0x2250] sm:$0xff]
        %v1393 = vld [vmem:[%s215 + $0x2258] sm:$0xff]
        %v1394 = vld [vmem:[%s215 + $0x2260] sm:$0xff]
        %v1395 = vld [vmem:[%s215 + $0x2268] sm:$0xff]
        %v1396 = vld [vmem:[%s215 + $0x2270] sm:$0xff]
        %v1397 = vld [vmem:[%s215 + $0x2278] sm:$0xff]
        %v1398 = vld [vmem:[%s215 + $0x2280] sm:$0xff]
        %v1399 = vld [vmem:[%s215 + $0x2288] sm:$0xff]
        %v1400 = vld [vmem:[%s215 + $0x2290] sm:$0xff]
        %v1401 = vld [vmem:[%s215 + $0x2298] sm:$0xff]
        %v1402 = vld [vmem:[%s215 + $0x22a0] sm:$0xff]
        %v1403 = vld [vmem:[%s215 + $0x22a8] sm:$0xff]
        %v1404 = vld [vmem:[%s215 + $0x22b0] sm:$0xff]
        %v1405 = vld [vmem:[%s215 + $0x22b8] sm:$0xff]
        %v1406 = vld [vmem:[%s215 + $0x22c0] sm:$0xff]
        %v1407 = vld [vmem:[%s215 + $0x22c8] sm:$0xff]
        %v1408 = vld [vmem:[%s215 + $0x22d0] sm:$0xff]
        %v1409 = vld [vmem:[%s215 + $0x22d8] sm:$0xff]
        %v1410 = vld [vmem:[%s215 + $0x22e0] sm:$0xff]
        %v1411 = vld [vmem:[%s215 + $0x22e8] sm:$0xff]
        %v1412 = vld [vmem:[%s215 + $0x22f0] sm:$0xff]
        %v1413 = vld [vmem:[%s215 + $0x22f8] sm:$0xff]
        %v1414 = vld [vmem:[%s215 + $0x2300] sm:$0xff]
        %v1415 = vld [vmem:[%s215 + $0x2308] sm:$0xff]
        %v1416 = vld [vmem:[%s215 + $0x2310] sm:$0xff]
        %v1417 = vld [vmem:[%s215 + $0x2318] sm:$0xff]
        %v1418 = vld [vmem:[%s215 + $0x2320] sm:$0xff]
        %v1419 = vld [vmem:[%s215 + $0x2328] sm:$0xff]
        %v1420 = vld [vmem:[%s215 + $0x2330] sm:$0xff]
        %v1421 = vld [vmem:[%s215 + $0x2338] sm:$0xff]
        %v1422 = vld [vmem:[%s215 + $0x2340] sm:$0xff]
        %v1423 = vld [vmem:[%s215 + $0x2348] sm:$0xff]
        %v1424 = vld [vmem:[%s215 + $0x2350] sm:$0xff]
        %v1425 = vld [vmem:[%s215 + $0x2358] sm:$0xff]
        %v1426 = vld [vmem:[%s215 + $0x2360] sm:$0xff]
        %v1427 = vld [vmem:[%s215 + $0x2368] sm:$0xff]
        %v1428 = vld [vmem:[%s215 + $0x2370] sm:$0xff]
        %v1429 = vld [vmem:[%s215 + $0x2378] sm:$0xff]
        %v1430 = vld [vmem:[%s215 + $0x2380] sm:$0xff]
        %v1431 = vld [vmem:[%s215 + $0x2388] sm:$0xff]
        %v1432 = vld [vmem:[%s215 + $0x2390] sm:$0xff]
        %v1433 = vld [vmem:[%s215 + $0x2398] sm:$0xff]
        %v1434 = vld [vmem:[%s215 + $0x23a0] sm:$0xff]
        %v1435 = vld [vmem:[%s215 + $0x23a8] sm:$0xff]
        %v1436 = vld [vmem:[%s215 + $0x23b0] sm:$0xff]
        %v1437 = vld [vmem:[%s215 + $0x23b8] sm:$0xff]
        %v1438 = vld [vmem:[%s215 + $0x23c0] sm:$0xff]
        %v1439 = vld [vmem:[%s215 + $0x23c8] sm:$0xff]
        %v1440 = vld [vmem:[%s215 + $0x23d0] sm:$0xff]
        %v1441 = vld [vmem:[%s215 + $0x23d8] sm:$0xff]
        %v1442 = vld [vmem:[%s215 + $0x23e0] sm:$0xff]
        %v1443 = vld [vmem:[%s215 + $0x23e8] sm:$0xff]
        %v1444 = vld [vmem:[%s215 + $0x23f0] sm:$0xff]
        %v1445 = vld [vmem:[%s215 + $0x23f8] sm:$0xff]
        %v1446 = vld [vmem:[%s215 + $0x2400] sm:$0xff]
        %v1447 = vld [vmem:[%s215 + $0x2408] sm:$0xff]
        %v1448 = vld [vmem:[%s215 + $0x2410] sm:$0xff]
        %v1449 = vld [vmem:[%s215 + $0x2418] sm:$0xff]
        %v1450 = vld [vmem:[%s215 + $0x2420] sm:$0xff]
        %v1451 = vld [vmem:[%s215 + $0x2428] sm:$0xff]
        %v1452 = vld [vmem:[%s215 + $0x2430] sm:$0xff]
        %v1453 = vld [vmem:[%s215 + $0x2438] sm:$0xff]
        %v1454 = vld [vmem:[%s215 + $0x2440] sm:$0xff]
        %v1455 = vld [vmem:[%s215 + $0x2448] sm:$0xff]
        %v1456 = vld [vmem:[%s215 + $0x2450] sm:$0xff]
        %v1457 = vld [vmem:[%s215 + $0x2458] sm:$0xff]
        %v1458 = vld [vmem:[%s215 + $0x2460] sm:$0xff]
        %v1459 = vld [vmem:[%s215 + $0x2468] sm:$0xff]
        %v1460 = vld [vmem:[%s215 + $0x2470] sm:$0xff]
        %v1461 = vld [vmem:[%s215 + $0x2478] sm:$0xff]
        %v1462 = vld [vmem:[%s215 + $0x2480] sm:$0xff]
        %v1463 = vld [vmem:[%s215 + $0x2488] sm:$0xff]
        %v1464 = vld [vmem:[%s215 + $0x2490] sm:$0xff]
        %v1465 = vld [vmem:[%s215 + $0x2498] sm:$0xff]
        %v1466 = vld [vmem:[%s215 + $0x24a0] sm:$0xff]
        %v1467 = vld [vmem:[%s215 + $0x24a8] sm:$0xff]
        %v1468 = vld [vmem:[%s215 + $0x24b0] sm:$0xff]
        %v1469 = vld [vmem:[%s215 + $0x24b8] sm:$0xff]
        %v1470 = vld [vmem:[%s215 + $0x24c0] sm:$0xff]
        %v1471 = vld [vmem:[%s215 + $0x24c8] sm:$0xff]
        %v1472 = vld [vmem:[%s215 + $0x24d0] sm:$0xff]
        %v1473 = vld [vmem:[%s215 + $0x24d8] sm:$0xff]
        %v1474 = vld [vmem:[%s215 + $0x24e0] sm:$0xff]
        %v1475 = vld [vmem:[%s215 + $0x24e8] sm:$0xff]
        %v1476 = vld [vmem:[%s215 + $0x24f0] sm:$0xff]
        %v1477 = vld [vmem:[%s215 + $0x24f8] sm:$0xff]
        %v1478 = vld [vmem:[%s215 + $0x2500] sm:$0xff]
        %v1479 = vld [vmem:[%s215 + $0x2508] sm:$0xff]
        %v1480 = vld [vmem:[%s215 + $0x2510] sm:$0xff]
        %v1481 = vld [vmem:[%s215 + $0x2518] sm:$0xff]
        %v1482 = vld [vmem:[%s215 + $0x2520] sm:$0xff]
        %v1483 = vld [vmem:[%s215 + $0x2528] sm:$0xff]
        %v1484 = vld [vmem:[%s215 + $0x2530] sm:$0xff]
        %v1485 = vld [vmem:[%s215 + $0x2538] sm:$0xff]
        %v1486 = vld [vmem:[%s215 + $0x2540] sm:$0xff]
        %v1487 = vld [vmem:[%s215 + $0x2548] sm:$0xff]
        %v1488 = vld [vmem:[%s215 + $0x2550] sm:$0xff]
        %v1489 = vld [vmem:[%s215 + $0x2558] sm:$0xff]
        %v1490 = vld [vmem:[%s215 + $0x2560] sm:$0xff]
        %v1491 = vld [vmem:[%s215 + $0x2568] sm:$0xff]
        %v1492 = vld [vmem:[%s215 + $0x2570] sm:$0xff]
        %v1493 = vld [vmem:[%s215 + $0x2578] sm:$0xff]
        %v1494 = vld [vmem:[%s215 + $0x2580] sm:$0xff]
        %v1495 = vld [vmem:[%s215 + $0x2588] sm:$0xff]
        %v1496 = vld [vmem:[%s215 + $0x2590] sm:$0xff]
        %v1497 = vld [vmem:[%s215 + $0x2598] sm:$0xff]
        %v1498 = vld [vmem:[%s215 + $0x25a0] sm:$0xff]
        %v1499 = vld [vmem:[%s215 + $0x25a8] sm:$0xff]
        %v1500 = vld [vmem:[%s215 + $0x25b0] sm:$0xff]
        %v1501 = vld [vmem:[%s215 + $0x25b8] sm:$0xff]
        %v1502 = vld [vmem:[%s215 + $0x25c0] sm:$0xff]
        %v1503 = vld [vmem:[%s215 + $0x25c8] sm:$0xff]
        %v1504 = vld [vmem:[%s215 + $0x25d0] sm:$0xff]
        %v1505 = vld [vmem:[%s215 + $0x25d8] sm:$0xff]
        %v1506 = vld [vmem:[%s215 + $0x25e0] sm:$0xff]
        %v1507 = vld [vmem:[%s215 + $0x25e8] sm:$0xff]
        %v1508 = vld [vmem:[%s215 + $0x25f0] sm:$0xff]
        %v1509 = vld [vmem:[%s215 + $0x25f8] sm:$0xff]
        %v1510 = vld [vmem:[%s215 + $0x2600] sm:$0xff]
        %v1511 = vld [vmem:[%s215 + $0x2608] sm:$0xff]
        %v1512 = vld [vmem:[%s215 + $0x2610] sm:$0xff]
        %v1513 = vld [vmem:[%s215 + $0x2618] sm:$0xff]
        %v1514 = vld [vmem:[%s215 + $0x2620] sm:$0xff]
        %v1515 = vld [vmem:[%s215 + $0x2628] sm:$0xff]
        %v1516 = vld [vmem:[%s215 + $0x2630] sm:$0xff]
        %v1517 = vld [vmem:[%s215 + $0x2638] sm:$0xff]
        %v1518 = vld [vmem:[%s215 + $0x2640] sm:$0xff]
        %v1519 = vld [vmem:[%s215 + $0x2648] sm:$0xff]
        %v1520 = vld [vmem:[%s215 + $0x2650] sm:$0xff]
        %v1521 = vld [vmem:[%s215 + $0x2658] sm:$0xff]
        %v1522 = vld [vmem:[%s215 + $0x2660] sm:$0xff]
        %v1523 = vld [vmem:[%s215 + $0x2668] sm:$0xff]
        %v1524 = vld [vmem:[%s215 + $0x2670] sm:$0xff]
        %v1525 = vld [vmem:[%s215 + $0x2678] sm:$0xff]
        %v1526 = vld [vmem:[%s215 + $0x2680] sm:$0xff]
        %v1527 = vld [vmem:[%s215 + $0x2688] sm:$0xff]
        %v1528 = vld [vmem:[%s215 + $0x2690] sm:$0xff]
        %v1529 = vld [vmem:[%s215 + $0x2698] sm:$0xff]
        %v1530 = vld [vmem:[%s215 + $0x26a0] sm:$0xff]
        %v1531 = vld [vmem:[%s215 + $0x26a8] sm:$0xff]
        %v1532 = vld [vmem:[%s215 + $0x26b0] sm:$0xff]
        %v1533 = vld [vmem:[%s215 + $0x26b8] sm:$0xff]
        %v1534 = vld [vmem:[%s215 + $0x26c0] sm:$0xff]
        %v1535 = vld [vmem:[%s215 + $0x26c8] sm:$0xff]
        %v1536 = vld [vmem:[%s215 + $0x26d0] sm:$0xff]
        %v1537 = vld [vmem:[%s215 + $0x26d8] sm:$0xff]
        %v1538 = vld [vmem:[%s215 + $0x26e0] sm:$0xff]
        %v1539 = vld [vmem:[%s215 + $0x26e8] sm:$0xff]
        %v1540 = vld [vmem:[%s215 + $0x26f0] sm:$0xff]
        %v1541 = vld [vmem:[%s215 + $0x26f8] sm:$0xff]
        %v1542 = vld [vmem:[%s215 + $0x2700] sm:$0xff]
        %v1543 = vld [vmem:[%s215 + $0x2708] sm:$0xff]
        %v1544 = vld [vmem:[%s215 + $0x2710] sm:$0xff]
        %v1545 = vld [vmem:[%s215 + $0x2718] sm:$0xff]
        %v1546 = vld [vmem:[%s215 + $0x2720] sm:$0xff]
        %v1547 = vld [vmem:[%s215 + $0x2728] sm:$0xff]
        %v1548 = vld [vmem:[%s215 + $0x2730] sm:$0xff]
        %v1549 = vld [vmem:[%s215 + $0x2738] sm:$0xff]
        %v1550 = vld [vmem:[%s215 + $0x2740] sm:$0xff]
        %v1551 = vld [vmem:[%s215 + $0x2748] sm:$0xff]
        %v1552 = vld [vmem:[%s215 + $0x2750] sm:$0xff]
        %v1553 = vld [vmem:[%s215 + $0x2758] sm:$0xff]
        %v1554 = vld [vmem:[%s215 + $0x2760] sm:$0xff]
        %v1555 = vld [vmem:[%s215 + $0x2768] sm:$0xff]
        %v1556 = vld [vmem:[%s215 + $0x2770] sm:$0xff]
        %v1557 = vld [vmem:[%s215 + $0x2778] sm:$0xff]
        %v1558 = vld [vmem:[%s215 + $0x2780] sm:$0xff]
        %v1559 = vld [vmem:[%s215 + $0x2788] sm:$0xff]
        %v1560 = vld [vmem:[%s215 + $0x2790] sm:$0xff]
        %v1561 = vld [vmem:[%s215 + $0x2798] sm:$0xff]
        %v1562 = vld [vmem:[%s215 + $0x27a0] sm:$0xff]
        %v1563 = vld [vmem:[%s215 + $0x27a8] sm:$0xff]
        %v1564 = vld [vmem:[%s215 + $0x27b0] sm:$0xff]
        %v1565 = vld [vmem:[%s215 + $0x27b8] sm:$0xff]
        %v1566 = vld [vmem:[%s215 + $0x27c0] sm:$0xff]
        %v1567 = vld [vmem:[%s215 + $0x27c8] sm:$0xff]
        %v1568 = vld [vmem:[%s215 + $0x27d0] sm:$0xff]
        %v1569 = vld [vmem:[%s215 + $0x27d8] sm:$0xff]
        %v1570 = vld [vmem:[%s215 + $0x27e0] sm:$0xff]
        %v1571 = vld [vmem:[%s215 + $0x27e8] sm:$0xff]
        %v1572 = vld [vmem:[%s215 + $0x27f0] sm:$0xff]
        %v1573 = vld [vmem:[%s215 + $0x27f8] sm:$0xff]
        %v1574 = vld [vmem:[%s215 + $0x2800] sm:$0xff]
        %v1575 = vld [vmem:[%s215 + $0x2808] sm:$0xff]
        %v1576 = vld [vmem:[%s215 + $0x2810] sm:$0xff]
        %v1577 = vld [vmem:[%s215 + $0x2818] sm:$0xff]
        %v1578 = vld [vmem:[%s215 + $0x2820] sm:$0xff]
        %v1579 = vld [vmem:[%s215 + $0x2828] sm:$0xff]
        %v1580 = vld [vmem:[%s215 + $0x2830] sm:$0xff]
        %v1581 = vld [vmem:[%s215 + $0x2838] sm:$0xff]
        %v1582 = vld [vmem:[%s215 + $0x2840] sm:$0xff]
        %v1583 = vld [vmem:[%s215 + $0x2848] sm:$0xff]
        %v1584 = vld [vmem:[%s215 + $0x2850] sm:$0xff]
        %v1585 = vld [vmem:[%s215 + $0x2858] sm:$0xff]
        %v1586 = vld [vmem:[%s215 + $0x2860] sm:$0xff]
        %v1587 = vld [vmem:[%s215 + $0x2868] sm:$0xff]
        %v1588 = vld [vmem:[%s215 + $0x2870] sm:$0xff]
        %v1589 = vld [vmem:[%s215 + $0x2878] sm:$0xff]
        %v1590 = vld [vmem:[%s215 + $0x2880] sm:$0xff]
        %v1591 = vld [vmem:[%s215 + $0x2888] sm:$0xff]
        %v1592 = vld [vmem:[%s215 + $0x2890] sm:$0xff]
        %v1593 = vld [vmem:[%s215 + $0x2898] sm:$0xff]
        %v1594 = vld [vmem:[%s215 + $0x28a0] sm:$0xff]
        %v1595 = vld [vmem:[%s215 + $0x28a8] sm:$0xff]
        %v1596 = vld [vmem:[%s215 + $0x28b0] sm:$0xff]
        %v1597 = vld [vmem:[%s215 + $0x28b8] sm:$0xff]
        %v1598 = vld [vmem:[%s215 + $0x28c0] sm:$0xff]
        %v1599 = vld [vmem:[%s215 + $0x28c8] sm:$0xff]
        %v1600 = vld [vmem:[%s215 + $0x28d0] sm:$0xff]
        %v1601 = vld [vmem:[%s215 + $0x28d8] sm:$0xff]
        %v1602 = vld [vmem:[%s215 + $0x28e0] sm:$0xff]
        %v1603 = vld [vmem:[%s215 + $0x28e8] sm:$0xff]
        %v1604 = vld [vmem:[%s215 + $0x28f0] sm:$0xff]
        %v1605 = vld [vmem:[%s215 + $0x28f8] sm:$0xff]
        %v1606 = vld [vmem:[%s215 + $0x2900] sm:$0xff]
        %v1607 = vld [vmem:[%s215 + $0x2908] sm:$0xff]
        %v1608 = vld [vmem:[%s215 + $0x2910] sm:$0xff]
        %v1609 = vld [vmem:[%s215 + $0x2918] sm:$0xff]
        %v1610 = vld [vmem:[%s215 + $0x2920] sm:$0xff]
        %v1611 = vld [vmem:[%s215 + $0x2928] sm:$0xff]
        %v1612 = vld [vmem:[%s215 + $0x2930] sm:$0xff]
        %v1613 = vld [vmem:[%s215 + $0x2938] sm:$0xff]
        %v1614 = vld [vmem:[%s215 + $0x2940] sm:$0xff]
        %v1615 = vld [vmem:[%s215 + $0x2948] sm:$0xff]
        %v1616 = vld [vmem:[%s215 + $0x2950] sm:$0xff]
        %v1617 = vld [vmem:[%s215 + $0x2958] sm:$0xff]
        %v1618 = vld [vmem:[%s215 + $0x2960] sm:$0xff]
        %v1619 = vld [vmem:[%s215 + $0x2968] sm:$0xff]
        %v1620 = vld [vmem:[%s215 + $0x2970] sm:$0xff]
        %v1621 = vld [vmem:[%s215 + $0x2978] sm:$0xff]
        %v1622 = vld [vmem:[%s215 + $0x2980] sm:$0xff]
        %v1623 = vld [vmem:[%s215 + $0x2988] sm:$0xff]
        %v1624 = vld [vmem:[%s215 + $0x2990] sm:$0xff]
        %v1625 = vld [vmem:[%s215 + $0x2998] sm:$0xff]
        %v1626 = vld [vmem:[%s215 + $0x29a0] sm:$0xff]
        %v1627 = vld [vmem:[%s215 + $0x29a8] sm:$0xff]
        %v1628 = vld [vmem:[%s215 + $0x29b0] sm:$0xff]
        %v1629 = vld [vmem:[%s215 + $0x29b8] sm:$0xff]
        %v1630 = vld [vmem:[%s215 + $0x29c0] sm:$0xff]
        %v1631 = vld [vmem:[%s215 + $0x29c8] sm:$0xff]
        %v1632 = vld [vmem:[%s215 + $0x29d0] sm:$0xff]
        %v1633 = vld [vmem:[%s215 + $0x29d8] sm:$0xff]
        %v1634 = vld [vmem:[%s215 + $0x29e0] sm:$0xff]
        %v1635 = vld [vmem:[%s215 + $0x29e8] sm:$0xff]
        %v1636 = vld [vmem:[%s215 + $0x29f0] sm:$0xff]
        %v1637 = vld [vmem:[%s215 + $0x29f8] sm:$0xff]
        %v1638 = vld [vmem:[%s215 + $0x2a00] sm:$0xff]
        %v1639 = vld [vmem:[%s215 + $0x2a08] sm:$0xff]
        %v1640 = vld [vmem:[%s215 + $0x2a10] sm:$0xff]
        %v1641 = vld [vmem:[%s215 + $0x2a18] sm:$0xff]
        %v1642 = vld [vmem:[%s215 + $0x2a20] sm:$0xff]
        %v1643 = vld [vmem:[%s215 + $0x2a28] sm:$0xff]
        %v1644 = vld [vmem:[%s215 + $0x2a30] sm:$0xff]
        %v1645 = vld [vmem:[%s215 + $0x2a38] sm:$0xff]
        %v1646 = vld [vmem:[%s215 + $0x2a40] sm:$0xff]
        %v1647 = vld [vmem:[%s215 + $0x2a48] sm:$0xff]
        %v1648 = vld [vmem:[%s215 + $0x2a50] sm:$0xff]
        %v1649 = vld [vmem:[%s215 + $0x2a58] sm:$0xff]
        %v1650 = vld [vmem:[%s215 + $0x2a60] sm:$0xff]
        %v1651 = vld [vmem:[%s215 + $0x2a68] sm:$0xff]
        %v1652 = vld [vmem:[%s215 + $0x2a70] sm:$0xff]
        %v1653 = vld [vmem:[%s215 + $0x2a78] sm:$0xff]
        %v1654 = vld [vmem:[%s215 + $0x2a80] sm:$0xff]
        %v1655 = vld [vmem:[%s215 + $0x2a88] sm:$0xff]
        %v1656 = vld [vmem:[%s215 + $0x2a90] sm:$0xff]
        %v1657 = vld [vmem:[%s215 + $0x2a98] sm:$0xff]
        %v1658 = vld [vmem:[%s215 + $0x2aa0] sm:$0xff]
        %v1659 = vld [vmem:[%s215 + $0x2aa8] sm:$0xff]
        %v1660 = vld [vmem:[%s215 + $0x2ab0] sm:$0xff]
        %v1661 = vld [vmem:[%s215 + $0x2ab8] sm:$0xff]
        %v1662 = vld [vmem:[%s215 + $0x2ac0] sm:$0xff]
        %v1663 = vld [vmem:[%s215 + $0x2ac8] sm:$0xff]
        %v1664 = vld [vmem:[%s215 + $0x2ad0] sm:$0xff]
        %v1665 = vld [vmem:[%s215 + $0x2ad8] sm:$0xff]
        %v1666 = vld [vmem:[%s215 + $0x2ae0] sm:$0xff]
        %v1667 = vld [vmem:[%s215 + $0x2ae8] sm:$0xff]
        %v1668 = vld [vmem:[%s215 + $0x2af0] sm:$0xff]
        %v1669 = vld [vmem:[%s215 + $0x2af8] sm:$0xff]
        %v1670 = vld [vmem:[%s215 + $0x2b00] sm:$0xff]
        %v1671 = vld [vmem:[%s215 + $0x2b08] sm:$0xff]
        %v1672 = vld [vmem:[%s215 + $0x2b10] sm:$0xff]
        %v1673 = vld [vmem:[%s215 + $0x2b18] sm:$0xff]
        %v1674 = vld [vmem:[%s215 + $0x2b20] sm:$0xff]
        %v1675 = vld [vmem:[%s215 + $0x2b28] sm:$0xff]
        %v1676 = vld [vmem:[%s215 + $0x2b30] sm:$0xff]
        %v1677 = vld [vmem:[%s215 + $0x2b38] sm:$0xff]
        %v1678 = vld [vmem:[%s215 + $0x2b40] sm:$0xff]
        %v1679 = vld [vmem:[%s215 + $0x2b48] sm:$0xff]
        %v1680 = vld [vmem:[%s215 + $0x2b50] sm:$0xff]
        %v1681 = vld [vmem:[%s215 + $0x2b58] sm:$0xff]
        %v1682 = vld [vmem:[%s215 + $0x2b60] sm:$0xff]
        %v1683 = vld [vmem:[%s215 + $0x2b68] sm:$0xff]
        %v1684 = vld [vmem:[%s215 + $0x2b70] sm:$0xff]
        %v1685 = vld [vmem:[%s215 + $0x2b78] sm:$0xff]
        %v1686 = vld [vmem:[%s215 + $0x2b80] sm:$0xff]
        %v1687 = vld [vmem:[%s215 + $0x2b88] sm:$0xff]
        %v1688 = vld [vmem:[%s215 + $0x2b90] sm:$0xff]
        %v1689 = vld [vmem:[%s215 + $0x2b98] sm:$0xff]
        %v1690 = vld [vmem:[%s215 + $0x2ba0] sm:$0xff]
        %v1691 = vld [vmem:[%s215 + $0x2ba8] sm:$0xff]
        %v1692 = vld [vmem:[%s215 + $0x2bb0] sm:$0xff]
        %v1693 = vld [vmem:[%s215 + $0x2bb8] sm:$0xff]
        %v1694 = vld [vmem:[%s215 + $0x2bc0] sm:$0xff]
        %v1695 = vld [vmem:[%s215 + $0x2bc8] sm:$0xff]
        %v1696 = vld [vmem:[%s215 + $0x2bd0] sm:$0xff]
        %v1697 = vld [vmem:[%s215 + $0x2bd8] sm:$0xff]
        %v1698 = vld [vmem:[%s215 + $0x2be0] sm:$0xff]
        %v1699 = vld [vmem:[%s215 + $0x2be8] sm:$0xff]
        %v1700 = vld [vmem:[%s215 + $0x2bf0] sm:$0xff]
        %v1701 = vld [vmem:[%s215 + $0x2bf8] sm:$0xff]
        %v1702 = vld [vmem:[%s215 + $0x2c00] sm:$0xff]
        %v1703 = vld [vmem:[%s215 + $0x2c08] sm:$0xff]
        %v1704 = vld [vmem:[%s215 + $0x2c10] sm:$0xff]
        %v1705 = vld [vmem:[%s215 + $0x2c18] sm:$0xff]
        %v1706 = vld [vmem:[%s215 + $0x2c20] sm:$0xff]
        %v1707 = vld [vmem:[%s215 + $0x2c28] sm:$0xff]
        %v1708 = vld [vmem:[%s215 + $0x2c30] sm:$0xff]
        %v1709 = vld [vmem:[%s215 + $0x2c38] sm:$0xff]
        %v1710 = vld [vmem:[%s215 + $0x2c40] sm:$0xff]
        %v1711 = vld [vmem:[%s215 + $0x2c48] sm:$0xff]
        %v1712 = vld [vmem:[%s215 + $0x2c50] sm:$0xff]
        %v1713 = vld [vmem:[%s215 + $0x2c58] sm:$0xff]
        %v1714 = vld [vmem:[%s215 + $0x2c60] sm:$0xff]
        %v1715 = vld [vmem:[%s215 + $0x2c68] sm:$0xff]
        %v1716 = vld [vmem:[%s215 + $0x2c70] sm:$0xff]
        %v1717 = vld [vmem:[%s215 + $0x2c78] sm:$0xff]
        %v1718 = vld [vmem:[%s215 + $0x2c80] sm:$0xff]
        %v1719 = vld [vmem:[%s215 + $0x2c88] sm:$0xff]
        %v1720 = vld [vmem:[%s215 + $0x2c90] sm:$0xff]
        %v1721 = vld [vmem:[%s215 + $0x2c98] sm:$0xff]
        %v1722 = vld [vmem:[%s215 + $0x2ca0] sm:$0xff]
        %v1723 = vld [vmem:[%s215 + $0x2ca8] sm:$0xff]
        %v1724 = vld [vmem:[%s215 + $0x2cb0] sm:$0xff]
        %v1725 = vld [vmem:[%s215 + $0x2cb8] sm:$0xff]
        %v1726 = vld [vmem:[%s215 + $0x2cc0] sm:$0xff]
        %v1727 = vld [vmem:[%s215 + $0x2cc8] sm:$0xff]
        %v1728 = vld [vmem:[%s215 + $0x2cd0] sm:$0xff]
        %v1729 = vld [vmem:[%s215 + $0x2cd8] sm:$0xff]
        %v1730 = vld [vmem:[%s215 + $0x2ce0] sm:$0xff]
        %v1731 = vld [vmem:[%s215 + $0x2ce8] sm:$0xff]
        %v1732 = vld [vmem:[%s215 + $0x2cf0] sm:$0xff]
        %v1733 = vld [vmem:[%s215 + $0x2cf8] sm:$0xff]
        %v1734 = vld [vmem:[%s215 + $0x2d00] sm:$0xff]
        %v1735 = vld [vmem:[%s215 + $0x2d08] sm:$0xff]
        %v1736 = vld [vmem:[%s215 + $0x2d10] sm:$0xff]
        %v1737 = vld [vmem:[%s215 + $0x2d18] sm:$0xff]
        %v1738 = vld [vmem:[%s215 + $0x2d20] sm:$0xff]
        %v1739 = vld [vmem:[%s215 + $0x2d28] sm:$0xff]
        %v1740 = vld [vmem:[%s215 + $0x2d30] sm:$0xff]
        %v1741 = vld [vmem:[%s215 + $0x2d38] sm:$0xff]
        %v1742 = vld [vmem:[%s215 + $0x2d40] sm:$0xff]
        %v1743 = vld [vmem:[%s215 + $0x2d48] sm:$0xff]
        %v1744 = vld [vmem:[%s215 + $0x2d50] sm:$0xff]
        %v1745 = vld [vmem:[%s215 + $0x2d58] sm:$0xff]
        %v1746 = vld [vmem:[%s215 + $0x2d60] sm:$0xff]
        %v1747 = vld [vmem:[%s215 + $0x2d68] sm:$0xff]
        %v1748 = vld [vmem:[%s215 + $0x2d70] sm:$0xff]
        %v1749 = vld [vmem:[%s215 + $0x2d78] sm:$0xff]
        %v1750 = vld [vmem:[%s215 + $0x2d80] sm:$0xff]
        %v1751 = vld [vmem:[%s215 + $0x2d88] sm:$0xff]
        %v1752 = vld [vmem:[%s215 + $0x2d90] sm:$0xff]
        %v1753 = vld [vmem:[%s215 + $0x2d98] sm:$0xff]
        %v1754 = vld [vmem:[%s215 + $0x2da0] sm:$0xff]
        %v1755 = vld [vmem:[%s215 + $0x2da8] sm:$0xff]
        %v1756 = vld [vmem:[%s215 + $0x2db0] sm:$0xff]
        %v1757 = vld [vmem:[%s215 + $0x2db8] sm:$0xff]
        %v1758 = vld [vmem:[%s215 + $0x2dc0] sm:$0xff]
        %v1759 = vld [vmem:[%s215 + $0x2dc8] sm:$0xff]
        %v1760 = vld [vmem:[%s215 + $0x2dd0] sm:$0xff]
        %v1761 = vld [vmem:[%s215 + $0x2dd8] sm:$0xff]
        %v1762 = vld [vmem:[%s215 + $0x2de0] sm:$0xff]
        %v1763 = vld [vmem:[%s215 + $0x2de8] sm:$0xff]
        %v1764 = vld [vmem:[%s215 + $0x2df0] sm:$0xff]
        %v1765 = vld [vmem:[%s215 + $0x2df8] sm:$0xff]
        %v1766 = vld [vmem:[%s215 + $0x2e00] sm:$0xff]
        %v1767 = vld [vmem:[%s215 + $0x2e08] sm:$0xff]
        %v1768 = vld [vmem:[%s215 + $0x2e10] sm:$0xff]
        %v1769 = vld [vmem:[%s215 + $0x2e18] sm:$0xff]
        %v1770 = vld [vmem:[%s215 + $0x2e20] sm:$0xff]
        %v1771 = vld [vmem:[%s215 + $0x2e28] sm:$0xff]
        %v1772 = vld [vmem:[%s215 + $0x2e30] sm:$0xff]
        %v1773 = vld [vmem:[%s215 + $0x2e38] sm:$0xff]
        %v1774 = vld [vmem:[%s215 + $0x2e40] sm:$0xff]
        %v1775 = vld [vmem:[%s215 + $0x2e48] sm:$0xff]
        %v1776 = vld [vmem:[%s215 + $0x2e50] sm:$0xff]
        %v1777 = vld [vmem:[%s215 + $0x2e58] sm:$0xff]
        %v1778 = vld [vmem:[%s215 + $0x2e60] sm:$0xff]
        %v1779 = vld [vmem:[%s215 + $0x2e68] sm:$0xff]
        %v1780 = vld [vmem:[%s215 + $0x2e70] sm:$0xff]
        %v1781 = vld [vmem:[%s215 + $0x2e78] sm:$0xff]
        %v1782 = vld [vmem:[%s215 + $0x2e80] sm:$0xff]
        %v1783 = vld [vmem:[%s215 + $0x2e88] sm:$0xff]
        %v1784 = vld [vmem:[%s215 + $0x2e90] sm:$0xff]
        %v1785 = vld [vmem:[%s215 + $0x2e98] sm:$0xff]
        %v1786 = vld [vmem:[%s215 + $0x2ea0] sm:$0xff]
        %v1787 = vld [vmem:[%s215 + $0x2ea8] sm:$0xff]
        %v1788 = vld [vmem:[%s215 + $0x2eb0] sm:$0xff]
        %v1789 = vld [vmem:[%s215 + $0x2eb8] sm:$0xff]
        %v1790 = vld [vmem:[%s215 + $0x2ec0] sm:$0xff]
        %v1791 = vld [vmem:[%s215 + $0x2ec8] sm:$0xff]
        %v1792 = vld [vmem:[%s215 + $0x2ed0] sm:$0xff]
        %v1793 = vld [vmem:[%s215 + $0x2ed8] sm:$0xff]
        %v1794 = vld [vmem:[%s215 + $0x2ee0] sm:$0xff]
        %v1795 = vld [vmem:[%s215 + $0x2ee8] sm:$0xff]
        %v1796 = vld [vmem:[%s215 + $0x2ef0] sm:$0xff]
        %v1797 = vld [vmem:[%s215 + $0x2ef8] sm:$0xff]
        %v1798 = vld [vmem:[%s215 + $0x2f00] sm:$0xff]
        %v1799 = vld [vmem:[%s215 + $0x2f08] sm:$0xff]
        %v1800 = vld [vmem:[%s215 + $0x2f10] sm:$0xff]
        %v1801 = vld [vmem:[%s215 + $0x2f18] sm:$0xff]
        %v1802 = vld [vmem:[%s215 + $0x2f20] sm:$0xff]
        %v1803 = vld [vmem:[%s215 + $0x2f28] sm:$0xff]
        %v1804 = vld [vmem:[%s215 + $0x2f30] sm:$0xff]
        %v1805 = vld [vmem:[%s215 + $0x2f38] sm:$0xff]
        %v1806 = vld [vmem:[%s215 + $0x2f40] sm:$0xff]
        %v1807 = vld [vmem:[%s215 + $0x2f48] sm:$0xff]
        %v1808 = vld [vmem:[%s215 + $0x2f50] sm:$0xff]
        %v1809 = vld [vmem:[%s215 + $0x2f58] sm:$0xff]
        %v1810 = vld [vmem:[%s215 + $0x2f60] sm:$0xff]
        %v1811 = vld [vmem:[%s215 + $0x2f68] sm:$0xff]
        %v1812 = vld [vmem:[%s215 + $0x2f70] sm:$0xff]
        %v1813 = vld [vmem:[%s215 + $0x2f78] sm:$0xff]
        %v1814 = vld [vmem:[%s215 + $0x2f80] sm:$0xff]
        %v1815 = vld [vmem:[%s215 + $0x2f88] sm:$0xff]
        %v1816 = vld [vmem:[%s215 + $0x2f90] sm:$0xff]
        %v1817 = vld [vmem:[%s215 + $0x2f98] sm:$0xff]
        %v1818 = vld [vmem:[%s215 + $0x2fa0] sm:$0xff]
        %v1819 = vld [vmem:[%s215 + $0x2fa8] sm:$0xff]
        %v1820 = vld [vmem:[%s215 + $0x2fb0] sm:$0xff]
        %v1821 = vld [vmem:[%s215 + $0x2fb8] sm:$0xff]
        %v1822 = vld [vmem:[%s215 + $0x2fc0] sm:$0xff]
        %v1823 = vld [vmem:[%s215 + $0x2fc8] sm:$0xff]
        %v1824 = vld [vmem:[%s215 + $0x2fd0] sm:$0xff]
        %v1825 = vld [vmem:[%s215 + $0x2fd8] sm:$0xff]
        %v1826 = vld [vmem:[%s215 + $0x2fe0] sm:$0xff]
        %v1827 = vld [vmem:[%s215 + $0x2fe8] sm:$0xff]
        %v1828 = vld [vmem:[%s215 + $0x2ff0] sm:$0xff]
        %v1829 = vld [vmem:[%s215 + $0x2ff8] sm:$0xff]
        %v1830 = vld [vmem:[%s215 + $0x3000] sm:$0xff]
        %v1831 = vld [vmem:[%s215 + $0x3008] sm:$0xff]
        %v1832 = vld [vmem:[%s215 + $0x3010] sm:$0xff]
        %v1833 = vld [vmem:[%s215 + $0x3018] sm:$0xff]
        %v1834 = vld [vmem:[%s215 + $0x3020] sm:$0xff]
        %v1835 = vld [vmem:[%s215 + $0x3028] sm:$0xff]
        %v1836 = vld [vmem:[%s215 + $0x3030] sm:$0xff]
        %v1837 = vld [vmem:[%s215 + $0x3038] sm:$0xff]
        %v1838 = vld [vmem:[%s215 + $0x3040] sm:$0xff]
        %v1839 = vld [vmem:[%s215 + $0x3048] sm:$0xff]
        %v1840 = vld [vmem:[%s215 + $0x3050] sm:$0xff]
        %v1841 = vld [vmem:[%s215 + $0x3058] sm:$0xff]
        %v1842 = vld [vmem:[%s215 + $0x3060] sm:$0xff]
        %v1843 = vld [vmem:[%s215 + $0x3068] sm:$0xff]
        %v1844 = vld [vmem:[%s215 + $0x3070] sm:$0xff]
        %v1845 = vld [vmem:[%s215 + $0x3078] sm:$0xff]
        %v1846 = vld [vmem:[%s215 + $0x3080] sm:$0xff]
        %v1847 = vld [vmem:[%s215 + $0x3088] sm:$0xff]
        %v1848 = vld [vmem:[%s215 + $0x3090] sm:$0xff]
        %v1849 = vld [vmem:[%s215 + $0x3098] sm:$0xff]
        %v1850 = vld [vmem:[%s215 + $0x30a0] sm:$0xff]
        %v1851 = vld [vmem:[%s215 + $0x30a8] sm:$0xff]
        %v1852 = vld [vmem:[%s215 + $0x30b0] sm:$0xff]
        %v1853 = vld [vmem:[%s215 + $0x30b8] sm:$0xff]
        %v1854 = vld [vmem:[%s215 + $0x30c0] sm:$0xff]
        %v1855 = vld [vmem:[%s215 + $0x30c8] sm:$0xff]
        %v1856 = vld [vmem:[%s215 + $0x30d0] sm:$0xff]
        %v1857 = vld [vmem:[%s215 + $0x30d8] sm:$0xff]
        %v1858 = vld [vmem:[%s215 + $0x30e0] sm:$0xff]
        %v1859 = vld [vmem:[%s215 + $0x30e8] sm:$0xff]
        %v1860 = vld [vmem:[%s215 + $0x30f0] sm:$0xff]
        %v1861 = vld [vmem:[%s215 + $0x30f8] sm:$0xff]
        %v1862 = vld [vmem:[%s215 + $0x3100] sm:$0xff]
        %v1863 = vld [vmem:[%s215 + $0x3108] sm:$0xff]
        %v1864 = vld [vmem:[%s215 + $0x3110] sm:$0xff]
        %v1865 = vld [vmem:[%s215 + $0x3118] sm:$0xff]
        %v1866 = vld [vmem:[%s215 + $0x3120] sm:$0xff]
        %v1867 = vld [vmem:[%s215 + $0x3128] sm:$0xff]
        %v1868 = vld [vmem:[%s215 + $0x3130] sm:$0xff]
        %v1869 = vld [vmem:[%s215 + $0x3138] sm:$0xff]
        %v1870 = vld [vmem:[%s215 + $0x3140] sm:$0xff]
        %v1871 = vld [vmem:[%s215 + $0x3148] sm:$0xff]
        %v1872 = vld [vmem:[%s215 + $0x3150] sm:$0xff]
        %v1873 = vld [vmem:[%s215 + $0x3158] sm:$0xff]
        %v1874 = vld [vmem:[%s215 + $0x3160] sm:$0xff]
        %v1875 = vld [vmem:[%s215 + $0x3168] sm:$0xff]
        %v1876 = vld [vmem:[%s215 + $0x3170] sm:$0xff]
        %v1877 = vld [vmem:[%s215 + $0x3178] sm:$0xff]
        %v1878 = vld [vmem:[%s215 + $0x3180] sm:$0xff]
        %v1879 = vld [vmem:[%s215 + $0x3188] sm:$0xff]
        %v1880 = vld [vmem:[%s215 + $0x3190] sm:$0xff]
        %v1881 = vld [vmem:[%s215 + $0x3198] sm:$0xff]
        %v1882 = vld [vmem:[%s215 + $0x31a0] sm:$0xff]
        %v1883 = vld [vmem:[%s215 + $0x31a8] sm:$0xff]
        %v1884 = vld [vmem:[%s215 + $0x31b0] sm:$0xff]
        %v1885 = vld [vmem:[%s215 + $0x31b8] sm:$0xff]
        %v1886 = vld [vmem:[%s215 + $0x31c0] sm:$0xff]
        %v1887 = vld [vmem:[%s215 + $0x31c8] sm:$0xff]
        %v1888 = vld [vmem:[%s215 + $0x31d0] sm:$0xff]
        %v1889 = vld [vmem:[%s215 + $0x31d8] sm:$0xff]
        %v1890 = vld [vmem:[%s215 + $0x31e0] sm:$0xff]
        %v1891 = vld [vmem:[%s215 + $0x31e8] sm:$0xff]
        %v1892 = vld [vmem:[%s215 + $0x31f0] sm:$0xff]
        %v1893 = vld [vmem:[%s215 + $0x31f8] sm:$0xff]
        %v1894 = vld [vmem:[%s215 + $0x3200] sm:$0xff]
        %v1895 = vld [vmem:[%s215 + $0x3208] sm:$0xff]
        %v1896 = vld [vmem:[%s215 + $0x3210] sm:$0xff]
        %v1897 = vld [vmem:[%s215 + $0x3218] sm:$0xff]
        %v1898 = vld [vmem:[%s215 + $0x3220] sm:$0xff]
        %v1899 = vld [vmem:[%s215 + $0x3228] sm:$0xff]
        %v1900 = vld [vmem:[%s215 + $0x3230] sm:$0xff]
        %v1901 = vld [vmem:[%s215 + $0x3238] sm:$0xff]
        %v1902 = vld [vmem:[%s215 + $0x3240] sm:$0xff]
        %v1903 = vld [vmem:[%s215 + $0x3248] sm:$0xff]
        %v1904 = vld [vmem:[%s215 + $0x3250] sm:$0xff]
        %v1905 = vld [vmem:[%s215 + $0x3258] sm:$0xff]
        %v1906 = vld [vmem:[%s215 + $0x3260] sm:$0xff]
        %v1907 = vld [vmem:[%s215 + $0x3268] sm:$0xff]
        %v1908 = vld [vmem:[%s215 + $0x3270] sm:$0xff]
        %v1909 = vld [vmem:[%s215 + $0x3278] sm:$0xff]
        %v1910 = vld [vmem:[%s215 + $0x3280] sm:$0xff]
        %v1911 = vld [vmem:[%s215 + $0x3288] sm:$0xff]
        %v1912 = vld [vmem:[%s215 + $0x3290] sm:$0xff]
        %v1913 = vld [vmem:[%s215 + $0x3298] sm:$0xff]
        %v1914 = vld [vmem:[%s215 + $0x32a0] sm:$0xff]
        %v1915 = vld [vmem:[%s215 + $0x32a8] sm:$0xff]
        %v1916 = vld [vmem:[%s215 + $0x32b0] sm:$0xff]
        %v1917 = vld [vmem:[%s215 + $0x32b8] sm:$0xff]
        %v1918 = vld [vmem:[%s215 + $0x32c0] sm:$0xff]
        %v1919 = vld [vmem:[%s215 + $0x32c8] sm:$0xff]
        %v1920 = vld [vmem:[%s215 + $0x32d0] sm:$0xff]
        %v1921 = vld [vmem:[%s215 + $0x32d8] sm:$0xff]
        %v1922 = vld [vmem:[%s215 + $0x32e0] sm:$0xff]
        %v1923 = vld [vmem:[%s215 + $0x32e8] sm:$0xff]
        %v1924 = vld [vmem:[%s215 + $0x32f0] sm:$0xff]
        %v1925 = vld [vmem:[%s215 + $0x32f8] sm:$0xff]
        %v1926 = vld [vmem:[%s215 + $0x3300] sm:$0xff]
        %v1927 = vld [vmem:[%s215 + $0x3308] sm:$0xff]
        %v1928 = vld [vmem:[%s215 + $0x3310] sm:$0xff]
        %v1929 = vld [vmem:[%s215 + $0x3318] sm:$0xff]
        %v1930 = vld [vmem:[%s215 + $0x3320] sm:$0xff]
        %v1931 = vld [vmem:[%s215 + $0x3328] sm:$0xff]
        %v1932 = vld [vmem:[%s215 + $0x3330] sm:$0xff]
        %v1933 = vld [vmem:[%s215 + $0x3338] sm:$0xff]
        %v1934 = vld [vmem:[%s215 + $0x3340] sm:$0xff]
        %v1935 = vld [vmem:[%s215 + $0x3348] sm:$0xff]
        %v1936 = vld [vmem:[%s215 + $0x3350] sm:$0xff]
        %v1937 = vld [vmem:[%s215 + $0x3358] sm:$0xff]
        %v1938 = vld [vmem:[%s215 + $0x3360] sm:$0xff]
        %v1939 = vld [vmem:[%s215 + $0x3368] sm:$0xff]
        %v1940 = vld [vmem:[%s215 + $0x3370] sm:$0xff]
        %v1941 = vld [vmem:[%s215 + $0x3378] sm:$0xff]
        %v1942 = vld [vmem:[%s215 + $0x3380] sm:$0xff]
        %v1943 = vld [vmem:[%s215 + $0x3388] sm:$0xff]
        %v1944 = vld [vmem:[%s215 + $0x3390] sm:$0xff]
        %v1945 = vld [vmem:[%s215 + $0x3398] sm:$0xff]
        %v1946 = vld [vmem:[%s215 + $0x33a0] sm:$0xff]
        %v1947 = vld [vmem:[%s215 + $0x33a8] sm:$0xff]
        %v1948 = vld [vmem:[%s215 + $0x33b0] sm:$0xff]
        %v1949 = vld [vmem:[%s215 + $0x33b8] sm:$0xff]
        %v1950 = vld [vmem:[%s215 + $0x33c0] sm:$0xff]
        %v1951 = vld [vmem:[%s215 + $0x33c8] sm:$0xff]
        %v1952 = vld [vmem:[%s215 + $0x33d0] sm:$0xff]
        %v1953 = vld [vmem:[%s215 + $0x33d8] sm:$0xff]
        %v1954 = vld [vmem:[%s215 + $0x33e0] sm:$0xff]
        %v1955 = vld [vmem:[%s215 + $0x33e8] sm:$0xff]
        %v1956 = vld [vmem:[%s215 + $0x33f0] sm:$0xff]
        %v1957 = vld [vmem:[%s215 + $0x33f8] sm:$0xff]
        %v1958 = vld [vmem:[%s215 + $0x3400] sm:$0xff]
        %v1959 = vld [vmem:[%s215 + $0x3408] sm:$0xff]
        %v1960 = vld [vmem:[%s215 + $0x3410] sm:$0xff]
        %v1961 = vld [vmem:[%s215 + $0x3418] sm:$0xff]
        %v1962 = vld [vmem:[%s215 + $0x3420] sm:$0xff]
        %v1963 = vld [vmem:[%s215 + $0x3428] sm:$0xff]
        %v1964 = vld [vmem:[%s215 + $0x3430] sm:$0xff]
        %v1965 = vld [vmem:[%s215 + $0x3438] sm:$0xff]
        %v1966 = vld [vmem:[%s215 + $0x3440] sm:$0xff]
        %v1967 = vld [vmem:[%s215 + $0x3448] sm:$0xff]
        %v1968 = vld [vmem:[%s215 + $0x3450] sm:$0xff]
        %v1969 = vld [vmem:[%s215 + $0x3458] sm:$0xff]
        %v1970 = vld [vmem:[%s215 + $0x3460] sm:$0xff]
        %v1971 = vld [vmem:[%s215 + $0x3468] sm:$0xff]
        %v1972 = vld [vmem:[%s215 + $0x3470] sm:$0xff]
        %v1973 = vld [vmem:[%s215 + $0x3478] sm:$0xff]
        %v1974 = vld [vmem:[%s215 + $0x3480] sm:$0xff]
        %v1975 = vld [vmem:[%s215 + $0x3488] sm:$0xff]
        %v1976 = vld [vmem:[%s215 + $0x3490] sm:$0xff]
        %v1977 = vld [vmem:[%s215 + $0x3498] sm:$0xff]
        %v1978 = vld [vmem:[%s215 + $0x34a0] sm:$0xff]
        %v1979 = vld [vmem:[%s215 + $0x34a8] sm:$0xff]
        %v1980 = vld [vmem:[%s215 + $0x34b0] sm:$0xff]
        %v1981 = vld [vmem:[%s215 + $0x34b8] sm:$0xff]
        %v1982 = vld [vmem:[%s215 + $0x34c0] sm:$0xff]
        %v1983 = vld [vmem:[%s215 + $0x34c8] sm:$0xff]
        %v1984 = vld [vmem:[%s215 + $0x34d0] sm:$0xff]
        %v1985 = vld [vmem:[%s215 + $0x34d8] sm:$0xff]
        %v1986 = vld [vmem:[%s215 + $0x34e0] sm:$0xff]
        %v1987 = vld [vmem:[%s215 + $0x34e8] sm:$0xff]
        %v1988 = vld [vmem:[%s215 + $0x34f0] sm:$0xff]
        %v1989 = vld [vmem:[%s215 + $0x34f8] sm:$0xff]
        %v1990 = vld [vmem:[%s215 + $0x3500] sm:$0xff]
        %v1991 = vld [vmem:[%s215 + $0x3508] sm:$0xff]
        %v1992 = vld [vmem:[%s215 + $0x3510] sm:$0xff]
        %v1993 = vld [vmem:[%s215 + $0x3518] sm:$0xff]
        %v1994 = vld [vmem:[%s215 + $0x3520] sm:$0xff]
        %v1995 = vld [vmem:[%s215 + $0x3528] sm:$0xff]
        %v1996 = vld [vmem:[%s215 + $0x3530] sm:$0xff]
        %v1997 = vld [vmem:[%s215 + $0x3538] sm:$0xff]
        %v1998 = vld [vmem:[%s215 + $0x3540] sm:$0xff]
        %v1999 = vld [vmem:[%s215 + $0x3548] sm:$0xff]
        %v2000 = vld [vmem:[%s215 + $0x3550] sm:$0xff]
        %v2001 = vld [vmem:[%s215 + $0x3558] sm:$0xff]
        %v2002 = vld [vmem:[%s215 + $0x3560] sm:$0xff]
        %v2003 = vld [vmem:[%s215 + $0x3568] sm:$0xff]
        %v2004 = vld [vmem:[%s215 + $0x3570] sm:$0xff]
        %v2005 = vld [vmem:[%s215 + $0x3578] sm:$0xff]
        %v2006 = vld [vmem:[%s215 + $0x3580] sm:$0xff]
        %v2007 = vld [vmem:[%s215 + $0x3588] sm:$0xff]
        %v2008 = vld [vmem:[%s215 + $0x3590] sm:$0xff]
        %v2009 = vld [vmem:[%s215 + $0x3598] sm:$0xff]
        %v2010 = vld [vmem:[%s215 + $0x35a0] sm:$0xff]
        %v2011 = vld [vmem:[%s215 + $0x35a8] sm:$0xff]
        %v2012 = vld [vmem:[%s215 + $0x35b0] sm:$0xff]
        %v2013 = vld [vmem:[%s215 + $0x35b8] sm:$0xff]
        %v2014 = vld [vmem:[%s215 + $0x35c0] sm:$0xff]
        %v2015 = vld [vmem:[%s215 + $0x35c8] sm:$0xff]
        %v2016 = vld [vmem:[%s215 + $0x35d0] sm:$0xff]
        %v2017 = vld [vmem:[%s215 + $0x35d8] sm:$0xff]
        %v2018 = vld [vmem:[%s215 + $0x35e0] sm:$0xff]
        %v2019 = vld [vmem:[%s215 + $0x35e8] sm:$0xff]
        %v2020 = vld [vmem:[%s215 + $0x35f0] sm:$0xff]
        %v2021 = vld [vmem:[%s215 + $0x35f8] sm:$0xff]
        %v2022 = vld [vmem:[%s215 + $0x3600] sm:$0xff]
        %v2023 = vld [vmem:[%s215 + $0x3608] sm:$0xff]
        %v2024 = vld [vmem:[%s215 + $0x3610] sm:$0xff]
        %v2025 = vld [vmem:[%s215 + $0x3618] sm:$0xff]
        %v2026 = vld [vmem:[%s215 + $0x3620] sm:$0xff]
        %v2027 = vld [vmem:[%s215 + $0x3628] sm:$0xff]
        %v2028 = vld [vmem:[%s215 + $0x3630] sm:$0xff]
        %v2029 = vld [vmem:[%s215 + $0x3638] sm:$0xff]
        %v2030 = vld [vmem:[%s215 + $0x3640] sm:$0xff]
        %v2031 = vld [vmem:[%s215 + $0x3648] sm:$0xff]
        %v2032 = vld [vmem:[%s215 + $0x3650] sm:$0xff]
        %v2033 = vld [vmem:[%s215 + $0x3658] sm:$0xff]
        %v2034 = vld [vmem:[%s215 + $0x3660] sm:$0xff]
        %v2035 = vld [vmem:[%s215 + $0x3668] sm:$0xff]
        %v2036 = vld [vmem:[%s215 + $0x3670] sm:$0xff]
        %v2037 = vld [vmem:[%s215 + $0x3678] sm:$0xff]
        %v2038 = vld [vmem:[%s215 + $0x3680] sm:$0xff]
        %v2039 = vld [vmem:[%s215 + $0x3688] sm:$0xff]
        %v2040 = vld [vmem:[%s215 + $0x3690] sm:$0xff]
        %v2041 = vld [vmem:[%s215 + $0x3698] sm:$0xff]
        %v2042 = vld [vmem:[%s215 + $0x36a0] sm:$0xff]
        %v2043 = vld [vmem:[%s215 + $0x36a8] sm:$0xff]
        %v2044 = vld [vmem:[%s215 + $0x36b0] sm:$0xff]
        %v2045 = vld [vmem:[%s215 + $0x36b8] sm:$0xff]
        %v2046 = vld [vmem:[%s215 + $0x36c0] sm:$0xff]
        %v2047 = vld [vmem:[%s215 + $0x36c8] sm:$0xff]
        %v2048 = vld [vmem:[%s215 + $0x36d0] sm:$0xff]
        %v2049 = vld [vmem:[%s215 + $0x36d8] sm:$0xff]
        %v2050 = vld [vmem:[%s215 + $0x36e0] sm:$0xff]
        %v2051 = vld [vmem:[%s215 + $0x36e8] sm:$0xff]
        %v2052 = vld [vmem:[%s215 + $0x36f0] sm:$0xff]
        %v2053 = vld [vmem:[%s215 + $0x36f8] sm:$0xff]
        %v2054 = vld [vmem:[%s215 + $0x3700] sm:$0xff]
        %v2055 = vld [vmem:[%s215 + $0x3708] sm:$0xff]
        %v2056 = vld [vmem:[%s215 + $0x3710] sm:$0xff]
        %v2057 = vld [vmem:[%s215 + $0x3718] sm:$0xff]
        %v2058 = vld [vmem:[%s215 + $0x3720] sm:$0xff]
        %v2059 = vld [vmem:[%s215 + $0x3728] sm:$0xff]
        %v2060 = vld [vmem:[%s215 + $0x3730] sm:$0xff]
        %v2061 = vld [vmem:[%s215 + $0x3738] sm:$0xff]
        %v2062 = vld [vmem:[%s215 + $0x3740] sm:$0xff]
        %v2063 = vld [vmem:[%s215 + $0x3748] sm:$0xff]
        %v2064 = vld [vmem:[%s215 + $0x3750] sm:$0xff]
        %v2065 = vld [vmem:[%s215 + $0x3758] sm:$0xff]
        %v2066 = vld [vmem:[%s215 + $0x3760] sm:$0xff]
        %v2067 = vld [vmem:[%s215 + $0x3768] sm:$0xff]
        %v2068 = vld [vmem:[%s215 + $0x3770] sm:$0xff]
        %v2069 = vld [vmem:[%s215 + $0x3778] sm:$0xff]
        %v2070 = vld [vmem:[%s215 + $0x3780] sm:$0xff]
        %v2071 = vld [vmem:[%s215 + $0x3788] sm:$0xff]
        %v2072 = vld [vmem:[%s215 + $0x3790] sm:$0xff]
        %v2073 = vld [vmem:[%s215 + $0x3798] sm:$0xff]
        %v2074 = vld [vmem:[%s215 + $0x37a0] sm:$0xff]
        %v2075 = vld [vmem:[%s215 + $0x37a8] sm:$0xff]
        %v2076 = vld [vmem:[%s215 + $0x37b0] sm:$0xff]
        %v2077 = vld [vmem:[%s215 + $0x37b8] sm:$0xff]
        %v2078 = vld [vmem:[%s215 + $0x37c0] sm:$0xff]
        %v2079 = vld [vmem:[%s215 + $0x37c8] sm:$0xff]
        %v2080 = vld [vmem:[%s215 + $0x37d0] sm:$0xff]
        %v2081 = vld [vmem:[%s215 + $0x37d8] sm:$0xff]
        %v2082 = vld [vmem:[%s215 + $0x37e0] sm:$0xff]
        %v2083 = vld [vmem:[%s215 + $0x37e8] sm:$0xff]
        %v2084 = vld [vmem:[%s215 + $0x37f0] sm:$0xff]
        %v2085 = vld [vmem:[%s215 + $0x37f8] sm:$0xff]
        %v2086 = vld [vmem:[%s215 + $0x3800] sm:$0xff]
        %v2087 = vld [vmem:[%s215 + $0x3808] sm:$0xff]
        %v2088 = vld [vmem:[%s215 + $0x3810] sm:$0xff]
        %v2089 = vld [vmem:[%s215 + $0x3818] sm:$0xff]
        %v2090 = vld [vmem:[%s215 + $0x3820] sm:$0xff]
        %v2091 = vld [vmem:[%s215 + $0x3828] sm:$0xff]
        %v2092 = vld [vmem:[%s215 + $0x3830] sm:$0xff]
        %v2093 = vld [vmem:[%s215 + $0x3838] sm:$0xff]
        %v2094 = vld [vmem:[%s215 + $0x3840] sm:$0xff]
        %v2095 = vld [vmem:[%s215 + $0x3848] sm:$0xff]
        %v2096 = vld [vmem:[%s215 + $0x3850] sm:$0xff]
        %v2097 = vld [vmem:[%s215 + $0x3858] sm:$0xff]
        %v2098 = vld [vmem:[%s215 + $0x3860] sm:$0xff]
        %v2099 = vld [vmem:[%s215 + $0x3868] sm:$0xff]
        %v2100 = vld [vmem:[%s215 + $0x3870] sm:$0xff]
        %v2101 = vld [vmem:[%s215 + $0x3878] sm:$0xff]
        %v2102 = vld [vmem:[%s215 + $0x3880] sm:$0xff]
        %v2103 = vld [vmem:[%s215 + $0x3888] sm:$0xff]
        %v2104 = vld [vmem:[%s215 + $0x3890] sm:$0xff]
        %v2105 = vld [vmem:[%s215 + $0x3898] sm:$0xff]
        %v2106 = vld [vmem:[%s215 + $0x38a0] sm:$0xff]
        %v2107 = vld [vmem:[%s215 + $0x38a8] sm:$0xff]
        %v2108 = vld [vmem:[%s215 + $0x38b0] sm:$0xff]
        %v2109 = vld [vmem:[%s215 + $0x38b8] sm:$0xff]
        %v2110 = vld [vmem:[%s215 + $0x38c0] sm:$0xff]
        %v2111 = vld [vmem:[%s215 + $0x38c8] sm:$0xff]
        %v2112 = vld [vmem:[%s215 + $0x38d0] sm:$0xff]
        %v2113 = vld [vmem:[%s215 + $0x38d8] sm:$0xff]
        %v2114 = vld [vmem:[%s215 + $0x38e0] sm:$0xff]
        %v2115 = vld [vmem:[%s215 + $0x38e8] sm:$0xff]
        %v2116 = vld [vmem:[%s215 + $0x38f0] sm:$0xff]
        %v2117 = vld [vmem:[%s215 + $0x38f8] sm:$0xff]
        %v2118 = vld [vmem:[%s215 + $0x3900] sm:$0xff]
        %v2119 = vld [vmem:[%s215 + $0x3908] sm:$0xff]
        %v2120 = vld [vmem:[%s215 + $0x3910] sm:$0xff]
        %v2121 = vld [vmem:[%s215 + $0x3918] sm:$0xff]
        %v2122 = vld [vmem:[%s215 + $0x3920] sm:$0xff]
        %v2123 = vld [vmem:[%s215 + $0x3928] sm:$0xff]
        %v2124 = vld [vmem:[%s215 + $0x3930] sm:$0xff]
        %v2125 = vld [vmem:[%s215 + $0x3938] sm:$0xff]
        %v2126 = vld [vmem:[%s215 + $0x3940] sm:$0xff]
        %v2127 = vld [vmem:[%s215 + $0x3948] sm:$0xff]
        %v2128 = vld [vmem:[%s215 + $0x3950] sm:$0xff]
        %v2129 = vld [vmem:[%s215 + $0x3958] sm:$0xff]
        %v2130 = vld [vmem:[%s215 + $0x3960] sm:$0xff]
        %v2131 = vld [vmem:[%s215 + $0x3968] sm:$0xff]
        %v2132 = vld [vmem:[%s215 + $0x3970] sm:$0xff]
        %v2133 = vld [vmem:[%s215 + $0x3978] sm:$0xff]
        %v2134 = vld [vmem:[%s215 + $0x3980] sm:$0xff]
        %v2135 = vld [vmem:[%s215 + $0x3988] sm:$0xff]
        %v2136 = vld [vmem:[%s215 + $0x3990] sm:$0xff]
        %v2137 = vld [vmem:[%s215 + $0x3998] sm:$0xff]
        %v2138 = vld [vmem:[%s215 + $0x39a0] sm:$0xff]
        %v2139 = vld [vmem:[%s215 + $0x39a8] sm:$0xff]
        %v2140 = vld [vmem:[%s215 + $0x39b0] sm:$0xff]
        %v2141 = vld [vmem:[%s215 + $0x39b8] sm:$0xff]
        %v2142 = vld [vmem:[%s215 + $0x39c0] sm:$0xff]
        %v2143 = vld [vmem:[%s215 + $0x39c8] sm:$0xff]
        %v2144 = vld [vmem:[%s215 + $0x39d0] sm:$0xff]
        %v2145 = vld [vmem:[%s215 + $0x39d8] sm:$0xff]
        %v2146 = vld [vmem:[%s215 + $0x39e0] sm:$0xff]
        %v2147 = vld [vmem:[%s215 + $0x39e8] sm:$0xff]
        %v2148 = vld [vmem:[%s215 + $0x39f0] sm:$0xff]
        %v2149 = vld [vmem:[%s215 + $0x39f8] sm:$0xff]
        %v2150 = vld [vmem:[%s215 + $0x3a00] sm:$0xff]
        %v2151 = vld [vmem:[%s215 + $0x3a08] sm:$0xff]
        %v2152 = vld [vmem:[%s215 + $0x3a10] sm:$0xff]
        %v2153 = vld [vmem:[%s215 + $0x3a18] sm:$0xff]
        %v2154 = vld [vmem:[%s215 + $0x3a20] sm:$0xff]
        %v2155 = vld [vmem:[%s215 + $0x3a28] sm:$0xff]
        %v2156 = vld [vmem:[%s215 + $0x3a30] sm:$0xff]
        %v2157 = vld [vmem:[%s215 + $0x3a38] sm:$0xff]
        %v2158 = vld [vmem:[%s215 + $0x3a40] sm:$0xff]
        %v2159 = vld [vmem:[%s215 + $0x3a48] sm:$0xff]
        %v2160 = vld [vmem:[%s215 + $0x3a50] sm:$0xff]
        %v2161 = vld [vmem:[%s215 + $0x3a58] sm:$0xff]
        %v2162 = vld [vmem:[%s215 + $0x3a60] sm:$0xff]
        %v2163 = vld [vmem:[%s215 + $0x3a68] sm:$0xff]
        %v2164 = vld [vmem:[%s215 + $0x3a70] sm:$0xff]
        %v2165 = vld [vmem:[%s215 + $0x3a78] sm:$0xff]
        %v2166 = vld [vmem:[%s215 + $0x3a80] sm:$0xff]
        %v2167 = vld [vmem:[%s215 + $0x3a88] sm:$0xff]
        %v2168 = vld [vmem:[%s215 + $0x3a90] sm:$0xff]
        %v2169 = vld [vmem:[%s215 + $0x3a98] sm:$0xff]
        %v2170 = vld [vmem:[%s215 + $0x3aa0] sm:$0xff]
        %v2171 = vld [vmem:[%s215 + $0x3aa8] sm:$0xff]
        %v2172 = vld [vmem:[%s215 + $0x3ab0] sm:$0xff]
        %v2173 = vld [vmem:[%s215 + $0x3ab8] sm:$0xff]
        %v2174 = vld [vmem:[%s215 + $0x3ac0] sm:$0xff]
        %v2175 = vld [vmem:[%s215 + $0x3ac8] sm:$0xff]
        %v2176 = vld [vmem:[%s215 + $0x3ad0] sm:$0xff]
        %v2177 = vld [vmem:[%s215 + $0x3ad8] sm:$0xff]
        %v2178 = vld [vmem:[%s215 + $0x3ae0] sm:$0xff]
        %v2179 = vld [vmem:[%s215 + $0x3ae8] sm:$0xff]
        %v2180 = vld [vmem:[%s215 + $0x3af0] sm:$0xff]
        %v2181 = vld [vmem:[%s215 + $0x3af8] sm:$0xff]
        %v2182 = vld [vmem:[%s215 + $0x3b00] sm:$0xff]
        %v2183 = vld [vmem:[%s215 + $0x3b08] sm:$0xff]
        %v2184 = vld [vmem:[%s215 + $0x3b10] sm:$0xff]
        %v2185 = vld [vmem:[%s215 + $0x3b18] sm:$0xff]
        %v2186 = vld [vmem:[%s215 + $0x3b20] sm:$0xff]
        %v2187 = vld [vmem:[%s215 + $0x3b28] sm:$0xff]
        %v2188 = vld [vmem:[%s215 + $0x3b30] sm:$0xff]
        %v2189 = vld [vmem:[%s215 + $0x3b38] sm:$0xff]
        %v2190 = vld [vmem:[%s215 + $0x3b40] sm:$0xff]
        %v2191 = vld [vmem:[%s215 + $0x3b48] sm:$0xff]
        %v2192 = vld [vmem:[%s215 + $0x3b50] sm:$0xff]
        %v2193 = vld [vmem:[%s215 + $0x3b58] sm:$0xff]
        %v2194 = vld [vmem:[%s215 + $0x3b60] sm:$0xff]
        %v2195 = vld [vmem:[%s215 + $0x3b68] sm:$0xff]
        %v2196 = vld [vmem:[%s215 + $0x3b70] sm:$0xff]
        %v2197 = vld [vmem:[%s215 + $0x3b78] sm:$0xff]
        %v2198 = vld [vmem:[%s215 + $0x3b80] sm:$0xff]
        %v2199 = vld [vmem:[%s215 + $0x3b88] sm:$0xff]
        %v2200 = vld [vmem:[%s215 + $0x3b90] sm:$0xff]
        %v2201 = vld [vmem:[%s215 + $0x3b98] sm:$0xff]
        %v2202 = vld [vmem:[%s215 + $0x3ba0] sm:$0xff]
        %v2203 = vld [vmem:[%s215 + $0x3ba8] sm:$0xff]
        %v2204 = vld [vmem:[%s215 + $0x3bb0] sm:$0xff]
        %v2205 = vld [vmem:[%s215 + $0x3bb8] sm:$0xff]
        %v2206 = vld [vmem:[%s215 + $0x3bc0] sm:$0xff]
        %v2207 = vld [vmem:[%s215 + $0x3bc8] sm:$0xff]
        %v2208 = vld [vmem:[%s215 + $0x3bd0] sm:$0xff]
        %v2209 = vld [vmem:[%s215 + $0x3bd8] sm:$0xff]
        %v2210 = vld [vmem:[%s215 + $0x3be0] sm:$0xff]
        %v2211 = vld [vmem:[%s215 + $0x3be8] sm:$0xff]
        %v2212 = vld [vmem:[%s215 + $0x3bf0] sm:$0xff]
        %v2213 = vld [vmem:[%s215 + $0x3bf8] sm:$0xff]
        %v2214 = vld [vmem:[%s215 + $0x3c00] sm:$0xff]
        %v2215 = vld [vmem:[%s215 + $0x3c08] sm:$0xff]
        %v2216 = vld [vmem:[%s215 + $0x3c10] sm:$0xff]
        %v2217 = vld [vmem:[%s215 + $0x3c18] sm:$0xff]
        %v2218 = vld [vmem:[%s215 + $0x3c20] sm:$0xff]
        %v2219 = vld [vmem:[%s215 + $0x3c28] sm:$0xff]
        %v2220 = vld [vmem:[%s215 + $0x3c30] sm:$0xff]
        %v2221 = vld [vmem:[%s215 + $0x3c38] sm:$0xff]
        %v2222 = vld [vmem:[%s215 + $0x3c40] sm:$0xff]
        %v2223 = vld [vmem:[%s215 + $0x3c48] sm:$0xff]
        %v2224 = vld [vmem:[%s215 + $0x3c50] sm:$0xff]
        %v2225 = vld [vmem:[%s215 + $0x3c58] sm:$0xff]
        %v2226 = vld [vmem:[%s215 + $0x3c60] sm:$0xff]
        %v2227 = vld [vmem:[%s215 + $0x3c68] sm:$0xff]
        %v2228 = vld [vmem:[%s215 + $0x3c70] sm:$0xff]
        %v2229 = vld [vmem:[%s215 + $0x3c78] sm:$0xff]
        %v2230 = vld [vmem:[%s215 + $0x3c80] sm:$0xff]
        %v2231 = vld [vmem:[%s215 + $0x3c88] sm:$0xff]
        %v2232 = vld [vmem:[%s215 + $0x3c90] sm:$0xff]
        %v2233 = vld [vmem:[%s215 + $0x3c98] sm:$0xff]
        %v2234 = vld [vmem:[%s215 + $0x3ca0] sm:$0xff]
        %v2235 = vld [vmem:[%s215 + $0x3ca8] sm:$0xff]
        %v2236 = vld [vmem:[%s215 + $0x3cb0] sm:$0xff]
        %v2237 = vld [vmem:[%s215 + $0x3cb8] sm:$0xff]
        %v2238 = vld [vmem:[%s215 + $0x3cc0] sm:$0xff]
        %v2239 = vld [vmem:[%s215 + $0x3cc8] sm:$0xff]
        %v2240 = vld [vmem:[%s215 + $0x3cd0] sm:$0xff]
        %v2241 = vld [vmem:[%s215 + $0x3cd8] sm:$0xff]
        %v2242 = vld [vmem:[%s215 + $0x3ce0] sm:$0xff]
        %v2243 = vld [vmem:[%s215 + $0x3ce8] sm:$0xff]
        %v2244 = vld [vmem:[%s215 + $0x3cf0] sm:$0xff]
        %v2245 = vld [vmem:[%s215 + $0x3cf8] sm:$0xff]
        %v2246 = vld [vmem:[%s215 + $0x3d00] sm:$0xff]
        %v2247 = vld [vmem:[%s215 + $0x3d08] sm:$0xff]
        %v2248 = vld [vmem:[%s215 + $0x3d10] sm:$0xff]
        %v2249 = vld [vmem:[%s215 + $0x3d18] sm:$0xff]
        %v2250 = vld [vmem:[%s215 + $0x3d20] sm:$0xff]
        %v2251 = vld [vmem:[%s215 + $0x3d28] sm:$0xff]
        %v2252 = vld [vmem:[%s215 + $0x3d30] sm:$0xff]
        %v2253 = vld [vmem:[%s215 + $0x3d38] sm:$0xff]
        %v2254 = vld [vmem:[%s215 + $0x3d40] sm:$0xff]
        %v2255 = vld [vmem:[%s215 + $0x3d48] sm:$0xff]
        %v2256 = vld [vmem:[%s215 + $0x3d50] sm:$0xff]
        %v2257 = vld [vmem:[%s215 + $0x3d58] sm:$0xff]
        %v2258 = vld [vmem:[%s215 + $0x3d60] sm:$0xff]
        %v2259 = vld [vmem:[%s215 + $0x3d68] sm:$0xff]
        %v2260 = vld [vmem:[%s215 + $0x3d70] sm:$0xff]
        %v2261 = vld [vmem:[%s215 + $0x3d78] sm:$0xff]
        %v2262 = vld [vmem:[%s215 + $0x3d80] sm:$0xff]
        %v2263 = vld [vmem:[%s215 + $0x3d88] sm:$0xff]
        %v2264 = vld [vmem:[%s215 + $0x3d90] sm:$0xff]
        %v2265 = vld [vmem:[%s215 + $0x3d98] sm:$0xff]
        %v2266 = vld [vmem:[%s215 + $0x3da0] sm:$0xff]
        %v2267 = vld [vmem:[%s215 + $0x3da8] sm:$0xff]
        %v2268 = vld [vmem:[%s215 + $0x3db0] sm:$0xff]
        %v2269 = vld [vmem:[%s215 + $0x3db8] sm:$0xff]
        %v2270 = vld [vmem:[%s215 + $0x3dc0] sm:$0xff]
        %v2271 = vld [vmem:[%s215 + $0x3dc8] sm:$0xff]
        %v2272 = vld [vmem:[%s215 + $0x3dd0] sm:$0xff]
        %v2273 = vld [vmem:[%s215 + $0x3dd8] sm:$0xff]
        %v2274 = vld [vmem:[%s215 + $0x3de0] sm:$0xff]
        %v2275 = vld [vmem:[%s215 + $0x3de8] sm:$0xff]
        %v2276 = vld [vmem:[%s215 + $0x3df0] sm:$0xff]
        %v2277 = vld [vmem:[%s215 + $0x3df8] sm:$0xff]
        %v2278 = vld [vmem:[%s215 + $0x3e00] sm:$0xff]
        %v2279 = vld [vmem:[%s215 + $0x3e08] sm:$0xff]
        %v2280 = vld [vmem:[%s215 + $0x3e10] sm:$0xff]
        %v2281 = vld [vmem:[%s215 + $0x3e18] sm:$0xff]
        %v2282 = vld [vmem:[%s215 + $0x3e20] sm:$0xff]
        %v2283 = vld [vmem:[%s215 + $0x3e28] sm:$0xff]
        %v2284 = vld [vmem:[%s215 + $0x3e30] sm:$0xff]
        %v2285 = vld [vmem:[%s215 + $0x3e38] sm:$0xff]
        %v2286 = vld [vmem:[%s215 + $0x3e40] sm:$0xff]
        %v2287 = vld [vmem:[%s215 + $0x3e48] sm:$0xff]
        %v2288 = vld [vmem:[%s215 + $0x3e50] sm:$0xff]
        %v2289 = vld [vmem:[%s215 + $0x3e58] sm:$0xff]
        %v2290 = vld [vmem:[%s215 + $0x3e60] sm:$0xff]
        %v2291 = vld [vmem:[%s215 + $0x3e68] sm:$0xff]
        %v2292 = vld [vmem:[%s215 + $0x3e70] sm:$0xff]
        %v2293 = vld [vmem:[%s215 + $0x3e78] sm:$0xff]
        %v2294 = vld [vmem:[%s215 + $0x3e80] sm:$0xff]
        %v2295 = vld [vmem:[%s215 + $0x3e88] sm:$0xff]
        %v2296 = vld [vmem:[%s215 + $0x3e90] sm:$0xff]
        %v2297 = vld [vmem:[%s215 + $0x3e98] sm:$0xff]
        %v2298 = vld [vmem:[%s215 + $0x3ea0] sm:$0xff]
        %v2299 = vld [vmem:[%s215 + $0x3ea8] sm:$0xff]
        %v2300 = vld [vmem:[%s215 + $0x3eb0] sm:$0xff]
        %v2301 = vld [vmem:[%s215 + $0x3eb8] sm:$0xff]
        %v2302 = vld [vmem:[%s215 + $0x3ec0] sm:$0xff]
        %v2303 = vld [vmem:[%s215 + $0x3ec8] sm:$0xff]
        %v2304 = vld [vmem:[%s215 + $0x3ed0] sm:$0xff]
        %v2305 = vld [vmem:[%s215 + $0x3ed8] sm:$0xff]
        %v2306 = vld [vmem:[%s215 + $0x3ee0] sm:$0xff]
        %v2307 = vld [vmem:[%s215 + $0x3ee8] sm:$0xff]
        %v2308 = vld [vmem:[%s215 + $0x3ef0] sm:$0xff]
        %v2309 = vld [vmem:[%s215 + $0x3ef8] sm:$0xff]
        %v2310 = vld [vmem:[%s215 + $0x3f00] sm:$0xff]
        %v2311 = vld [vmem:[%s215 + $0x3f08] sm:$0xff]
        %v2312 = vld [vmem:[%s215 + $0x3f10] sm:$0xff]
        %v2313 = vld [vmem:[%s215 + $0x3f18] sm:$0xff]
        %v2314 = vld [vmem:[%s215 + $0x3f20] sm:$0xff]
        %v2315 = vld [vmem:[%s215 + $0x3f28] sm:$0xff]
        %v2316 = vld [vmem:[%s215 + $0x3f30] sm:$0xff]
        %v2317 = vld [vmem:[%s215 + $0x3f38] sm:$0xff]
        %v2318 = vld [vmem:[%s215 + $0x3f40] sm:$0xff]
        %v2319 = vld [vmem:[%s215 + $0x3f48] sm:$0xff]
        %v2320 = vld [vmem:[%s215 + $0x3f50] sm:$0xff]
        %v2321 = vld [vmem:[%s215 + $0x3f58] sm:$0xff]
        %v2322 = vld [vmem:[%s215 + $0x3f60] sm:$0xff]
        %v2323 = vld [vmem:[%s215 + $0x3f68] sm:$0xff]
        %v2324 = vld [vmem:[%s215 + $0x3f70] sm:$0xff]
        %v2325 = vld [vmem:[%s215 + $0x3f78] sm:$0xff]
        %v2326 = vld [vmem:[%s215 + $0x3f80] sm:$0xff]
        %v2327 = vld [vmem:[%s215 + $0x3f88] sm:$0xff]
        %v2328 = vld [vmem:[%s215 + $0x3f90] sm:$0xff]
        %v2329 = vld [vmem:[%s215 + $0x3f98] sm:$0xff]
        %v2330 = vld [vmem:[%s215 + $0x3fa0] sm:$0xff]
        %v2331 = vld [vmem:[%s215 + $0x3fa8] sm:$0xff]
        %v2332 = vld [vmem:[%s215 + $0x3fb0] sm:$0xff]
        %v2333 = vld [vmem:[%s215 + $0x3fb8] sm:$0xff]
        %v2334 = vld [vmem:[%s215 + $0x3fc0] sm:$0xff]
        %v2335 = vld [vmem:[%s215 + $0x3fc8] sm:$0xff]
        %v2336 = vld [vmem:[%s215 + $0x3fd0] sm:$0xff]
        %v2337 = vld [vmem:[%s215 + $0x3fd8] sm:$0xff]
        %v2338 = vld [vmem:[%s215 + $0x3fe0] sm:$0xff]
        %v2339 = vld [vmem:[%s215 + $0x3fe8] sm:$0xff]
        %v2340 = vld [vmem:[%s215 + $0x3ff0] sm:$0xff]
        %v2341 = vld [vmem:[%s215 + $0x3ff8] sm:$0xff]
        %v2342 = vld [vmem:[%s215 + $0x4000] sm:$0xff]
        %v2343 = vld [vmem:[%s215 + $0x4008] sm:$0xff]
        %v2344 = vld [vmem:[%s215 + $0x4010] sm:$0xff]
        %v2345 = vld [vmem:[%s215 + $0x4018] sm:$0xff]
        %v2346 = vld [vmem:[%s215 + $0x4020] sm:$0xff]
        %v2347 = vld [vmem:[%s215 + $0x4028] sm:$0xff]
        %v2348 = vld [vmem:[%s215 + $0x4030] sm:$0xff]
        %v2349 = vld [vmem:[%s215 + $0x4038] sm:$0xff]
        %v2350 = vld [vmem:[%s215 + $0x4040] sm:$0xff]
        %v2351 = vld [vmem:[%s215 + $0x4048] sm:$0xff]
        %v2352 = vld [vmem:[%s215 + $0x4050] sm:$0xff]
        %v2353 = vld [vmem:[%s215 + $0x4058] sm:$0xff]
        %v2354 = vld [vmem:[%s215 + $0x4060] sm:$0xff]
        %v2355 = vld [vmem:[%s215 + $0x4068] sm:$0xff]
        %v2356 = vld [vmem:[%s215 + $0x4070] sm:$0xff]
        %v2357 = vld [vmem:[%s215 + $0x4078] sm:$0xff]
        %v2358 = vld [vmem:[%s215 + $0x4080] sm:$0xff]
        %v2359 = vld [vmem:[%s215 + $0x4088] sm:$0xff]
        %v2360 = vld [vmem:[%s215 + $0x4090] sm:$0xff]
        %v2361 = vld [vmem:[%s215 + $0x4098] sm:$0xff]
        %v2362 = vld [vmem:[%s215 + $0x40a0] sm:$0xff]
        %v2363 = vld [vmem:[%s215 + $0x40a8] sm:$0xff]
        %v2364 = vld [vmem:[%s215 + $0x40b0] sm:$0xff]
        %v2365 = vld [vmem:[%s215 + $0x40b8] sm:$0xff]
        %v2366 = vld [vmem:[%s215 + $0x40c0] sm:$0xff]
        %v2367 = vld [vmem:[%s215 + $0x40c8] sm:$0xff]
        %v2368 = vld [vmem:[%s215 + $0x40d0] sm:$0xff]
        %v2369 = vld [vmem:[%s215 + $0x40d8] sm:$0xff]
        %v2370 = vld [vmem:[%s215 + $0x40e0] sm:$0xff]
        %v2371 = vld [vmem:[%s215 + $0x40e8] sm:$0xff]
        %v2372 = vld [vmem:[%s215 + $0x40f0] sm:$0xff]
        %v2373 = vld [vmem:[%s215 + $0x40f8] sm:$0xff]
        %v2374 = vld [vmem:[%s215 + $0x4100] sm:$0xff]
        %v2375 = vld [vmem:[%s215 + $0x4108] sm:$0xff]
        %v2376 = vld [vmem:[%s215 + $0x4110] sm:$0xff]
        %v2377 = vld [vmem:[%s215 + $0x4118] sm:$0xff]
        %v2378 = vld [vmem:[%s215 + $0x4120] sm:$0xff]
        %v2379 = vld [vmem:[%s215 + $0x4128] sm:$0xff]
        %v2380 = vld [vmem:[%s215 + $0x4130] sm:$0xff]
        %v2381 = vld [vmem:[%s215 + $0x4138] sm:$0xff]
        %v2382 = vld [vmem:[%s215 + $0x4140] sm:$0xff]
        %v2383 = vld [vmem:[%s215 + $0x4148] sm:$0xff]
        %v2384 = vld [vmem:[%s215 + $0x4150] sm:$0xff]
        %v2385 = vld [vmem:[%s215 + $0x4158] sm:$0xff]
        %v2386 = vld [vmem:[%s215 + $0x4160] sm:$0xff]
        %v2387 = vld [vmem:[%s215 + $0x4168] sm:$0xff]
        %v2388 = vld [vmem:[%s215 + $0x4170] sm:$0xff]
        %v2389 = vld [vmem:[%s215 + $0x4178] sm:$0xff]
        %v2390 = vld [vmem:[%s215 + $0x4180] sm:$0xff]
        %v2391 = vld [vmem:[%s215 + $0x4188] sm:$0xff]
        %v2392 = vld [vmem:[%s215 + $0x4190] sm:$0xff]
        %v2393 = vld [vmem:[%s215 + $0x4198] sm:$0xff]
        %v2394 = vld [vmem:[%s215 + $0x41a0] sm:$0xff]
        %v2395 = vld [vmem:[%s215 + $0x41a8] sm:$0xff]
        %v2396 = vld [vmem:[%s215 + $0x41b0] sm:$0xff]
        %v2397 = vld [vmem:[%s215 + $0x41b8] sm:$0xff]
        %v2398 = vld [vmem:[%s215 + $0x41c0] sm:$0xff]
        %v2399 = vld [vmem:[%s215 + $0x41c8] sm:$0xff]
        %v2400 = vld [vmem:[%s215 + $0x41d0] sm:$0xff]
        %v2401 = vld [vmem:[%s215 + $0x41d8] sm:$0xff]
        %v2402 = vld [vmem:[%s215 + $0x41e0] sm:$0xff]
        %v2403 = vld [vmem:[%s215 + $0x41e8] sm:$0xff]
        %v2404 = vld [vmem:[%s215 + $0x41f0] sm:$0xff]
        %v2405 = vld [vmem:[%s215 + $0x41f8] sm:$0xff]
        %v2406 = vld [vmem:[%s215 + $0x4200] sm:$0xff]
        %v2407 = vld [vmem:[%s215 + $0x4208] sm:$0xff]
        %v2408 = vld [vmem:[%s215 + $0x4210] sm:$0xff]
        %v2409 = vld [vmem:[%s215 + $0x4218] sm:$0xff]
        %v2410 = vld [vmem:[%s215 + $0x4220] sm:$0xff]
        %v2411 = vld [vmem:[%s215 + $0x4228] sm:$0xff]
        %v2412 = vld [vmem:[%s215 + $0x4230] sm:$0xff]
        %v2413 = vld [vmem:[%s215 + $0x4238] sm:$0xff]
        %v2414 = vld [vmem:[%s215 + $0x4240] sm:$0xff]
        %v2415 = vld [vmem:[%s215 + $0x4248] sm:$0xff]
        %v2416 = vld [vmem:[%s215 + $0x4250] sm:$0xff]
        %v2417 = vld [vmem:[%s215 + $0x4258] sm:$0xff]
        %v2418 = vld [vmem:[%s215 + $0x4260] sm:$0xff]
        %v2419 = vld [vmem:[%s215 + $0x4268] sm:$0xff]
        %v2420 = vld [vmem:[%s215 + $0x4270] sm:$0xff]
        %v2421 = vld [vmem:[%s215 + $0x4278] sm:$0xff]
        %v2422 = vld [vmem:[%s215 + $0x4280] sm:$0xff]
        %v2423 = vld [vmem:[%s215 + $0x4288] sm:$0xff]
        %v2424 = vld [vmem:[%s215 + $0x4290] sm:$0xff]
        %v2425 = vld [vmem:[%s215 + $0x4298] sm:$0xff]
        %v2426 = vld [vmem:[%s215 + $0x42a0] sm:$0xff]
        %v2427 = vld [vmem:[%s215 + $0x42a8] sm:$0xff]
        %v2428 = vld [vmem:[%s215 + $0x42b0] sm:$0xff]
        %v2429 = vld [vmem:[%s215 + $0x42b8] sm:$0xff]
        %v2430 = vld [vmem:[%s215 + $0x42c0] sm:$0xff]
        %v2431 = vld [vmem:[%s215 + $0x42c8] sm:$0xff]
        %v2432 = vld [vmem:[%s215 + $0x42d0] sm:$0xff]
        %v2433 = vld [vmem:[%s215 + $0x42d8] sm:$0xff]
        %v2434 = vld [vmem:[%s215 + $0x42e0] sm:$0xff]
        %v2435 = vld [vmem:[%s215 + $0x42e8] sm:$0xff]
        %v2436 = vld [vmem:[%s215 + $0x42f0] sm:$0xff]
        %v2437 = vld [vmem:[%s215 + $0x42f8] sm:$0xff]
        %v2438 = vld [vmem:[%s215 + $0x4300] sm:$0xff]
        %v2439 = vld [vmem:[%s215 + $0x4308] sm:$0xff]
        %v2440 = vld [vmem:[%s215 + $0x4310] sm:$0xff]
        %v2441 = vld [vmem:[%s215 + $0x4318] sm:$0xff]
        %v2442 = vld [vmem:[%s215 + $0x4320] sm:$0xff]
        %v2443 = vld [vmem:[%s215 + $0x4328] sm:$0xff]
        %v2444 = vld [vmem:[%s215 + $0x4330] sm:$0xff]
        %v2445 = vld [vmem:[%s215 + $0x4338] sm:$0xff]
        %v2446 = vld [vmem:[%s215 + $0x4340] sm:$0xff]
        %v2447 = vld [vmem:[%s215 + $0x4348] sm:$0xff]
        %v2448 = vld [vmem:[%s215 + $0x4350] sm:$0xff]
        %v2449 = vld [vmem:[%s215 + $0x4358] sm:$0xff]
        %v2450 = vld [vmem:[%s215 + $0x4360] sm:$0xff]
        %v2451 = vld [vmem:[%s215 + $0x4368] sm:$0xff]
        %v2452 = vld [vmem:[%s215 + $0x4370] sm:$0xff]
        %v2453 = vld [vmem:[%s215 + $0x4378] sm:$0xff]
        %v2454 = vld [vmem:[%s215 + $0x4380] sm:$0xff]
        %v2455 = vld [vmem:[%s215 + $0x4388] sm:$0xff]
        %v2456 = vld [vmem:[%s215 + $0x4390] sm:$0xff]
        %v2457 = vld [vmem:[%s215 + $0x4398] sm:$0xff]
        %v2458 = vld [vmem:[%s215 + $0x43a0] sm:$0xff]
        %v2459 = vld [vmem:[%s215 + $0x43a8] sm:$0xff]
        %v2460 = vld [vmem:[%s215 + $0x43b0] sm:$0xff]
        %v2461 = vld [vmem:[%s215 + $0x43b8] sm:$0xff]
        %v2462 = vld [vmem:[%s215 + $0x43c0] sm:$0xff]
        %v2463 = vld [vmem:[%s215 + $0x43c8] sm:$0xff]
        %v2464 = vld [vmem:[%s215 + $0x43d0] sm:$0xff]
        %v2465 = vld [vmem:[%s215 + $0x43d8] sm:$0xff]
        %v2466 = vld [vmem:[%s215 + $0x43e0] sm:$0xff]
        %v2467 = vld [vmem:[%s215 + $0x43e8] sm:$0xff]
        %v2468 = vld [vmem:[%s215 + $0x43f0] sm:$0xff]
        %v2469 = vld [vmem:[%s215 + $0x43f8] sm:$0xff]
        %v2470 = vld [vmem:[%s215 + $0x4400] sm:$0xff]
        %v2471 = vld [vmem:[%s215 + $0x4408] sm:$0xff]
        %v2472 = vld [vmem:[%s215 + $0x4410] sm:$0xff]
        %v2473 = vld [vmem:[%s215 + $0x4418] sm:$0xff]
        %v2474 = vld [vmem:[%s215 + $0x4420] sm:$0xff]
        %v2475 = vld [vmem:[%s215 + $0x4428] sm:$0xff]
        %v2476 = vld [vmem:[%s215 + $0x4430] sm:$0xff]
        %v2477 = vld [vmem:[%s215 + $0x4438] sm:$0xff]
        %v2478 = vld [vmem:[%s215 + $0x4440] sm:$0xff]
        %v2479 = vld [vmem:[%s215 + $0x4448] sm:$0xff]
        %v2480 = vld [vmem:[%s215 + $0x4450] sm:$0xff]
        %v2481 = vld [vmem:[%s215 + $0x4458] sm:$0xff]
        %v2482 = vld [vmem:[%s215 + $0x4460] sm:$0xff]
        %v2483 = vld [vmem:[%s215 + $0x4468] sm:$0xff]
        %v2484 = vld [vmem:[%s215 + $0x4470] sm:$0xff]
        %v2485 = vld [vmem:[%s215 + $0x4478] sm:$0xff]
        %v2486 = vld [vmem:[%s215 + $0x4480] sm:$0xff]
        %v2487 = vld [vmem:[%s215 + $0x4488] sm:$0xff]
        %v2488 = vld [vmem:[%s215 + $0x4490] sm:$0xff]
        %v2489 = vld [vmem:[%s215 + $0x4498] sm:$0xff]
        %v2490 = vld [vmem:[%s215 + $0x44a0] sm:$0xff]
        %v2491 = vld [vmem:[%s215 + $0x44a8] sm:$0xff]
        %v2492 = vld [vmem:[%s215 + $0x44b0] sm:$0xff]
        %v2493 = vld [vmem:[%s215 + $0x44b8] sm:$0xff]
        %v2494 = vld [vmem:[%s215 + $0x44c0] sm:$0xff]
        %v2495 = vld [vmem:[%s215 + $0x44c8] sm:$0xff]
        %v2496 = vld [vmem:[%s215 + $0x44d0] sm:$0xff]
        %v2497 = vld [vmem:[%s215 + $0x44d8] sm:$0xff]
        %v2498 = vld [vmem:[%s215 + $0x44e0] sm:$0xff]
        %v2499 = vld [vmem:[%s215 + $0x44e8] sm:$0xff]
        %v2500 = vld [vmem:[%s215 + $0x44f0] sm:$0xff]
        %v2501 = vld [vmem:[%s215 + $0x44f8] sm:$0xff]
        %v2502 = vld [vmem:[%s215 + $0x4500] sm:$0xff]
        %v2503 = vld [vmem:[%s215 + $0x4508] sm:$0xff]
        %v2504 = vld [vmem:[%s215 + $0x4510] sm:$0xff]
        %v2505 = vld [vmem:[%s215 + $0x4518] sm:$0xff]
        %v2506 = vld [vmem:[%s215 + $0x4520] sm:$0xff]
        %v2507 = vld [vmem:[%s215 + $0x4528] sm:$0xff]
        %v2508 = vld [vmem:[%s215 + $0x4530] sm:$0xff]
        %v2509 = vld [vmem:[%s215 + $0x4538] sm:$0xff]
        %v2510 = vld [vmem:[%s215 + $0x4540] sm:$0xff]
        %v2511 = vld [vmem:[%s215 + $0x4548] sm:$0xff]
        %v2512 = vld [vmem:[%s215 + $0x4550] sm:$0xff]
        %v2513 = vld [vmem:[%s215 + $0x4558] sm:$0xff]
        %v2514 = vld [vmem:[%s215 + $0x4560] sm:$0xff]
        %v2515 = vld [vmem:[%s215 + $0x4568] sm:$0xff]
        %v2516 = vld [vmem:[%s215 + $0x4570] sm:$0xff]
        %v2517 = vld [vmem:[%s215 + $0x4578] sm:$0xff]
        %v2518 = vld [vmem:[%s215 + $0x4580] sm:$0xff]
        %v2519 = vld [vmem:[%s215 + $0x4588] sm:$0xff]
        %v2520 = vld [vmem:[%s215 + $0x4590] sm:$0xff]
        %v2521 = vld [vmem:[%s215 + $0x4598] sm:$0xff]
        %v2522 = vld [vmem:[%s215 + $0x45a0] sm:$0xff]
        %v2523 = vld [vmem:[%s215 + $0x45a8] sm:$0xff]
        %v2524 = vld [vmem:[%s215 + $0x45b0] sm:$0xff]
        %v2525 = vld [vmem:[%s215 + $0x45b8] sm:$0xff]
        %v2526 = vld [vmem:[%s215 + $0x45c0] sm:$0xff]
        %v2527 = vld [vmem:[%s215 + $0x45c8] sm:$0xff]
        %v2528 = vld [vmem:[%s215 + $0x45d0] sm:$0xff]
        %v2529 = vld [vmem:[%s215 + $0x45d8] sm:$0xff]
        %v2530 = vld [vmem:[%s215 + $0x45e0] sm:$0xff]
        %v2531 = vld [vmem:[%s215 + $0x45e8] sm:$0xff]
        %v2532 = vld [vmem:[%s215 + $0x45f0] sm:$0xff]
        %v2533 = vld [vmem:[%s215 + $0x45f8] sm:$0xff]
        %v2534 = vld [vmem:[%s215 + $0x4600] sm:$0xff]
        %v2535 = vld [vmem:[%s215 + $0x4608] sm:$0xff]
        %v2536 = vld [vmem:[%s215 + $0x4610] sm:$0xff]
        %v2537 = vld [vmem:[%s215 + $0x4618] sm:$0xff]
        %v2538 = vld [vmem:[%s215 + $0x4620] sm:$0xff]
        %v2539 = vld [vmem:[%s215 + $0x4628] sm:$0xff]
        %v2540 = vld [vmem:[%s215 + $0x4630] sm:$0xff]
        %v2541 = vld [vmem:[%s215 + $0x4638] sm:$0xff]
        %v2542 = vld [vmem:[%s215 + $0x4640] sm:$0xff]
        %v2543 = vld [vmem:[%s215 + $0x4648] sm:$0xff]
        %v2544 = vld [vmem:[%s215 + $0x4650] sm:$0xff]
        %v2545 = vld [vmem:[%s215 + $0x4658] sm:$0xff]
        %v2546 = vld [vmem:[%s215 + $0x4660] sm:$0xff]
        %v2547 = vld [vmem:[%s215 + $0x4668] sm:$0xff]
        %v2548 = vld [vmem:[%s215 + $0x4670] sm:$0xff]
        %v2549 = vld [vmem:[%s215 + $0x4678] sm:$0xff]
        %v2550 = vld [vmem:[%s215 + $0x4680] sm:$0xff]
        %v2551 = vld [vmem:[%s215 + $0x4688] sm:$0xff]
        %v2552 = vld [vmem:[%s215 + $0x4690] sm:$0xff]
        %v2553 = vld [vmem:[%s215 + $0x4698] sm:$0xff]
        %v2554 = vld [vmem:[%s215 + $0x46a0] sm:$0xff]
        %v2555 = vld [vmem:[%s215 + $0x46a8] sm:$0xff]
        %v2556 = vld [vmem:[%s215 + $0x46b0] sm:$0xff]
        %v2557 = vld [vmem:[%s215 + $0x46b8] sm:$0xff]
        %v2558 = vld [vmem:[%s215 + $0x46c0] sm:$0xff]
        %v2559 = vld [vmem:[%s215 + $0x46c8] sm:$0xff]
        %v2560 = vld [vmem:[%s215 + $0x46d0] sm:$0xff]
        %v2561 = vld [vmem:[%s215 + $0x46d8] sm:$0xff]
        %v2562 = vld [vmem:[%s215 + $0x46e0] sm:$0xff]
        %v2563 = vld [vmem:[%s215 + $0x46e8] sm:$0xff]
        %v2564 = vld [vmem:[%s215 + $0x46f0] sm:$0xff]
        %v2565 = vld [vmem:[%s215 + $0x46f8] sm:$0xff]
        %v2566 = vld [vmem:[%s215 + $0x4700] sm:$0xff]
        %v2567 = vld [vmem:[%s215 + $0x4708] sm:$0xff]
        %v2568 = vld [vmem:[%s215 + $0x4710] sm:$0xff]
        %v2569 = vld [vmem:[%s215 + $0x4718] sm:$0xff]
        %v2570 = vld [vmem:[%s215 + $0x4720] sm:$0xff]
        %v2571 = vld [vmem:[%s215 + $0x4728] sm:$0xff]
        %v2572 = vld [vmem:[%s215 + $0x4730] sm:$0xff]
        %v2573 = vld [vmem:[%s215 + $0x4738] sm:$0xff]
        %v2574 = vld [vmem:[%s215 + $0x4740] sm:$0xff]
        %v2575 = vld [vmem:[%s215 + $0x4748] sm:$0xff]
        %v2576 = vld [vmem:[%s215 + $0x4750] sm:$0xff]
        %v2577 = vld [vmem:[%s215 + $0x4758] sm:$0xff]
        %v2578 = vld [vmem:[%s215 + $0x4760] sm:$0xff]
        %v2579 = vld [vmem:[%s215 + $0x4768] sm:$0xff]
        %v2580 = vld [vmem:[%s215 + $0x4770] sm:$0xff]
        %v2581 = vld [vmem:[%s215 + $0x4778] sm:$0xff]
        %v2582 = vld [vmem:[%s215 + $0x4780] sm:$0xff]
        %v2583 = vld [vmem:[%s215 + $0x4788] sm:$0xff]
        %v2584 = vld [vmem:[%s215 + $0x4790] sm:$0xff]
        %v2585 = vld [vmem:[%s215 + $0x4798] sm:$0xff]
        %v2586 = vld [vmem:[%s215 + $0x47a0] sm:$0xff]
        %v2587 = vld [vmem:[%s215 + $0x47a8] sm:$0xff]
        %v2588 = vld [vmem:[%s215 + $0x47b0] sm:$0xff]
        %v2589 = vld [vmem:[%s215 + $0x47b8] sm:$0xff]
        %v2590 = vld [vmem:[%s215 + $0x47c0] sm:$0xff]
        %v2591 = vld [vmem:[%s215 + $0x47c8] sm:$0xff]
        %v2592 = vld [vmem:[%s215 + $0x47d0] sm:$0xff]
        %v2593 = vld [vmem:[%s215 + $0x47d8] sm:$0xff]
        %v2594 = vld [vmem:[%s215 + $0x47e0] sm:$0xff]
        %v2595 = vld [vmem:[%s215 + $0x47e8] sm:$0xff]
        %v2596 = vld [vmem:[%s215 + $0x47f0] sm:$0xff]
        %v2597 = vld [vmem:[%s215 + $0x47f8] sm:$0xff]
        %v2598 = vld [vmem:[%s215 + $0x4800] sm:$0xff]
        %v2599 = vld [vmem:[%s215 + $0x4808] sm:$0xff]
        %v2600 = vld [vmem:[%s215 + $0x4810] sm:$0xff]
        %v2601 = vld [vmem:[%s215 + $0x4818] sm:$0xff]
        %v2602 = vld [vmem:[%s215 + $0x4820] sm:$0xff]
        %v2603 = vld [vmem:[%s215 + $0x4828] sm:$0xff]
        %v2604 = vld [vmem:[%s215 + $0x4830] sm:$0xff]
        %v2605 = vld [vmem:[%s215 + $0x4838] sm:$0xff]
        %v2606 = vld [vmem:[%s215 + $0x4840] sm:$0xff]
        %v2607 = vld [vmem:[%s215 + $0x4848] sm:$0xff]
        %v2608 = vld [vmem:[%s215 + $0x4850] sm:$0xff]
        %v2609 = vld [vmem:[%s215 + $0x4858] sm:$0xff]
        %v2610 = vld [vmem:[%s215 + $0x4860] sm:$0xff]
        %v2611 = vld [vmem:[%s215 + $0x4868] sm:$0xff]
        %v2612 = vld [vmem:[%s215 + $0x4870] sm:$0xff]
        %v2613 = vld [vmem:[%s215 + $0x4878] sm:$0xff]
        %v2614 = vld [vmem:[%s215 + $0x4880] sm:$0xff]
        %v2615 = vld [vmem:[%s215 + $0x4888] sm:$0xff]
        %v2616 = vld [vmem:[%s215 + $0x4890] sm:$0xff]
        %v2617 = vld [vmem:[%s215 + $0x4898] sm:$0xff]
        %v2618 = vld [vmem:[%s215 + $0x48a0] sm:$0xff]
        %v2619 = vld [vmem:[%s215 + $0x48a8] sm:$0xff]
        %v2620 = vld [vmem:[%s215 + $0x48b0] sm:$0xff]
        %v2621 = vld [vmem:[%s215 + $0x48b8] sm:$0xff]
        %v2622 = vld [vmem:[%s215 + $0x48c0] sm:$0xff]
        %v2623 = vld [vmem:[%s215 + $0x48c8] sm:$0xff]
        %v2624 = vld [vmem:[%s215 + $0x48d0] sm:$0xff]
        %v2625 = vld [vmem:[%s215 + $0x48d8] sm:$0xff]
        %v2626 = vld [vmem:[%s215 + $0x48e0] sm:$0xff]
        %v2627 = vld [vmem:[%s215 + $0x48e8] sm:$0xff]
        %v2628 = vld [vmem:[%s215 + $0x48f0] sm:$0xff]
        %v2629 = vld [vmem:[%s215 + $0x48f8] sm:$0xff]
        %v2630 = vld [vmem:[%s215 + $0x4900] sm:$0xff]
        %v2631 = vld [vmem:[%s215 + $0x4908] sm:$0xff]
        %v2632 = vld [vmem:[%s215 + $0x4910] sm:$0xff]
        %v2633 = vld [vmem:[%s215 + $0x4918] sm:$0xff]
        %v2634 = vld [vmem:[%s215 + $0x4920] sm:$0xff]
        %v2635 = vld [vmem:[%s215 + $0x4928] sm:$0xff]
        %v2636 = vld [vmem:[%s215 + $0x4930] sm:$0xff]
        %v2637 = vld [vmem:[%s215 + $0x4938] sm:$0xff]
        %v2638 = vld [vmem:[%s215 + $0x4940] sm:$0xff]
        %v2639 = vld [vmem:[%s215 + $0x4948] sm:$0xff]
        %v2640 = vld [vmem:[%s215 + $0x4950] sm:$0xff]
        %v2641 = vld [vmem:[%s215 + $0x4958] sm:$0xff]
        %v2642 = vld [vmem:[%s215 + $0x4960] sm:$0xff]
        %v2643 = vld [vmem:[%s215 + $0x4968] sm:$0xff]
        %v2644 = vld [vmem:[%s215 + $0x4970] sm:$0xff]
        %v2645 = vld [vmem:[%s215 + $0x4978] sm:$0xff]
        %v2646 = vld [vmem:[%s215 + $0x4980] sm:$0xff]
        %v2647 = vld [vmem:[%s215 + $0x4988] sm:$0xff]
        %v2648 = vld [vmem:[%s215 + $0x4990] sm:$0xff]
        %v2649 = vld [vmem:[%s215 + $0x4998] sm:$0xff]
        %v2650 = vld [vmem:[%s215 + $0x49a0] sm:$0xff]
        %v2651 = vld [vmem:[%s215 + $0x49a8] sm:$0xff]
        %v2652 = vld [vmem:[%s215 + $0x49b0] sm:$0xff]
        %v2653 = vld [vmem:[%s215 + $0x49b8] sm:$0xff]
        %v2654 = vld [vmem:[%s215 + $0x49c0] sm:$0xff]
        %v2655 = vld [vmem:[%s215 + $0x49c8] sm:$0xff]
        %v2656 = vld [vmem:[%s215 + $0x49d0] sm:$0xff]
        %v2657 = vld [vmem:[%s215 + $0x49d8] sm:$0xff]
        %v2658 = vld [vmem:[%s215 + $0x49e0] sm:$0xff]
        %v2659 = vld [vmem:[%s215 + $0x49e8] sm:$0xff]
        %v2660 = vld [vmem:[%s215 + $0x49f0] sm:$0xff]
        %v2661 = vld [vmem:[%s215 + $0x49f8] sm:$0xff]
        %v2662 = vld [vmem:[%s215 + $0x4a00] sm:$0xff]
        %v2663 = vld [vmem:[%s215 + $0x4a08] sm:$0xff]
        %v2664 = vld [vmem:[%s215 + $0x4a10] sm:$0xff]
        %v2665 = vld [vmem:[%s215 + $0x4a18] sm:$0xff]
        %v2666 = vld [vmem:[%s215 + $0x4a20] sm:$0xff]
        %v2667 = vld [vmem:[%s215 + $0x4a28] sm:$0xff]
        %v2668 = vld [vmem:[%s215 + $0x4a30] sm:$0xff]
        %v2669 = vld [vmem:[%s215 + $0x4a38] sm:$0xff]
        %v2670 = vld [vmem:[%s215 + $0x4a40] sm:$0xff]
        %v2671 = vld [vmem:[%s215 + $0x4a48] sm:$0xff]
        %v2672 = vld [vmem:[%s215 + $0x4a50] sm:$0xff]
        %v2673 = vld [vmem:[%s215 + $0x4a58] sm:$0xff]
        %v2674 = vld [vmem:[%s215 + $0x4a60] sm:$0xff]
        %v2675 = vld [vmem:[%s215 + $0x4a68] sm:$0xff]
        %v2676 = vld [vmem:[%s215 + $0x4a70] sm:$0xff]
        %v2677 = vld [vmem:[%s215 + $0x4a78] sm:$0xff]
        %v2678 = vld [vmem:[%s215 + $0x4a80] sm:$0xff]
        %v2679 = vld [vmem:[%s215 + $0x4a88] sm:$0xff]
        %v2680 = vld [vmem:[%s215 + $0x4a90] sm:$0xff]
        %v2681 = vld [vmem:[%s215 + $0x4a98] sm:$0xff]
        %v2682 = vld [vmem:[%s215 + $0x4aa0] sm:$0xff]
        %v2683 = vld [vmem:[%s215 + $0x4aa8] sm:$0xff]
        %v2684 = vld [vmem:[%s215 + $0x4ab0] sm:$0xff]
        %v2685 = vld [vmem:[%s215 + $0x4ab8] sm:$0xff]
        %v2686 = vld [vmem:[%s215 + $0x4ac0] sm:$0xff]
        %v2687 = vld [vmem:[%s215 + $0x4ac8] sm:$0xff]
        %v2688 = vld [vmem:[%s215 + $0x4ad0] sm:$0xff]
        %v2689 = vld [vmem:[%s215 + $0x4ad8] sm:$0xff]
        %v2690 = vld [vmem:[%s215 + $0x4ae0] sm:$0xff]
        %v2691 = vld [vmem:[%s215 + $0x4ae8] sm:$0xff]
        %v2692 = vld [vmem:[%s215 + $0x4af0] sm:$0xff]
        %v2693 = vld [vmem:[%s215 + $0x4af8] sm:$0xff]
        %v2694 = vld [vmem:[%s215 + $0x4b00] sm:$0xff]
        %v2695 = vld [vmem:[%s215 + $0x4b08] sm:$0xff]
        %v2696 = vld [vmem:[%s215 + $0x4b10] sm:$0xff]
        %v2697 = vld [vmem:[%s215 + $0x4b18] sm:$0xff]
        %v2698 = vld [vmem:[%s215 + $0x4b20] sm:$0xff]
        %v2699 = vld [vmem:[%s215 + $0x4b28] sm:$0xff]
        %v2700 = vld [vmem:[%s215 + $0x4b30] sm:$0xff]
        %v2701 = vld [vmem:[%s215 + $0x4b38] sm:$0xff]
        %v2702 = vld [vmem:[%s215 + $0x4b40] sm:$0xff]
        %v2703 = vld [vmem:[%s215 + $0x4b48] sm:$0xff]
        %v2704 = vld [vmem:[%s215 + $0x4b50] sm:$0xff]
        %v2705 = vld [vmem:[%s215 + $0x4b58] sm:$0xff]
        %v2706 = vld [vmem:[%s215 + $0x4b60] sm:$0xff]
        %v2707 = vld [vmem:[%s215 + $0x4b68] sm:$0xff]
        %v2708 = vld [vmem:[%s215 + $0x4b70] sm:$0xff]
        %v2709 = vld [vmem:[%s215 + $0x4b78] sm:$0xff]
        %v2710 = vld [vmem:[%s215 + $0x4b80] sm:$0xff]
        %v2711 = vld [vmem:[%s215 + $0x4b88] sm:$0xff]
        %v2712 = vld [vmem:[%s215 + $0x4b90] sm:$0xff]
        %v2713 = vld [vmem:[%s215 + $0x4b98] sm:$0xff]
        %v2714 = vld [vmem:[%s215 + $0x4ba0] sm:$0xff]
        %v2715 = vld [vmem:[%s215 + $0x4ba8] sm:$0xff]
        %v2716 = vld [vmem:[%s215 + $0x4bb0] sm:$0xff]
        %v2717 = vld [vmem:[%s215 + $0x4bb8] sm:$0xff]
        %v2718 = vld [vmem:[%s215 + $0x4bc0] sm:$0xff]
        %v2719 = vld [vmem:[%s215 + $0x4bc8] sm:$0xff]
        %v2720 = vld [vmem:[%s215 + $0x4bd0] sm:$0xff]
        %v2721 = vld [vmem:[%s215 + $0x4bd8] sm:$0xff]
        %v2722 = vld [vmem:[%s215 + $0x4be0] sm:$0xff]
        %v2723 = vld [vmem:[%s215 + $0x4be8] sm:$0xff]
        %v2724 = vld [vmem:[%s215 + $0x4bf0] sm:$0xff]
        %v2725 = vld [vmem:[%s215 + $0x4bf8] sm:$0xff]
        %v2726 = vld [vmem:[%s215 + $0x4c00] sm:$0xff]
        %v2727 = vld [vmem:[%s215 + $0x4c08] sm:$0xff]
        %v2728 = vld [vmem:[%s215 + $0x4c10] sm:$0xff]
        %v2729 = vld [vmem:[%s215 + $0x4c18] sm:$0xff]
        %v2730 = vld [vmem:[%s215 + $0x4c20] sm:$0xff]
        %v2731 = vld [vmem:[%s215 + $0x4c28] sm:$0xff]
        %v2732 = vld [vmem:[%s215 + $0x4c30] sm:$0xff]
        %v2733 = vld [vmem:[%s215 + $0x4c38] sm:$0xff]
        %v2734 = vld [vmem:[%s215 + $0x4c40] sm:$0xff]
        %v2735 = vld [vmem:[%s215 + $0x4c48] sm:$0xff]
        %v2736 = vld [vmem:[%s215 + $0x4c50] sm:$0xff]
        %v2737 = vld [vmem:[%s215 + $0x4c58] sm:$0xff]
        %v2738 = vld [vmem:[%s215 + $0x4c60] sm:$0xff]
        %v2739 = vld [vmem:[%s215 + $0x4c68] sm:$0xff]
        %v2740 = vld [vmem:[%s215 + $0x4c70] sm:$0xff]
        %v2741 = vld [vmem:[%s215 + $0x4c78] sm:$0xff]
        %v2742 = vld [vmem:[%s215 + $0x4c80] sm:$0xff]
        %v2743 = vld [vmem:[%s215 + $0x4c88] sm:$0xff]
        %v2744 = vld [vmem:[%s215 + $0x4c90] sm:$0xff]
        %v2745 = vld [vmem:[%s215 + $0x4c98] sm:$0xff]
        %v2746 = vld [vmem:[%s215 + $0x4ca0] sm:$0xff]
        %v2747 = vld [vmem:[%s215 + $0x4ca8] sm:$0xff]
        %v2748 = vld [vmem:[%s215 + $0x4cb0] sm:$0xff]
        %v2749 = vld [vmem:[%s215 + $0x4cb8] sm:$0xff]
        %v2750 = vld [vmem:[%s215 + $0x4cc0] sm:$0xff]
        %v2751 = vld [vmem:[%s215 + $0x4cc8] sm:$0xff]
        %v2752 = vld [vmem:[%s215 + $0x4cd0] sm:$0xff]
        %v2753 = vld [vmem:[%s215 + $0x4cd8] sm:$0xff]
        %v2754 = vld [vmem:[%s215 + $0x4ce0] sm:$0xff]
        %v2755 = vld [vmem:[%s215 + $0x4ce8] sm:$0xff]
        %v2756 = vld [vmem:[%s215 + $0x4cf0] sm:$0xff]
        %v2757 = vld [vmem:[%s215 + $0x4cf8] sm:$0xff]
        %v2758 = vld [vmem:[%s215 + $0x4d00] sm:$0xff]
        %v2759 = vld [vmem:[%s215 + $0x4d08] sm:$0xff]
        %v2760 = vld [vmem:[%s215 + $0x4d10] sm:$0xff]
        %v2761 = vld [vmem:[%s215 + $0x4d18] sm:$0xff]
        %v2762 = vld [vmem:[%s215 + $0x4d20] sm:$0xff]
        %v2763 = vld [vmem:[%s215 + $0x4d28] sm:$0xff]
        %v2764 = vld [vmem:[%s215 + $0x4d30] sm:$0xff]
        %v2765 = vld [vmem:[%s215 + $0x4d38] sm:$0xff]
        %v2766 = vld [vmem:[%s215 + $0x4d40] sm:$0xff]
        %v2767 = vld [vmem:[%s215 + $0x4d48] sm:$0xff]
        %v2768 = vld [vmem:[%s215 + $0x4d50] sm:$0xff]
        %v2769 = vld [vmem:[%s215 + $0x4d58] sm:$0xff]
        %v2770 = vld [vmem:[%s215 + $0x4d60] sm:$0xff]
        %v2771 = vld [vmem:[%s215 + $0x4d68] sm:$0xff]
        %v2772 = vld [vmem:[%s215 + $0x4d70] sm:$0xff]
        %v2773 = vld [vmem:[%s215 + $0x4d78] sm:$0xff]
        %v2774 = vld [vmem:[%s215 + $0x4d80] sm:$0xff]
        %v2775 = vld [vmem:[%s215 + $0x4d88] sm:$0xff]
        %v2776 = vld [vmem:[%s215 + $0x4d90] sm:$0xff]
        %v2777 = vld [vmem:[%s215 + $0x4d98] sm:$0xff]
        %v2778 = vld [vmem:[%s215 + $0x4da0] sm:$0xff]
        %v2779 = vld [vmem:[%s215 + $0x4da8] sm:$0xff]
        %v2780 = vld [vmem:[%s215 + $0x4db0] sm:$0xff]
        %v2781 = vld [vmem:[%s215 + $0x4db8] sm:$0xff]
        %v2782 = vld [vmem:[%s215 + $0x4dc0] sm:$0xff]
        %v2783 = vld [vmem:[%s215 + $0x4dc8] sm:$0xff]
        %v2784 = vld [vmem:[%s215 + $0x4dd0] sm:$0xff]
        %v2785 = vld [vmem:[%s215 + $0x4dd8] sm:$0xff]
        %v2786 = vld [vmem:[%s215 + $0x4de0] sm:$0xff]
        %v2787 = vld [vmem:[%s215 + $0x4de8] sm:$0xff]
        %v2788 = vld [vmem:[%s215 + $0x4df0] sm:$0xff]
        %v2789 = vld [vmem:[%s215 + $0x4df8] sm:$0xff]
        %v2790 = vld [vmem:[%s215 + $0x4e00] sm:$0xff]
        %v2791 = vld [vmem:[%s215 + $0x4e08] sm:$0xff]
        %v2792 = vld [vmem:[%s215 + $0x4e10] sm:$0xff]
        %v2793 = vld [vmem:[%s215 + $0x4e18] sm:$0xff]
        %v2794 = vld [vmem:[%s215 + $0x4e20] sm:$0xff]
        %v2795 = vld [vmem:[%s215 + $0x4e28] sm:$0xff]
        %v2796 = vld [vmem:[%s215 + $0x4e30] sm:$0xff]
        %v2797 = vld [vmem:[%s215 + $0x4e38] sm:$0xff]
        %v2798 = vld [vmem:[%s215 + $0x4e40] sm:$0xff]
        %v2799 = vld [vmem:[%s215 + $0x4e48] sm:$0xff]
        %v2800 = vld [vmem:[%s215 + $0x4e50] sm:$0xff]
        %v2801 = vld [vmem:[%s215 + $0x4e58] sm:$0xff]
        %v2802 = vld [vmem:[%s215 + $0x4e60] sm:$0xff]
        %v2803 = vld [vmem:[%s215 + $0x4e68] sm:$0xff]
        %v2804 = vld [vmem:[%s215 + $0x4e70] sm:$0xff]
        %v2805 = vld [vmem:[%s215 + $0x4e78] sm:$0xff]
        %v2806 = vld [vmem:[%s215 + $0x4e80] sm:$0xff]
        %v2807 = vld [vmem:[%s215 + $0x4e88] sm:$0xff]
        %v2808 = vld [vmem:[%s215 + $0x4e90] sm:$0xff]
        %v2809 = vld [vmem:[%s215 + $0x4e98] sm:$0xff]
        %v2810 = vld [vmem:[%s215 + $0x4ea0] sm:$0xff]
        %v2811 = vld [vmem:[%s215 + $0x4ea8] sm:$0xff]
        %v2812 = vld [vmem:[%s215 + $0x4eb0] sm:$0xff]
        %v2813 = vld [vmem:[%s215 + $0x4eb8] sm:$0xff]
        %v2814 = vld [vmem:[%s215 + $0x4ec0] sm:$0xff]
        %v2815 = vld [vmem:[%s215 + $0x4ec8] sm:$0xff]
        %v2816 = vld [vmem:[%s215 + $0x4ed0] sm:$0xff]
        %v2817 = vld [vmem:[%s215 + $0x4ed8] sm:$0xff]
        %v2818 = vld [vmem:[%s215 + $0x4ee0] sm:$0xff]
        %v2819 = vld [vmem:[%s215 + $0x4ee8] sm:$0xff]
        %v2820 = vld [vmem:[%s215 + $0x4ef0] sm:$0xff]
        %v2821 = vld [vmem:[%s215 + $0x4ef8] sm:$0xff]
        %v2822 = vld [vmem:[%s215 + $0x4f00] sm:$0xff]
        %v2823 = vld [vmem:[%s215 + $0x4f08] sm:$0xff]
        %v2824 = vld [vmem:[%s215 + $0x4f10] sm:$0xff]
        %v2825 = vld [vmem:[%s215 + $0x4f18] sm:$0xff]
        %v2826 = vld [vmem:[%s215 + $0x4f20] sm:$0xff]
        %v2827 = vld [vmem:[%s215 + $0x4f28] sm:$0xff]
        %v2828 = vld [vmem:[%s215 + $0x4f30] sm:$0xff]
        %v2829 = vld [vmem:[%s215 + $0x4f38] sm:$0xff]
        %v2830 = vld [vmem:[%s215 + $0x4f40] sm:$0xff]
        %v2831 = vld [vmem:[%s215 + $0x4f48] sm:$0xff]
        %v2832 = vld [vmem:[%s215 + $0x4f50] sm:$0xff]
        %v2833 = vld [vmem:[%s215 + $0x4f58] sm:$0xff]
        %v2834 = vld [vmem:[%s215 + $0x4f60] sm:$0xff]
        %v2835 = vld [vmem:[%s215 + $0x4f68] sm:$0xff]
        %v2836 = vld [vmem:[%s215 + $0x4f70] sm:$0xff]
        %v2837 = vld [vmem:[%s215 + $0x4f78] sm:$0xff]
        %v2838 = vld [vmem:[%s215 + $0x4f80] sm:$0xff]
        %v2839 = vld [vmem:[%s215 + $0x4f88] sm:$0xff]
        %v2840 = vld [vmem:[%s215 + $0x4f90] sm:$0xff]
        %v2841 = vld [vmem:[%s215 + $0x4f98] sm:$0xff]
        %v2842 = vld [vmem:[%s215 + $0x4fa0] sm:$0xff]
        %v2843 = vld [vmem:[%s215 + $0x4fa8] sm:$0xff]
        %v2844 = vld [vmem:[%s215 + $0x4fb0] sm:$0xff]
        %v2845 = vld [vmem:[%s215 + $0x4fb8] sm:$0xff]
        %v2846 = vld [vmem:[%s215 + $0x4fc0] sm:$0xff]
        %v2847 = vld [vmem:[%s215 + $0x4fc8] sm:$0xff]
        %v2848 = vld [vmem:[%s215 + $0x4fd0] sm:$0xff]
        %v2849 = vld [vmem:[%s215 + $0x4fd8] sm:$0xff]
        %v2850 = vld [vmem:[%s215 + $0x4fe0] sm:$0xff]
        %v2851 = vld [vmem:[%s215 + $0x4fe8] sm:$0xff]
        %v2852 = vld [vmem:[%s215 + $0x4ff0] sm:$0xff]
        %v2853 = vld [vmem:[%s215 + $0x4ff8] sm:$0xff]
        %v2854 = vld [vmem:[%s215 + $0x5000] sm:$0xff]
        %v2855 = vld [vmem:[%s215 + $0x5008] sm:$0xff]
        %v2856 = vld [vmem:[%s215 + $0x5010] sm:$0xff]
        %v2857 = vld [vmem:[%s215 + $0x5018] sm:$0xff]
        %v2858 = vld [vmem:[%s215 + $0x5020] sm:$0xff]
        %v2859 = vld [vmem:[%s215 + $0x5028] sm:$0xff]
        %v2860 = vld [vmem:[%s215 + $0x5030] sm:$0xff]
        %v2861 = vld [vmem:[%s215 + $0x5038] sm:$0xff]
        %v2862 = vld [vmem:[%s215 + $0x5040] sm:$0xff]
        %v2863 = vld [vmem:[%s215 + $0x5048] sm:$0xff]
        %v2864 = vld [vmem:[%s215 + $0x5050] sm:$0xff]
        %v2865 = vld [vmem:[%s215 + $0x5058] sm:$0xff]
        %v2866 = vld [vmem:[%s215 + $0x5060] sm:$0xff]
        %v2867 = vld [vmem:[%s215 + $0x5068] sm:$0xff]
        %v2868 = vld [vmem:[%s215 + $0x5070] sm:$0xff]
        %v2869 = vld [vmem:[%s215 + $0x5078] sm:$0xff]
        %v2870 = vld [vmem:[%s215 + $0x5080] sm:$0xff]
        %v2871 = vld [vmem:[%s215 + $0x5088] sm:$0xff]
        %v2872 = vld [vmem:[%s215 + $0x5090] sm:$0xff]
        %v2873 = vld [vmem:[%s215 + $0x5098] sm:$0xff]
        %v2874 = vld [vmem:[%s215 + $0x50a0] sm:$0xff]
        %v2875 = vld [vmem:[%s215 + $0x50a8] sm:$0xff]
        %v2876 = vld [vmem:[%s215 + $0x50b0] sm:$0xff]
        %v2877 = vld [vmem:[%s215 + $0x50b8] sm:$0xff]
        %v2878 = vld [vmem:[%s215 + $0x50c0] sm:$0xff]
        %v2879 = vld [vmem:[%s215 + $0x50c8] sm:$0xff]
        %v2880 = vld [vmem:[%s215 + $0x50d0] sm:$0xff]
        %v2881 = vld [vmem:[%s215 + $0x50d8] sm:$0xff]
        %v2882 = vld [vmem:[%s215 + $0x50e0] sm:$0xff]
        %v2883 = vld [vmem:[%s215 + $0x50e8] sm:$0xff]
        %v2884 = vld [vmem:[%s215 + $0x50f0] sm:$0xff]
        %v2885 = vld [vmem:[%s215 + $0x50f8] sm:$0xff]
        %v2886 = vld [vmem:[%s215 + $0x5100] sm:$0xff]
        %v2887 = vld [vmem:[%s215 + $0x5108] sm:$0xff]
        %v2888 = vld [vmem:[%s215 + $0x5110] sm:$0xff]
        %v2889 = vld [vmem:[%s215 + $0x5118] sm:$0xff]
        %v2890 = vld [vmem:[%s215 + $0x5120] sm:$0xff]
        %v2891 = vld [vmem:[%s215 + $0x5128] sm:$0xff]
        %v2892 = vld [vmem:[%s215 + $0x5130] sm:$0xff]
        %v2893 = vld [vmem:[%s215 + $0x5138] sm:$0xff]
        %v2894 = vld [vmem:[%s215 + $0x5140] sm:$0xff]
        %v2895 = vld [vmem:[%s215 + $0x5148] sm:$0xff]
        %v2896 = vld [vmem:[%s215 + $0x5150] sm:$0xff]
        %v2897 = vld [vmem:[%s215 + $0x5158] sm:$0xff]
        %v2898 = vld [vmem:[%s215 + $0x5160] sm:$0xff]
        %v2899 = vld [vmem:[%s215 + $0x5168] sm:$0xff]
        %v2900 = vld [vmem:[%s215 + $0x5170] sm:$0xff]
        %v2901 = vld [vmem:[%s215 + $0x5178] sm:$0xff]
        %v2902 = vld [vmem:[%s215 + $0x5180] sm:$0xff]
        %v2903 = vld [vmem:[%s215 + $0x5188] sm:$0xff]
        %v2904 = vld [vmem:[%s215 + $0x5190] sm:$0xff]
        %v2905 = vld [vmem:[%s215 + $0x5198] sm:$0xff]
        %v2906 = vld [vmem:[%s215 + $0x51a0] sm:$0xff]
        %v2907 = vld [vmem:[%s215 + $0x51a8] sm:$0xff]
        %v2908 = vld [vmem:[%s215 + $0x51b0] sm:$0xff]
        %v2909 = vld [vmem:[%s215 + $0x51b8] sm:$0xff]
        %v2910 = vld [vmem:[%s215 + $0x51c0] sm:$0xff]
        %v2911 = vld [vmem:[%s215 + $0x51c8] sm:$0xff]
        %v2912 = vld [vmem:[%s215 + $0x51d0] sm:$0xff]
        %v2913 = vld [vmem:[%s215 + $0x51d8] sm:$0xff]
        %v2914 = vld [vmem:[%s215 + $0x51e0] sm:$0xff]
        %v2915 = vld [vmem:[%s215 + $0x51e8] sm:$0xff]
        %v2916 = vld [vmem:[%s215 + $0x51f0] sm:$0xff]
        %v2917 = vld [vmem:[%s215 + $0x51f8] sm:$0xff]
        %v2918 = vld [vmem:[%s215 + $0x5200] sm:$0xff]
        %v2919 = vld [vmem:[%s215 + $0x5208] sm:$0xff]
        %v2920 = vld [vmem:[%s215 + $0x5210] sm:$0xff]
        %v2921 = vld [vmem:[%s215 + $0x5218] sm:$0xff]
        %v2922 = vld [vmem:[%s215 + $0x5220] sm:$0xff]
        %v2923 = vld [vmem:[%s215 + $0x5228] sm:$0xff]
        %v2924 = vld [vmem:[%s215 + $0x5230] sm:$0xff]
        %v2925 = vld [vmem:[%s215 + $0x5238] sm:$0xff]
        %v2926 = vld [vmem:[%s215 + $0x5240] sm:$0xff]
        %v2927 = vld [vmem:[%s215 + $0x5248] sm:$0xff]
        %v2928 = vld [vmem:[%s215 + $0x5250] sm:$0xff]
        %v2929 = vld [vmem:[%s215 + $0x5258] sm:$0xff]
        %v2930 = vld [vmem:[%s215 + $0x5260] sm:$0xff]
        %v2931 = vld [vmem:[%s215 + $0x5268] sm:$0xff]
        %v2932 = vld [vmem:[%s215 + $0x5270] sm:$0xff]
        %v2933 = vld [vmem:[%s215 + $0x5278] sm:$0xff]
        %v2934 = vld [vmem:[%s215 + $0x5280] sm:$0xff]
        %v2935 = vld [vmem:[%s215 + $0x5288] sm:$0xff]
        %v2936 = vld [vmem:[%s215 + $0x5290] sm:$0xff]
        %v2937 = vld [vmem:[%s215 + $0x5298] sm:$0xff]
        %v2938 = vld [vmem:[%s215 + $0x52a0] sm:$0xff]
        %v2939 = vld [vmem:[%s215 + $0x52a8] sm:$0xff]
        %v2940 = vld [vmem:[%s215 + $0x52b0] sm:$0xff]
        %v2941 = vld [vmem:[%s215 + $0x52b8] sm:$0xff]
        %v2942 = vld [vmem:[%s215 + $0x52c0] sm:$0xff]
        %v2943 = vld [vmem:[%s215 + $0x52c8] sm:$0xff]
        %v2944 = vld [vmem:[%s215 + $0x52d0] sm:$0xff]
        %v2945 = vld [vmem:[%s215 + $0x52d8] sm:$0xff]
        %v2946 = vld [vmem:[%s215 + $0x52e0] sm:$0xff]
        %v2947 = vld [vmem:[%s215 + $0x52e8] sm:$0xff]
        %v2948 = vld [vmem:[%s215 + $0x52f0] sm:$0xff]
        %v2949 = vld [vmem:[%s215 + $0x52f8] sm:$0xff]
        %v2950 = vld [vmem:[%s215 + $0x5300] sm:$0xff]
        %v2951 = vld [vmem:[%s215 + $0x5308] sm:$0xff]
        %v2952 = vld [vmem:[%s215 + $0x5310] sm:$0xff]
        %v2953 = vld [vmem:[%s215 + $0x5318] sm:$0xff]
        %v2954 = vld [vmem:[%s215 + $0x5320] sm:$0xff]
        %v2955 = vld [vmem:[%s215 + $0x5328] sm:$0xff]
        %v2956 = vld [vmem:[%s215 + $0x5330] sm:$0xff]
        %v2957 = vld [vmem:[%s215 + $0x5338] sm:$0xff]
        %v2958 = vld [vmem:[%s215 + $0x5340] sm:$0xff]
        %v2959 = vld [vmem:[%s215 + $0x5348] sm:$0xff]
        %v2960 = vld [vmem:[%s215 + $0x5350] sm:$0xff]
        %v2961 = vld [vmem:[%s215 + $0x5358] sm:$0xff]
        %v2962 = vld [vmem:[%s215 + $0x5360] sm:$0xff]
        %v2963 = vld [vmem:[%s215 + $0x5368] sm:$0xff]
        %v2964 = vld [vmem:[%s215 + $0x5370] sm:$0xff]
        %v2965 = vld [vmem:[%s215 + $0x5378] sm:$0xff]
        %v2966 = vld [vmem:[%s215 + $0x5380] sm:$0xff]
        %v2967 = vld [vmem:[%s215 + $0x5388] sm:$0xff]
        %v2968 = vld [vmem:[%s215 + $0x5390] sm:$0xff]
        %v2969 = vld [vmem:[%s215 + $0x5398] sm:$0xff]
        %v2970 = vld [vmem:[%s215 + $0x53a0] sm:$0xff]
        %v2971 = vld [vmem:[%s215 + $0x53a8] sm:$0xff]
        %v2972 = vld [vmem:[%s215 + $0x53b0] sm:$0xff]
        %v2973 = vld [vmem:[%s215 + $0x53b8] sm:$0xff]
        %v2974 = vld [vmem:[%s215 + $0x53c0] sm:$0xff]
        %v2975 = vld [vmem:[%s215 + $0x53c8] sm:$0xff]
        %v2976 = vld [vmem:[%s215 + $0x53d0] sm:$0xff]
        %v2977 = vld [vmem:[%s215 + $0x53d8] sm:$0xff]
        %v2978 = vld [vmem:[%s215 + $0x53e0] sm:$0xff]
        %v2979 = vld [vmem:[%s215 + $0x53e8] sm:$0xff]
        %v2980 = vld [vmem:[%s215 + $0x53f0] sm:$0xff]
        %v2981 = vld [vmem:[%s215 + $0x53f8] sm:$0xff]
        %v2982 = vld [vmem:[%s215 + $0x5400] sm:$0xff]
        %v2983 = vld [vmem:[%s215 + $0x5408] sm:$0xff]
        %v2984 = vld [vmem:[%s215 + $0x5410] sm:$0xff]
        %v2985 = vld [vmem:[%s215 + $0x5418] sm:$0xff]
        %v2986 = vld [vmem:[%s215 + $0x5420] sm:$0xff]
        %v2987 = vld [vmem:[%s215 + $0x5428] sm:$0xff]
        %v2988 = vld [vmem:[%s215 + $0x5430] sm:$0xff]
        %v2989 = vld [vmem:[%s215 + $0x5438] sm:$0xff]
        %v2990 = vld [vmem:[%s215 + $0x5440] sm:$0xff]
        %v2991 = vld [vmem:[%s215 + $0x5448] sm:$0xff]
        %v2992 = vld [vmem:[%s215 + $0x5450] sm:$0xff]
        %v2993 = vld [vmem:[%s215 + $0x5458] sm:$0xff]
        %v2994 = vld [vmem:[%s215 + $0x5460] sm:$0xff]
        %v2995 = vld [vmem:[%s215 + $0x5468] sm:$0xff]
        %v2996 = vld [vmem:[%s215 + $0x5470] sm:$0xff]
        %v2997 = vld [vmem:[%s215 + $0x5478] sm:$0xff]
        %v2998 = vld [vmem:[%s215 + $0x5480] sm:$0xff]
        %v2999 = vld [vmem:[%s215 + $0x5488] sm:$0xff]
        %v3000 = vld [vmem:[%s215 + $0x5490] sm:$0xff]
        %v3001 = vld [vmem:[%s215 + $0x5498] sm:$0xff]
        %v3002 = vld [vmem:[%s215 + $0x54a0] sm:$0xff]
        %v3003 = vld [vmem:[%s215 + $0x54a8] sm:$0xff]
        %v3004 = vld [vmem:[%s215 + $0x54b0] sm:$0xff]
        %v3005 = vld [vmem:[%s215 + $0x54b8] sm:$0xff]
        %v3006 = vld [vmem:[%s215 + $0x54c0] sm:$0xff]
        %v3007 = vld [vmem:[%s215 + $0x54c8] sm:$0xff]
        %v3008 = vld [vmem:[%s215 + $0x54d0] sm:$0xff]
        %v3009 = vld [vmem:[%s215 + $0x54d8] sm:$0xff]
        %v3010 = vld [vmem:[%s215 + $0x54e0] sm:$0xff]
        %v3011 = vld [vmem:[%s215 + $0x54e8] sm:$0xff]
        %v3012 = vld [vmem:[%s215 + $0x54f0] sm:$0xff]
        %v3013 = vld [vmem:[%s215 + $0x54f8] sm:$0xff]
        %v3014 = vld [vmem:[%s215 + $0x5500] sm:$0xff]
        %v3015 = vld [vmem:[%s215 + $0x5508] sm:$0xff]
        %v3016 = vld [vmem:[%s215 + $0x5510] sm:$0xff]
        %v3017 = vld [vmem:[%s215 + $0x5518] sm:$0xff]
        %v3018 = vld [vmem:[%s215 + $0x5520] sm:$0xff]
        %v3019 = vld [vmem:[%s215 + $0x5528] sm:$0xff]
        %v3020 = vld [vmem:[%s215 + $0x5530] sm:$0xff]
        %v3021 = vld [vmem:[%s215 + $0x5538] sm:$0xff]
        %v3022 = vld [vmem:[%s215 + $0x5540] sm:$0xff]
        %v3023 = vld [vmem:[%s215 + $0x5548] sm:$0xff]
        %v3024 = vld [vmem:[%s215 + $0x5550] sm:$0xff]
        %v3025 = vld [vmem:[%s215 + $0x5558] sm:$0xff]
        %v3026 = vld [vmem:[%s215 + $0x5560] sm:$0xff]
        %v3027 = vld [vmem:[%s215 + $0x5568] sm:$0xff]
        %v3028 = vld [vmem:[%s215 + $0x5570] sm:$0xff]
        %v3029 = vld [vmem:[%s215 + $0x5578] sm:$0xff]
        %v3030 = vld [vmem:[%s215 + $0x5580] sm:$0xff]
        %v3031 = vld [vmem:[%s215 + $0x5588] sm:$0xff]
        %v3032 = vld [vmem:[%s215 + $0x5590] sm:$0xff]
        %v3033 = vld [vmem:[%s215 + $0x5598] sm:$0xff]
        %v3034 = vld [vmem:[%s215 + $0x55a0] sm:$0xff]
        %v3035 = vld [vmem:[%s215 + $0x55a8] sm:$0xff]
        %v3036 = vld [vmem:[%s215 + $0x55b0] sm:$0xff]
        %v3037 = vld [vmem:[%s215 + $0x55b8] sm:$0xff]
        %v3038 = vld [vmem:[%s215 + $0x55c0] sm:$0xff]
        %v3039 = vld [vmem:[%s215 + $0x55c8] sm:$0xff]
        %v3040 = vld [vmem:[%s215 + $0x55d0] sm:$0xff]
        %v3041 = vld [vmem:[%s215 + $0x55d8] sm:$0xff]
        %v3042 = vld [vmem:[%s215 + $0x55e0] sm:$0xff]
        %v3043 = vld [vmem:[%s215 + $0x55e8] sm:$0xff]
        %v3044 = vld [vmem:[%s215 + $0x55f0] sm:$0xff]
        %v3045 = vld [vmem:[%s215 + $0x55f8] sm:$0xff]
        %v3046 = vld [vmem:[%s215 + $0x5600] sm:$0xff]
        %v3047 = vld [vmem:[%s215 + $0x5608] sm:$0xff]
        %v3048 = vld [vmem:[%s215 + $0x5610] sm:$0xff]
        %v3049 = vld [vmem:[%s215 + $0x5618] sm:$0xff]
        %v3050 = vld [vmem:[%s215 + $0x5620] sm:$0xff]
        %v3051 = vld [vmem:[%s215 + $0x5628] sm:$0xff]
        %v3052 = vld [vmem:[%s215 + $0x5630] sm:$0xff]
        %v3053 = vld [vmem:[%s215 + $0x5638] sm:$0xff]
        %v3054 = vld [vmem:[%s215 + $0x5640] sm:$0xff]
        %v3055 = vld [vmem:[%s215 + $0x5648] sm:$0xff]
        %v3056 = vld [vmem:[%s215 + $0x5650] sm:$0xff]
        %v3057 = vld [vmem:[%s215 + $0x5658] sm:$0xff]
        %v3058 = vld [vmem:[%s215 + $0x5660] sm:$0xff]
        %v3059 = vld [vmem:[%s215 + $0x5668] sm:$0xff]
        %v3060 = vld [vmem:[%s215 + $0x5670] sm:$0xff]
        %v3061 = vld [vmem:[%s215 + $0x5678] sm:$0xff]
        %v3062 = vld [vmem:[%s215 + $0x5680] sm:$0xff]
        %v3063 = vld [vmem:[%s215 + $0x5688] sm:$0xff]
        %v3064 = vld [vmem:[%s215 + $0x5690] sm:$0xff]
        %v3065 = vld [vmem:[%s215 + $0x5698] sm:$0xff]
        %v3066 = vld [vmem:[%s215 + $0x56a0] sm:$0xff]
        %v3067 = vld [vmem:[%s215 + $0x56a8] sm:$0xff]
        %v3068 = vld [vmem:[%s215 + $0x56b0] sm:$0xff]
        %v3069 = vld [vmem:[%s215 + $0x56b8] sm:$0xff]
        %v3070 = vld [vmem:[%s215 + $0x56c0] sm:$0xff]
        %v3071 = vld [vmem:[%s215 + $0x56c8] sm:$0xff]
        %v3072 = vld [vmem:[%s215 + $0x56d0] sm:$0xff]
        %v3073 = vld [vmem:[%s215 + $0x56d8] sm:$0xff]
        %v3074 = vld [vmem:[%s215 + $0x56e0] sm:$0xff]
        %v3075 = vld [vmem:[%s215 + $0x56e8] sm:$0xff]
        %v3076 = vld [vmem:[%s215 + $0x56f0] sm:$0xff]
        %v3077 = vld [vmem:[%s215 + $0x56f8] sm:$0xff]
        %v3078 = vld [vmem:[%s215 + $0x5700] sm:$0xff]
        %v3079 = vld [vmem:[%s215 + $0x5708] sm:$0xff]
        %v3080 = vld [vmem:[%s215 + $0x5710] sm:$0xff]
        %v3081 = vld [vmem:[%s215 + $0x5718] sm:$0xff]
        %v3082 = vld [vmem:[%s215 + $0x5720] sm:$0xff]
        %v3083 = vld [vmem:[%s215 + $0x5728] sm:$0xff]
        %v3084 = vld [vmem:[%s215 + $0x5730] sm:$0xff]
        %v3085 = vld [vmem:[%s215 + $0x5738] sm:$0xff]
        %v3086 = vld [vmem:[%s215 + $0x5740] sm:$0xff]
        %v3087 = vld [vmem:[%s215 + $0x5748] sm:$0xff]
        %v3088 = vld [vmem:[%s215 + $0x5750] sm:$0xff]
        %v3089 = vld [vmem:[%s215 + $0x5758] sm:$0xff]
        %v3090 = vld [vmem:[%s215 + $0x5760] sm:$0xff]
        %v3091 = vld [vmem:[%s215 + $0x5768] sm:$0xff]
        %v3092 = vld [vmem:[%s215 + $0x5770] sm:$0xff]
        %v3093 = vld [vmem:[%s215 + $0x5778] sm:$0xff]
        %v3094 = vld [vmem:[%s215 + $0x5780] sm:$0xff]
        %v3095 = vld [vmem:[%s215 + $0x5788] sm:$0xff]
        %v3096 = vld [vmem:[%s215 + $0x5790] sm:$0xff]
        %v3097 = vld [vmem:[%s215 + $0x5798] sm:$0xff]
        %v3098 = vld [vmem:[%s215 + $0x57a0] sm:$0xff]
        %v3099 = vld [vmem:[%s215 + $0x57a8] sm:$0xff]
        %v3100 = vld [vmem:[%s215 + $0x57b0] sm:$0xff]
        %v3101 = vld [vmem:[%s215 + $0x57b8] sm:$0xff]
        %v3102 = vld [vmem:[%s215 + $0x57c0] sm:$0xff]
        %v3103 = vld [vmem:[%s215 + $0x57c8] sm:$0xff]
        %v3104 = vld [vmem:[%s215 + $0x57d0] sm:$0xff]
        %v3105 = vld [vmem:[%s215 + $0x57d8] sm:$0xff]
        %v3106 = vld [vmem:[%s215 + $0x57e0] sm:$0xff]
        %v3107 = vld [vmem:[%s215 + $0x57e8] sm:$0xff]
        %v3108 = vld [vmem:[%s215 + $0x57f0] sm:$0xff]
        %v3109 = vld [vmem:[%s215 + $0x57f8] sm:$0xff]
        %v3110 = vld [vmem:[%s215 + $0x5800] sm:$0xff]
        %v3111 = vld [vmem:[%s215 + $0x5808] sm:$0xff]
        %v3112 = vld [vmem:[%s215 + $0x5810] sm:$0xff]
        %v3113 = vld [vmem:[%s215 + $0x5818] sm:$0xff]
        %v3114 = vld [vmem:[%s215 + $0x5820] sm:$0xff]
        %v3115 = vld [vmem:[%s215 + $0x5828] sm:$0xff]
        %v3116 = vld [vmem:[%s215 + $0x5830] sm:$0xff]
        %v3117 = vld [vmem:[%s215 + $0x5838] sm:$0xff]
        %v3118 = vld [vmem:[%s215 + $0x5840] sm:$0xff]
        %v3119 = vld [vmem:[%s215 + $0x5848] sm:$0xff]
        %v3120 = vld [vmem:[%s215 + $0x5850] sm:$0xff]
        %v3121 = vld [vmem:[%s215 + $0x5858] sm:$0xff]
        %v3122 = vld [vmem:[%s215 + $0x5860] sm:$0xff]
        %v3123 = vld [vmem:[%s215 + $0x5868] sm:$0xff]
        %v3124 = vld [vmem:[%s215 + $0x5870] sm:$0xff]
        %v3125 = vld [vmem:[%s215 + $0x5878] sm:$0xff]
        %v3126 = vld [vmem:[%s215 + $0x5880] sm:$0xff]
        %v3127 = vld [vmem:[%s215 + $0x5888] sm:$0xff]
        %v3128 = vld [vmem:[%s215 + $0x5890] sm:$0xff]
        %v3129 = vld [vmem:[%s215 + $0x5898] sm:$0xff]
        %v3130 = vld [vmem:[%s215 + $0x58a0] sm:$0xff]
        %v3131 = vld [vmem:[%s215 + $0x58a8] sm:$0xff]
        %v3132 = vld [vmem:[%s215 + $0x58b0] sm:$0xff]
        %v3133 = vld [vmem:[%s215 + $0x58b8] sm:$0xff]
        %v3134 = vld [vmem:[%s215 + $0x58c0] sm:$0xff]
        %v3135 = vld [vmem:[%s215 + $0x58c8] sm:$0xff]
        %v3136 = vld [vmem:[%s215 + $0x58d0] sm:$0xff]
        %v3137 = vld [vmem:[%s215 + $0x58d8] sm:$0xff]
        %v3138 = vld [vmem:[%s215 + $0x58e0] sm:$0xff]
        %v3139 = vld [vmem:[%s215 + $0x58e8] sm:$0xff]
        %v3140 = vld [vmem:[%s215 + $0x58f0] sm:$0xff]
        %v3141 = vld [vmem:[%s215 + $0x58f8] sm:$0xff]
        %v3142 = vld [vmem:[%s215 + $0x5900] sm:$0xff]
        %v3143 = vld [vmem:[%s215 + $0x5908] sm:$0xff]
        %v3144 = vld [vmem:[%s215 + $0x5910] sm:$0xff]
        %v3145 = vld [vmem:[%s215 + $0x5918] sm:$0xff]
        %v3146 = vld [vmem:[%s215 + $0x5920] sm:$0xff]
        %v3147 = vld [vmem:[%s215 + $0x5928] sm:$0xff]
        %v3148 = vld [vmem:[%s215 + $0x5930] sm:$0xff]
        %v3149 = vld [vmem:[%s215 + $0x5938] sm:$0xff]
        %v3150 = vld [vmem:[%s215 + $0x5940] sm:$0xff]
        %v3151 = vld [vmem:[%s215 + $0x5948] sm:$0xff]
        %v3152 = vld [vmem:[%s215 + $0x5950] sm:$0xff]
        %v3153 = vld [vmem:[%s215 + $0x5958] sm:$0xff]
        %v3154 = vld [vmem:[%s215 + $0x5960] sm:$0xff]
        %v3155 = vld [vmem:[%s215 + $0x5968] sm:$0xff]
        %v3156 = vld [vmem:[%s215 + $0x5970] sm:$0xff]
        %v3157 = vld [vmem:[%s215 + $0x5978] sm:$0xff]
        %v3158 = vld [vmem:[%s215 + $0x5980] sm:$0xff]
        %v3159 = vld [vmem:[%s215 + $0x5988] sm:$0xff]
        %v3160 = vld [vmem:[%s215 + $0x5990] sm:$0xff]
        %v3161 = vld [vmem:[%s215 + $0x5998] sm:$0xff]
        %v3162 = vld [vmem:[%s215 + $0x59a0] sm:$0xff]
        %v3163 = vld [vmem:[%s215 + $0x59a8] sm:$0xff]
        %v3164 = vld [vmem:[%s215 + $0x59b0] sm:$0xff]
        %v3165 = vld [vmem:[%s215 + $0x59b8] sm:$0xff]
        %v3166 = vld [vmem:[%s215 + $0x59c0] sm:$0xff]
        %v3167 = vld [vmem:[%s215 + $0x59c8] sm:$0xff]
        %v3168 = vld [vmem:[%s215 + $0x59d0] sm:$0xff]
        %v3169 = vld [vmem:[%s215 + $0x59d8] sm:$0xff]
        %v3170 = vld [vmem:[%s215 + $0x59e0] sm:$0xff]
        %v3171 = vld [vmem:[%s215 + $0x59e8] sm:$0xff]
        %v3172 = vld [vmem:[%s215 + $0x59f0] sm:$0xff]
        %v3173 = vld [vmem:[%s215 + $0x59f8] sm:$0xff]
        %v3174 = vld [vmem:[%s215 + $0x5a00] sm:$0xff]
        %v3175 = vld [vmem:[%s215 + $0x5a08] sm:$0xff]
        %v3176 = vld [vmem:[%s215 + $0x5a10] sm:$0xff]
        %v3177 = vld [vmem:[%s215 + $0x5a18] sm:$0xff]
        %v3178 = vld [vmem:[%s215 + $0x5a20] sm:$0xff]
        %v3179 = vld [vmem:[%s215 + $0x5a28] sm:$0xff]
        %v3180 = vld [vmem:[%s215 + $0x5a30] sm:$0xff]
        %v3181 = vld [vmem:[%s215 + $0x5a38] sm:$0xff]
        %v3182 = vld [vmem:[%s215 + $0x5a40] sm:$0xff]
        %v3183 = vld [vmem:[%s215 + $0x5a48] sm:$0xff]
        %v3184 = vld [vmem:[%s215 + $0x5a50] sm:$0xff]
        %v3185 = vld [vmem:[%s215 + $0x5a58] sm:$0xff]
        %v3186 = vld [vmem:[%s215 + $0x5a60] sm:$0xff]
        %v3187 = vld [vmem:[%s215 + $0x5a68] sm:$0xff]
        %v3188 = vld [vmem:[%s215 + $0x5a70] sm:$0xff]
        %v3189 = vld [vmem:[%s215 + $0x5a78] sm:$0xff]
        %v3190 = vld [vmem:[%s215 + $0x5a80] sm:$0xff]
        %v3191 = vld [vmem:[%s215 + $0x5a88] sm:$0xff]
        %v3192 = vld [vmem:[%s215 + $0x5a90] sm:$0xff]
        %v3193 = vld [vmem:[%s215 + $0x5a98] sm:$0xff]
        %v3194 = vld [vmem:[%s215 + $0x5aa0] sm:$0xff]
        %v3195 = vld [vmem:[%s215 + $0x5aa8] sm:$0xff]
        %v3196 = vld [vmem:[%s215 + $0x5ab0] sm:$0xff]
        %v3197 = vld [vmem:[%s215 + $0x5ab8] sm:$0xff]
        %v3198 = vld [vmem:[%s215 + $0x5ac0] sm:$0xff]
        %v3199 = vld [vmem:[%s215 + $0x5ac8] sm:$0xff]
        %v3200 = vld [vmem:[%s215 + $0x5ad0] sm:$0xff]
        %v3201 = vld [vmem:[%s215 + $0x5ad8] sm:$0xff]
        %v3202 = vld [vmem:[%s215 + $0x5ae0] sm:$0xff]
        %v3203 = vld [vmem:[%s215 + $0x5ae8] sm:$0xff]
        %v3204 = vld [vmem:[%s215 + $0x5af0] sm:$0xff]
        %v3205 = vld [vmem:[%s215 + $0x5af8] sm:$0xff]
        %v3206 = vld [vmem:[%s215 + $0x5b00] sm:$0xff]
        %v3207 = vld [vmem:[%s215 + $0x5b08] sm:$0xff]
        %v3208 = vld [vmem:[%s215 + $0x5b10] sm:$0xff]
        %v3209 = vld [vmem:[%s215 + $0x5b18] sm:$0xff]
        %v3210 = vld [vmem:[%s215 + $0x5b20] sm:$0xff]
        %v3211 = vld [vmem:[%s215 + $0x5b28] sm:$0xff]
        %v3212 = vld [vmem:[%s215 + $0x5b30] sm:$0xff]
        %v3213 = vld [vmem:[%s215 + $0x5b38] sm:$0xff]
        %v3214 = vld [vmem:[%s215 + $0x5b40] sm:$0xff]
        %v3215 = vld [vmem:[%s215 + $0x5b48] sm:$0xff]
        %v3216 = vld [vmem:[%s215 + $0x5b50] sm:$0xff]
        %v3217 = vld [vmem:[%s215 + $0x5b58] sm:$0xff]
        %v3218 = vld [vmem:[%s215 + $0x5b60] sm:$0xff]
        %v3219 = vld [vmem:[%s215 + $0x5b68] sm:$0xff]
        %v3220 = vld [vmem:[%s215 + $0x5b70] sm:$0xff]
        %v3221 = vld [vmem:[%s215 + $0x5b78] sm:$0xff]
        %v3222 = vld [vmem:[%s215 + $0x5b80] sm:$0xff]
        %v3223 = vld [vmem:[%s215 + $0x5b88] sm:$0xff]
        %v3224 = vld [vmem:[%s215 + $0x5b90] sm:$0xff]
        %v3225 = vld [vmem:[%s215 + $0x5b98] sm:$0xff]
        %v3226 = vld [vmem:[%s215 + $0x5ba0] sm:$0xff]
        %v3227 = vld [vmem:[%s215 + $0x5ba8] sm:$0xff]
        %v3228 = vld [vmem:[%s215 + $0x5bb0] sm:$0xff]
        %v3229 = vld [vmem:[%s215 + $0x5bb8] sm:$0xff]
        %v3230 = vld [vmem:[%s215 + $0x5bc0] sm:$0xff]
        %v3231 = vld [vmem:[%s215 + $0x5bc8] sm:$0xff]
        %v3232 = vld [vmem:[%s215 + $0x5bd0] sm:$0xff]
        %v3233 = vld [vmem:[%s215 + $0x5bd8] sm:$0xff]
        %v3234 = vld [vmem:[%s215 + $0x5be0] sm:$0xff]
        %v3235 = vld [vmem:[%s215 + $0x5be8] sm:$0xff]
        %v3236 = vld [vmem:[%s215 + $0x5bf0] sm:$0xff]
        %v3237 = vld [vmem:[%s215 + $0x5bf8] sm:$0xff]
        %v3238 = vld [vmem:[%s215 + $0x5c00] sm:$0xff]
        %v3239 = vld [vmem:[%s215 + $0x5c08] sm:$0xff]
        %v3240 = vld [vmem:[%s215 + $0x5c10] sm:$0xff]
        %v3241 = vld [vmem:[%s215 + $0x5c18] sm:$0xff]
        %v3242 = vld [vmem:[%s215 + $0x5c20] sm:$0xff]
        %v3243 = vld [vmem:[%s215 + $0x5c28] sm:$0xff]
        %v3244 = vld [vmem:[%s215 + $0x5c30] sm:$0xff]
        %v3245 = vld [vmem:[%s215 + $0x5c38] sm:$0xff]
        %v3246 = vld [vmem:[%s215 + $0x5c40] sm:$0xff]
        %v3247 = vld [vmem:[%s215 + $0x5c48] sm:$0xff]
        %v3248 = vld [vmem:[%s215 + $0x5c50] sm:$0xff]
        %v3249 = vld [vmem:[%s215 + $0x5c58] sm:$0xff]
        %v3250 = vld [vmem:[%s215 + $0x5c60] sm:$0xff]
        %v3251 = vld [vmem:[%s215 + $0x5c68] sm:$0xff]
        %v3252 = vld [vmem:[%s215 + $0x5c70] sm:$0xff]
        %v3253 = vld [vmem:[%s215 + $0x5c78] sm:$0xff]
        %v3254 = vld [vmem:[%s215 + $0x5c80] sm:$0xff]
        %v3255 = vld [vmem:[%s215 + $0x5c88] sm:$0xff]
        %v3256 = vld [vmem:[%s215 + $0x5c90] sm:$0xff]
        %v3257 = vld [vmem:[%s215 + $0x5c98] sm:$0xff]
        %v3258 = vld [vmem:[%s215 + $0x5ca0] sm:$0xff]
        %v3259 = vld [vmem:[%s215 + $0x5ca8] sm:$0xff]
        %v3260 = vld [vmem:[%s215 + $0x5cb0] sm:$0xff]
        %v3261 = vld [vmem:[%s215 + $0x5cb8] sm:$0xff]
        %v3262 = vld [vmem:[%s215 + $0x5cc0] sm:$0xff]
        %v3263 = vld [vmem:[%s215 + $0x5cc8] sm:$0xff]
        %v3264 = vld [vmem:[%s215 + $0x5cd0] sm:$0xff]
        %v3265 = vld [vmem:[%s215 + $0x5cd8] sm:$0xff]
        %v3266 = vld [vmem:[%s215 + $0x5ce0] sm:$0xff]
        %v3267 = vld [vmem:[%s215 + $0x5ce8] sm:$0xff]
        %v3268 = vld [vmem:[%s215 + $0x5cf0] sm:$0xff]
        %v3269 = vld [vmem:[%s215 + $0x5cf8] sm:$0xff]
        %v3270 = vld [vmem:[%s215 + $0x5d00] sm:$0xff]
        %v3271 = vld [vmem:[%s215 + $0x5d08] sm:$0xff]
        %v3272 = vld [vmem:[%s215 + $0x5d10] sm:$0xff]
        %v3273 = vld [vmem:[%s215 + $0x5d18] sm:$0xff]
        %v3274 = vld [vmem:[%s215 + $0x5d20] sm:$0xff]
        %v3275 = vld [vmem:[%s215 + $0x5d28] sm:$0xff]
        %v3276 = vld [vmem:[%s215 + $0x5d30] sm:$0xff]
        %v3277 = vld [vmem:[%s215 + $0x5d38] sm:$0xff]
        %v3278 = vld [vmem:[%s215 + $0x5d40] sm:$0xff]
        %v3279 = vld [vmem:[%s215 + $0x5d48] sm:$0xff]
        %v3280 = vld [vmem:[%s215 + $0x5d50] sm:$0xff]
        %v3281 = vld [vmem:[%s215 + $0x5d58] sm:$0xff]
        %v3282 = vld [vmem:[%s215 + $0x5d60] sm:$0xff]
        %v3283 = vld [vmem:[%s215 + $0x5d68] sm:$0xff]
        %v3284 = vld [vmem:[%s215 + $0x5d70] sm:$0xff]
        %v3285 = vld [vmem:[%s215 + $0x5d78] sm:$0xff]
        %v3286 = vld [vmem:[%s215 + $0x5d80] sm:$0xff]
        %v3287 = vld [vmem:[%s215 + $0x5d88] sm:$0xff]
        %v3288 = vld [vmem:[%s215 + $0x5d90] sm:$0xff]
        %v3289 = vld [vmem:[%s215 + $0x5d98] sm:$0xff]
        %v3290 = vld [vmem:[%s215 + $0x5da0] sm:$0xff]
        %v3291 = vld [vmem:[%s215 + $0x5da8] sm:$0xff]
        %v3292 = vld [vmem:[%s215 + $0x5db0] sm:$0xff]
        %v3293 = vld [vmem:[%s215 + $0x5db8] sm:$0xff]
        %v3294 = vld [vmem:[%s215 + $0x5dc0] sm:$0xff]
        %v3295 = vld [vmem:[%s215 + $0x5dc8] sm:$0xff]
        %v3296 = vld [vmem:[%s215 + $0x5dd0] sm:$0xff]
        %v3297 = vld [vmem:[%s215 + $0x5dd8] sm:$0xff]
        %v3298 = vld [vmem:[%s215 + $0x5de0] sm:$0xff]
        %v3299 = vld [vmem:[%s215 + $0x5de8] sm:$0xff]
        %v3300 = vld [vmem:[%s215 + $0x5df0] sm:$0xff]
        %v3301 = vld [vmem:[%s215 + $0x5df8] sm:$0xff]
        %v3302 = vld [vmem:[%s215 + $0x5e00] sm:$0xff]
        %v3303 = vld [vmem:[%s215 + $0x5e08] sm:$0xff]
        %v3304 = vld [vmem:[%s215 + $0x5e10] sm:$0xff]
        %v3305 = vld [vmem:[%s215 + $0x5e18] sm:$0xff]
        %v3306 = vld [vmem:[%s215 + $0x5e20] sm:$0xff]
        %v3307 = vld [vmem:[%s215 + $0x5e28] sm:$0xff]
        %v3308 = vld [vmem:[%s215 + $0x5e30] sm:$0xff]
        %v3309 = vld [vmem:[%s215 + $0x5e38] sm:$0xff]
        %v3310 = vld [vmem:[%s215 + $0x5e40] sm:$0xff]
        %v3311 = vld [vmem:[%s215 + $0x5e48] sm:$0xff]
        %v3312 = vld [vmem:[%s215 + $0x5e50] sm:$0xff]
        %v3313 = vld [vmem:[%s215 + $0x5e58] sm:$0xff]
        %v3314 = vld [vmem:[%s215 + $0x5e60] sm:$0xff]
        %v3315 = vld [vmem:[%s215 + $0x5e68] sm:$0xff]
        %v3316 = vld [vmem:[%s215 + $0x5e70] sm:$0xff]
        %v3317 = vld [vmem:[%s215 + $0x5e78] sm:$0xff]
        %v3318 = vld [vmem:[%s215 + $0x5e80] sm:$0xff]
        %v3319 = vld [vmem:[%s215 + $0x5e88] sm:$0xff]
        %v3320 = vld [vmem:[%s215 + $0x5e90] sm:$0xff]
        %v3321 = vld [vmem:[%s215 + $0x5e98] sm:$0xff]
        %v3322 = vld [vmem:[%s215 + $0x5ea0] sm:$0xff]
        %v3323 = vld [vmem:[%s215 + $0x5ea8] sm:$0xff]
        %v3324 = vld [vmem:[%s215 + $0x5eb0] sm:$0xff]
        %v3325 = vld [vmem:[%s215 + $0x5eb8] sm:$0xff]
        %v3326 = vld [vmem:[%s215 + $0x5ec0] sm:$0xff]
        %v3327 = vld [vmem:[%s215 + $0x5ec8] sm:$0xff]
        %v3328 = vld [vmem:[%s215 + $0x5ed0] sm:$0xff]
        %v3329 = vld [vmem:[%s215 + $0x5ed8] sm:$0xff]
        %v3330 = vld [vmem:[%s215 + $0x5ee0] sm:$0xff]
        %v3331 = vld [vmem:[%s215 + $0x5ee8] sm:$0xff]
        %v3332 = vld [vmem:[%s215 + $0x5ef0] sm:$0xff]
        %v3333 = vld [vmem:[%s215 + $0x5ef8] sm:$0xff]
        %v3334 = vld [vmem:[%s215 + $0x5f00] sm:$0xff]
        %v3335 = vld [vmem:[%s215 + $0x5f08] sm:$0xff]
        %v3336 = vld [vmem:[%s215 + $0x5f10] sm:$0xff]
        %v3337 = vld [vmem:[%s215 + $0x5f18] sm:$0xff]
        %v3338 = vld [vmem:[%s215 + $0x5f20] sm:$0xff]
        %v3339 = vld [vmem:[%s215 + $0x5f28] sm:$0xff]
        %v3340 = vld [vmem:[%s215 + $0x5f30] sm:$0xff]
        %v3341 = vld [vmem:[%s215 + $0x5f38] sm:$0xff]
        %v3342 = vld [vmem:[%s215 + $0x5f40] sm:$0xff]
        %v3343 = vld [vmem:[%s215 + $0x5f48] sm:$0xff]
        %v3344 = vld [vmem:[%s215 + $0x5f50] sm:$0xff]
        %v3345 = vld [vmem:[%s215 + $0x5f58] sm:$0xff]
        %v3346 = vld [vmem:[%s215 + $0x5f60] sm:$0xff]
        %v3347 = vld [vmem:[%s215 + $0x5f68] sm:$0xff]
        %v3348 = vld [vmem:[%s215 + $0x5f70] sm:$0xff]
        %v3349 = vld [vmem:[%s215 + $0x5f78] sm:$0xff]
        %v3350 = vld [vmem:[%s215 + $0x5f80] sm:$0xff]
        %v3351 = vld [vmem:[%s215 + $0x5f88] sm:$0xff]
        %v3352 = vld [vmem:[%s215 + $0x5f90] sm:$0xff]
        %v3353 = vld [vmem:[%s215 + $0x5f98] sm:$0xff]
        %v3354 = vld [vmem:[%s215 + $0x5fa0] sm:$0xff]
        %v3355 = vld [vmem:[%s215 + $0x5fa8] sm:$0xff]
        %v3356 = vld [vmem:[%s215 + $0x5fb0] sm:$0xff]
        %v3357 = vld [vmem:[%s215 + $0x5fb8] sm:$0xff]
        %v3358 = vld [vmem:[%s215 + $0x5fc0] sm:$0xff]
        %v3359 = vld [vmem:[%s215 + $0x5fc8] sm:$0xff]
        %v3360 = vld [vmem:[%s215 + $0x5fd0] sm:$0xff]
        %v3361 = vld [vmem:[%s215 + $0x5fd8] sm:$0xff]
        %v3362 = vld [vmem:[%s215 + $0x5fe0] sm:$0xff]
        %v3363 = vld [vmem:[%s215 + $0x5fe8] sm:$0xff]
        %v3364 = vld [vmem:[%s215 + $0x5ff0] sm:$0xff]
        %v3365 = vld [vmem:[%s215 + $0x5ff8] sm:$0xff]
        %v3366 = vld [vmem:[%s215 + $0x6000] sm:$0xff]
        %v3367 = vld [vmem:[%s215 + $0x6008] sm:$0xff]
        %v3368 = vld [vmem:[%s215 + $0x6010] sm:$0xff]
        %v3369 = vld [vmem:[%s215 + $0x6018] sm:$0xff]
        %v3370 = vld [vmem:[%s215 + $0x6020] sm:$0xff]
        %v3371 = vld [vmem:[%s215 + $0x6028] sm:$0xff]
        %v3372 = vld [vmem:[%s215 + $0x6030] sm:$0xff]
        %v3373 = vld [vmem:[%s215 + $0x6038] sm:$0xff]
        %v3374 = vld [vmem:[%s215 + $0x6040] sm:$0xff]
        %v3375 = vld [vmem:[%s215 + $0x6048] sm:$0xff]
        %v3376 = vld [vmem:[%s215 + $0x6050] sm:$0xff]
        %v3377 = vld [vmem:[%s215 + $0x6058] sm:$0xff]
        %v3378 = vld [vmem:[%s215 + $0x6060] sm:$0xff]
        %v3379 = vld [vmem:[%s215 + $0x6068] sm:$0xff]
        %v3380 = vld [vmem:[%s215 + $0x6070] sm:$0xff]
        %v3381 = vld [vmem:[%s215 + $0x6078] sm:$0xff]
        %v3382 = vld [vmem:[%s215 + $0x6080] sm:$0xff]
        %v3383 = vld [vmem:[%s215 + $0x6088] sm:$0xff]
        %v3384 = vld [vmem:[%s215 + $0x6090] sm:$0xff]
        %v3385 = vld [vmem:[%s215 + $0x6098] sm:$0xff]
        %v3386 = vld [vmem:[%s215 + $0x60a0] sm:$0xff]
        %v3387 = vld [vmem:[%s215 + $0x60a8] sm:$0xff]
        %v3388 = vld [vmem:[%s215 + $0x60b0] sm:$0xff]
        %v3389 = vld [vmem:[%s215 + $0x60b8] sm:$0xff]
        %v3390 = vld [vmem:[%s215 + $0x60c0] sm:$0xff]
        %v3391 = vld [vmem:[%s215 + $0x60c8] sm:$0xff]
        %v3392 = vld [vmem:[%s215 + $0x60d0] sm:$0xff]
        %v3393 = vld [vmem:[%s215 + $0x60d8] sm:$0xff]
        %v3394 = vld [vmem:[%s215 + $0x60e0] sm:$0xff]
        %v3395 = vld [vmem:[%s215 + $0x60e8] sm:$0xff]
        %v3396 = vld [vmem:[%s215 + $0x60f0] sm:$0xff]
        %v3397 = vld [vmem:[%s215 + $0x60f8] sm:$0xff]
        %v3398 = vld [vmem:[%s215 + $0x6100] sm:$0xff]
        %v3399 = vld [vmem:[%s215 + $0x6108] sm:$0xff]
        %v3400 = vld [vmem:[%s215 + $0x6110] sm:$0xff]
        %v3401 = vld [vmem:[%s215 + $0x6118] sm:$0xff]
        %v3402 = vld [vmem:[%s215 + $0x6120] sm:$0xff]
        %v3403 = vld [vmem:[%s215 + $0x6128] sm:$0xff]
        %v3404 = vld [vmem:[%s215 + $0x6130] sm:$0xff]
        %v3405 = vld [vmem:[%s215 + $0x6138] sm:$0xff]
        %v3406 = vld [vmem:[%s215 + $0x6140] sm:$0xff]
        %v3407 = vld [vmem:[%s215 + $0x6148] sm:$0xff]
        %v3408 = vld [vmem:[%s215 + $0x6150] sm:$0xff]
        %v3409 = vld [vmem:[%s215 + $0x6158] sm:$0xff]
        %v3410 = vld [vmem:[%s215 + $0x6160] sm:$0xff]
        %v3411 = vld [vmem:[%s215 + $0x6168] sm:$0xff]
        %v3412 = vld [vmem:[%s215 + $0x6170] sm:$0xff]
        %v3413 = vld [vmem:[%s215 + $0x6178] sm:$0xff]
        %v3414 = vld [vmem:[%s215 + $0x6180] sm:$0xff]
        %v3415 = vld [vmem:[%s215 + $0x6188] sm:$0xff]
        %v3416 = vld [vmem:[%s215 + $0x6190] sm:$0xff]
        %v3417 = vld [vmem:[%s215 + $0x6198] sm:$0xff]
        %v3418 = vld [vmem:[%s215 + $0x61a0] sm:$0xff]
        %v3419 = vld [vmem:[%s215 + $0x61a8] sm:$0xff]
        %v3420 = vld [vmem:[%s215 + $0x61b0] sm:$0xff]
        %v3421 = vld [vmem:[%s215 + $0x61b8] sm:$0xff]
        %v3422 = vld [vmem:[%s215 + $0x61c0] sm:$0xff]
        %v3423 = vld [vmem:[%s215 + $0x61c8] sm:$0xff]
        %v3424 = vld [vmem:[%s215 + $0x61d0] sm:$0xff]
        %v3425 = vld [vmem:[%s215 + $0x61d8] sm:$0xff]
        %v3426 = vld [vmem:[%s215 + $0x61e0] sm:$0xff]
        %v3427 = vld [vmem:[%s215 + $0x61e8] sm:$0xff]
        %v3428 = vld [vmem:[%s215 + $0x61f0] sm:$0xff]
        %v3429 = vld [vmem:[%s215 + $0x61f8] sm:$0xff]
        %v3430 = vld [vmem:[%s215 + $0x6200] sm:$0xff]
        %v3431 = vld [vmem:[%s215 + $0x6208] sm:$0xff]
        %v3432 = vld [vmem:[%s215 + $0x6210] sm:$0xff]
        %v3433 = vld [vmem:[%s215 + $0x6218] sm:$0xff]
        %v3434 = vld [vmem:[%s215 + $0x6220] sm:$0xff]
        %v3435 = vld [vmem:[%s215 + $0x6228] sm:$0xff]
        %v3436 = vld [vmem:[%s215 + $0x6230] sm:$0xff]
        %v3437 = vld [vmem:[%s215 + $0x6238] sm:$0xff]
        %v3438 = vld [vmem:[%s215 + $0x6240] sm:$0xff]
        %v3439 = vld [vmem:[%s215 + $0x6248] sm:$0xff]
        %v3440 = vld [vmem:[%s215 + $0x6250] sm:$0xff]
        %v3441 = vld [vmem:[%s215 + $0x6258] sm:$0xff]
        %v3442 = vld [vmem:[%s215 + $0x6260] sm:$0xff]
        %v3443 = vld [vmem:[%s215 + $0x6268] sm:$0xff]
        %v3444 = vld [vmem:[%s215 + $0x6270] sm:$0xff]
        %v3445 = vld [vmem:[%s215 + $0x6278] sm:$0xff]
        %v3446 = vld [vmem:[%s215 + $0x6280] sm:$0xff]
        %v3447 = vld [vmem:[%s215 + $0x6288] sm:$0xff]
        %v3448 = vld [vmem:[%s215 + $0x6290] sm:$0xff]
        %v3449 = vld [vmem:[%s215 + $0x6298] sm:$0xff]
        %v3450 = vld [vmem:[%s215 + $0x62a0] sm:$0xff]
        %v3451 = vld [vmem:[%s215 + $0x62a8] sm:$0xff]
        %v3452 = vld [vmem:[%s215 + $0x62b0] sm:$0xff]
        %v3453 = vld [vmem:[%s215 + $0x62b8] sm:$0xff]
        %v3454 = vld [vmem:[%s215 + $0x62c0] sm:$0xff]
        %v3455 = vld [vmem:[%s215 + $0x62c8] sm:$0xff]
        %v3456 = vld [vmem:[%s215 + $0x62d0] sm:$0xff]
        %v3457 = vld [vmem:[%s215 + $0x62d8] sm:$0xff]
        %v3458 = vld [vmem:[%s215 + $0x62e0] sm:$0xff]
        %v3459 = vld [vmem:[%s215 + $0x62e8] sm:$0xff]
        %v3460 = vld [vmem:[%s215 + $0x62f0] sm:$0xff]
        %v3461 = vld [vmem:[%s215 + $0x62f8] sm:$0xff]
        %v3462 = vld [vmem:[%s215 + $0x6300] sm:$0xff]
        %v3463 = vld [vmem:[%s215 + $0x6308] sm:$0xff]
        %v3464 = vld [vmem:[%s215 + $0x6310] sm:$0xff]
        %v3465 = vld [vmem:[%s215 + $0x6318] sm:$0xff]
        %v3466 = vld [vmem:[%s215 + $0x6320] sm:$0xff]
        %v3467 = vld [vmem:[%s215 + $0x6328] sm:$0xff]
        %v3468 = vld [vmem:[%s215 + $0x6330] sm:$0xff]
        %v3469 = vld [vmem:[%s215 + $0x6338] sm:$0xff]
        %v3470 = vld [vmem:[%s215 + $0x6340] sm:$0xff]
        %v3471 = vld [vmem:[%s215 + $0x6348] sm:$0xff]
        %v3472 = vld [vmem:[%s215 + $0x6350] sm:$0xff]
        %v3473 = vld [vmem:[%s215 + $0x6358] sm:$0xff]
        %v3474 = vld [vmem:[%s215 + $0x6360] sm:$0xff]
        %v3475 = vld [vmem:[%s215 + $0x6368] sm:$0xff]
        %v3476 = vld [vmem:[%s215 + $0x6370] sm:$0xff]
        %v3477 = vld [vmem:[%s215 + $0x6378] sm:$0xff]
        %v3478 = vld [vmem:[%s215 + $0x6380] sm:$0xff]
        %v3479 = vld [vmem:[%s215 + $0x6388] sm:$0xff]
        %v3480 = vld [vmem:[%s215 + $0x6390] sm:$0xff]
        %v3481 = vld [vmem:[%s215 + $0x6398] sm:$0xff]
        %v3482 = vld [vmem:[%s215 + $0x63a0] sm:$0xff]
        %v3483 = vld [vmem:[%s215 + $0x63a8] sm:$0xff]
        %v3484 = vld [vmem:[%s215 + $0x63b0] sm:$0xff]
        %v3485 = vld [vmem:[%s215 + $0x63b8] sm:$0xff]
        %v3486 = vld [vmem:[%s215 + $0x63c0] sm:$0xff]
        %v3487 = vld [vmem:[%s215 + $0x63c8] sm:$0xff]
        %v3488 = vld [vmem:[%s215 + $0x63d0] sm:$0xff]
        %v3489 = vld [vmem:[%s215 + $0x63d8] sm:$0xff]
        %v3490 = vld [vmem:[%s215 + $0x63e0] sm:$0xff]
        %v3491 = vld [vmem:[%s215 + $0x63e8] sm:$0xff]
        %v3492 = vld [vmem:[%s215 + $0x63f0] sm:$0xff]
        %v3493 = vld [vmem:[%s215 + $0x63f8] sm:$0xff]
        %v3494 = vld [vmem:[%s215 + $0x6400] sm:$0xff]
        %v3495 = vld [vmem:[%s215 + $0x6408] sm:$0xff]
        %v3496 = vld [vmem:[%s215 + $0x6410] sm:$0xff]
        %v3497 = vld [vmem:[%s215 + $0x6418] sm:$0xff]
        %v3498 = vld [vmem:[%s215 + $0x6420] sm:$0xff]
        %v3499 = vld [vmem:[%s215 + $0x6428] sm:$0xff]
        %v3500 = vld [vmem:[%s215 + $0x6430] sm:$0xff]
        %v3501 = vld [vmem:[%s215 + $0x6438] sm:$0xff]
        %v3502 = vld [vmem:[%s215 + $0x6440] sm:$0xff]
        %v3503 = vld [vmem:[%s215 + $0x6448] sm:$0xff]
        %v3504 = vld [vmem:[%s215 + $0x6450] sm:$0xff]
        %v3505 = vld [vmem:[%s215 + $0x6458] sm:$0xff]
        %v3506 = vld [vmem:[%s215 + $0x6460] sm:$0xff]
        %v3507 = vld [vmem:[%s215 + $0x6468] sm:$0xff]
        %v3508 = vld [vmem:[%s215 + $0x6470] sm:$0xff]
        %v3509 = vld [vmem:[%s215 + $0x6478] sm:$0xff]
        %v3510 = vld [vmem:[%s215 + $0x6480] sm:$0xff]
        %v3511 = vld [vmem:[%s215 + $0x6488] sm:$0xff]
        %v3512 = vld [vmem:[%s215 + $0x6490] sm:$0xff]
        %v3513 = vld [vmem:[%s215 + $0x6498] sm:$0xff]
        %v3514 = vld [vmem:[%s215 + $0x64a0] sm:$0xff]
        %v3515 = vld [vmem:[%s215 + $0x64a8] sm:$0xff]
        %v3516 = vld [vmem:[%s215 + $0x64b0] sm:$0xff]
        %v3517 = vld [vmem:[%s215 + $0x64b8] sm:$0xff]
        %v3518 = vld [vmem:[%s215 + $0x64c0] sm:$0xff]
        %v3519 = vld [vmem:[%s215 + $0x64c8] sm:$0xff]
        %v3520 = vld [vmem:[%s215 + $0x64d0] sm:$0xff]
        %v3521 = vld [vmem:[%s215 + $0x64d8] sm:$0xff]
        %v3522 = vld [vmem:[%s215 + $0x64e0] sm:$0xff]
        %v3523 = vld [vmem:[%s215 + $0x64e8] sm:$0xff]
        %v3524 = vld [vmem:[%s215 + $0x64f0] sm:$0xff]
        %v3525 = vld [vmem:[%s215 + $0x64f8] sm:$0xff]
        %v3526 = vld [vmem:[%s215 + $0x6500] sm:$0xff]
        %v3527 = vld [vmem:[%s215 + $0x6508] sm:$0xff]
        %v3528 = vld [vmem:[%s215 + $0x6510] sm:$0xff]
        %v3529 = vld [vmem:[%s215 + $0x6518] sm:$0xff]
        %v3530 = vld [vmem:[%s215 + $0x6520] sm:$0xff]
        %v3531 = vld [vmem:[%s215 + $0x6528] sm:$0xff]
        %v3532 = vld [vmem:[%s215 + $0x6530] sm:$0xff]
        %v3533 = vld [vmem:[%s215 + $0x6538] sm:$0xff]
        %v3534 = vld [vmem:[%s215 + $0x6540] sm:$0xff]
        %v3535 = vld [vmem:[%s215 + $0x6548] sm:$0xff]
        %v3536 = vld [vmem:[%s215 + $0x6550] sm:$0xff]
        %v3537 = vld [vmem:[%s215 + $0x6558] sm:$0xff]
        %v3538 = vld [vmem:[%s215 + $0x6560] sm:$0xff]
        %v3539 = vld [vmem:[%s215 + $0x6568] sm:$0xff]
        %v3540 = vld [vmem:[%s215 + $0x6570] sm:$0xff]
        %v3541 = vld [vmem:[%s215 + $0x6578] sm:$0xff]
        %v3542 = vld [vmem:[%s215 + $0x6580] sm:$0xff]
        %v3543 = vld [vmem:[%s215 + $0x6588] sm:$0xff]
        %v3544 = vld [vmem:[%s215 + $0x6590] sm:$0xff]
        %v3545 = vld [vmem:[%s215 + $0x6598] sm:$0xff]
        %v3546 = vld [vmem:[%s215 + $0x65a0] sm:$0xff]
        %v3547 = vld [vmem:[%s215 + $0x65a8] sm:$0xff]
        %v3548 = vld [vmem:[%s215 + $0x65b0] sm:$0xff]
        %v3549 = vld [vmem:[%s215 + $0x65b8] sm:$0xff]
        %v3550 = vld [vmem:[%s215 + $0x65c0] sm:$0xff]
        %v3551 = vld [vmem:[%s215 + $0x65c8] sm:$0xff]
        %v3552 = vld [vmem:[%s215 + $0x65d0] sm:$0xff]
        %v3553 = vld [vmem:[%s215 + $0x65d8] sm:$0xff]
        %v3554 = vld [vmem:[%s215 + $0x65e0] sm:$0xff]
        %v3555 = vld [vmem:[%s215 + $0x65e8] sm:$0xff]
        %v3556 = vld [vmem:[%s215 + $0x65f0] sm:$0xff]
        %v3557 = vld [vmem:[%s215 + $0x65f8] sm:$0xff]
        %v3558 = vld [vmem:[%s215 + $0x6600] sm:$0xff]
        %v3559 = vld [vmem:[%s215 + $0x6608] sm:$0xff]
        %v3560 = vld [vmem:[%s215 + $0x6610] sm:$0xff]
        %v3561 = vld [vmem:[%s215 + $0x6618] sm:$0xff]
        %v3562 = vld [vmem:[%s215 + $0x6620] sm:$0xff]
        %v3563 = vld [vmem:[%s215 + $0x6628] sm:$0xff]
        %v3564 = vld [vmem:[%s215 + $0x6630] sm:$0xff]
        %v3565 = vld [vmem:[%s215 + $0x6638] sm:$0xff]
        %v3566 = vld [vmem:[%s215 + $0x6640] sm:$0xff]
        %v3567 = vld [vmem:[%s215 + $0x6648] sm:$0xff]
        %v3568 = vld [vmem:[%s215 + $0x6650] sm:$0xff]
        %v3569 = vld [vmem:[%s215 + $0x6658] sm:$0xff]
        %v3570 = vld [vmem:[%s215 + $0x6660] sm:$0xff]
        %v3571 = vld [vmem:[%s215 + $0x6668] sm:$0xff]
        %v3572 = vld [vmem:[%s215 + $0x6670] sm:$0xff]
        %v3573 = vld [vmem:[%s215 + $0x6678] sm:$0xff]
        %v3574 = vld [vmem:[%s215 + $0x6680] sm:$0xff]
        %v3575 = vld [vmem:[%s215 + $0x6688] sm:$0xff]
        %v3576 = vld [vmem:[%s215 + $0x6690] sm:$0xff]
        %v3577 = vld [vmem:[%s215 + $0x6698] sm:$0xff]
        %v3578 = vld [vmem:[%s215 + $0x66a0] sm:$0xff]
        %v3579 = vld [vmem:[%s215 + $0x66a8] sm:$0xff]
        %v3580 = vld [vmem:[%s215 + $0x66b0] sm:$0xff]
        %v3581 = vld [vmem:[%s215 + $0x66b8] sm:$0xff]
        %v3582 = vld [vmem:[%s215 + $0x66c0] sm:$0xff]
        %v3583 = vld [vmem:[%s215 + $0x66c8] sm:$0xff]
        %v3584 = vld [vmem:[%s215 + $0x66d0] sm:$0xff]
        %v3585 = vld [vmem:[%s215 + $0x66d8] sm:$0xff]
        %v3586 = vld [vmem:[%s215 + $0x66e0] sm:$0xff]
        %v3587 = vld [vmem:[%s215 + $0x66e8] sm:$0xff]
        %v3588 = vld [vmem:[%s215 + $0x66f0] sm:$0xff]
        %v3589 = vld [vmem:[%s215 + $0x66f8] sm:$0xff]
        %v3590 = vld [vmem:[%s215 + $0x6700] sm:$0xff]
        %v3591 = vld [vmem:[%s215 + $0x6708] sm:$0xff]
        %v3592 = vld [vmem:[%s215 + $0x6710] sm:$0xff]
        %v3593 = vld [vmem:[%s215 + $0x6718] sm:$0xff]
        %v3594 = vld [vmem:[%s215 + $0x6720] sm:$0xff]
        %v3595 = vld [vmem:[%s215 + $0x6728] sm:$0xff]
        %v3596 = vld [vmem:[%s215 + $0x6730] sm:$0xff]
        %v3597 = vld [vmem:[%s215 + $0x6738] sm:$0xff]
        %v3598 = vld [vmem:[%s215 + $0x6740] sm:$0xff]
        %v3599 = vld [vmem:[%s215 + $0x6748] sm:$0xff]
        %v3600 = vld [vmem:[%s215 + $0x6750] sm:$0xff]
        %v3601 = vld [vmem:[%s215 + $0x6758] sm:$0xff]
        %v3602 = vld [vmem:[%s215 + $0x6760] sm:$0xff]
        %v3603 = vld [vmem:[%s215 + $0x6768] sm:$0xff]
        %v3604 = vld [vmem:[%s215 + $0x6770] sm:$0xff]
        %v3605 = vld [vmem:[%s215 + $0x6778] sm:$0xff]
        %v3606 = vld [vmem:[%s215 + $0x6780] sm:$0xff]
        %v3607 = vld [vmem:[%s215 + $0x6788] sm:$0xff]
        %v3608 = vld [vmem:[%s215 + $0x6790] sm:$0xff]
        %v3609 = vld [vmem:[%s215 + $0x6798] sm:$0xff]
        %v3610 = vld [vmem:[%s215 + $0x67a0] sm:$0xff]
        %v3611 = vld [vmem:[%s215 + $0x67a8] sm:$0xff]
        %v3612 = vld [vmem:[%s215 + $0x67b0] sm:$0xff]
        %v3613 = vld [vmem:[%s215 + $0x67b8] sm:$0xff]
        %v3614 = vld [vmem:[%s215 + $0x67c0] sm:$0xff]
        %v3615 = vld [vmem:[%s215 + $0x67c8] sm:$0xff]
        %v3616 = vld [vmem:[%s215 + $0x67d0] sm:$0xff]
        %v3617 = vld [vmem:[%s215 + $0x67d8] sm:$0xff]
        %v3618 = vld [vmem:[%s215 + $0x67e0] sm:$0xff]
        %v3619 = vld [vmem:[%s215 + $0x67e8] sm:$0xff]
        %v3620 = vld [vmem:[%s215 + $0x67f0] sm:$0xff]
        %v3621 = vld [vmem:[%s215 + $0x67f8] sm:$0xff]
        %v3622 = vld [vmem:[%s215 + $0x6800] sm:$0xff]
        %v3623 = vld [vmem:[%s215 + $0x6808] sm:$0xff]
        %v3624 = vld [vmem:[%s215 + $0x6810] sm:$0xff]
        %v3625 = vld [vmem:[%s215 + $0x6818] sm:$0xff]
        %v3626 = vld [vmem:[%s215 + $0x6820] sm:$0xff]
        %v3627 = vld [vmem:[%s215 + $0x6828] sm:$0xff]
        %v3628 = vld [vmem:[%s215 + $0x6830] sm:$0xff]
        %v3629 = vld [vmem:[%s215 + $0x6838] sm:$0xff]
        %v3630 = vld [vmem:[%s215 + $0x6840] sm:$0xff]
        %v3631 = vld [vmem:[%s215 + $0x6848] sm:$0xff]
        %v3632 = vld [vmem:[%s215 + $0x6850] sm:$0xff]
        %v3633 = vld [vmem:[%s215 + $0x6858] sm:$0xff]
        %v3634 = vld [vmem:[%s215 + $0x6860] sm:$0xff]
        %v3635 = vld [vmem:[%s215 + $0x6868] sm:$0xff]
        %v3636 = vld [vmem:[%s215 + $0x6870] sm:$0xff]
        %v3637 = vld [vmem:[%s215 + $0x6878] sm:$0xff]
        %v3638 = vld [vmem:[%s215 + $0x6880] sm:$0xff]
        %v3639 = vld [vmem:[%s215 + $0x6888] sm:$0xff]
        %v3640 = vld [vmem:[%s215 + $0x6890] sm:$0xff]
        %v3641 = vld [vmem:[%s215 + $0x6898] sm:$0xff]
        %v3642 = vld [vmem:[%s215 + $0x68a0] sm:$0xff]
        %v3643 = vld [vmem:[%s215 + $0x68a8] sm:$0xff]
        %v3644 = vld [vmem:[%s215 + $0x68b0] sm:$0xff]
        %v3645 = vld [vmem:[%s215 + $0x68b8] sm:$0xff]
        %v3646 = vld [vmem:[%s215 + $0x68c0] sm:$0xff]
        %v3647 = vld [vmem:[%s215 + $0x68c8] sm:$0xff]
        %v3648 = vld [vmem:[%s215 + $0x68d0] sm:$0xff]
        %v3649 = vld [vmem:[%s215 + $0x68d8] sm:$0xff]
        %v3650 = vld [vmem:[%s215 + $0x68e0] sm:$0xff]
        %v3651 = vld [vmem:[%s215 + $0x68e8] sm:$0xff]
        %v3652 = vld [vmem:[%s215 + $0x68f0] sm:$0xff]
        %v3653 = vld [vmem:[%s215 + $0x68f8] sm:$0xff]
        %v3654 = vld [vmem:[%s215 + $0x6900] sm:$0xff]
        %v3655 = vld [vmem:[%s215 + $0x6908] sm:$0xff]
        %v3656 = vld [vmem:[%s215 + $0x6910] sm:$0xff]
        %v3657 = vld [vmem:[%s215 + $0x6918] sm:$0xff]
        %v3658 = vld [vmem:[%s215 + $0x6920] sm:$0xff]
        %v3659 = vld [vmem:[%s215 + $0x6928] sm:$0xff]
        %v3660 = vld [vmem:[%s215 + $0x6930] sm:$0xff]
        %v3661 = vld [vmem:[%s215 + $0x6938] sm:$0xff]
        %v3662 = vld [vmem:[%s215 + $0x6940] sm:$0xff]
        %v3663 = vld [vmem:[%s215 + $0x6948] sm:$0xff]
        %v3664 = vld [vmem:[%s215 + $0x6950] sm:$0xff]
        %v3665 = vld [vmem:[%s215 + $0x6958] sm:$0xff]
        %v3666 = vld [vmem:[%s215 + $0x6960] sm:$0xff]
        %v3667 = vld [vmem:[%s215 + $0x6968] sm:$0xff]
        %v3668 = vld [vmem:[%s215 + $0x6970] sm:$0xff]
        %v3669 = vld [vmem:[%s215 + $0x6978] sm:$0xff]
        %v3670 = vld [vmem:[%s215 + $0x6980] sm:$0xff]
        %v3671 = vld [vmem:[%s215 + $0x6988] sm:$0xff]
        %v3672 = vld [vmem:[%s215 + $0x6990] sm:$0xff]
        %v3673 = vld [vmem:[%s215 + $0x6998] sm:$0xff]
        %v3674 = vld [vmem:[%s215 + $0x69a0] sm:$0xff]
        %v3675 = vld [vmem:[%s215 + $0x69a8] sm:$0xff]
        %v3676 = vld [vmem:[%s215 + $0x69b0] sm:$0xff]
        %v3677 = vld [vmem:[%s215 + $0x69b8] sm:$0xff]
        %v3678 = vld [vmem:[%s215 + $0x69c0] sm:$0xff]
        %v3679 = vld [vmem:[%s215 + $0x69c8] sm:$0xff]
        %v3680 = vld [vmem:[%s215 + $0x69d0] sm:$0xff]
        %v3681 = vld [vmem:[%s215 + $0x69d8] sm:$0xff]
        %v3682 = vld [vmem:[%s215 + $0x69e0] sm:$0xff]
        %v3683 = vld [vmem:[%s215 + $0x69e8] sm:$0xff]
        %v3684 = vld [vmem:[%s215 + $0x69f0] sm:$0xff]
        %v3685 = vld [vmem:[%s215 + $0x69f8] sm:$0xff]
        %v3686 = vld [vmem:[%s215 + $0x6a00] sm:$0xff]
        %v3687 = vld [vmem:[%s215 + $0x6a08] sm:$0xff]
        %v3688 = vld [vmem:[%s215 + $0x6a10] sm:$0xff]
        %v3689 = vld [vmem:[%s215 + $0x6a18] sm:$0xff]
        %v3690 = vld [vmem:[%s215 + $0x6a20] sm:$0xff]
        %v3691 = vld [vmem:[%s215 + $0x6a28] sm:$0xff]
        %v3692 = vld [vmem:[%s215 + $0x6a30] sm:$0xff]
        %v3693 = vld [vmem:[%s215 + $0x6a38] sm:$0xff]
        %v3694 = vld [vmem:[%s215 + $0x6a40] sm:$0xff]
        %v3695 = vld [vmem:[%s215 + $0x6a48] sm:$0xff]
        %v3696 = vld [vmem:[%s215 + $0x6a50] sm:$0xff]
        %v3697 = vld [vmem:[%s215 + $0x6a58] sm:$0xff]
        %v3698 = vld [vmem:[%s215 + $0x6a60] sm:$0xff]
        %v3699 = vld [vmem:[%s215 + $0x6a68] sm:$0xff]
        %v3700 = vld [vmem:[%s215 + $0x6a70] sm:$0xff]
        %v3701 = vld [vmem:[%s215 + $0x6a78] sm:$0xff]
        %v3702 = vld [vmem:[%s215 + $0x6a80] sm:$0xff]
        %v3703 = vld [vmem:[%s215 + $0x6a88] sm:$0xff]
        %v3704 = vld [vmem:[%s215 + $0x6a90] sm:$0xff]
        %v3705 = vld [vmem:[%s215 + $0x6a98] sm:$0xff]
        %v3706 = vld [vmem:[%s215 + $0x6aa0] sm:$0xff]
        %v3707 = vld [vmem:[%s215 + $0x6aa8] sm:$0xff]
        %v3708 = vld [vmem:[%s215 + $0x6ab0] sm:$0xff]
        %v3709 = vld [vmem:[%s215 + $0x6ab8] sm:$0xff]
        %v3710 = vld [vmem:[%s215 + $0x6ac0] sm:$0xff]
        %v3711 = vld [vmem:[%s215 + $0x6ac8] sm:$0xff]
        %v3712 = vld [vmem:[%s215 + $0x6ad0] sm:$0xff]
        %v3713 = vld [vmem:[%s215 + $0x6ad8] sm:$0xff]
        %v3714 = vld [vmem:[%s215 + $0x6ae0] sm:$0xff]
        %v3715 = vld [vmem:[%s215 + $0x6ae8] sm:$0xff]
        %v3716 = vld [vmem:[%s215 + $0x6af0] sm:$0xff]
        %v3717 = vld [vmem:[%s215 + $0x6af8] sm:$0xff]
        %v3718 = vld [vmem:[%s215 + $0x6b00] sm:$0xff]
        %v3719 = vld [vmem:[%s215 + $0x6b08] sm:$0xff]
        %v3720 = vld [vmem:[%s215 + $0x6b10] sm:$0xff]
        %v3721 = vld [vmem:[%s215 + $0x6b18] sm:$0xff]
        %v3722 = vld [vmem:[%s215 + $0x6b20] sm:$0xff]
        %v3723 = vld [vmem:[%s215 + $0x6b28] sm:$0xff]
        %v3724 = vld [vmem:[%s215 + $0x6b30] sm:$0xff]
        %v3725 = vld [vmem:[%s215 + $0x6b38] sm:$0xff]
        %v3726 = vld [vmem:[%s215 + $0x6b40] sm:$0xff]
        %v3727 = vld [vmem:[%s215 + $0x6b48] sm:$0xff]
        %v3728 = vld [vmem:[%s215 + $0x6b50] sm:$0xff]
        %v3729 = vld [vmem:[%s215 + $0x6b58] sm:$0xff]
        %v3730 = vld [vmem:[%s215 + $0x6b60] sm:$0xff]
        %v3731 = vld [vmem:[%s215 + $0x6b68] sm:$0xff]
        %v3732 = vld [vmem:[%s215 + $0x6b70] sm:$0xff]
        %v3733 = vld [vmem:[%s215 + $0x6b78] sm:$0xff]
        %v3734 = vld [vmem:[%s215 + $0x6b80] sm:$0xff]
        %v3735 = vld [vmem:[%s215 + $0x6b88] sm:$0xff]
        %v3736 = vld [vmem:[%s215 + $0x6b90] sm:$0xff]
        %v3737 = vld [vmem:[%s215 + $0x6b98] sm:$0xff]
        %v3738 = vld [vmem:[%s215 + $0x6ba0] sm:$0xff]
        %v3739 = vld [vmem:[%s215 + $0x6ba8] sm:$0xff]
        %v3740 = vld [vmem:[%s215 + $0x6bb0] sm:$0xff]
        %v3741 = vld [vmem:[%s215 + $0x6bb8] sm:$0xff]
        %v3742 = vld [vmem:[%s215 + $0x6bc0] sm:$0xff]
        %v3743 = vld [vmem:[%s215 + $0x6bc8] sm:$0xff]
        %v3744 = vld [vmem:[%s215 + $0x6bd0] sm:$0xff]
        %v3745 = vld [vmem:[%s215 + $0x6bd8] sm:$0xff]
        %v3746 = vld [vmem:[%s215 + $0x6be0] sm:$0xff]
        %v3747 = vld [vmem:[%s215 + $0x6be8] sm:$0xff]
        %v3748 = vld [vmem:[%s215 + $0x6bf0] sm:$0xff]
        %v3749 = vld [vmem:[%s215 + $0x6bf8] sm:$0xff]
        %v3750 = vld [vmem:[%s215 + $0x6c00] sm:$0xff]
        %v3751 = vld [vmem:[%s215 + $0x6c08] sm:$0xff]
        %v3752 = vld [vmem:[%s215 + $0x6c10] sm:$0xff]
        %v3753 = vld [vmem:[%s215 + $0x6c18] sm:$0xff]
        %v3754 = vld [vmem:[%s215 + $0x6c20] sm:$0xff]
        %v3755 = vld [vmem:[%s215 + $0x6c28] sm:$0xff]
        %v3756 = vld [vmem:[%s215 + $0x6c30] sm:$0xff]
        %v3757 = vld [vmem:[%s215 + $0x6c38] sm:$0xff]
        %v3758 = vld [vmem:[%s215 + $0x6c40] sm:$0xff]
        %v3759 = vld [vmem:[%s215 + $0x6c48] sm:$0xff]
        %v3760 = vld [vmem:[%s215 + $0x6c50] sm:$0xff]
        %v3761 = vld [vmem:[%s215 + $0x6c58] sm:$0xff]
        %v3762 = vld [vmem:[%s215 + $0x6c60] sm:$0xff]
        %v3763 = vld [vmem:[%s215 + $0x6c68] sm:$0xff]
        %v3764 = vld [vmem:[%s215 + $0x6c70] sm:$0xff]
        %v3765 = vld [vmem:[%s215 + $0x6c78] sm:$0xff]
        %v3766 = vld [vmem:[%s215 + $0x6c80] sm:$0xff]
        %v3767 = vld [vmem:[%s215 + $0x6c88] sm:$0xff]
        %v3768 = vld [vmem:[%s215 + $0x6c90] sm:$0xff]
        %v3769 = vld [vmem:[%s215 + $0x6c98] sm:$0xff]
        %v3770 = vld [vmem:[%s215 + $0x6ca0] sm:$0xff]
        %v3771 = vld [vmem:[%s215 + $0x6ca8] sm:$0xff]
        %v3772 = vld [vmem:[%s215 + $0x6cb0] sm:$0xff]
        %v3773 = vld [vmem:[%s215 + $0x6cb8] sm:$0xff]
        %v3774 = vld [vmem:[%s215 + $0x6cc0] sm:$0xff]
        %v3775 = vld [vmem:[%s215 + $0x6cc8] sm:$0xff]
        %v3776 = vld [vmem:[%s215 + $0x6cd0] sm:$0xff]
        %v3777 = vld [vmem:[%s215 + $0x6cd8] sm:$0xff]
        %v3778 = vld [vmem:[%s215 + $0x6ce0] sm:$0xff]
        %v3779 = vld [vmem:[%s215 + $0x6ce8] sm:$0xff]
        %v3780 = vld [vmem:[%s215 + $0x6cf0] sm:$0xff]
        %v3781 = vld [vmem:[%s215 + $0x6cf8] sm:$0xff]
        %v3782 = vld [vmem:[%s215 + $0x6d00] sm:$0xff]
        %v3783 = vld [vmem:[%s215 + $0x6d08] sm:$0xff]
        %v3784 = vld [vmem:[%s215 + $0x6d10] sm:$0xff]
        %v3785 = vld [vmem:[%s215 + $0x6d18] sm:$0xff]
        %v3786 = vld [vmem:[%s215 + $0x6d20] sm:$0xff]
        %v3787 = vld [vmem:[%s215 + $0x6d28] sm:$0xff]
        %v3788 = vld [vmem:[%s215 + $0x6d30] sm:$0xff]
        %v3789 = vld [vmem:[%s215 + $0x6d38] sm:$0xff]
        %v3790 = vld [vmem:[%s215 + $0x6d40] sm:$0xff]
        %v3791 = vld [vmem:[%s215 + $0x6d48] sm:$0xff]
        %v3792 = vld [vmem:[%s215 + $0x6d50] sm:$0xff]
        %v3793 = vld [vmem:[%s215 + $0x6d58] sm:$0xff]
        %v3794 = vld [vmem:[%s215 + $0x6d60] sm:$0xff]
        %v3795 = vld [vmem:[%s215 + $0x6d68] sm:$0xff]
        %v3796 = vld [vmem:[%s215 + $0x6d70] sm:$0xff]
        %v3797 = vld [vmem:[%s215 + $0x6d78] sm:$0xff]
        %v3798 = vld [vmem:[%s215 + $0x6d80] sm:$0xff]
        %v3799 = vld [vmem:[%s215 + $0x6d88] sm:$0xff]
        %v3800 = vld [vmem:[%s215 + $0x6d90] sm:$0xff]
        %v3801 = vld [vmem:[%s215 + $0x6d98] sm:$0xff]
        %v3802 = vld [vmem:[%s215 + $0x6da0] sm:$0xff]
        %v3803 = vld [vmem:[%s215 + $0x6da8] sm:$0xff]
        %v3804 = vld [vmem:[%s215 + $0x6db0] sm:$0xff]
        %v3805 = vld [vmem:[%s215 + $0x6db8] sm:$0xff]
        %v3806 = vld [vmem:[%s215 + $0x6dc0] sm:$0xff]
        %v3807 = vld [vmem:[%s215 + $0x6dc8] sm:$0xff]
        %v3808 = vld [vmem:[%s215 + $0x6dd0] sm:$0xff]
        %v3809 = vld [vmem:[%s215 + $0x6dd8] sm:$0xff]
        %v3810 = vld [vmem:[%s215 + $0x6de0] sm:$0xff]
        %v3811 = vld [vmem:[%s215 + $0x6de8] sm:$0xff]
        %v3812 = vld [vmem:[%s215 + $0x6df0] sm:$0xff]
        %v3813 = vld [vmem:[%s215 + $0x6df8] sm:$0xff]
        %v3814 = vld [vmem:[%s215 + $0x6e00] sm:$0xff]
        %v3815 = vld [vmem:[%s215 + $0x6e08] sm:$0xff]
        %v3816 = vld [vmem:[%s215 + $0x6e10] sm:$0xff]
        %v3817 = vld [vmem:[%s215 + $0x6e18] sm:$0xff]
        %v3818 = vld [vmem:[%s215 + $0x6e20] sm:$0xff]
        %v3819 = vld [vmem:[%s215 + $0x6e28] sm:$0xff]
        %v3820 = vld [vmem:[%s215 + $0x6e30] sm:$0xff]
        %v3821 = vld [vmem:[%s215 + $0x6e38] sm:$0xff]
        %v3822 = vld [vmem:[%s215 + $0x6e40] sm:$0xff]
        %v3823 = vld [vmem:[%s215 + $0x6e48] sm:$0xff]
        %v3824 = vld [vmem:[%s215 + $0x6e50] sm:$0xff]
        %v3825 = vld [vmem:[%s215 + $0x6e58] sm:$0xff]
        %v3826 = vld [vmem:[%s215 + $0x6e60] sm:$0xff]
        %v3827 = vld [vmem:[%s215 + $0x6e68] sm:$0xff]
        %v3828 = vld [vmem:[%s215 + $0x6e70] sm:$0xff]
        %v3829 = vld [vmem:[%s215 + $0x6e78] sm:$0xff]
        %v3830 = vld [vmem:[%s215 + $0x6e80] sm:$0xff]
        %v3831 = vld [vmem:[%s215 + $0x6e88] sm:$0xff]
        %v3832 = vld [vmem:[%s215 + $0x6e90] sm:$0xff]
        %v3833 = vld [vmem:[%s215 + $0x6e98] sm:$0xff]
        %v3834 = vld [vmem:[%s215 + $0x6ea0] sm:$0xff]
        %v3835 = vld [vmem:[%s215 + $0x6ea8] sm:$0xff]
        %v3836 = vld [vmem:[%s215 + $0x6eb0] sm:$0xff]
        %v3837 = vld [vmem:[%s215 + $0x6eb8] sm:$0xff]
        %v3838 = vld [vmem:[%s215 + $0x6ec0] sm:$0xff]
        %v3839 = vld [vmem:[%s215 + $0x6ec8] sm:$0xff]
        %v3840 = vld [vmem:[%s215 + $0x6ed0] sm:$0xff]
        %v3841 = vld [vmem:[%s215 + $0x6ed8] sm:$0xff]
        %v3842 = vld [vmem:[%s215 + $0x6ee0] sm:$0xff]
        %v3843 = vld [vmem:[%s215 + $0x6ee8] sm:$0xff]
        %v3844 = vld [vmem:[%s215 + $0x6ef0] sm:$0xff]
        %v3845 = vld [vmem:[%s215 + $0x6ef8] sm:$0xff]
        %v3846 = vld [vmem:[%s215 + $0x6f00] sm:$0xff]
        %v3847 = vld [vmem:[%s215 + $0x6f08] sm:$0xff]
        %v3848 = vld [vmem:[%s215 + $0x6f10] sm:$0xff]
        %v3849 = vld [vmem:[%s215 + $0x6f18] sm:$0xff]
        %v3850 = vld [vmem:[%s215 + $0x6f20] sm:$0xff]
        %v3851 = vld [vmem:[%s215 + $0x6f28] sm:$0xff]
        %v3852 = vld [vmem:[%s215 + $0x6f30] sm:$0xff]
        %v3853 = vld [vmem:[%s215 + $0x6f38] sm:$0xff]
        %v3854 = vld [vmem:[%s215 + $0x6f40] sm:$0xff]
        %v3855 = vld [vmem:[%s215 + $0x6f48] sm:$0xff]
        %v3856 = vld [vmem:[%s215 + $0x6f50] sm:$0xff]
        %v3857 = vld [vmem:[%s215 + $0x6f58] sm:$0xff]
        %v3858 = vld [vmem:[%s215 + $0x6f60] sm:$0xff]
        %v3859 = vld [vmem:[%s215 + $0x6f68] sm:$0xff]
        %v3860 = vld [vmem:[%s215 + $0x6f70] sm:$0xff]
        %v3861 = vld [vmem:[%s215 + $0x6f78] sm:$0xff]
        %v3862 = vld [vmem:[%s215 + $0x6f80] sm:$0xff]
        %v3863 = vld [vmem:[%s215 + $0x6f88] sm:$0xff]
        %v3864 = vld [vmem:[%s215 + $0x6f90] sm:$0xff]
        %v3865 = vld [vmem:[%s215 + $0x6f98] sm:$0xff]
        %v3866 = vld [vmem:[%s215 + $0x6fa0] sm:$0xff]
        %v3867 = vld [vmem:[%s215 + $0x6fa8] sm:$0xff]
        %v3868 = vld [vmem:[%s215 + $0x6fb0] sm:$0xff]
        %v3869 = vld [vmem:[%s215 + $0x6fb8] sm:$0xff]
        %v3870 = vld [vmem:[%s215 + $0x6fc0] sm:$0xff]
        %v3871 = vld [vmem:[%s215 + $0x6fc8] sm:$0xff]
        %v3872 = vld [vmem:[%s215 + $0x6fd0] sm:$0xff]
        %v3873 = vld [vmem:[%s215 + $0x6fd8] sm:$0xff]
        %v3874 = vld [vmem:[%s215 + $0x6fe0] sm:$0xff]
        %v3875 = vld [vmem:[%s215 + $0x6fe8] sm:$0xff]
        %v3876 = vld [vmem:[%s215 + $0x6ff0] sm:$0xff]
        %v3877 = vld [vmem:[%s215 + $0x6ff8] sm:$0xff]
        %v3878 = vld [vmem:[%s215 + $0x7000] sm:$0xff]
        %v3879 = vld [vmem:[%s215 + $0x7008] sm:$0xff]
        %v3880 = vld [vmem:[%s215 + $0x7010] sm:$0xff]
        %v3881 = vld [vmem:[%s215 + $0x7018] sm:$0xff]
        %v3882 = vld [vmem:[%s215 + $0x7020] sm:$0xff]
        %v3883 = vld [vmem:[%s215 + $0x7028] sm:$0xff]
        %v3884 = vld [vmem:[%s215 + $0x7030] sm:$0xff]
        %v3885 = vld [vmem:[%s215 + $0x7038] sm:$0xff]
        %v3886 = vld [vmem:[%s215 + $0x7040] sm:$0xff]
        %v3887 = vld [vmem:[%s215 + $0x7048] sm:$0xff]
        %v3888 = vld [vmem:[%s215 + $0x7050] sm:$0xff]
        %v3889 = vld [vmem:[%s215 + $0x7058] sm:$0xff]
        %v3890 = vld [vmem:[%s215 + $0x7060] sm:$0xff]
        %v3891 = vld [vmem:[%s215 + $0x7068] sm:$0xff]
        %v3892 = vld [vmem:[%s215 + $0x7070] sm:$0xff]
        %v3893 = vld [vmem:[%s215 + $0x7078] sm:$0xff]
        %v3894 = vld [vmem:[%s215 + $0x7080] sm:$0xff]
        %v3895 = vld [vmem:[%s215 + $0x7088] sm:$0xff]
        %v3896 = vld [vmem:[%s215 + $0x7090] sm:$0xff]
        %v3897 = vld [vmem:[%s215 + $0x7098] sm:$0xff]
        %v3898 = vld [vmem:[%s215 + $0x70a0] sm:$0xff]
        %v3899 = vld [vmem:[%s215 + $0x70a8] sm:$0xff]
        %v3900 = vld [vmem:[%s215 + $0x70b0] sm:$0xff]
        %v3901 = vld [vmem:[%s215 + $0x70b8] sm:$0xff]
        %v3902 = vld [vmem:[%s215 + $0x70c0] sm:$0xff]
        %v3903 = vld [vmem:[%s215 + $0x70c8] sm:$0xff]
        %v3904 = vld [vmem:[%s215 + $0x70d0] sm:$0xff]
        %v3905 = vld [vmem:[%s215 + $0x70d8] sm:$0xff]
        %v3906 = vld [vmem:[%s215 + $0x70e0] sm:$0xff]
        %v3907 = vld [vmem:[%s215 + $0x70e8] sm:$0xff]
        %v3908 = vld [vmem:[%s215 + $0x70f0] sm:$0xff]
        %v3909 = vld [vmem:[%s215 + $0x70f8] sm:$0xff]
        %v3910 = vld [vmem:[%s215 + $0x7100] sm:$0xff]
        %v3911 = vld [vmem:[%s215 + $0x7108] sm:$0xff]
        %v3912 = vld [vmem:[%s215 + $0x7110] sm:$0xff]
        %v3913 = vld [vmem:[%s215 + $0x7118] sm:$0xff]
        %v3914 = vld [vmem:[%s215 + $0x7120] sm:$0xff]
        %v3915 = vld [vmem:[%s215 + $0x7128] sm:$0xff]
        %v3916 = vld [vmem:[%s215 + $0x7130] sm:$0xff]
        %v3917 = vld [vmem:[%s215 + $0x7138] sm:$0xff]
        %v3918 = vld [vmem:[%s215 + $0x7140] sm:$0xff]
        %v3919 = vld [vmem:[%s215 + $0x7148] sm:$0xff]
        %v3920 = vld [vmem:[%s215 + $0x7150] sm:$0xff]
        %v3921 = vld [vmem:[%s215 + $0x7158] sm:$0xff]
        %v3922 = vld [vmem:[%s215 + $0x7160] sm:$0xff]
        %v3923 = vld [vmem:[%s215 + $0x7168] sm:$0xff]
        %v3924 = vld [vmem:[%s215 + $0x7170] sm:$0xff]
        %v3925 = vld [vmem:[%s215 + $0x7178] sm:$0xff]
        %v3926 = vld [vmem:[%s215 + $0x7180] sm:$0xff]
        %v3927 = vld [vmem:[%s215 + $0x7188] sm:$0xff]
        %v3928 = vld [vmem:[%s215 + $0x7190] sm:$0xff]
        %v3929 = vld [vmem:[%s215 + $0x7198] sm:$0xff]
        %v3930 = vld [vmem:[%s215 + $0x71a0] sm:$0xff]
        %v3931 = vld [vmem:[%s215 + $0x71a8] sm:$0xff]
        %v3932 = vld [vmem:[%s215 + $0x71b0] sm:$0xff]
        %v3933 = vld [vmem:[%s215 + $0x71b8] sm:$0xff]
        %v3934 = vld [vmem:[%s215 + $0x71c0] sm:$0xff]
        %v3935 = vld [vmem:[%s215 + $0x71c8] sm:$0xff]
        %v3936 = vld [vmem:[%s215 + $0x71d0] sm:$0xff]
        %v3937 = vld [vmem:[%s215 + $0x71d8] sm:$0xff]
        %v3938 = vld [vmem:[%s215 + $0x71e0] sm:$0xff]
        %v3939 = vld [vmem:[%s215 + $0x71e8] sm:$0xff]
        %v3940 = vld [vmem:[%s215 + $0x71f0] sm:$0xff]
        %v3941 = vld [vmem:[%s215 + $0x71f8] sm:$0xff]
        %v3942 = vld [vmem:[%s215 + $0x7200] sm:$0xff]
        %v3943 = vld [vmem:[%s215 + $0x7208] sm:$0xff]
        %v3944 = vld [vmem:[%s215 + $0x7210] sm:$0xff]
        %v3945 = vld [vmem:[%s215 + $0x7218] sm:$0xff]
        %v3946 = vld [vmem:[%s215 + $0x7220] sm:$0xff]
        %v3947 = vld [vmem:[%s215 + $0x7228] sm:$0xff]
        %v3948 = vld [vmem:[%s215 + $0x7230] sm:$0xff]
        %v3949 = vld [vmem:[%s215 + $0x7238] sm:$0xff]
        %v3950 = vld [vmem:[%s215 + $0x7240] sm:$0xff]
        %v3951 = vld [vmem:[%s215 + $0x7248] sm:$0xff]
        %v3952 = vld [vmem:[%s215 + $0x7250] sm:$0xff]
        %v3953 = vld [vmem:[%s215 + $0x7258] sm:$0xff]
        %v3954 = vld [vmem:[%s215 + $0x7260] sm:$0xff]
        %v3955 = vld [vmem:[%s215 + $0x7268] sm:$0xff]
        %v3956 = vld [vmem:[%s215 + $0x7270] sm:$0xff]
        %v3957 = vld [vmem:[%s215 + $0x7278] sm:$0xff]
        %v3958 = vld [vmem:[%s215 + $0x7280] sm:$0xff]
        %v3959 = vld [vmem:[%s215 + $0x7288] sm:$0xff]
        %v3960 = vld [vmem:[%s215 + $0x7290] sm:$0xff]
        %v3961 = vld [vmem:[%s215 + $0x7298] sm:$0xff]
        %v3962 = vld [vmem:[%s215 + $0x72a0] sm:$0xff]
        %v3963 = vld [vmem:[%s215 + $0x72a8] sm:$0xff]
        %v3964 = vld [vmem:[%s215 + $0x72b0] sm:$0xff]
        %v3965 = vld [vmem:[%s215 + $0x72b8] sm:$0xff]
        %v3966 = vld [vmem:[%s215 + $0x72c0] sm:$0xff]
        %v3967 = vld [vmem:[%s215 + $0x72c8] sm:$0xff]
        %v3968 = vld [vmem:[%s215 + $0x72d0] sm:$0xff]
        %v3969 = vld [vmem:[%s215 + $0x72d8] sm:$0xff]
        %v3970 = vld [vmem:[%s215 + $0x72e0] sm:$0xff]
        %v3971 = vld [vmem:[%s215 + $0x72e8] sm:$0xff]
        %v3972 = vld [vmem:[%s215 + $0x72f0] sm:$0xff]
        %v3973 = vld [vmem:[%s215 + $0x72f8] sm:$0xff]
        %v3974 = vld [vmem:[%s215 + $0x7300] sm:$0xff]
        %v3975 = vld [vmem:[%s215 + $0x7308] sm:$0xff]
        %v3976 = vld [vmem:[%s215 + $0x7310] sm:$0xff]
        %v3977 = vld [vmem:[%s215 + $0x7318] sm:$0xff]
        %v3978 = vld [vmem:[%s215 + $0x7320] sm:$0xff]
        %v3979 = vld [vmem:[%s215 + $0x7328] sm:$0xff]
        %v3980 = vld [vmem:[%s215 + $0x7330] sm:$0xff]
        %v3981 = vld [vmem:[%s215 + $0x7338] sm:$0xff]
        %v3982 = vld [vmem:[%s215 + $0x7340] sm:$0xff]
        %v3983 = vld [vmem:[%s215 + $0x7348] sm:$0xff]
        %v3984 = vld [vmem:[%s215 + $0x7350] sm:$0xff]
        %v3985 = vld [vmem:[%s215 + $0x7358] sm:$0xff]
        %v3986 = vld [vmem:[%s215 + $0x7360] sm:$0xff]
        %v3987 = vld [vmem:[%s215 + $0x7368] sm:$0xff]
        %v3988 = vld [vmem:[%s215 + $0x7370] sm:$0xff]
        %v3989 = vld [vmem:[%s215 + $0x7378] sm:$0xff]
        %v3990 = vld [vmem:[%s215 + $0x7380] sm:$0xff]
        %v3991 = vld [vmem:[%s215 + $0x7388] sm:$0xff]
        %v3992 = vld [vmem:[%s215 + $0x7390] sm:$0xff]
        %v3993 = vld [vmem:[%s215 + $0x7398] sm:$0xff]
        %v3994 = vld [vmem:[%s215 + $0x73a0] sm:$0xff]
        %v3995 = vld [vmem:[%s215 + $0x73a8] sm:$0xff]
        %v3996 = vld [vmem:[%s215 + $0x73b0] sm:$0xff]
        %v3997 = vld [vmem:[%s215 + $0x73b8] sm:$0xff]
        %v3998 = vld [vmem:[%s215 + $0x73c0] sm:$0xff]
        %v3999 = vld [vmem:[%s215 + $0x73c8] sm:$0xff]
        %v4000 = vld [vmem:[%s215 + $0x73d0] sm:$0xff]
        %v4001 = vld [vmem:[%s215 + $0x73d8] sm:$0xff]
        %v4002 = vld [vmem:[%s215 + $0x73e0] sm:$0xff]
        %v4003 = vld [vmem:[%s215 + $0x73e8] sm:$0xff]
        %v4004 = vld [vmem:[%s215 + $0x73f0] sm:$0xff]
        %v4005 = vld [vmem:[%s215 + $0x73f8] sm:$0xff]
        %v4006 = vld [vmem:[%s215 + $0x7400] sm:$0xff]
        %v4007 = vld [vmem:[%s215 + $0x7408] sm:$0xff]
        %v4008 = vld [vmem:[%s215 + $0x7410] sm:$0xff]
        %v4009 = vld [vmem:[%s215 + $0x7418] sm:$0xff]
        %v4010 = vld [vmem:[%s215 + $0x7420] sm:$0xff]
        %v4011 = vld [vmem:[%s215 + $0x7428] sm:$0xff]
        %v4012 = vld [vmem:[%s215 + $0x7430] sm:$0xff]
        %v4013 = vld [vmem:[%s215 + $0x7438] sm:$0xff]
        %v4014 = vld [vmem:[%s215 + $0x7440] sm:$0xff]
        %v4015 = vld [vmem:[%s215 + $0x7448] sm:$0xff]
        %v4016 = vld [vmem:[%s215 + $0x7450] sm:$0xff]
        %v4017 = vld [vmem:[%s215 + $0x7458] sm:$0xff]
        %v4018 = vld [vmem:[%s215 + $0x7460] sm:$0xff]
        %v4019 = vld [vmem:[%s215 + $0x7468] sm:$0xff]
        %v4020 = vld [vmem:[%s215 + $0x7470] sm:$0xff]
        %v4021 = vld [vmem:[%s215 + $0x7478] sm:$0xff]
        %v4022 = vld [vmem:[%s215 + $0x7480] sm:$0xff]
        %v4023 = vld [vmem:[%s215 + $0x7488] sm:$0xff]
        %v4024 = vld [vmem:[%s215 + $0x7490] sm:$0xff]
        %v4025 = vld [vmem:[%s215 + $0x7498] sm:$0xff]
        %v4026 = vld [vmem:[%s215 + $0x74a0] sm:$0xff]
        %v4027 = vld [vmem:[%s215 + $0x74a8] sm:$0xff]
        %v4028 = vld [vmem:[%s215 + $0x74b0] sm:$0xff]
        %v4029 = vld [vmem:[%s215 + $0x74b8] sm:$0xff]
        %v4030 = vld [vmem:[%s215 + $0x74c0] sm:$0xff]
        %v4031 = vld [vmem:[%s215 + $0x74c8] sm:$0xff]
        %v4032 = vld [vmem:[%s215 + $0x74d0] sm:$0xff]
        %v4033 = vld [vmem:[%s215 + $0x74d8] sm:$0xff]
        %v4034 = vld [vmem:[%s215 + $0x74e0] sm:$0xff]
        %v4035 = vld [vmem:[%s215 + $0x74e8] sm:$0xff]
        %v4036 = vld [vmem:[%s215 + $0x74f0] sm:$0xff]
        %v4037 = vld [vmem:[%s215 + $0x74f8] sm:$0xff]
        %v4038 = vld [vmem:[%s215 + $0x7500] sm:$0xff]
        %v4039 = vld [vmem:[%s215 + $0x7508] sm:$0xff]
        %v4040 = vld [vmem:[%s215 + $0x7510] sm:$0xff]
        %v4041 = vld [vmem:[%s215 + $0x7518] sm:$0xff]
        %v4042 = vld [vmem:[%s215 + $0x7520] sm:$0xff]
        %v4043 = vld [vmem:[%s215 + $0x7528] sm:$0xff]
        %v4044 = vld [vmem:[%s215 + $0x7530] sm:$0xff]
        %v4045 = vld [vmem:[%s215 + $0x7538] sm:$0xff]
        %v4046 = vld [vmem:[%s215 + $0x7540] sm:$0xff]
        %v4047 = vld [vmem:[%s215 + $0x7548] sm:$0xff]
        %v4048 = vld [vmem:[%s215 + $0x7550] sm:$0xff]
        %v4049 = vld [vmem:[%s215 + $0x7558] sm:$0xff]
        %v4050 = vld [vmem:[%s215 + $0x7560] sm:$0xff]
        %v4051 = vld [vmem:[%s215 + $0x7568] sm:$0xff]
        %v4052 = vld [vmem:[%s215 + $0x7570] sm:$0xff]
        %v4053 = vld [vmem:[%s215 + $0x7578] sm:$0xff]
        %v4054 = vld [vmem:[%s215 + $0x7580] sm:$0xff]
        %v4055 = vld [vmem:[%s215 + $0x7588] sm:$0xff]
        %v4056 = vld [vmem:[%s215 + $0x7590] sm:$0xff]
        %v4057 = vld [vmem:[%s215 + $0x7598] sm:$0xff]
        %v4058 = vld [vmem:[%s215 + $0x75a0] sm:$0xff]
        %v4059 = vld [vmem:[%s215 + $0x75a8] sm:$0xff]
        %v4060 = vld [vmem:[%s215 + $0x75b0] sm:$0xff]
        %v4061 = vld [vmem:[%s215 + $0x75b8] sm:$0xff]
        %v4062 = vld [vmem:[%s215 + $0x75c0] sm:$0xff]
        %v4063 = vld [vmem:[%s215 + $0x75c8] sm:$0xff]
        %v4064 = vld [vmem:[%s215 + $0x75d0] sm:$0xff]
        %v4065 = vld [vmem:[%s215 + $0x75d8] sm:$0xff]
        %v4066 = vld [vmem:[%s215 + $0x75e0] sm:$0xff]
        %v4067 = vld [vmem:[%s215 + $0x75e8] sm:$0xff]
        %v4068 = vld [vmem:[%s215 + $0x75f0] sm:$0xff]
        %v4069 = vld [vmem:[%s215 + $0x75f8] sm:$0xff]
        %v4070 = vld [vmem:[%s215 + $0x7600] sm:$0xff]
        %v4071 = vld [vmem:[%s215 + $0x7608] sm:$0xff]
        %v4072 = vld [vmem:[%s215 + $0x7610] sm:$0xff]
        %v4073 = vld [vmem:[%s215 + $0x7618] sm:$0xff]
        %v4074 = vld [vmem:[%s215 + $0x7620] sm:$0xff]
        %v4075 = vld [vmem:[%s215 + $0x7628] sm:$0xff]
        %v4076 = vld [vmem:[%s215 + $0x7630] sm:$0xff]
        %v4077 = vld [vmem:[%s215 + $0x7638] sm:$0xff]
        %v4078 = vld [vmem:[%s215 + $0x7640] sm:$0xff]
        %v4079 = vld [vmem:[%s215 + $0x7648] sm:$0xff]
        %v4080 = vld [vmem:[%s215 + $0x7650] sm:$0xff]
        %v4081 = vld [vmem:[%s215 + $0x7658] sm:$0xff]
        %v4082 = vld [vmem:[%s215 + $0x7660] sm:$0xff]
        %v4083 = vld [vmem:[%s215 + $0x7668] sm:$0xff]
        %v4084 = vld [vmem:[%s215 + $0x7670] sm:$0xff]
        %v4085 = vld [vmem:[%s215 + $0x7678] sm:$0xff]
        %v4086 = vld [vmem:[%s215 + $0x7680] sm:$0xff]
        %v4087 = vld [vmem:[%s215 + $0x7688] sm:$0xff]
        %v4088 = vld [vmem:[%s215 + $0x7690] sm:$0xff]
        %v4089 = vld [vmem:[%s215 + $0x7698] sm:$0xff]
        %v4090 = vld [vmem:[%s215 + $0x76a0] sm:$0xff]
        %v4091 = vld [vmem:[%s215 + $0x76a8] sm:$0xff]
        %v4092 = vld [vmem:[%s215 + $0x76b0] sm:$0xff]
        %v4093 = vld [vmem:[%s215 + $0x76b8] sm:$0xff]
        %v4094 = vld [vmem:[%s215 + $0x76c0] sm:$0xff]
        %v4095 = vld [vmem:[%s215 + $0x76c8] sm:$0xff]
        %v4096 = vld [vmem:[%s215 + $0x76d0] sm:$0xff]
        %v4097 = vld [vmem:[%s215 + $0x76d8] sm:$0xff]
        %v4098 = vld [vmem:[%s215 + $0x76e0] sm:$0xff]
        %v4099 = vld [vmem:[%s215 + $0x76e8] sm:$0xff]
        %v4100 = vld [vmem:[%s215 + $0x76f0] sm:$0xff]
        %v4101 = vld [vmem:[%s215 + $0x76f8] sm:$0xff]
        %v4102 = vld [vmem:[%s215 + $0x7700] sm:$0xff]
        %v4103 = vld [vmem:[%s215 + $0x7708] sm:$0xff]
        %v4104 = vld [vmem:[%s215 + $0x7710] sm:$0xff]
        %v4105 = vld [vmem:[%s215 + $0x7718] sm:$0xff]
        %v4106 = vld [vmem:[%s215 + $0x7720] sm:$0xff]
        %v4107 = vld [vmem:[%s215 + $0x7728] sm:$0xff]
        %v4108 = vld [vmem:[%s215 + $0x7730] sm:$0xff]
        %v4109 = vld [vmem:[%s215 + $0x7738] sm:$0xff]
        %v4110 = vld [vmem:[%s215 + $0x7740] sm:$0xff]
        %v4111 = vld [vmem:[%s215 + $0x7748] sm:$0xff]
        %v4112 = vld [vmem:[%s215 + $0x7750] sm:$0xff]
        %v4113 = vld [vmem:[%s215 + $0x7758] sm:$0xff]
        %v4114 = vld [vmem:[%s215 + $0x7760] sm:$0xff]
        %v4115 = vld [vmem:[%s215 + $0x7768] sm:$0xff]
        %v4116 = vld [vmem:[%s215 + $0x7770] sm:$0xff]
        %v4117 = vld [vmem:[%s215 + $0x7778] sm:$0xff]
        %v4118 = vld [vmem:[%s215 + $0x7780] sm:$0xff]
        %v4119 = vld [vmem:[%s215 + $0x7788] sm:$0xff]
        %v4120 = vld [vmem:[%s215 + $0x7790] sm:$0xff]
        %v4121 = vld [vmem:[%s215 + $0x7798] sm:$0xff]
        %v4122 = vld [vmem:[%s215 + $0x77a0] sm:$0xff]
        %v4123 = vld [vmem:[%s215 + $0x77a8] sm:$0xff]
        %v4124 = vld [vmem:[%s215 + $0x77b0] sm:$0xff]
        %v4125 = vld [vmem:[%s215 + $0x77b8] sm:$0xff]
        %v4126 = vld [vmem:[%s215 + $0x77c0] sm:$0xff]
        %v4127 = vld [vmem:[%s215 + $0x77c8] sm:$0xff]
        %v4128 = vld [vmem:[%s215 + $0x77d0] sm:$0xff]
        %v4129 = vld [vmem:[%s215 + $0x77d8] sm:$0xff]
        %v4130 = vld [vmem:[%s215 + $0x77e0] sm:$0xff]
        %v4131 = vld [vmem:[%s215 + $0x77e8] sm:$0xff]
        %v4132 = vld [vmem:[%s215 + $0x77f0] sm:$0xff]
        %v4133 = vld [vmem:[%s215 + $0x77f8] sm:$0xff]
        %v4134 = vld [vmem:[%s215 + $0x7800] sm:$0xff]
        %v4135 = vld [vmem:[%s215 + $0x7808] sm:$0xff]
        %v4136 = vld [vmem:[%s215 + $0x7810] sm:$0xff]
        %v4137 = vld [vmem:[%s215 + $0x7818] sm:$0xff]
        %v4138 = vld [vmem:[%s215 + $0x7820] sm:$0xff]
        %v4139 = vld [vmem:[%s215 + $0x7828] sm:$0xff]
        %v4140 = vld [vmem:[%s215 + $0x7830] sm:$0xff]
        %v4141 = vld [vmem:[%s215 + $0x7838] sm:$0xff]
        %v4142 = vld [vmem:[%s215 + $0x7840] sm:$0xff]
        %v4143 = vld [vmem:[%s215 + $0x7848] sm:$0xff]
        %v4144 = vld [vmem:[%s215 + $0x7850] sm:$0xff]
        %v4145 = vld [vmem:[%s215 + $0x7858] sm:$0xff]
        %v4146 = vld [vmem:[%s215 + $0x7860] sm:$0xff]
        %v4147 = vld [vmem:[%s215 + $0x7868] sm:$0xff]
        %v4148 = vld [vmem:[%s215 + $0x7870] sm:$0xff]
        %v4149 = vld [vmem:[%s215 + $0x7878] sm:$0xff]
        %v4150 = vld [vmem:[%s215 + $0x7880] sm:$0xff]
        %v4151 = vld [vmem:[%s215 + $0x7888] sm:$0xff]
        %v4152 = vld [vmem:[%s215 + $0x7890] sm:$0xff]
        %v4153 = vld [vmem:[%s215 + $0x7898] sm:$0xff]
        %v4154 = vld [vmem:[%s215 + $0x78a0] sm:$0xff]
        %v4155 = vld [vmem:[%s215 + $0x78a8] sm:$0xff]
        %v4156 = vld [vmem:[%s215 + $0x78b0] sm:$0xff]
        %v4157 = vld [vmem:[%s215 + $0x78b8] sm:$0xff]
        %v4158 = vld [vmem:[%s215 + $0x78c0] sm:$0xff]
        %v4159 = vld [vmem:[%s215 + $0x78c8] sm:$0xff]
        %v4160 = vld [vmem:[%s215 + $0x78d0] sm:$0xff]
        %v4161 = vld [vmem:[%s215 + $0x78d8] sm:$0xff]
        %v4162 = vld [vmem:[%s215 + $0x78e0] sm:$0xff]
        %v4163 = vld [vmem:[%s215 + $0x78e8] sm:$0xff]
        %v4164 = vld [vmem:[%s215 + $0x78f0] sm:$0xff]
        %v4165 = vld [vmem:[%s215 + $0x78f8] sm:$0xff]
        %v4166 = vld [vmem:[%s215 + $0x7900] sm:$0xff]
        %v4167 = vld [vmem:[%s215 + $0x7908] sm:$0xff]
        %v4168 = vld [vmem:[%s215 + $0x7910] sm:$0xff]
        %v4169 = vld [vmem:[%s215 + $0x7918] sm:$0xff]
        %v4170 = vld [vmem:[%s215 + $0x7920] sm:$0xff]
        %v4171 = vld [vmem:[%s215 + $0x7928] sm:$0xff]
        %v4172 = vld [vmem:[%s215 + $0x7930] sm:$0xff]
        %v4173 = vld [vmem:[%s215 + $0x7938] sm:$0xff]
        %v4174 = vld [vmem:[%s215 + $0x7940] sm:$0xff]
        %v4175 = vld [vmem:[%s215 + $0x7948] sm:$0xff]
        %v4176 = vld [vmem:[%s215 + $0x7950] sm:$0xff]
        %v4177 = vld [vmem:[%s215 + $0x7958] sm:$0xff]
        %v4178 = vld [vmem:[%s215 + $0x7960] sm:$0xff]
        %v4179 = vld [vmem:[%s215 + $0x7968] sm:$0xff]
        %v4180 = vld [vmem:[%s215 + $0x7970] sm:$0xff]
        %v4181 = vld [vmem:[%s215 + $0x7978] sm:$0xff]
        %v4182 = vld [vmem:[%s215 + $0x7980] sm:$0xff]
        %v4183 = vld [vmem:[%s215 + $0x7988] sm:$0xff]
        %v4184 = vld [vmem:[%s215 + $0x7990] sm:$0xff]
        %v4185 = vld [vmem:[%s215 + $0x7998] sm:$0xff]
        %v4186 = vld [vmem:[%s215 + $0x79a0] sm:$0xff]
        %v4187 = vld [vmem:[%s215 + $0x79a8] sm:$0xff]
        %v4188 = vld [vmem:[%s215 + $0x79b0] sm:$0xff]
        %v4189 = vld [vmem:[%s215 + $0x79b8] sm:$0xff]
        %v4190 = vld [vmem:[%s215 + $0x79c0] sm:$0xff]
        %v4191 = vld [vmem:[%s215 + $0x79c8] sm:$0xff]
        %v4192 = vld [vmem:[%s215 + $0x79d0] sm:$0xff]
        %v4193 = vld [vmem:[%s215 + $0x79d8] sm:$0xff]
        %v4194 = vld [vmem:[%s215 + $0x79e0] sm:$0xff]
        %v4195 = vld [vmem:[%s215 + $0x79e8] sm:$0xff]
        %v4196 = vld [vmem:[%s215 + $0x79f0] sm:$0xff]
        %v4197 = vld [vmem:[%s215 + $0x79f8] sm:$0xff]
        %v4198 = vld [vmem:[%s215 + $0x7a00] sm:$0xff]
        %v4199 = vld [vmem:[%s215 + $0x7a08] sm:$0xff]
        %v4200 = vld [vmem:[%s215 + $0x7a10] sm:$0xff]
        %v4201 = vld [vmem:[%s215 + $0x7a18] sm:$0xff]
        %v4202 = vld [vmem:[%s215 + $0x7a20] sm:$0xff]
        %v4203 = vld [vmem:[%s215 + $0x7a28] sm:$0xff]
        %v4204 = vld [vmem:[%s215 + $0x7a30] sm:$0xff]
        %v4205 = vld [vmem:[%s215 + $0x7a38] sm:$0xff]
        %v4206 = vld [vmem:[%s215 + $0x7a40] sm:$0xff]
        %v4207 = vld [vmem:[%s215 + $0x7a48] sm:$0xff]
        %v4208 = vld [vmem:[%s215 + $0x7a50] sm:$0xff]
        %v4209 = vld [vmem:[%s215 + $0x7a58] sm:$0xff]
        %v4210 = vld [vmem:[%s215 + $0x7a60] sm:$0xff]
        %v4211 = vld [vmem:[%s215 + $0x7a68] sm:$0xff]
        %v4212 = vld [vmem:[%s215 + $0x7a70] sm:$0xff]
        %v4213 = vld [vmem:[%s215 + $0x7a78] sm:$0xff]
        %v4214 = vld [vmem:[%s215 + $0x7a80] sm:$0xff]
        %v4215 = vld [vmem:[%s215 + $0x7a88] sm:$0xff]
        %v4216 = vld [vmem:[%s215 + $0x7a90] sm:$0xff]
        %v4217 = vld [vmem:[%s215 + $0x7a98] sm:$0xff]
        %v4218 = vld [vmem:[%s215 + $0x7aa0] sm:$0xff]
        %v4219 = vld [vmem:[%s215 + $0x7aa8] sm:$0xff]
        %v4220 = vld [vmem:[%s215 + $0x7ab0] sm:$0xff]
        %v4221 = vld [vmem:[%s215 + $0x7ab8] sm:$0xff]
        %v4222 = vld [vmem:[%s215 + $0x7ac0] sm:$0xff]
        %v4223 = vld [vmem:[%s215 + $0x7ac8] sm:$0xff]
        %v4224 = vld [vmem:[%s215 + $0x7ad0] sm:$0xff]
        %v4225 = vld [vmem:[%s215 + $0x7ad8] sm:$0xff]
        %v4226 = vld [vmem:[%s215 + $0x7ae0] sm:$0xff]
        %v4227 = vld [vmem:[%s215 + $0x7ae8] sm:$0xff]
        %v4228 = vld [vmem:[%s215 + $0x7af0] sm:$0xff]
        %v4229 = vld [vmem:[%s215 + $0x7af8] sm:$0xff]
        %v4230 = vld [vmem:[%s215 + $0x7b00] sm:$0xff]
        %v4231 = vld [vmem:[%s215 + $0x7b08] sm:$0xff]
        %v4232 = vld [vmem:[%s215 + $0x7b10] sm:$0xff]
        %v4233 = vld [vmem:[%s215 + $0x7b18] sm:$0xff]
        %v4234 = vld [vmem:[%s215 + $0x7b20] sm:$0xff]
        %v4235 = vld [vmem:[%s215 + $0x7b28] sm:$0xff]
        %v4236 = vld [vmem:[%s215 + $0x7b30] sm:$0xff]
        %v4237 = vld [vmem:[%s215 + $0x7b38] sm:$0xff]
        %v4238 = vld [vmem:[%s215 + $0x7b40] sm:$0xff]
        %v4239 = vld [vmem:[%s215 + $0x7b48] sm:$0xff]
        %v4240 = vld [vmem:[%s215 + $0x7b50] sm:$0xff]
        %v4241 = vld [vmem:[%s215 + $0x7b58] sm:$0xff]
        %v4242 = vld [vmem:[%s215 + $0x7b60] sm:$0xff]
        %v4243 = vld [vmem:[%s215 + $0x7b68] sm:$0xff]
        %v4244 = vld [vmem:[%s215 + $0x7b70] sm:$0xff]
        %v4245 = vld [vmem:[%s215 + $0x7b78] sm:$0xff]
        %v4246 = vld [vmem:[%s215 + $0x7b80] sm:$0xff]
        %v4247 = vld [vmem:[%s215 + $0x7b88] sm:$0xff]
        %v4248 = vld [vmem:[%s215 + $0x7b90] sm:$0xff]
        %v4249 = vld [vmem:[%s215 + $0x7b98] sm:$0xff]
        %v4250 = vld [vmem:[%s215 + $0x7ba0] sm:$0xff]
        %v4251 = vld [vmem:[%s215 + $0x7ba8] sm:$0xff]
        %v4252 = vld [vmem:[%s215 + $0x7bb0] sm:$0xff]
        %v4253 = vld [vmem:[%s215 + $0x7bb8] sm:$0xff]
        %v4254 = vld [vmem:[%s215 + $0x7bc0] sm:$0xff]
        %v4255 = vld [vmem:[%s215 + $0x7bc8] sm:$0xff]
        %v4256 = vld [vmem:[%s215 + $0x7bd0] sm:$0xff]
        %v4257 = vld [vmem:[%s215 + $0x7bd8] sm:$0xff]
        %v4258 = vld [vmem:[%s215 + $0x7be0] sm:$0xff]
        %v4259 = vld [vmem:[%s215 + $0x7be8] sm:$0xff]
        %v4260 = vld [vmem:[%s215 + $0x7bf0] sm:$0xff]
        %v4261 = vld [vmem:[%s215 + $0x7bf8] sm:$0xff]
        %v4262 = vld [vmem:[%s215 + $0x7c00] sm:$0xff]
        %v4263 = vld [vmem:[%s215 + $0x7c08] sm:$0xff]
        %v4264 = vld [vmem:[%s215 + $0x7c10] sm:$0xff]
        %v4265 = vld [vmem:[%s215 + $0x7c18] sm:$0xff]
        %v4266 = vld [vmem:[%s215 + $0x7c20] sm:$0xff]
        %v4267 = vld [vmem:[%s215 + $0x7c28] sm:$0xff]
        %v4268 = vld [vmem:[%s215 + $0x7c30] sm:$0xff]
        %v4269 = vld [vmem:[%s215 + $0x7c38] sm:$0xff]
        %v4270 = vld [vmem:[%s215 + $0x7c40] sm:$0xff]
        %v4271 = vld [vmem:[%s215 + $0x7c48] sm:$0xff]
        %v4272 = vld [vmem:[%s215 + $0x7c50] sm:$0xff]
        %v4273 = vld [vmem:[%s215 + $0x7c58] sm:$0xff]
        %v4274 = vld [vmem:[%s215 + $0x7c60] sm:$0xff]
        %v4275 = vld [vmem:[%s215 + $0x7c68] sm:$0xff]
        %v4276 = vld [vmem:[%s215 + $0x7c70] sm:$0xff]
        %v4277 = vld [vmem:[%s215 + $0x7c78] sm:$0xff]
        %v4278 = vld [vmem:[%s215 + $0x7c80] sm:$0xff]
        %v4279 = vld [vmem:[%s215 + $0x7c88] sm:$0xff]
        %v4280 = vld [vmem:[%s215 + $0x7c90] sm:$0xff]
        %v4281 = vld [vmem:[%s215 + $0x7c98] sm:$0xff]
        %v4282 = vld [vmem:[%s215 + $0x7ca0] sm:$0xff]
        %v4283 = vld [vmem:[%s215 + $0x7ca8] sm:$0xff]
        %v4284 = vld [vmem:[%s215 + $0x7cb0] sm:$0xff]
        %v4285 = vld [vmem:[%s215 + $0x7cb8] sm:$0xff]
        %v4286 = vld [vmem:[%s215 + $0x7cc0] sm:$0xff]
        %v4287 = vld [vmem:[%s215 + $0x7cc8] sm:$0xff]
        %v4288 = vld [vmem:[%s215 + $0x7cd0] sm:$0xff]
        %v4289 = vld [vmem:[%s215 + $0x7cd8] sm:$0xff]
        %v4290 = vld [vmem:[%s215 + $0x7ce0] sm:$0xff]
        %v4291 = vld [vmem:[%s215 + $0x7ce8] sm:$0xff]
        %v4292 = vld [vmem:[%s215 + $0x7cf0] sm:$0xff]
        %v4293 = vld [vmem:[%s215 + $0x7cf8] sm:$0xff]
        %v4294 = vld [vmem:[%s215 + $0x7d00] sm:$0xff]
        %v4295 = vld [vmem:[%s215 + $0x7d08] sm:$0xff]
        %v4296 = vld [vmem:[%s215 + $0x7d10] sm:$0xff]
        %v4297 = vld [vmem:[%s215 + $0x7d18] sm:$0xff]
        %v4298 = vld [vmem:[%s215 + $0x7d20] sm:$0xff]
        %v4299 = vld [vmem:[%s215 + $0x7d28] sm:$0xff]
        %v4300 = vld [vmem:[%s215 + $0x7d30] sm:$0xff]
        %v4301 = vld [vmem:[%s215 + $0x7d38] sm:$0xff]
        %v4302 = vld [vmem:[%s215 + $0x7d40] sm:$0xff]
        %v4303 = vld [vmem:[%s215 + $0x7d48] sm:$0xff]
        %v4304 = vld [vmem:[%s215 + $0x7d50] sm:$0xff]
        %v4305 = vld [vmem:[%s215 + $0x7d58] sm:$0xff]
        %v4306 = vld [vmem:[%s215 + $0x7d60] sm:$0xff]
        %v4307 = vld [vmem:[%s215 + $0x7d68] sm:$0xff]
        %v4308 = vld [vmem:[%s215 + $0x7d70] sm:$0xff]
        %v4309 = vld [vmem:[%s215 + $0x7d78] sm:$0xff]
        %v4310 = vld [vmem:[%s215 + $0x7d80] sm:$0xff]
        %v4311 = vld [vmem:[%s215 + $0x7d88] sm:$0xff]
        %v4312 = vld [vmem:[%s215 + $0x7d90] sm:$0xff]
        %v4313 = vld [vmem:[%s215 + $0x7d98] sm:$0xff]
        %v4314 = vld [vmem:[%s215 + $0x7da0] sm:$0xff]
        %v4315 = vld [vmem:[%s215 + $0x7da8] sm:$0xff]
        %v4316 = vld [vmem:[%s215 + $0x7db0] sm:$0xff]
        %v4317 = vld [vmem:[%s215 + $0x7db8] sm:$0xff]
        %v4318 = vld [vmem:[%s215 + $0x7dc0] sm:$0xff]
        %v4319 = vld [vmem:[%s215 + $0x7dc8] sm:$0xff]
        %v4320 = vld [vmem:[%s215 + $0x7dd0] sm:$0xff]
        %v4321 = vld [vmem:[%s215 + $0x7dd8] sm:$0xff]
        %v4322 = vld [vmem:[%s215 + $0x7de0] sm:$0xff]
        %v4323 = vld [vmem:[%s215 + $0x7de8] sm:$0xff]
        %v4324 = vld [vmem:[%s215 + $0x7df0] sm:$0xff]
        %v4325 = vld [vmem:[%s215 + $0x7df8] sm:$0xff]
        %v4326 = vld [vmem:[%s215 + $0x7e00] sm:$0xff]
        %v4327 = vld [vmem:[%s215 + $0x7e08] sm:$0xff]
        %v4328 = vld [vmem:[%s215 + $0x7e10] sm:$0xff]
        %v4329 = vld [vmem:[%s215 + $0x7e18] sm:$0xff]
        %v4330 = vld [vmem:[%s215 + $0x7e20] sm:$0xff]
        %v4331 = vld [vmem:[%s215 + $0x7e28] sm:$0xff]
        %v4332 = vld [vmem:[%s215 + $0x7e30] sm:$0xff]
        %v4333 = vld [vmem:[%s215 + $0x7e38] sm:$0xff]
        %v4334 = vld [vmem:[%s215 + $0x7e40] sm:$0xff]
        %v4335 = vld [vmem:[%s215 + $0x7e48] sm:$0xff]
        %v4336 = vld [vmem:[%s215 + $0x7e50] sm:$0xff]
        %v4337 = vld [vmem:[%s215 + $0x7e58] sm:$0xff]
        %v4338 = vld [vmem:[%s215 + $0x7e60] sm:$0xff]
        %v4339 = vld [vmem:[%s215 + $0x7e68] sm:$0xff]
        %v4340 = vld [vmem:[%s215 + $0x7e70] sm:$0xff]
        %v4341 = vld [vmem:[%s215 + $0x7e78] sm:$0xff]
        %v4342 = vld [vmem:[%s215 + $0x7e80] sm:$0xff]
        %v4343 = vld [vmem:[%s215 + $0x7e88] sm:$0xff]
        %v4344 = vld [vmem:[%s215 + $0x7e90] sm:$0xff]
        %v4345 = vld [vmem:[%s215 + $0x7e98] sm:$0xff]
        %v4346 = vld [vmem:[%s215 + $0x7ea0] sm:$0xff]
        %v4347 = vld [vmem:[%s215 + $0x7ea8] sm:$0xff]
        %v4348 = vld [vmem:[%s215 + $0x7eb0] sm:$0xff]
        %v4349 = vld [vmem:[%s215 + $0x7eb8] sm:$0xff]
        %v4350 = vld [vmem:[%s215 + $0x7ec0] sm:$0xff]
        %v4351 = vld [vmem:[%s215 + $0x7ec8] sm:$0xff]
        %v4352 = vld [vmem:[%s215 + $0x7ed0] sm:$0xff]
        %v4353 = vld [vmem:[%s215 + $0x7ed8] sm:$0xff]
        %v4354 = vld [vmem:[%s215 + $0x7ee0] sm:$0xff]
        %v4355 = vld [vmem:[%s215 + $0x7ee8] sm:$0xff]
        %v4356 = vld [vmem:[%s215 + $0x7ef0] sm:$0xff]
        %v4357 = vld [vmem:[%s215 + $0x7ef8] sm:$0xff]
        %v4358 = vld [vmem:[%s215 + $0x7f00] sm:$0xff]
        %v4359 = vld [vmem:[%s215 + $0x7f08] sm:$0xff]
        %v4360 = vld [vmem:[%s215 + $0x7f10] sm:$0xff]
        %v4361 = vld [vmem:[%s215 + $0x7f18] sm:$0xff]
        %v4362 = vld [vmem:[%s215 + $0x7f20] sm:$0xff]
        %v4363 = vld [vmem:[%s215 + $0x7f28] sm:$0xff]
        %v4364 = vld [vmem:[%s215 + $0x7f30] sm:$0xff]
        %v4365 = vld [vmem:[%s215 + $0x7f38] sm:$0xff]
        %v4366 = vld [vmem:[%s215 + $0x7f40] sm:$0xff]
        %v4367 = vld [vmem:[%s215 + $0x7f48] sm:$0xff]
        %v4368 = vld [vmem:[%s215 + $0x7f50] sm:$0xff]
        %v4369 = vld [vmem:[%s215 + $0x7f58] sm:$0xff]
        %v4370 = vld [vmem:[%s215 + $0x7f60] sm:$0xff]
        %v4371 = vld [vmem:[%s215 + $0x7f68] sm:$0xff]
        %v4372 = vld [vmem:[%s215 + $0x7f70] sm:$0xff]
        %v4373 = vld [vmem:[%s215 + $0x7f78] sm:$0xff]
        %v4374 = vld [vmem:[%s215 + $0x7f80] sm:$0xff]
        %v4375 = vld [vmem:[%s215 + $0x7f88] sm:$0xff]
        %v4376 = vld [vmem:[%s215 + $0x7f90] sm:$0xff]
        %v4377 = vld [vmem:[%s215 + $0x7f98] sm:$0xff]
        %v4378 = vld [vmem:[%s215 + $0x7fa0] sm:$0xff]
        %v4379 = vld [vmem:[%s215 + $0x7fa8] sm:$0xff]
        %v4380 = vld [vmem:[%s215 + $0x7fb0] sm:$0xff]
        %v4381 = vld [vmem:[%s215 + $0x7fb8] sm:$0xff]
        %v4382 = vld [vmem:[%s215 + $0x7fc0] sm:$0xff]
        %v4383 = vld [vmem:[%s215 + $0x7fc8] sm:$0xff]
        %v4384 = vld [vmem:[%s215 + $0x7fd0] sm:$0xff]
        %v4385 = vld [vmem:[%s215 + $0x7fd8] sm:$0xff]
        %v4386 = vld [vmem:[%s215 + $0x7fe0] sm:$0xff]
        %v4387 = vld [vmem:[%s215 + $0x7fe8] sm:$0xff]
        %v4388 = vld [vmem:[%s215 + $0x7ff0] sm:$0xff]
        %v4389 = vld [vmem:[%s215 + $0x7ff8] sm:$0xff]
        %v4406 = vcombine.high %v278, %v278
        %v4408 = vunpack.c.l.s4 1983009808
        %v4409 = vunpack.c.0.s8 %v4408
        %v4410 = vlaneseq
        %v4411 = vshrl.u32 %v4410, 7
        %v4412 = vsub.s32 %v4409, %v4411
        %v4413 = vrot.slane %v278, %v4412
        %v4415 = vunpack.c.l.s4 1983009808
        %v4416 = vunpack.c.0.s8 %v4415
        %v4417 = vlaneseq
        %v4418 = vshrl.u32 %v4417, 7
        %v4419 = vsub.s32 %v4416, %v4418
        %v4420 = vrot.slane %v4406, %v4419
        %v4421 = vcombine.high %v4413, %v4413
        %v4422 = vcombine.high %v4420, %v4420
        %v4423 = vcombine.high %v279, %v279
        %v4425 = vunpack.c.l.s4 1983009808
        %v4426 = vunpack.c.0.s8 %v4425
        %v4427 = vlaneseq
        %v4428 = vshrl.u32 %v4427, 7
        %v4429 = vsub.s32 %v4426, %v4428
        %v4430 = vrot.slane %v279, %v4429
        %v4432 = vunpack.c.l.s4 1983009808
        %v4433 = vunpack.c.0.s8 %v4432
        %v4434 = vlaneseq
        %v4435 = vshrl.u32 %v4434, 7
        %v4436 = vsub.s32 %v4433, %v4435
        %v4437 = vrot.slane %v4423, %v4436
        %v4438 = vcombine.high %v4430, %v4430
        %v4439 = vcombine.high %v4437, %v4437
        %v4440 = vcombine.high %v280, %v280
        %v4442 = vunpack.c.l.s4 1983009808
        %v4443 = vunpack.c.0.s8 %v4442
        %v4444 = vlaneseq
        %v4445 = vshrl.u32 %v4444, 7
        %v4446 = vsub.s32 %v4443, %v4445
        %v4447 = vrot.slane %v280, %v4446
        %v4449 = vunpack.c.l.s4 1983009808
        %v4450 = vunpack.c.0.s8 %v4449
        %v4451 = vlaneseq
        %v4452 = vshrl.u32 %v4451, 7
        %v4453 = vsub.s32 %v4450, %v4452
        %v4454 = vrot.slane %v4440, %v4453
        %v4455 = vcombine.high %v4447, %v4447
        %v4456 = vcombine.high %v4454, %v4454
        %v4457 = vcombine.high %v281, %v281
        %v4459 = vunpack.c.l.s4 1983009808
        %v4460 = vunpack.c.0.s8 %v4459
        %v4461 = vlaneseq
        %v4462 = vshrl.u32 %v4461, 7
        %v4463 = vsub.s32 %v4460, %v4462
        %v4464 = vrot.slane %v281, %v4463
        %v4466 = vunpack.c.l.s4 1983009808
        %v4467 = vunpack.c.0.s8 %v4466
        %v4468 = vlaneseq
        %v4469 = vshrl.u32 %v4468, 7
        %v4470 = vsub.s32 %v4467, %v4469
        %v4471 = vrot.slane %v4457, %v4470
        %v4472 = vcombine.high %v4464, %v4464
        %v4473 = vcombine.high %v4471, %v4471
        %v4474 = vcombine.high %v282, %v282
        %v4476 = vunpack.c.l.s4 1983009808
        %v4477 = vunpack.c.0.s8 %v4476
        %v4478 = vlaneseq
        %v4479 = vshrl.u32 %v4478, 7
        %v4480 = vsub.s32 %v4477, %v4479
        %v4481 = vrot.slane %v282, %v4480
        %v4483 = vunpack.c.l.s4 1983009808
        %v4484 = vunpack.c.0.s8 %v4483
        %v4485 = vlaneseq
        %v4486 = vshrl.u32 %v4485, 7
        %v4487 = vsub.s32 %v4484, %v4486
        %v4488 = vrot.slane %v4474, %v4487
        %v4489 = vcombine.high %v4481, %v4481
        %v4490 = vcombine.high %v4488, %v4488
        %v4491 = vcombine.high %v283, %v283
        %v4493 = vunpack.c.l.s4 1983009808
        %v4494 = vunpack.c.0.s8 %v4493
        %v4495 = vlaneseq
        %v4496 = vshrl.u32 %v4495, 7
        %v4497 = vsub.s32 %v4494, %v4496
        %v4498 = vrot.slane %v283, %v4497
        %v4500 = vunpack.c.l.s4 1983009808
        %v4501 = vunpack.c.0.s8 %v4500
        %v4502 = vlaneseq
        %v4503 = vshrl.u32 %v4502, 7
        %v4504 = vsub.s32 %v4501, %v4503
        %v4505 = vrot.slane %v4491, %v4504
        %v4506 = vcombine.high %v4498, %v4498
        %v4507 = vcombine.high %v4505, %v4505
        %v4508 = vcombine.high %v284, %v284
        %v4510 = vunpack.c.l.s4 1983009808
        %v4511 = vunpack.c.0.s8 %v4510
        %v4512 = vlaneseq
        %v4513 = vshrl.u32 %v4512, 7
        %v4514 = vsub.s32 %v4511, %v4513
        %v4515 = vrot.slane %v284, %v4514
        %v4517 = vunpack.c.l.s4 1983009808
        %v4518 = vunpack.c.0.s8 %v4517
        %v4519 = vlaneseq
        %v4520 = vshrl.u32 %v4519, 7
        %v4521 = vsub.s32 %v4518, %v4520
        %v4522 = vrot.slane %v4508, %v4521
        %v4523 = vcombine.high %v4515, %v4515
        %v4524 = vcombine.high %v4522, %v4522
        %v4525 = vcombine.high %v285, %v285
        %v4527 = vunpack.c.l.s4 1983009808
        %v4528 = vunpack.c.0.s8 %v4527
        %v4529 = vlaneseq
        %v4530 = vshrl.u32 %v4529, 7
        %v4531 = vsub.s32 %v4528, %v4530
        %v4532 = vrot.slane %v285, %v4531
        %v4534 = vunpack.c.l.s4 1983009808
        %v4535 = vunpack.c.0.s8 %v4534
        %v4536 = vlaneseq
        %v4537 = vshrl.u32 %v4536, 7
        %v4538 = vsub.s32 %v4535, %v4537
        %v4539 = vrot.slane %v4525, %v4538
        %v4540 = vcombine.high %v4532, %v4532
        %v4541 = vcombine.high %v4539, %v4539
        %v4542 = vcombine.high %v286, %v286
        %v4544 = vunpack.c.l.s4 1983009808
        %v4545 = vunpack.c.0.s8 %v4544
        %v4546 = vlaneseq
        %v4547 = vshrl.u32 %v4546, 7
        %v4548 = vsub.s32 %v4545, %v4547
        %v4549 = vrot.slane %v286, %v4548
        %v4551 = vunpack.c.l.s4 1983009808
        %v4552 = vunpack.c.0.s8 %v4551
        %v4553 = vlaneseq
        %v4554 = vshrl.u32 %v4553, 7
        %v4555 = vsub.s32 %v4552, %v4554
        %v4556 = vrot.slane %v4542, %v4555
        %v4557 = vcombine.high %v4549, %v4549
        %v4558 = vcombine.high %v4556, %v4556
        %v4559 = vcombine.high %v287, %v287
        %v4561 = vunpack.c.l.s4 1983009808
        %v4562 = vunpack.c.0.s8 %v4561
        %v4563 = vlaneseq
        %v4564 = vshrl.u32 %v4563, 7
        %v4565 = vsub.s32 %v4562, %v4564
        %v4566 = vrot.slane %v287, %v4565
        %v4568 = vunpack.c.l.s4 1983009808
        %v4569 = vunpack.c.0.s8 %v4568
        %v4570 = vlaneseq
        %v4571 = vshrl.u32 %v4570, 7
        %v4572 = vsub.s32 %v4569, %v4571
        %v4573 = vrot.slane %v4559, %v4572
        %v4574 = vcombine.high %v4566, %v4566
        %v4575 = vcombine.high %v4573, %v4573
        %v4576 = vcombine.high %v288, %v288
        %v4578 = vunpack.c.l.s4 1983009808
        %v4579 = vunpack.c.0.s8 %v4578
        %v4580 = vlaneseq
        %v4581 = vshrl.u32 %v4580, 7
        %v4582 = vsub.s32 %v4579, %v4581
        %v4583 = vrot.slane %v288, %v4582
        %v4585 = vunpack.c.l.s4 1983009808
        %v4586 = vunpack.c.0.s8 %v4585
        %v4587 = vlaneseq
        %v4588 = vshrl.u32 %v4587, 7
        %v4589 = vsub.s32 %v4586, %v4588
        %v4590 = vrot.slane %v4576, %v4589
        %v4591 = vcombine.high %v4583, %v4583
        %v4592 = vcombine.high %v4590, %v4590
        %v4593 = vcombine.high %v289, %v289
        %v4595 = vunpack.c.l.s4 1983009808
        %v4596 = vunpack.c.0.s8 %v4595
        %v4597 = vlaneseq
        %v4598 = vshrl.u32 %v4597, 7
        %v4599 = vsub.s32 %v4596, %v4598
        %v4600 = vrot.slane %v289, %v4599
        %v4602 = vunpack.c.l.s4 1983009808
        %v4603 = vunpack.c.0.s8 %v4602
        %v4604 = vlaneseq
        %v4605 = vshrl.u32 %v4604, 7
        %v4606 = vsub.s32 %v4603, %v4605
        %v4607 = vrot.slane %v4593, %v4606
        %v4608 = vcombine.high %v4600, %v4600
        %v4609 = vcombine.high %v4607, %v4607
        %v4610 = vcombine.high %v290, %v290
        %v4612 = vunpack.c.l.s4 1983009808
        %v4613 = vunpack.c.0.s8 %v4612
        %v4614 = vlaneseq
        %v4615 = vshrl.u32 %v4614, 7
        %v4616 = vsub.s32 %v4613, %v4615
        %v4617 = vrot.slane %v290, %v4616
        %v4619 = vunpack.c.l.s4 1983009808
        %v4620 = vunpack.c.0.s8 %v4619
        %v4621 = vlaneseq
        %v4622 = vshrl.u32 %v4621, 7
        %v4623 = vsub.s32 %v4620, %v4622
        %v4624 = vrot.slane %v4610, %v4623
        %v4625 = vcombine.high %v4617, %v4617
        %v4626 = vcombine.high %v4624, %v4624
        %v4627 = vcombine.high %v291, %v291
        %v4629 = vunpack.c.l.s4 1983009808
        %v4630 = vunpack.c.0.s8 %v4629
        %v4631 = vlaneseq
        %v4632 = vshrl.u32 %v4631, 7
        %v4633 = vsub.s32 %v4630, %v4632
        %v4634 = vrot.slane %v291, %v4633
        %v4636 = vunpack.c.l.s4 1983009808
        %v4637 = vunpack.c.0.s8 %v4636
        %v4638 = vlaneseq
        %v4639 = vshrl.u32 %v4638, 7
        %v4640 = vsub.s32 %v4637, %v4639
        %v4641 = vrot.slane %v4627, %v4640
        %v4642 = vcombine.high %v4634, %v4634
        %v4643 = vcombine.high %v4641, %v4641
        %v4644 = vcombine.high %v292, %v292
        %v4646 = vunpack.c.l.s4 1983009808
        %v4647 = vunpack.c.0.s8 %v4646
        %v4648 = vlaneseq
        %v4649 = vshrl.u32 %v4648, 7
        %v4650 = vsub.s32 %v4647, %v4649
        %v4651 = vrot.slane %v292, %v4650
        %v4653 = vunpack.c.l.s4 1983009808
        %v4654 = vunpack.c.0.s8 %v4653
        %v4655 = vlaneseq
        %v4656 = vshrl.u32 %v4655, 7
        %v4657 = vsub.s32 %v4654, %v4656
        %v4658 = vrot.slane %v4644, %v4657
        %v4659 = vcombine.high %v4651, %v4651
        %v4660 = vcombine.high %v4658, %v4658
        %v4661 = vcombine.high %v293, %v293
        %v4663 = vunpack.c.l.s4 1983009808
        %v4664 = vunpack.c.0.s8 %v4663
        %v4665 = vlaneseq
        %v4666 = vshrl.u32 %v4665, 7
        %v4667 = vsub.s32 %v4664, %v4666
        %v4668 = vrot.slane %v293, %v4667
        %v4670 = vunpack.c.l.s4 1983009808
        %v4671 = vunpack.c.0.s8 %v4670
        %v4672 = vlaneseq
        %v4673 = vshrl.u32 %v4672, 7
        %v4674 = vsub.s32 %v4671, %v4673
        %v4675 = vrot.slane %v4661, %v4674
        %v4676 = vcombine.high %v4668, %v4668
        %v4677 = vcombine.high %v4675, %v4675
        %4742 = vmatprep.subr.mxu0 %v295
        %4743 = vmatpush1.msra.mxu0 %v294
        %4744 = vmatprep.subr.mxu0 %v299
        %4745 = vmatpush1.msra.mxu0 %v298
        %4746 = vmatprep.subr.mxu0 %v303
        %4747 = vmatpush1.msra.mxu0 %v302
        %4748 = vmatprep.subr.mxu0 %v307
        %4749 = vmatpush1.msra.mxu0 %v306
        %4750 = vmatprep.subr.mxu0 %v311
        %4751 = vmatpush1.msra.mxu0 %v310
        %4752 = vmatprep.subr.mxu0 %v315
        %4753 = vmatpush1.msra.mxu0 %v314
        %4754 = vmatprep.subr.mxu0 %v319
        %4755 = vmatpush1.msra.mxu0 %v318
        %4756 = vmatprep.subr.mxu0 %v323
        %4757 = vmatpush1.msra.mxu0 %v322
        %4758 = vmatprep.subr.mxu0 %v327
        %4759 = vmatpush1.msra.mxu0 %v326
        %4760 = vmatprep.subr.mxu0 %v331
        %4761 = vmatpush1.msra.mxu0 %v330
        %4762 = vmatprep.subr.mxu0 %v335
        %4763 = vmatpush1.msra.mxu0 %v334
        %4764 = vmatprep.subr.mxu0 %v339
        %4765 = vmatpush1.msra.mxu0 %v338
        %4766 = vmatprep.subr.mxu0 %v343
        %4767 = vmatpush1.msra.mxu0 %v342
        %4768 = vmatprep.subr.mxu0 %v347
        %4769 = vmatpush1.msra.mxu0 %v346
        %4770 = vmatprep.subr.mxu0 %v351
        %4771 = vmatpush1.msra.mxu0 %v350
        %4772 = vmatprep.subr.mxu0 %v355
        %4773 = vmatpush1.msra.mxu0 %v354
        %4774 = vmatprep.subr.mxu0 %v359
        %4775 = vmatpush1.msra.mxu0 %v358
        %4776 = vmatprep.subr.mxu0 %v363
        %4777 = vmatpush1.msra.mxu0 %v362
        %4778 = vmatprep.subr.mxu0 %v367
        %4779 = vmatpush1.msra.mxu0 %v366
        %4780 = vmatprep.subr.mxu0 %v371
        %4781 = vmatpush1.msra.mxu0 %v370
        %4782 = vmatprep.subr.mxu0 %v375
        %4783 = vmatpush1.msra.mxu0 %v374
        %4784 = vmatprep.subr.mxu0 %v379
        %4785 = vmatpush1.msra.mxu0 %v378
        %4786 = vmatprep.subr.mxu0 %v383
        %4787 = vmatpush1.msra.mxu0 %v382
        %4788 = vmatprep.subr.mxu0 %v387
        %4789 = vmatpush1.msra.mxu0 %v386
        %4790 = vmatprep.subr.mxu0 %v391
        %4791 = vmatpush1.msra.mxu0 %v390
        %4792 = vmatprep.subr.mxu0 %v395
        %4793 = vmatpush1.msra.mxu0 %v394
        %4794 = vmatprep.subr.mxu0 %v399
        %4795 = vmatpush1.msra.mxu0 %v398
        %4796 = vmatprep.subr.mxu0 %v403
        %4797 = vmatpush1.msra.mxu0 %v402
        %4798 = vmatprep.subr.mxu0 %v407
        %4799 = vmatpush1.msra.mxu0 %v406
        %4800 = vmatprep.subr.mxu0 %v411
        %4801 = vmatpush1.msra.mxu0 %v410
        %4802 = vmatprep.subr.mxu0 %v415
        %4803 = vmatpush1.msra.mxu0 %v414
        %4804 = vmatprep.subr.mxu0 %v419
        %4805 = vmatpush1.msra.mxu0 %v418
        %4806 = vmatprep.mubr.f32.mxu0 %v4421
        %4807 = vmatmul.mubr.f32.gmra.mrb[0].mxu0 %v4413
        %v4808 = vpop.f32.mrb[0].mxu0
        %v4809 = vadd.f32 0.0, %v4808
        %v4810 = vpop.f32.mrb[0].mxu0
        %v4811 = vadd.f32 0.0, %v4810
        %4812 = vdwg.mxu0
        %4813 = vmatprep.subr.mxu0 %v423
        %4814 = vmatpush1.msra.mxu0 %v422
        %4815 = vmatprep.subr.mxu0 %v427
        %4816 = vmatpush1.msra.mxu0 %v426
        %4817 = vmatprep.subr.mxu0 %v431
        %4818 = vmatpush1.msra.mxu0 %v430
        %4819 = vmatprep.subr.mxu0 %v435
        %4820 = vmatpush1.msra.mxu0 %v434
        %4821 = vmatprep.subr.mxu0 %v439
        %4822 = vmatpush1.msra.mxu0 %v438
        %4823 = vmatprep.subr.mxu0 %v443
        %4824 = vmatpush1.msra.mxu0 %v442
        %4825 = vmatprep.subr.mxu0 %v447
        %4826 = vmatpush1.msra.mxu0 %v446
        %4827 = vmatprep.subr.mxu0 %v451
        %4828 = vmatpush1.msra.mxu0 %v450
        %4829 = vmatprep.subr.mxu0 %v455
        %4830 = vmatpush1.msra.mxu0 %v454
        %4831 = vmatprep.subr.mxu0 %v459
        %4832 = vmatpush1.msra.mxu0 %v458
        %4833 = vmatprep.subr.mxu0 %v463
        %4834 = vmatpush1.msra.mxu0 %v462
        %4835 = vmatprep.subr.mxu0 %v467
        %4836 = vmatpush1.msra.mxu0 %v466
        %4837 = vmatprep.subr.mxu0 %v471
        %4838 = vmatpush1.msra.mxu0 %v470
        %4839 = vmatprep.subr.mxu0 %v475
        %4840 = vmatpush1.msra.mxu0 %v474
        %4841 = vmatprep.subr.mxu0 %v479
        %4842 = vmatpush1.msra.mxu0 %v478
        %4843 = vmatprep.subr.mxu0 %v483
        %4844 = vmatpush1.msra.mxu0 %v482
        %4845 = vmatprep.subr.mxu0 %v487
        %4846 = vmatpush1.msra.mxu0 %v486
        %4847 = vmatprep.subr.mxu0 %v491
        %4848 = vmatpush1.msra.mxu0 %v490
        %4849 = vmatprep.subr.mxu0 %v495
        %4850 = vmatpush1.msra.mxu0 %v494
        %4851 = vmatprep.subr.mxu0 %v499
        %4852 = vmatpush1.msra.mxu0 %v498
        %4853 = vmatprep.subr.mxu0 %v503
        %4854 = vmatpush1.msra.mxu0 %v502
        %4855 = vmatprep.subr.mxu0 %v507
        %4856 = vmatpush1.msra.mxu0 %v506
        %4857 = vmatprep.subr.mxu0 %v511
        %4858 = vmatpush1.msra.mxu0 %v510
        %4859 = vmatprep.subr.mxu0 %v515
        %4860 = vmatpush1.msra.mxu0 %v514
        %4861 = vmatprep.subr.mxu0 %v519
        %4862 = vmatpush1.msra.mxu0 %v518
        %4863 = vmatprep.subr.mxu0 %v523
        %4864 = vmatpush1.msra.mxu0 %v522
        %4865 = vmatprep.subr.mxu0 %v527
        %4866 = vmatpush1.msra.mxu0 %v526
        %4867 = vmatprep.subr.mxu0 %v531
        %4868 = vmatpush1.msra.mxu0 %v530
        %4869 = vmatprep.subr.mxu0 %v535
        %4870 = vmatpush1.msra.mxu0 %v534
        %4871 = vmatprep.subr.mxu0 %v539
        %4872 = vmatpush1.msra.mxu0 %v538
        %4873 = vmatprep.subr.mxu0 %v543
        %4874 = vmatpush1.msra.mxu0 %v542
        %4875 = vmatprep.subr.mxu0 %v547
        %4876 = vmatpush1.msra.mxu0 %v546
        %4877 = vmatprep.mubr.f32.mxu0 %v4422
        %4878 = vmatmul.mubr.f32.gmra.mrb[0].mxu0 %v4420
        %v4879 = vpop.f32.mrb[0].mxu0
        %v4880 = vadd.f32 %v4809, %v4879
        %v4881 = vpop.f32.mrb[0].mxu0
        %v4882 = vadd.f32 %v4811, %v4881
        %4883 = vdwg.mxu0
        %4884 = vmatprep.subr.mxu0 %v551
        %4885 = vmatpush1.msra.mxu0 %v550
        %4886 = vmatprep.subr.mxu0 %v555
        %4887 = vmatpush1.msra.mxu0 %v554
        %4888 = vmatprep.subr.mxu0 %v559
        %4889 = vmatpush1.msra.mxu0 %v558
        %4890 = vmatprep.subr.mxu0 %v563
        %4891 = vmatpush1.msra.mxu0 %v562
        %4892 = vmatprep.subr.mxu0 %v567
        %4893 = vmatpush1.msra.mxu0 %v566
        %4894 = vmatprep.subr.mxu0 %v571
        %4895 = vmatpush1.msra.mxu0 %v570
        %4896 = vmatprep.subr.mxu0 %v575
        %4897 = vmatpush1.msra.mxu0 %v574
        %4898 = vmatprep.subr.mxu0 %v579
        %4899 = vmatpush1.msra.mxu0 %v578
        %4900 = vmatprep.subr.mxu0 %v583
        %4901 = vmatpush1.msra.mxu0 %v582
        %4902 = vmatprep.subr.mxu0 %v587
        %4903 = vmatpush1.msra.mxu0 %v586
        %4904 = vmatprep.subr.mxu0 %v591
        %4905 = vmatpush1.msra.mxu0 %v590
        %4906 = vmatprep.subr.mxu0 %v595
        %4907 = vmatpush1.msra.mxu0 %v594
        %4908 = vmatprep.subr.mxu0 %v599
        %4909 = vmatpush1.msra.mxu0 %v598
        %4910 = vmatprep.subr.mxu0 %v603
        %4911 = vmatpush1.msra.mxu0 %v602
        %4912 = vmatprep.subr.mxu0 %v607
        %4913 = vmatpush1.msra.mxu0 %v606
        %4914 = vmatprep.subr.mxu0 %v611
        %4915 = vmatpush1.msra.mxu0 %v610
        %4916 = vmatprep.subr.mxu0 %v615
        %4917 = vmatpush1.msra.mxu0 %v614
        %4918 = vmatprep.subr.mxu0 %v619
        %4919 = vmatpush1.msra.mxu0 %v618
        %4920 = vmatprep.subr.mxu0 %v623
        %4921 = vmatpush1.msra.mxu0 %v622
        %4922 = vmatprep.subr.mxu0 %v627
        %4923 = vmatpush1.msra.mxu0 %v626
        %4924 = vmatprep.subr.mxu0 %v631
        %4925 = vmatpush1.msra.mxu0 %v630
        %4926 = vmatprep.subr.mxu0 %v635
        %4927 = vmatpush1.msra.mxu0 %v634
        %4928 = vmatprep.subr.mxu0 %v639
        %4929 = vmatpush1.msra.mxu0 %v638
        %4930 = vmatprep.subr.mxu0 %v643
        %4931 = vmatpush1.msra.mxu0 %v642
        %4932 = vmatprep.subr.mxu0 %v647
        %4933 = vmatpush1.msra.mxu0 %v646
        %4934 = vmatprep.subr.mxu0 %v651
        %4935 = vmatpush1.msra.mxu0 %v650
        %4936 = vmatprep.subr.mxu0 %v655
        %4937 = vmatpush1.msra.mxu0 %v654
        %4938 = vmatprep.subr.mxu0 %v659
        %4939 = vmatpush1.msra.mxu0 %v658
        %4940 = vmatprep.subr.mxu0 %v663
        %4941 = vmatpush1.msra.mxu0 %v662
        %4942 = vmatprep.subr.mxu0 %v667
        %4943 = vmatpush1.msra.mxu0 %v666
        %4944 = vmatprep.subr.mxu0 %v671
        %4945 = vmatpush1.msra.mxu0 %v670
        %4946 = vmatprep.subr.mxu0 %v675
        %4947 = vmatpush1.msra.mxu0 %v674
        %4948 = vmatprep.mubr.f32.mxu0 %v4438
        %4949 = vmatmul.mubr.f32.gmra.mrb[0].mxu0 %v4430
        %v4950 = vpop.f32.mrb[0].mxu0
        %v4951 = vadd.f32 %v4880, %v4950
        %v4952 = vpop.f32.mrb[0].mxu0
        %v4953 = vadd.f32 %v4882, %v4952
        %4954 = vdwg.mxu0
        %4955 = vmatprep.subr.mxu0 %v679
        %4956 = vmatpush1.msra.mxu0 %v678
        %4957 = vmatprep.subr.mxu0 %v683
        %4958 = vmatpush1.msra.mxu0 %v682
        %4959 = vmatprep.subr.mxu0 %v687
        %4960 = vmatpush1.msra.mxu0 %v686
        %4961 = vmatprep.subr.mxu0 %v691
        %4962 = vmatpush1.msra.mxu0 %v690
        %4963 = vmatprep.subr.mxu0 %v695
        %4964 = vmatpush1.msra.mxu0 %v694
        %4965 = vmatprep.subr.mxu0 %v699
        %4966 = vmatpush1.msra.mxu0 %v698
        %4967 = vmatprep.subr.mxu0 %v703
        %4968 = vmatpush1.msra.mxu0 %v702
        %4969 = vmatprep.subr.mxu0 %v707
        %4970 = vmatpush1.msra.mxu0 %v706
        %4971 = vmatprep.subr.mxu0 %v711
        %4972 = vmatpush1.msra.mxu0 %v710
        %4973 = vmatprep.subr.mxu0 %v715
        %4974 = vmatpush1.msra.mxu0 %v714
        %4975 = vmatprep.subr.mxu0 %v719
        %4976 = vmatpush1.msra.mxu0 %v718
        %4977 = vmatprep.subr.mxu0 %v723
        %4978 = vmatpush1.msra.mxu0 %v722
        %4979 = vmatprep.subr.mxu0 %v727
        %4980 = vmatpush1.msra.mxu0 %v726
        %4981 = vmatprep.subr.mxu0 %v731
        %4982 = vmatpush1.msra.mxu0 %v730
        %4983 = vmatprep.subr.mxu0 %v735
        %4984 = vmatpush1.msra.mxu0 %v734
        %4985 = vmatprep.subr.mxu0 %v739
        %4986 = vmatpush1.msra.mxu0 %v738
        %4987 = vmatprep.subr.mxu0 %v743
        %4988 = vmatpush1.msra.mxu0 %v742
        %4989 = vmatprep.subr.mxu0 %v747
        %4990 = vmatpush1.msra.mxu0 %v746
        %4991 = vmatprep.subr.mxu0 %v751
        %4992 = vmatpush1.msra.mxu0 %v750
        %4993 = vmatprep.subr.mxu0 %v755
        %4994 = vmatpush1.msra.mxu0 %v754
        %4995 = vmatprep.subr.mxu0 %v759
        %4996 = vmatpush1.msra.mxu0 %v758
        %4997 = vmatprep.subr.mxu0 %v763
        %4998 = vmatpush1.msra.mxu0 %v762
        %4999 = vmatprep.subr.mxu0 %v767
        %5000 = vmatpush1.msra.mxu0 %v766
        %5001 = vmatprep.subr.mxu0 %v771
        %5002 = vmatpush1.msra.mxu0 %v770
        %5003 = vmatprep.subr.mxu0 %v775
        %5004 = vmatpush1.msra.mxu0 %v774
        %5005 = vmatprep.subr.mxu0 %v779
        %5006 = vmatpush1.msra.mxu0 %v778
        %5007 = vmatprep.subr.mxu0 %v783
        %5008 = vmatpush1.msra.mxu0 %v782
        %5009 = vmatprep.subr.mxu0 %v787
        %5010 = vmatpush1.msra.mxu0 %v786
        %5011 = vmatprep.subr.mxu0 %v791
        %5012 = vmatpush1.msra.mxu0 %v790
        %5013 = vmatprep.subr.mxu0 %v795
        %5014 = vmatpush1.msra.mxu0 %v794
        %5015 = vmatprep.subr.mxu0 %v799
        %5016 = vmatpush1.msra.mxu0 %v798
        %5017 = vmatprep.subr.mxu0 %v803
        %5018 = vmatpush1.msra.mxu0 %v802
        %5019 = vmatprep.mubr.f32.mxu0 %v4439
        %5020 = vmatmul.mubr.f32.gmra.mrb[0].mxu0 %v4437
        %v5021 = vpop.f32.mrb[0].mxu0
        %v5022 = vadd.f32 %v4951, %v5021
        %v5023 = vpop.f32.mrb[0].mxu0
        %v5024 = vadd.f32 %v4953, %v5023
        %5025 = vdwg.mxu0
        %5026 = vmatprep.subr.mxu0 %v807
        %5027 = vmatpush1.msra.mxu0 %v806
        %5028 = vmatprep.subr.mxu0 %v811
        %5029 = vmatpush1.msra.mxu0 %v810
        %5030 = vmatprep.subr.mxu0 %v815
        %5031 = vmatpush1.msra.mxu0 %v814
        %5032 = vmatprep.subr.mxu0 %v819
        %5033 = vmatpush1.msra.mxu0 %v818
        %5034 = vmatprep.subr.mxu0 %v823
        %5035 = vmatpush1.msra.mxu0 %v822
        %5036 = vmatprep.subr.mxu0 %v827
        %5037 = vmatpush1.msra.mxu0 %v826
        %5038 = vmatprep.subr.mxu0 %v831
        %5039 = vmatpush1.msra.mxu0 %v830
        %5040 = vmatprep.subr.mxu0 %v835
        %5041 = vmatpush1.msra.mxu0 %v834
        %5042 = vmatprep.subr.mxu0 %v839
        %5043 = vmatpush1.msra.mxu0 %v838
        %5044 = vmatprep.subr.mxu0 %v843
        %5045 = vmatpush1.msra.mxu0 %v842
        %5046 = vmatprep.subr.mxu0 %v847
        %5047 = vmatpush1.msra.mxu0 %v846
        %5048 = vmatprep.subr.mxu0 %v851
        %5049 = vmatpush1.msra.mxu0 %v850
        %5050 = vmatprep.subr.mxu0 %v855
        %5051 = vmatpush1.msra.mxu0 %v854
        %5052 = vmatprep.subr.mxu0 %v859
        %5053 = vmatpush1.msra.mxu0 %v858
        %5054 = vmatprep.subr.mxu0 %v863
        %5055 = vmatpush1.msra.mxu0 %v862
        %5056 = vmatprep.subr.mxu0 %v867
        %5057 = vmatpush1.msra.mxu0 %v866
        %5058 = vmatprep.subr.mxu0 %v871
        %5059 = vmatpush1.msra.mxu0 %v870
        %5060 = vmatprep.subr.mxu0 %v875
        %5061 = vmatpush1.msra.mxu0 %v874
        %5062 = vmatprep.subr.mxu0 %v879
        %5063 = vmatpush1.msra.mxu0 %v878
        %5064 = vmatprep.subr.mxu0 %v883
        %5065 = vmatpush1.msra.mxu0 %v882
        %5066 = vmatprep.subr.mxu0 %v887
        %5067 = vmatpush1.msra.mxu0 %v886
        %5068 = vmatprep.subr.mxu0 %v891
        %5069 = vmatpush1.msra.mxu0 %v890
        %5070 = vmatprep.subr.mxu0 %v895
        %5071 = vmatpush1.msra.mxu0 %v894
        %5072 = vmatprep.subr.mxu0 %v899
        %5073 = vmatpush1.msra.mxu0 %v898
        %5074 = vmatprep.subr.mxu0 %v903
        %5075 = vmatpush1.msra.mxu0 %v902
        %5076 = vmatprep.subr.mxu0 %v907
        %5077 = vmatpush1.msra.mxu0 %v906
        %5078 = vmatprep.subr.mxu0 %v911
        %5079 = vmatpush1.msra.mxu0 %v910
        %5080 = vmatprep.subr.mxu0 %v915
        %5081 = vmatpush1.msra.mxu0 %v914
        %5082 = vmatprep.subr.mxu0 %v919
        %5083 = vmatpush1.msra.mxu0 %v918
        %5084 = vmatprep.subr.mxu0 %v923
        %5085 = vmatpush1.msra.mxu0 %v922
        %5086 = vmatprep.subr.mxu0 %v927
        %5087 = vmatpush1.msra.mxu0 %v926
        %5088 = vmatprep.subr.mxu0 %v931
        %5089 = vmatpush1.msra.mxu0 %v930
        %5090 = vmatprep.mubr.f32.mxu0 %v4455
        %5091 = vmatmul.mubr.f32.gmra.mrb[0].mxu0 %v4447
        %v5092 = vpop.f32.mrb[0].mxu0
        %v5093 = vadd.f32 %v5022, %v5092
        %v5094 = vpop.f32.mrb[0].mxu0
        %v5095 = vadd.f32 %v5024, %v5094
        %5096 = vdwg.mxu0
        %5097 = vmatprep.subr.mxu0 %v935
        %5098 = vmatpush1.msra.mxu0 %v934
        %5099 = vmatprep.subr.mxu0 %v939
        %5100 = vmatpush1.msra.mxu0 %v938
        %5101 = vmatprep.subr.mxu0 %v943
        %5102 = vmatpush1.msra.mxu0 %v942
        %5103 = vmatprep.subr.mxu0 %v947
        %5104 = vmatpush1.msra.mxu0 %v946
        %5105 = vmatprep.subr.mxu0 %v951
        %5106 = vmatpush1.msra.mxu0 %v950
        %5107 = vmatprep.subr.mxu0 %v955
        %5108 = vmatpush1.msra.mxu0 %v954
        %5109 = vmatprep.subr.mxu0 %v959
        %5110 = vmatpush1.msra.mxu0 %v958
        %5111 = vmatprep.subr.mxu0 %v963
        %5112 = vmatpush1.msra.mxu0 %v962
        %5113 = vmatprep.subr.mxu0 %v967
        %5114 = vmatpush1.msra.mxu0 %v966
        %5115 = vmatprep.subr.mxu0 %v971
        %5116 = vmatpush1.msra.mxu0 %v970
        %5117 = vmatprep.subr.mxu0 %v975
        %5118 = vmatpush1.msra.mxu0 %v974
        %5119 = vmatprep.subr.mxu0 %v979
        %5120 = vmatpush1.msra.mxu0 %v978
        %5121 = vmatprep.subr.mxu0 %v983
        %5122 = vmatpush1.msra.mxu0 %v982
        %5123 = vmatprep.subr.mxu0 %v987
        %5124 = vmatpush1.msra.mxu0 %v986
        %5125 = vmatprep.subr.mxu0 %v991
        %5126 = vmatpush1.msra.mxu0 %v990
        %5127 = vmatprep.subr.mxu0 %v995
        %5128 = vmatpush1.msra.mxu0 %v994
        %5129 = vmatprep.subr.mxu0 %v999
        %5130 = vmatpush1.msra.mxu0 %v998
        %5131 = vmatprep.subr.mxu0 %v1003
        %5132 = vmatpush1.msra.mxu0 %v1002
        %5133 = vmatprep.subr.mxu0 %v1007
        %5134 = vmatpush1.msra.mxu0 %v1006
        %5135 = vmatprep.subr.mxu0 %v1011
        %5136 = vmatpush1.msra.mxu0 %v1010
        %5137 = vmatprep.subr.mxu0 %v1015
        %5138 = vmatpush1.msra.mxu0 %v1014
        %5139 = vmatprep.subr.mxu0 %v1019
        %5140 = vmatpush1.msra.mxu0 %v1018
        %5141 = vmatprep.subr.mxu0 %v1023
        %5142 = vmatpush1.msra.mxu0 %v1022
        %5143 = vmatprep.subr.mxu0 %v1027
        %5144 = vmatpush1.msra.mxu0 %v1026
        %5145 = vmatprep.subr.mxu0 %v1031
        %5146 = vmatpush1.msra.mxu0 %v1030
        %5147 = vmatprep.subr.mxu0 %v1035
        %5148 = vmatpush1.msra.mxu0 %v1034
        %5149 = vmatprep.subr.mxu0 %v1039
        %5150 = vmatpush1.msra.mxu0 %v1038
        %5151 = vmatprep.subr.mxu0 %v1043
        %5152 = vmatpush1.msra.mxu0 %v1042
        %5153 = vmatprep.subr.mxu0 %v1047
        %5154 = vmatpush1.msra.mxu0 %v1046
        %5155 = vmatprep.subr.mxu0 %v1051
        %5156 = vmatpush1.msra.mxu0 %v1050
        %5157 = vmatprep.subr.mxu0 %v1055
        %5158 = vmatpush1.msra.mxu0 %v1054
        %5159 = vmatprep.subr.mxu0 %v1059
        %5160 = vmatpush1.msra.mxu0 %v1058
        %5161 = vmatprep.mubr.f32.mxu0 %v4456
        %5162 = vmatmul.mubr.f32.gmra.mrb[0].mxu0 %v4454
        %v5163 = vpop.f32.mrb[0].mxu0
        %v5164 = vadd.f32 %v5093, %v5163
        %v5165 = vpop.f32.mrb[0].mxu0
        %v5166 = vadd.f32 %v5095, %v5165
        %5167 = vdwg.mxu0
        %5168 = vmatprep.subr.mxu0 %v1063
        %5169 = vmatpush1.msra.mxu0 %v1062
        %5170 = vmatprep.subr.mxu0 %v1067
        %5171 = vmatpush1.msra.mxu0 %v1066
        %5172 = vmatprep.subr.mxu0 %v1071
        %5173 = vmatpush1.msra.mxu0 %v1070
        %5174 = vmatprep.subr.mxu0 %v1075
        %5175 = vmatpush1.msra.mxu0 %v1074
        %5176 = vmatprep.subr.mxu0 %v1079
        %5177 = vmatpush1.msra.mxu0 %v1078
        %5178 = vmatprep.subr.mxu0 %v1083
        %5179 = vmatpush1.msra.mxu0 %v1082
        %5180 = vmatprep.subr.mxu0 %v1087
        %5181 = vmatpush1.msra.mxu0 %v1086
        %5182 = vmatprep.subr.mxu0 %v1091
        %5183 = vmatpush1.msra.mxu0 %v1090
        %5184 = vmatprep.subr.mxu0 %v1095
        %5185 = vmatpush1.msra.mxu0 %v1094
        %5186 = vmatprep.subr.mxu0 %v1099
        %5187 = vmatpush1.msra.mxu0 %v1098
        %5188 = vmatprep.subr.mxu0 %v1103
        %5189 = vmatpush1.msra.mxu0 %v1102
        %5190 = vmatprep.subr.mxu0 %v1107
        %5191 = vmatpush1.msra.mxu0 %v1106
        %5192 = vmatprep.subr.mxu0 %v1111
        %5193 = vmatpush1.msra.mxu0 %v1110
        %5194 = vmatprep.subr.mxu0 %v1115
        %5195 = vmatpush1.msra.mxu0 %v1114
        %5196 = vmatprep.subr.mxu0 %v1119
        %5197 = vmatpush1.msra.mxu0 %v1118
        %5198 = vmatprep.subr.mxu0 %v1123
        %5199 = vmatpush1.msra.mxu0 %v1122
        %5200 = vmatprep.subr.mxu0 %v1127
        %5201 = vmatpush1.msra.mxu0 %v1126
        %5202 = vmatprep.subr.mxu0 %v1131
        %5203 = vmatpush1.msra.mxu0 %v1130
        %5204 = vmatprep.subr.mxu0 %v1135
        %5205 = vmatpush1.msra.mxu0 %v1134
        %5206 = vmatprep.subr.mxu0 %v1139
        %5207 = vmatpush1.msra.mxu0 %v1138
        %5208 = vmatprep.subr.mxu0 %v1143
        %5209 = vmatpush1.msra.mxu0 %v1142
        %5210 = vmatprep.subr.mxu0 %v1147
        %5211 = vmatpush1.msra.mxu0 %v1146
        %5212 = vmatprep.subr.mxu0 %v1151
        %5213 = vmatpush1.msra.mxu0 %v1150
        %5214 = vmatprep.subr.mxu0 %v1155
        %5215 = vmatpush1.msra.mxu0 %v1154
        %5216 = vmatprep.subr.mxu0 %v1159
        %5217 = vmatpush1.msra.mxu0 %v1158
        %5218 = vmatprep.subr.mxu0 %v1163
        %5219 = vmatpush1.msra.mxu0 %v1162
        %5220 = vmatprep.subr.mxu0 %v1167
        %5221 = vmatpush1.msra.mxu0 %v1166
        %5222 = vmatprep.subr.mxu0 %v1171
        %5223 = vmatpush1.msra.mxu0 %v1170
        %5224 = vmatprep.subr.mxu0 %v1175
        %5225 = vmatpush1.msra.mxu0 %v1174
        %5226 = vmatprep.subr.mxu0 %v1179
        %5227 = vmatpush1.msra.mxu0 %v1178
        %5228 = vmatprep.subr.mxu0 %v1183
        %5229 = vmatpush1.msra.mxu0 %v1182
        %5230 = vmatprep.subr.mxu0 %v1187
        %5231 = vmatpush1.msra.mxu0 %v1186
        %5232 = vmatprep.mubr.f32.mxu0 %v4472
        %5233 = vmatmul.mubr.f32.gmra.mrb[0].mxu0 %v4464
        %v5234 = vpop.f32.mrb[0].mxu0
        %v5235 = vadd.f32 %v5164, %v5234
        %v5236 = vpop.f32.mrb[0].mxu0
        %v5237 = vadd.f32 %v5166, %v5236
        %5238 = vdwg.mxu0
        %5239 = vmatprep.subr.mxu0 %v1191
        %5240 = vmatpush1.msra.mxu0 %v1190
        %5241 = vmatprep.subr.mxu0 %v1195
        %5242 = vmatpush1.msra.mxu0 %v1194
        %5243 = vmatprep.subr.mxu0 %v1199
        %5244 = vmatpush1.msra.mxu0 %v1198
        %5245 = vmatprep.subr.mxu0 %v1203
        %5246 = vmatpush1.msra.mxu0 %v1202
        %5247 = vmatprep.subr.mxu0 %v1207
        %5248 = vmatpush1.msra.mxu0 %v1206
        %5249 = vmatprep.subr.mxu0 %v1211
        %5250 = vmatpush1.msra.mxu0 %v1210
        %5251 = vmatprep.subr.mxu0 %v1215
        %5252 = vmatpush1.msra.mxu0 %v1214
        %5253 = vmatprep.subr.mxu0 %v1219
        %5254 = vmatpush1.msra.mxu0 %v1218
        %5255 = vmatprep.subr.mxu0 %v1223
        %5256 = vmatpush1.msra.mxu0 %v1222
        %5257 = vmatprep.subr.mxu0 %v1227
        %5258 = vmatpush1.msra.mxu0 %v1226
        %5259 = vmatprep.subr.mxu0 %v1231
        %5260 = vmatpush1.msra.mxu0 %v1230
        %5261 = vmatprep.subr.mxu0 %v1235
        %5262 = vmatpush1.msra.mxu0 %v1234
        %5263 = vmatprep.subr.mxu0 %v1239
        %5264 = vmatpush1.msra.mxu0 %v1238
        %5265 = vmatprep.subr.mxu0 %v1243
        %5266 = vmatpush1.msra.mxu0 %v1242
        %5267 = vmatprep.subr.mxu0 %v1247
        %5268 = vmatpush1.msra.mxu0 %v1246
        %5269 = vmatprep.subr.mxu0 %v1251
        %5270 = vmatpush1.msra.mxu0 %v1250
        %5271 = vmatprep.subr.mxu0 %v1255
        %5272 = vmatpush1.msra.mxu0 %v1254
        %5273 = vmatprep.subr.mxu0 %v1259
        %5274 = vmatpush1.msra.mxu0 %v1258
        %5275 = vmatprep.subr.mxu0 %v1263
        %5276 = vmatpush1.msra.mxu0 %v1262
        %5277 = vmatprep.subr.mxu0 %v1267
        %5278 = vmatpush1.msra.mxu0 %v1266
        %5279 = vmatprep.subr.mxu0 %v1271
        %5280 = vmatpush1.msra.mxu0 %v1270
        %5281 = vmatprep.subr.mxu0 %v1275
        %5282 = vmatpush1.msra.mxu0 %v1274
        %5283 = vmatprep.subr.mxu0 %v1279
        %5284 = vmatpush1.msra.mxu0 %v1278
        %5285 = vmatprep.subr.mxu0 %v1283
        %5286 = vmatpush1.msra.mxu0 %v1282
        %5287 = vmatprep.subr.mxu0 %v1287
        %5288 = vmatpush1.msra.mxu0 %v1286
        %5289 = vmatprep.subr.mxu0 %v1291
        %5290 = vmatpush1.msra.mxu0 %v1290
        %5291 = vmatprep.subr.mxu0 %v1295
        %5292 = vmatpush1.msra.mxu0 %v1294
        %5293 = vmatprep.subr.mxu0 %v1299
        %5294 = vmatpush1.msra.mxu0 %v1298
        %5295 = vmatprep.subr.mxu0 %v1303
        %5296 = vmatpush1.msra.mxu0 %v1302
        %5297 = vmatprep.subr.mxu0 %v1307
        %5298 = vmatpush1.msra.mxu0 %v1306
        %5299 = vmatprep.subr.mxu0 %v1311
        %5300 = vmatpush1.msra.mxu0 %v1310
        %5301 = vmatprep.subr.mxu0 %v1315
        %5302 = vmatpush1.msra.mxu0 %v1314
        %5303 = vmatprep.mubr.f32.mxu0 %v4473
        %5304 = vmatmul.mubr.f32.gmra.mrb[0].mxu0 %v4471
        %v5305 = vpop.f32.mrb[0].mxu0
        %v5306 = vadd.f32 %v5235, %v5305
        %v5307 = vpop.f32.mrb[0].mxu0
        %v5308 = vadd.f32 %v5237, %v5307
        %5309 = vdwg.mxu0
        %5310 = vmatprep.subr.mxu0 %v1319
        %5311 = vmatpush1.msra.mxu0 %v1318
        %5312 = vmatprep.subr.mxu0 %v1323
        %5313 = vmatpush1.msra.mxu0 %v1322
        %5314 = vmatprep.subr.mxu0 %v1327
        %5315 = vmatpush1.msra.mxu0 %v1326
        %5316 = vmatprep.subr.mxu0 %v1331
        %5317 = vmatpush1.msra.mxu0 %v1330
        %5318 = vmatprep.subr.mxu0 %v1335
        %5319 = vmatpush1.msra.mxu0 %v1334
        %5320 = vmatprep.subr.mxu0 %v1339
        %5321 = vmatpush1.msra.mxu0 %v1338
        %5322 = vmatprep.subr.mxu0 %v1343
        %5323 = vmatpush1.msra.mxu0 %v1342
        %5324 = vmatprep.subr.mxu0 %v1347
        %5325 = vmatpush1.msra.mxu0 %v1346
        %5326 = vmatprep.subr.mxu0 %v1351
        %5327 = vmatpush1.msra.mxu0 %v1350
        %5328 = vmatprep.subr.mxu0 %v1355
        %5329 = vmatpush1.msra.mxu0 %v1354
        %5330 = vmatprep.subr.mxu0 %v1359
        %5331 = vmatpush1.msra.mxu0 %v1358
        %5332 = vmatprep.subr.mxu0 %v1363
        %5333 = vmatpush1.msra.mxu0 %v1362
        %5334 = vmatprep.subr.mxu0 %v1367
        %5335 = vmatpush1.msra.mxu0 %v1366
        %5336 = vmatprep.subr.mxu0 %v1371
        %5337 = vmatpush1.msra.mxu0 %v1370
        %5338 = vmatprep.subr.mxu0 %v1375
        %5339 = vmatpush1.msra.mxu0 %v1374
        %5340 = vmatprep.subr.mxu0 %v1379
        %5341 = vmatpush1.msra.mxu0 %v1378
        %5342 = vmatprep.subr.mxu0 %v1383
        %5343 = vmatpush1.msra.mxu0 %v1382
        %5344 = vmatprep.subr.mxu0 %v1387
        %5345 = vmatpush1.msra.mxu0 %v1386
        %5346 = vmatprep.subr.mxu0 %v1391
        %5347 = vmatpush1.msra.mxu0 %v1390
        %5348 = vmatprep.subr.mxu0 %v1395
        %5349 = vmatpush1.msra.mxu0 %v1394
        %5350 = vmatprep.subr.mxu0 %v1399
        %5351 = vmatpush1.msra.mxu0 %v1398
        %5352 = vmatprep.subr.mxu0 %v1403
        %5353 = vmatpush1.msra.mxu0 %v1402
        %5354 = vmatprep.subr.mxu0 %v1407
        %5355 = vmatpush1.msra.mxu0 %v1406
        %5356 = vmatprep.subr.mxu0 %v1411
        %5357 = vmatpush1.msra.mxu0 %v1410
        %5358 = vmatprep.subr.mxu0 %v1415
        %5359 = vmatpush1.msra.mxu0 %v1414
        %5360 = vmatprep.subr.mxu0 %v1419
        %5361 = vmatpush1.msra.mxu0 %v1418
        %5362 = vmatprep.subr.mxu0 %v1423
        %5363 = vmatpush1.msra.mxu0 %v1422
        %5364 = vmatprep.subr.mxu0 %v1427
        %5365 = vmatpush1.msra.mxu0 %v1426
        %5366 = vmatprep.subr.mxu0 %v1431
        %5367 = vmatpush1.msra.mxu0 %v1430
        %5368 = vmatprep.subr.mxu0 %v1435
        %5369 = vmatpush1.msra.mxu0 %v1434
        %5370 = vmatprep.subr.mxu0 %v1439
        %5371 = vmatpush1.msra.mxu0 %v1438
        %5372 = vmatprep.subr.mxu0 %v1443
        %5373 = vmatpush1.msra.mxu0 %v1442
        %5374 = vmatprep.mubr.f32.mxu0 %v4489
        %5375 = vmatmul.mubr.f32.gmra.mrb[0].mxu0 %v4481
        %v5376 = vpop.f32.mrb[0].mxu0
        %v5377 = vadd.f32 %v5306, %v5376
        %v5378 = vpop.f32.mrb[0].mxu0
        %v5379 = vadd.f32 %v5308, %v5378
        %5380 = vdwg.mxu0
        %5381 = vmatprep.subr.mxu0 %v1447
        %5382 = vmatpush1.msra.mxu0 %v1446
        %5383 = vmatprep.subr.mxu0 %v1451
        %5384 = vmatpush1.msra.mxu0 %v1450
        %5385 = vmatprep.subr.mxu0 %v1455
        %5386 = vmatpush1.msra.mxu0 %v1454
        %5387 = vmatprep.subr.mxu0 %v1459
        %5388 = vmatpush1.msra.mxu0 %v1458
        %5389 = vmatprep.subr.mxu0 %v1463
        %5390 = vmatpush1.msra.mxu0 %v1462
        %5391 = vmatprep.subr.mxu0 %v1467
        %5392 = vmatpush1.msra.mxu0 %v1466
        %5393 = vmatprep.subr.mxu0 %v1471
        %5394 = vmatpush1.msra.mxu0 %v1470
        %5395 = vmatprep.subr.mxu0 %v1475
        %5396 = vmatpush1.msra.mxu0 %v1474
        %5397 = vmatprep.subr.mxu0 %v1479
        %5398 = vmatpush1.msra.mxu0 %v1478
        %5399 = vmatprep.subr.mxu0 %v1483
        %5400 = vmatpush1.msra.mxu0 %v1482
        %5401 = vmatprep.subr.mxu0 %v1487
        %5402 = vmatpush1.msra.mxu0 %v1486
        %5403 = vmatprep.subr.mxu0 %v1491
        %5404 = vmatpush1.msra.mxu0 %v1490
        %5405 = vmatprep.subr.mxu0 %v1495
        %5406 = vmatpush1.msra.mxu0 %v1494
        %5407 = vmatprep.subr.mxu0 %v1499
        %5408 = vmatpush1.msra.mxu0 %v1498
        %5409 = vmatprep.subr.mxu0 %v1503
        %5410 = vmatpush1.msra.mxu0 %v1502
        %5411 = vmatprep.subr.mxu0 %v1507
        %5412 = vmatpush1.msra.mxu0 %v1506
        %5413 = vmatprep.subr.mxu0 %v1511
        %5414 = vmatpush1.msra.mxu0 %v1510
        %5415 = vmatprep.subr.mxu0 %v1515
        %5416 = vmatpush1.msra.mxu0 %v1514
        %5417 = vmatprep.subr.mxu0 %v1519
        %5418 = vmatpush1.msra.mxu0 %v1518
        %5419 = vmatprep.subr.mxu0 %v1523
        %5420 = vmatpush1.msra.mxu0 %v1522
        %5421 = vmatprep.subr.mxu0 %v1527
        %5422 = vmatpush1.msra.mxu0 %v1526
        %5423 = vmatprep.subr.mxu0 %v1531
        %5424 = vmatpush1.msra.mxu0 %v1530
        %5425 = vmatprep.subr.mxu0 %v1535
        %5426 = vmatpush1.msra.mxu0 %v1534
        %5427 = vmatprep.subr.mxu0 %v1539
        %5428 = vmatpush1.msra.mxu0 %v1538
        %5429 = vmatprep.subr.mxu0 %v1543
        %5430 = vmatpush1.msra.mxu0 %v1542
        %5431 = vmatprep.subr.mxu0 %v1547
        %5432 = vmatpush1.msra.mxu0 %v1546
        %5433 = vmatprep.subr.mxu0 %v1551
        %5434 = vmatpush1.msra.mxu0 %v1550
        %5435 = vmatprep.subr.mxu0 %v1555
        %5436 = vmatpush1.msra.mxu0 %v1554
        %5437 = vmatprep.subr.mxu0 %v1559
        %5438 = vmatpush1.msra.mxu0 %v1558
        %5439 = vmatprep.subr.mxu0 %v1563
        %5440 = vmatpush1.msra.mxu0 %v1562
        %5441 = vmatprep.subr.mxu0 %v1567
        %5442 = vmatpush1.msra.mxu0 %v1566
        %5443 = vmatprep.subr.mxu0 %v1571
        %5444 = vmatpush1.msra.mxu0 %v1570
        %5445 = vmatprep.mubr.f32.mxu0 %v4490
        %5446 = vmatmul.mubr.f32.gmra.mrb[0].mxu0 %v4488
        %v5447 = vpop.f32.mrb[0].mxu0
        %v5448 = vadd.f32 %v5377, %v5447
        %v5449 = vpop.f32.mrb[0].mxu0
        %v5450 = vadd.f32 %v5379, %v5449
        %5451 = vdwg.mxu0
        %5452 = vmatprep.subr.mxu0 %v1575
        %5453 = vmatpush1.msra.mxu0 %v1574
        %5454 = vmatprep.subr.mxu0 %v1579
        %5455 = vmatpush1.msra.mxu0 %v1578
        %5456 = vmatprep.subr.mxu0 %v1583
        %5457 = vmatpush1.msra.mxu0 %v1582
        %5458 = vmatprep.subr.mxu0 %v1587
        %5459 = vmatpush1.msra.mxu0 %v1586
        %5460 = vmatprep.subr.mxu0 %v1591
        %5461 = vmatpush1.msra.mxu0 %v1590
        %5462 = vmatprep.subr.mxu0 %v1595
        %5463 = vmatpush1.msra.mxu0 %v1594
        %5464 = vmatprep.subr.mxu0 %v1599
        %5465 = vmatpush1.msra.mxu0 %v1598
        %5466 = vmatprep.subr.mxu0 %v1603
        %5467 = vmatpush1.msra.mxu0 %v1602
        %5468 = vmatprep.subr.mxu0 %v1607
        %5469 = vmatpush1.msra.mxu0 %v1606
        %5470 = vmatprep.subr.mxu0 %v1611
        %5471 = vmatpush1.msra.mxu0 %v1610
        %5472 = vmatprep.subr.mxu0 %v1615
        %5473 = vmatpush1.msra.mxu0 %v1614
        %5474 = vmatprep.subr.mxu0 %v1619
        %5475 = vmatpush1.msra.mxu0 %v1618
        %5476 = vmatprep.subr.mxu0 %v1623
        %5477 = vmatpush1.msra.mxu0 %v1622
        %5478 = vmatprep.subr.mxu0 %v1627
        %5479 = vmatpush1.msra.mxu0 %v1626
        %5480 = vmatprep.subr.mxu0 %v1631
        %5481 = vmatpush1.msra.mxu0 %v1630
        %5482 = vmatprep.subr.mxu0 %v1635
        %5483 = vmatpush1.msra.mxu0 %v1634
        %5484 = vmatprep.subr.mxu0 %v1639
        %5485 = vmatpush1.msra.mxu0 %v1638
        %5486 = vmatprep.subr.mxu0 %v1643
        %5487 = vmatpush1.msra.mxu0 %v1642
        %5488 = vmatprep.subr.mxu0 %v1647
        %5489 = vmatpush1.msra.mxu0 %v1646
        %5490 = vmatprep.subr.mxu0 %v1651
        %5491 = vmatpush1.msra.mxu0 %v1650
        %5492 = vmatprep.subr.mxu0 %v1655
        %5493 = vmatpush1.msra.mxu0 %v1654
        %5494 = vmatprep.subr.mxu0 %v1659
        %5495 = vmatpush1.msra.mxu0 %v1658
        %5496 = vmatprep.subr.mxu0 %v1663
        %5497 = vmatpush1.msra.mxu0 %v1662
        %5498 = vmatprep.subr.mxu0 %v1667
        %5499 = vmatpush1.msra.mxu0 %v1666
        %5500 = vmatprep.subr.mxu0 %v1671
        %5501 = vmatpush1.msra.mxu0 %v1670
        %5502 = vmatprep.subr.mxu0 %v1675
        %5503 = vmatpush1.msra.mxu0 %v1674
        %5504 = vmatprep.subr.mxu0 %v1679
        %5505 = vmatpush1.msra.mxu0 %v1678
        %5506 = vmatprep.subr.mxu0 %v1683
        %5507 = vmatpush1.msra.mxu0 %v1682
        %5508 = vmatprep.subr.mxu0 %v1687
        %5509 = vmatpush1.msra.mxu0 %v1686
        %5510 = vmatprep.subr.mxu0 %v1691
        %5511 = vmatpush1.msra.mxu0 %v1690
        %5512 = vmatprep.subr.mxu0 %v1695
        %5513 = vmatpush1.msra.mxu0 %v1694
        %5514 = vmatprep.subr.mxu0 %v1699
        %5515 = vmatpush1.msra.mxu0 %v1698
        %5516 = vmatprep.mubr.f32.mxu0 %v4506
        %5517 = vmatmul.mubr.f32.gmra.mrb[0].mxu0 %v4498
        %v5518 = vpop.f32.mrb[0].mxu0
        %v5519 = vadd.f32 %v5448, %v5518
        %v5520 = vpop.f32.mrb[0].mxu0
        %v5521 = vadd.f32 %v5450, %v5520
        %5522 = vdwg.mxu0
        %5523 = vmatprep.subr.mxu0 %v1703
        %5524 = vmatpush1.msra.mxu0 %v1702
        %5525 = vmatprep.subr.mxu0 %v1707
        %5526 = vmatpush1.msra.mxu0 %v1706
        %5527 = vmatprep.subr.mxu0 %v1711
        %5528 = vmatpush1.msra.mxu0 %v1710
        %5529 = vmatprep.subr.mxu0 %v1715
        %5530 = vmatpush1.msra.mxu0 %v1714
        %5531 = vmatprep.subr.mxu0 %v1719
        %5532 = vmatpush1.msra.mxu0 %v1718
        %5533 = vmatprep.subr.mxu0 %v1723
        %5534 = vmatpush1.msra.mxu0 %v1722
        %5535 = vmatprep.subr.mxu0 %v1727
        %5536 = vmatpush1.msra.mxu0 %v1726
        %5537 = vmatprep.subr.mxu0 %v1731
        %5538 = vmatpush1.msra.mxu0 %v1730
        %5539 = vmatprep.subr.mxu0 %v1735
        %5540 = vmatpush1.msra.mxu0 %v1734
        %5541 = vmatprep.subr.mxu0 %v1739
        %5542 = vmatpush1.msra.mxu0 %v1738
        %5543 = vmatprep.subr.mxu0 %v1743
        %5544 = vmatpush1.msra.mxu0 %v1742
        %5545 = vmatprep.subr.mxu0 %v1747
        %5546 = vmatpush1.msra.mxu0 %v1746
        %5547 = vmatprep.subr.mxu0 %v1751
        %5548 = vmatpush1.msra.mxu0 %v1750
        %5549 = vmatprep.subr.mxu0 %v1755
        %5550 = vmatpush1.msra.mxu0 %v1754
        %5551 = vmatprep.subr.mxu0 %v1759
        %5552 = vmatpush1.msra.mxu0 %v1758
        %5553 = vmatprep.subr.mxu0 %v1763
        %5554 = vmatpush1.msra.mxu0 %v1762
        %5555 = vmatprep.subr.mxu0 %v1767
        %5556 = vmatpush1.msra.mxu0 %v1766
        %5557 = vmatprep.subr.mxu0 %v1771
        %5558 = vmatpush1.msra.mxu0 %v1770
        %5559 = vmatprep.subr.mxu0 %v1775
        %5560 = vmatpush1.msra.mxu0 %v1774
        %5561 = vmatprep.subr.mxu0 %v1779
        %5562 = vmatpush1.msra.mxu0 %v1778
        %5563 = vmatprep.subr.mxu0 %v1783
        %5564 = vmatpush1.msra.mxu0 %v1782
        %5565 = vmatprep.subr.mxu0 %v1787
        %5566 = vmatpush1.msra.mxu0 %v1786
        %5567 = vmatprep.subr.mxu0 %v1791
        %5568 = vmatpush1.msra.mxu0 %v1790
        %5569 = vmatprep.subr.mxu0 %v1795
        %5570 = vmatpush1.msra.mxu0 %v1794
        %5571 = vmatprep.subr.mxu0 %v1799
        %5572 = vmatpush1.msra.mxu0 %v1798
        %5573 = vmatprep.subr.mxu0 %v1803
        %5574 = vmatpush1.msra.mxu0 %v1802
        %5575 = vmatprep.subr.mxu0 %v1807
        %5576 = vmatpush1.msra.mxu0 %v1806
        %5577 = vmatprep.subr.mxu0 %v1811
        %5578 = vmatpush1.msra.mxu0 %v1810
        %5579 = vmatprep.subr.mxu0 %v1815
        %5580 = vmatpush1.msra.mxu0 %v1814
        %5581 = vmatprep.subr.mxu0 %v1819
        %5582 = vmatpush1.msra.mxu0 %v1818
        %5583 = vmatprep.subr.mxu0 %v1823
        %5584 = vmatpush1.msra.mxu0 %v1822
        %5585 = vmatprep.subr.mxu0 %v1827
        %5586 = vmatpush1.msra.mxu0 %v1826
        %5587 = vmatprep.mubr.f32.mxu0 %v4507
        %5588 = vmatmul.mubr.f32.gmra.mrb[0].mxu0 %v4505
        %v5589 = vpop.f32.mrb[0].mxu0
        %v5590 = vadd.f32 %v5519, %v5589
        %v5591 = vpop.f32.mrb[0].mxu0
        %v5592 = vadd.f32 %v5521, %v5591
        %5593 = vdwg.mxu0
        %5594 = vmatprep.subr.mxu0 %v1831
        %5595 = vmatpush1.msra.mxu0 %v1830
        %5596 = vmatprep.subr.mxu0 %v1835
        %5597 = vmatpush1.msra.mxu0 %v1834
        %5598 = vmatprep.subr.mxu0 %v1839
        %5599 = vmatpush1.msra.mxu0 %v1838
        %5600 = vmatprep.subr.mxu0 %v1843
        %5601 = vmatpush1.msra.mxu0 %v1842
        %5602 = vmatprep.subr.mxu0 %v1847
        %5603 = vmatpush1.msra.mxu0 %v1846
        %5604 = vmatprep.subr.mxu0 %v1851
        %5605 = vmatpush1.msra.mxu0 %v1850
        %5606 = vmatprep.subr.mxu0 %v1855
        %5607 = vmatpush1.msra.mxu0 %v1854
        %5608 = vmatprep.subr.mxu0 %v1859
        %5609 = vmatpush1.msra.mxu0 %v1858
        %5610 = vmatprep.subr.mxu0 %v1863
        %5611 = vmatpush1.msra.mxu0 %v1862
        %5612 = vmatprep.subr.mxu0 %v1867
        %5613 = vmatpush1.msra.mxu0 %v1866
        %5614 = vmatprep.subr.mxu0 %v1871
        %5615 = vmatpush1.msra.mxu0 %v1870
        %5616 = vmatprep.subr.mxu0 %v1875
        %5617 = vmatpush1.msra.mxu0 %v1874
        %5618 = vmatprep.subr.mxu0 %v1879
        %5619 = vmatpush1.msra.mxu0 %v1878
        %5620 = vmatprep.subr.mxu0 %v1883
        %5621 = vmatpush1.msra.mxu0 %v1882
        %5622 = vmatprep.subr.mxu0 %v1887
        %5623 = vmatpush1.msra.mxu0 %v1886
        %5624 = vmatprep.subr.mxu0 %v1891
        %5625 = vmatpush1.msra.mxu0 %v1890
        %5626 = vmatprep.subr.mxu0 %v1895
        %5627 = vmatpush1.msra.mxu0 %v1894
        %5628 = vmatprep.subr.mxu0 %v1899
        %5629 = vmatpush1.msra.mxu0 %v1898
        %5630 = vmatprep.subr.mxu0 %v1903
        %5631 = vmatpush1.msra.mxu0 %v1902
        %5632 = vmatprep.subr.mxu0 %v1907
        %5633 = vmatpush1.msra.mxu0 %v1906
        %5634 = vmatprep.subr.mxu0 %v1911
        %5635 = vmatpush1.msra.mxu0 %v1910
        %5636 = vmatprep.subr.mxu0 %v1915
        %5637 = vmatpush1.msra.mxu0 %v1914
        %5638 = vmatprep.subr.mxu0 %v1919
        %5639 = vmatpush1.msra.mxu0 %v1918
        %5640 = vmatprep.subr.mxu0 %v1923
        %5641 = vmatpush1.msra.mxu0 %v1922
        %5642 = vmatprep.subr.mxu0 %v1927
        %5643 = vmatpush1.msra.mxu0 %v1926
        %5644 = vmatprep.subr.mxu0 %v1931
        %5645 = vmatpush1.msra.mxu0 %v1930
        %5646 = vmatprep.subr.mxu0 %v1935
        %5647 = vmatpush1.msra.mxu0 %v1934
        %5648 = vmatprep.subr.mxu0 %v1939
        %5649 = vmatpush1.msra.mxu0 %v1938
        %5650 = vmatprep.subr.mxu0 %v1943
        %5651 = vmatpush1.msra.mxu0 %v1942
        %5652 = vmatprep.subr.mxu0 %v1947
        %5653 = vmatpush1.msra.mxu0 %v1946
        %5654 = vmatprep.subr.mxu0 %v1951
        %5655 = vmatpush1.msra.mxu0 %v1950
        %5656 = vmatprep.subr.mxu0 %v1955
        %5657 = vmatpush1.msra.mxu0 %v1954
        %5658 = vmatprep.mubr.f32.mxu0 %v4523
        %5659 = vmatmul.mubr.f32.gmra.mrb[0].mxu0 %v4515
        %v5660 = vpop.f32.mrb[0].mxu0
        %v5661 = vadd.f32 %v5590, %v5660
        %v5662 = vpop.f32.mrb[0].mxu0
        %v5663 = vadd.f32 %v5592, %v5662
        %5664 = vdwg.mxu0
        %5665 = vmatprep.subr.mxu0 %v1959
        %5666 = vmatpush1.msra.mxu0 %v1958
        %5667 = vmatprep.subr.mxu0 %v1963
        %5668 = vmatpush1.msra.mxu0 %v1962
        %5669 = vmatprep.subr.mxu0 %v1967
        %5670 = vmatpush1.msra.mxu0 %v1966
        %5671 = vmatprep.subr.mxu0 %v1971
        %5672 = vmatpush1.msra.mxu0 %v1970
        %5673 = vmatprep.subr.mxu0 %v1975
        %5674 = vmatpush1.msra.mxu0 %v1974
        %5675 = vmatprep.subr.mxu0 %v1979
        %5676 = vmatpush1.msra.mxu0 %v1978
        %5677 = vmatprep.subr.mxu0 %v1983
        %5678 = vmatpush1.msra.mxu0 %v1982
        %5679 = vmatprep.subr.mxu0 %v1987
        %5680 = vmatpush1.msra.mxu0 %v1986
        %5681 = vmatprep.subr.mxu0 %v1991
        %5682 = vmatpush1.msra.mxu0 %v1990
        %5683 = vmatprep.subr.mxu0 %v1995
        %5684 = vmatpush1.msra.mxu0 %v1994
        %5685 = vmatprep.subr.mxu0 %v1999
        %5686 = vmatpush1.msra.mxu0 %v1998
        %5687 = vmatprep.subr.mxu0 %v2003
        %5688 = vmatpush1.msra.mxu0 %v2002
        %5689 = vmatprep.subr.mxu0 %v2007
        %5690 = vmatpush1.msra.mxu0 %v2006
        %5691 = vmatprep.subr.mxu0 %v2011
        %5692 = vmatpush1.msra.mxu0 %v2010
        %5693 = vmatprep.subr.mxu0 %v2015
        %5694 = vmatpush1.msra.mxu0 %v2014
        %5695 = vmatprep.subr.mxu0 %v2019
        %5696 = vmatpush1.msra.mxu0 %v2018
        %5697 = vmatprep.subr.mxu0 %v2023
        %5698 = vmatpush1.msra.mxu0 %v2022
        %5699 = vmatprep.subr.mxu0 %v2027
        %5700 = vmatpush1.msra.mxu0 %v2026
        %5701 = vmatprep.subr.mxu0 %v2031
        %5702 = vmatpush1.msra.mxu0 %v2030
        %5703 = vmatprep.subr.mxu0 %v2035
        %5704 = vmatpush1.msra.mxu0 %v2034
        %5705 = vmatprep.subr.mxu0 %v2039
        %5706 = vmatpush1.msra.mxu0 %v2038
        %5707 = vmatprep.subr.mxu0 %v2043
        %5708 = vmatpush1.msra.mxu0 %v2042
        %5709 = vmatprep.subr.mxu0 %v2047
        %5710 = vmatpush1.msra.mxu0 %v2046
        %5711 = vmatprep.subr.mxu0 %v2051
        %5712 = vmatpush1.msra.mxu0 %v2050
        %5713 = vmatprep.subr.mxu0 %v2055
        %5714 = vmatpush1.msra.mxu0 %v2054
        %5715 = vmatprep.subr.mxu0 %v2059
        %5716 = vmatpush1.msra.mxu0 %v2058
        %5717 = vmatprep.subr.mxu0 %v2063
        %5718 = vmatpush1.msra.mxu0 %v2062
        %5719 = vmatprep.subr.mxu0 %v2067
        %5720 = vmatpush1.msra.mxu0 %v2066
        %5721 = vmatprep.subr.mxu0 %v2071
        %5722 = vmatpush1.msra.mxu0 %v2070
        %5723 = vmatprep.subr.mxu0 %v2075
        %5724 = vmatpush1.msra.mxu0 %v2074
        %5725 = vmatprep.subr.mxu0 %v2079
        %5726 = vmatpush1.msra.mxu0 %v2078
        %5727 = vmatprep.subr.mxu0 %v2083
        %5728 = vmatpush1.msra.mxu0 %v2082
        %5729 = vmatprep.mubr.f32.mxu0 %v4524
        %5730 = vmatmul.mubr.f32.gmra.mrb[0].mxu0 %v4522
        %v5731 = vpop.f32.mrb[0].mxu0
        %v5732 = vadd.f32 %v5661, %v5731
        %v5733 = vpop.f32.mrb[0].mxu0
        %v5734 = vadd.f32 %v5663, %v5733
        %5735 = vdwg.mxu0
        %5736 = vmatprep.subr.mxu0 %v2087
        %5737 = vmatpush1.msra.mxu0 %v2086
        %5738 = vmatprep.subr.mxu0 %v2091
        %5739 = vmatpush1.msra.mxu0 %v2090
        %5740 = vmatprep.subr.mxu0 %v2095
        %5741 = vmatpush1.msra.mxu0 %v2094
        %5742 = vmatprep.subr.mxu0 %v2099
        %5743 = vmatpush1.msra.mxu0 %v2098
        %5744 = vmatprep.subr.mxu0 %v2103
        %5745 = vmatpush1.msra.mxu0 %v2102
        %5746 = vmatprep.subr.mxu0 %v2107
        %5747 = vmatpush1.msra.mxu0 %v2106
        %5748 = vmatprep.subr.mxu0 %v2111
        %5749 = vmatpush1.msra.mxu0 %v2110
        %5750 = vmatprep.subr.mxu0 %v2115
        %5751 = vmatpush1.msra.mxu0 %v2114
        %5752 = vmatprep.subr.mxu0 %v2119
        %5753 = vmatpush1.msra.mxu0 %v2118
        %5754 = vmatprep.subr.mxu0 %v2123
        %5755 = vmatpush1.msra.mxu0 %v2122
        %5756 = vmatprep.subr.mxu0 %v2127
        %5757 = vmatpush1.msra.mxu0 %v2126
        %5758 = vmatprep.subr.mxu0 %v2131
        %5759 = vmatpush1.msra.mxu0 %v2130
        %5760 = vmatprep.subr.mxu0 %v2135
        %5761 = vmatpush1.msra.mxu0 %v2134
        %5762 = vmatprep.subr.mxu0 %v2139
        %5763 = vmatpush1.msra.mxu0 %v2138
        %5764 = vmatprep.subr.mxu0 %v2143
        %5765 = vmatpush1.msra.mxu0 %v2142
        %5766 = vmatprep.subr.mxu0 %v2147
        %5767 = vmatpush1.msra.mxu0 %v2146
        %5768 = vmatprep.subr.mxu0 %v2151
        %5769 = vmatpush1.msra.mxu0 %v2150
        %5770 = vmatprep.subr.mxu0 %v2155
        %5771 = vmatpush1.msra.mxu0 %v2154
        %5772 = vmatprep.subr.mxu0 %v2159
        %5773 = vmatpush1.msra.mxu0 %v2158
        %5774 = vmatprep.subr.mxu0 %v2163
        %5775 = vmatpush1.msra.mxu0 %v2162
        %5776 = vmatprep.subr.mxu0 %v2167
        %5777 = vmatpush1.msra.mxu0 %v2166
        %5778 = vmatprep.subr.mxu0 %v2171
        %5779 = vmatpush1.msra.mxu0 %v2170
        %5780 = vmatprep.subr.mxu0 %v2175
        %5781 = vmatpush1.msra.mxu0 %v2174
        %5782 = vmatprep.subr.mxu0 %v2179
        %5783 = vmatpush1.msra.mxu0 %v2178
        %5784 = vmatprep.subr.mxu0 %v2183
        %5785 = vmatpush1.msra.mxu0 %v2182
        %5786 = vmatprep.subr.mxu0 %v2187
        %5787 = vmatpush1.msra.mxu0 %v2186
        %5788 = vmatprep.subr.mxu0 %v2191
        %5789 = vmatpush1.msra.mxu0 %v2190
        %5790 = vmatprep.subr.mxu0 %v2195
        %5791 = vmatpush1.msra.mxu0 %v2194
        %5792 = vmatprep.subr.mxu0 %v2199
        %5793 = vmatpush1.msra.mxu0 %v2198
        %5794 = vmatprep.subr.mxu0 %v2203
        %5795 = vmatpush1.msra.mxu0 %v2202
        %5796 = vmatprep.subr.mxu0 %v2207
        %5797 = vmatpush1.msra.mxu0 %v2206
        %5798 = vmatprep.subr.mxu0 %v2211
        %5799 = vmatpush1.msra.mxu0 %v2210
        %5800 = vmatprep.mubr.f32.mxu0 %v4540
        %5801 = vmatmul.mubr.f32.gmra.mrb[0].mxu0 %v4532
        %v5802 = vpop.f32.mrb[0].mxu0
        %v5803 = vadd.f32 %v5732, %v5802
        %v5804 = vpop.f32.mrb[0].mxu0
        %v5805 = vadd.f32 %v5734, %v5804
        %5806 = vdwg.mxu0
        %5807 = vmatprep.subr.mxu0 %v2215
        %5808 = vmatpush1.msra.mxu0 %v2214
        %5809 = vmatprep.subr.mxu0 %v2219
        %5810 = vmatpush1.msra.mxu0 %v2218
        %5811 = vmatprep.subr.mxu0 %v2223
        %5812 = vmatpush1.msra.mxu0 %v2222
        %5813 = vmatprep.subr.mxu0 %v2227
        %5814 = vmatpush1.msra.mxu0 %v2226
        %5815 = vmatprep.subr.mxu0 %v2231
        %5816 = vmatpush1.msra.mxu0 %v2230
        %5817 = vmatprep.subr.mxu0 %v2235
        %5818 = vmatpush1.msra.mxu0 %v2234
        %5819 = vmatprep.subr.mxu0 %v2239
        %5820 = vmatpush1.msra.mxu0 %v2238
        %5821 = vmatprep.subr.mxu0 %v2243
        %5822 = vmatpush1.msra.mxu0 %v2242
        %5823 = vmatprep.subr.mxu0 %v2247
        %5824 = vmatpush1.msra.mxu0 %v2246
        %5825 = vmatprep.subr.mxu0 %v2251
        %5826 = vmatpush1.msra.mxu0 %v2250
        %5827 = vmatprep.subr.mxu0 %v2255
        %5828 = vmatpush1.msra.mxu0 %v2254
        %5829 = vmatprep.subr.mxu0 %v2259
        %5830 = vmatpush1.msra.mxu0 %v2258
        %5831 = vmatprep.subr.mxu0 %v2263
        %5832 = vmatpush1.msra.mxu0 %v2262
        %5833 = vmatprep.subr.mxu0 %v2267
        %5834 = vmatpush1.msra.mxu0 %v2266
        %5835 = vmatprep.subr.mxu0 %v2271
        %5836 = vmatpush1.msra.mxu0 %v2270
        %5837 = vmatprep.subr.mxu0 %v2275
        %5838 = vmatpush1.msra.mxu0 %v2274
        %5839 = vmatprep.subr.mxu0 %v2279
        %5840 = vmatpush1.msra.mxu0 %v2278
        %5841 = vmatprep.subr.mxu0 %v2283
        %5842 = vmatpush1.msra.mxu0 %v2282
        %5843 = vmatprep.subr.mxu0 %v2287
        %5844 = vmatpush1.msra.mxu0 %v2286
        %5845 = vmatprep.subr.mxu0 %v2291
        %5846 = vmatpush1.msra.mxu0 %v2290
        %5847 = vmatprep.subr.mxu0 %v2295
        %5848 = vmatpush1.msra.mxu0 %v2294
        %5849 = vmatprep.subr.mxu0 %v2299
        %5850 = vmatpush1.msra.mxu0 %v2298
        %5851 = vmatprep.subr.mxu0 %v2303
        %5852 = vmatpush1.msra.mxu0 %v2302
        %5853 = vmatprep.subr.mxu0 %v2307
        %5854 = vmatpush1.msra.mxu0 %v2306
        %5855 = vmatprep.subr.mxu0 %v2311
        %5856 = vmatpush1.msra.mxu0 %v2310
        %5857 = vmatprep.subr.mxu0 %v2315
        %5858 = vmatpush1.msra.mxu0 %v2314
        %5859 = vmatprep.subr.mxu0 %v2319
        %5860 = vmatpush1.msra.mxu0 %v2318
        %5861 = vmatprep.subr.mxu0 %v2323
        %5862 = vmatpush1.msra.mxu0 %v2322
        %5863 = vmatprep.subr.mxu0 %v2327
        %5864 = vmatpush1.msra.mxu0 %v2326
        %5865 = vmatprep.subr.mxu0 %v2331
        %5866 = vmatpush1.msra.mxu0 %v2330
        %5867 = vmatprep.subr.mxu0 %v2335
        %5868 = vmatpush1.msra.mxu0 %v2334
        %5869 = vmatprep.subr.mxu0 %v2339
        %5870 = vmatpush1.msra.mxu0 %v2338
        %5871 = vmatprep.mubr.f32.mxu0 %v4541
        %5872 = vmatmul.mubr.f32.gmra.mrb[0].mxu0 %v4539
        %v5873 = vpop.f32.mrb[0].mxu0
        %v5874 = vadd.f32 %v5803, %v5873
        %v5875 = vpop.f32.mrb[0].mxu0
        %v5876 = vadd.f32 %v5805, %v5875
        %5877 = vdwg.mxu0
        %5878 = vmatprep.subr.mxu0 %v2343
        %5879 = vmatpush1.msra.mxu0 %v2342
        %5880 = vmatprep.subr.mxu0 %v2347
        %5881 = vmatpush1.msra.mxu0 %v2346
        %5882 = vmatprep.subr.mxu0 %v2351
        %5883 = vmatpush1.msra.mxu0 %v2350
        %5884 = vmatprep.subr.mxu0 %v2355
        %5885 = vmatpush1.msra.mxu0 %v2354
        %5886 = vmatprep.subr.mxu0 %v2359
        %5887 = vmatpush1.msra.mxu0 %v2358
        %5888 = vmatprep.subr.mxu0 %v2363
        %5889 = vmatpush1.msra.mxu0 %v2362
        %5890 = vmatprep.subr.mxu0 %v2367
        %5891 = vmatpush1.msra.mxu0 %v2366
        %5892 = vmatprep.subr.mxu0 %v2371
        %5893 = vmatpush1.msra.mxu0 %v2370
        %5894 = vmatprep.subr.mxu0 %v2375
        %5895 = vmatpush1.msra.mxu0 %v2374
        %5896 = vmatprep.subr.mxu0 %v2379
        %5897 = vmatpush1.msra.mxu0 %v2378
        %5898 = vmatprep.subr.mxu0 %v2383
        %5899 = vmatpush1.msra.mxu0 %v2382
        %5900 = vmatprep.subr.mxu0 %v2387
        %5901 = vmatpush1.msra.mxu0 %v2386
        %5902 = vmatprep.subr.mxu0 %v2391
        %5903 = vmatpush1.msra.mxu0 %v2390
        %5904 = vmatprep.subr.mxu0 %v2395
        %5905 = vmatpush1.msra.mxu0 %v2394
        %5906 = vmatprep.subr.mxu0 %v2399
        %5907 = vmatpush1.msra.mxu0 %v2398
        %5908 = vmatprep.subr.mxu0 %v2403
        %5909 = vmatpush1.msra.mxu0 %v2402
        %5910 = vmatprep.subr.mxu0 %v2407
        %5911 = vmatpush1.msra.mxu0 %v2406
        %5912 = vmatprep.subr.mxu0 %v2411
        %5913 = vmatpush1.msra.mxu0 %v2410
        %5914 = vmatprep.subr.mxu0 %v2415
        %5915 = vmatpush1.msra.mxu0 %v2414
        %5916 = vmatprep.subr.mxu0 %v2419
        %5917 = vmatpush1.msra.mxu0 %v2418
        %5918 = vmatprep.subr.mxu0 %v2423
        %5919 = vmatpush1.msra.mxu0 %v2422
        %5920 = vmatprep.subr.mxu0 %v2427
        %5921 = vmatpush1.msra.mxu0 %v2426
        %5922 = vmatprep.subr.mxu0 %v2431
        %5923 = vmatpush1.msra.mxu0 %v2430
        %5924 = vmatprep.subr.mxu0 %v2435
        %5925 = vmatpush1.msra.mxu0 %v2434
        %5926 = vmatprep.subr.mxu0 %v2439
        %5927 = vmatpush1.msra.mxu0 %v2438
        %5928 = vmatprep.subr.mxu0 %v2443
        %5929 = vmatpush1.msra.mxu0 %v2442
        %5930 = vmatprep.subr.mxu0 %v2447
        %5931 = vmatpush1.msra.mxu0 %v2446
        %5932 = vmatprep.subr.mxu0 %v2451
        %5933 = vmatpush1.msra.mxu0 %v2450
        %5934 = vmatprep.subr.mxu0 %v2455
        %5935 = vmatpush1.msra.mxu0 %v2454
        %5936 = vmatprep.subr.mxu0 %v2459
        %5937 = vmatpush1.msra.mxu0 %v2458
        %5938 = vmatprep.subr.mxu0 %v2463
        %5939 = vmatpush1.msra.mxu0 %v2462
        %5940 = vmatprep.subr.mxu0 %v2467
        %5941 = vmatpush1.msra.mxu0 %v2466
        %5942 = vmatprep.mubr.f32.mxu0 %v4557
        %5943 = vmatmul.mubr.f32.gmra.mrb[0].mxu0 %v4549
        %v5944 = vpop.f32.mrb[0].mxu0
        %v5945 = vadd.f32 %v5874, %v5944
        %v5946 = vpop.f32.mrb[0].mxu0
        %v5947 = vadd.f32 %v5876, %v5946
        %5948 = vdwg.mxu0
        %5949 = vmatprep.subr.mxu0 %v2471
        %5950 = vmatpush1.msra.mxu0 %v2470
        %5951 = vmatprep.subr.mxu0 %v2475
        %5952 = vmatpush1.msra.mxu0 %v2474
        %5953 = vmatprep.subr.mxu0 %v2479
        %5954 = vmatpush1.msra.mxu0 %v2478
        %5955 = vmatprep.subr.mxu0 %v2483
        %5956 = vmatpush1.msra.mxu0 %v2482
        %5957 = vmatprep.subr.mxu0 %v2487
        %5958 = vmatpush1.msra.mxu0 %v2486
        %5959 = vmatprep.subr.mxu0 %v2491
        %5960 = vmatpush1.msra.mxu0 %v2490
        %5961 = vmatprep.subr.mxu0 %v2495
        %5962 = vmatpush1.msra.mxu0 %v2494
        %5963 = vmatprep.subr.mxu0 %v2499
        %5964 = vmatpush1.msra.mxu0 %v2498
        %5965 = vmatprep.subr.mxu0 %v2503
        %5966 = vmatpush1.msra.mxu0 %v2502
        %5967 = vmatprep.subr.mxu0 %v2507
        %5968 = vmatpush1.msra.mxu0 %v2506
        %5969 = vmatprep.subr.mxu0 %v2511
        %5970 = vmatpush1.msra.mxu0 %v2510
        %5971 = vmatprep.subr.mxu0 %v2515
        %5972 = vmatpush1.msra.mxu0 %v2514
        %5973 = vmatprep.subr.mxu0 %v2519
        %5974 = vmatpush1.msra.mxu0 %v2518
        %5975 = vmatprep.subr.mxu0 %v2523
        %5976 = vmatpush1.msra.mxu0 %v2522
        %5977 = vmatprep.subr.mxu0 %v2527
        %5978 = vmatpush1.msra.mxu0 %v2526
        %5979 = vmatprep.subr.mxu0 %v2531
        %5980 = vmatpush1.msra.mxu0 %v2530
        %5981 = vmatprep.subr.mxu0 %v2535
        %5982 = vmatpush1.msra.mxu0 %v2534
        %5983 = vmatprep.subr.mxu0 %v2539
        %5984 = vmatpush1.msra.mxu0 %v2538
        %5985 = vmatprep.subr.mxu0 %v2543
        %5986 = vmatpush1.msra.mxu0 %v2542
        %5987 = vmatprep.subr.mxu0 %v2547
        %5988 = vmatpush1.msra.mxu0 %v2546
        %5989 = vmatprep.subr.mxu0 %v2551
        %5990 = vmatpush1.msra.mxu0 %v2550
        %5991 = vmatprep.subr.mxu0 %v2555
        %5992 = vmatpush1.msra.mxu0 %v2554
        %5993 = vmatprep.subr.mxu0 %v2559
        %5994 = vmatpush1.msra.mxu0 %v2558
        %5995 = vmatprep.subr.mxu0 %v2563
        %5996 = vmatpush1.msra.mxu0 %v2562
        %5997 = vmatprep.subr.mxu0 %v2567
        %5998 = vmatpush1.msra.mxu0 %v2566
        %5999 = vmatprep.subr.mxu0 %v2571
        %6000 = vmatpush1.msra.mxu0 %v2570
        %6001 = vmatprep.subr.mxu0 %v2575
        %6002 = vmatpush1.msra.mxu0 %v2574
        %6003 = vmatprep.subr.mxu0 %v2579
        %6004 = vmatpush1.msra.mxu0 %v2578
        %6005 = vmatprep.subr.mxu0 %v2583
        %6006 = vmatpush1.msra.mxu0 %v2582
        %6007 = vmatprep.subr.mxu0 %v2587
        %6008 = vmatpush1.msra.mxu0 %v2586
        %6009 = vmatprep.subr.mxu0 %v2591
        %6010 = vmatpush1.msra.mxu0 %v2590
        %6011 = vmatprep.subr.mxu0 %v2595
        %6012 = vmatpush1.msra.mxu0 %v2594
        %6013 = vmatprep.mubr.f32.mxu0 %v4558
        %6014 = vmatmul.mubr.f32.gmra.mrb[0].mxu0 %v4556
        %v6015 = vpop.f32.mrb[0].mxu0
        %v6016 = vadd.f32 %v5945, %v6015
        %v6017 = vpop.f32.mrb[0].mxu0
        %v6018 = vadd.f32 %v5947, %v6017
        %6019 = vdwg.mxu0
        %6020 = vmatprep.subr.mxu0 %v2599
        %6021 = vmatpush1.msra.mxu0 %v2598
        %6022 = vmatprep.subr.mxu0 %v2603
        %6023 = vmatpush1.msra.mxu0 %v2602
        %6024 = vmatprep.subr.mxu0 %v2607
        %6025 = vmatpush1.msra.mxu0 %v2606
        %6026 = vmatprep.subr.mxu0 %v2611
        %6027 = vmatpush1.msra.mxu0 %v2610
        %6028 = vmatprep.subr.mxu0 %v2615
        %6029 = vmatpush1.msra.mxu0 %v2614
        %6030 = vmatprep.subr.mxu0 %v2619
        %6031 = vmatpush1.msra.mxu0 %v2618
        %6032 = vmatprep.subr.mxu0 %v2623
        %6033 = vmatpush1.msra.mxu0 %v2622
        %6034 = vmatprep.subr.mxu0 %v2627
        %6035 = vmatpush1.msra.mxu0 %v2626
        %6036 = vmatprep.subr.mxu0 %v2631
        %6037 = vmatpush1.msra.mxu0 %v2630
        %6038 = vmatprep.subr.mxu0 %v2635
        %6039 = vmatpush1.msra.mxu0 %v2634
        %6040 = vmatprep.subr.mxu0 %v2639
        %6041 = vmatpush1.msra.mxu0 %v2638
        %6042 = vmatprep.subr.mxu0 %v2643
        %6043 = vmatpush1.msra.mxu0 %v2642
        %6044 = vmatprep.subr.mxu0 %v2647
        %6045 = vmatpush1.msra.mxu0 %v2646
        %6046 = vmatprep.subr.mxu0 %v2651
        %6047 = vmatpush1.msra.mxu0 %v2650
        %6048 = vmatprep.subr.mxu0 %v2655
        %6049 = vmatpush1.msra.mxu0 %v2654
        %6050 = vmatprep.subr.mxu0 %v2659
        %6051 = vmatpush1.msra.mxu0 %v2658
        %6052 = vmatprep.subr.mxu0 %v2663
        %6053 = vmatpush1.msra.mxu0 %v2662
        %6054 = vmatprep.subr.mxu0 %v2667
        %6055 = vmatpush1.msra.mxu0 %v2666
        %6056 = vmatprep.subr.mxu0 %v2671
        %6057 = vmatpush1.msra.mxu0 %v2670
        %6058 = vmatprep.subr.mxu0 %v2675
        %6059 = vmatpush1.msra.mxu0 %v2674
        %6060 = vmatprep.subr.mxu0 %v2679
        %6061 = vmatpush1.msra.mxu0 %v2678
        %6062 = vmatprep.subr.mxu0 %v2683
        %6063 = vmatpush1.msra.mxu0 %v2682
        %6064 = vmatprep.subr.mxu0 %v2687
        %6065 = vmatpush1.msra.mxu0 %v2686
        %6066 = vmatprep.subr.mxu0 %v2691
        %6067 = vmatpush1.msra.mxu0 %v2690
        %6068 = vmatprep.subr.mxu0 %v2695
        %6069 = vmatpush1.msra.mxu0 %v2694
        %6070 = vmatprep.subr.mxu0 %v2699
        %6071 = vmatpush1.msra.mxu0 %v2698
        %6072 = vmatprep.subr.mxu0 %v2703
        %6073 = vmatpush1.msra.mxu0 %v2702
        %6074 = vmatprep.subr.mxu0 %v2707
        %6075 = vmatpush1.msra.mxu0 %v2706
        %6076 = vmatprep.subr.mxu0 %v2711
        %6077 = vmatpush1.msra.mxu0 %v2710
        %6078 = vmatprep.subr.mxu0 %v2715
        %6079 = vmatpush1.msra.mxu0 %v2714
        %6080 = vmatprep.subr.mxu0 %v2719
        %6081 = vmatpush1.msra.mxu0 %v2718
        %6082 = vmatprep.subr.mxu0 %v2723
        %6083 = vmatpush1.msra.mxu0 %v2722
        %6084 = vmatprep.mubr.f32.mxu0 %v4574
        %6085 = vmatmul.mubr.f32.gmra.mrb[0].mxu0 %v4566
        %v6086 = vpop.f32.mrb[0].mxu0
        %v6087 = vadd.f32 %v6016, %v6086
        %v6088 = vpop.f32.mrb[0].mxu0
        %v6089 = vadd.f32 %v6018, %v6088
        %6090 = vdwg.mxu0
        %6091 = vmatprep.subr.mxu0 %v2727
        %6092 = vmatpush1.msra.mxu0 %v2726
        %6093 = vmatprep.subr.mxu0 %v2731
        %6094 = vmatpush1.msra.mxu0 %v2730
        %6095 = vmatprep.subr.mxu0 %v2735
        %6096 = vmatpush1.msra.mxu0 %v2734
        %6097 = vmatprep.subr.mxu0 %v2739
        %6098 = vmatpush1.msra.mxu0 %v2738
        %6099 = vmatprep.subr.mxu0 %v2743
        %6100 = vmatpush1.msra.mxu0 %v2742
        %6101 = vmatprep.subr.mxu0 %v2747
        %6102 = vmatpush1.msra.mxu0 %v2746
        %6103 = vmatprep.subr.mxu0 %v2751
        %6104 = vmatpush1.msra.mxu0 %v2750
        %6105 = vmatprep.subr.mxu0 %v2755
        %6106 = vmatpush1.msra.mxu0 %v2754
        %6107 = vmatprep.subr.mxu0 %v2759
        %6108 = vmatpush1.msra.mxu0 %v2758
        %6109 = vmatprep.subr.mxu0 %v2763
        %6110 = vmatpush1.msra.mxu0 %v2762
        %6111 = vmatprep.subr.mxu0 %v2767
        %6112 = vmatpush1.msra.mxu0 %v2766
        %6113 = vmatprep.subr.mxu0 %v2771
        %6114 = vmatpush1.msra.mxu0 %v2770
        %6115 = vmatprep.subr.mxu0 %v2775
        %6116 = vmatpush1.msra.mxu0 %v2774
        %6117 = vmatprep.subr.mxu0 %v2779
        %6118 = vmatpush1.msra.mxu0 %v2778
        %6119 = vmatprep.subr.mxu0 %v2783
        %6120 = vmatpush1.msra.mxu0 %v2782
        %6121 = vmatprep.subr.mxu0 %v2787
        %6122 = vmatpush1.msra.mxu0 %v2786
        %6123 = vmatprep.subr.mxu0 %v2791
        %6124 = vmatpush1.msra.mxu0 %v2790
        %6125 = vmatprep.subr.mxu0 %v2795
        %6126 = vmatpush1.msra.mxu0 %v2794
        %6127 = vmatprep.subr.mxu0 %v2799
        %6128 = vmatpush1.msra.mxu0 %v2798
        %6129 = vmatprep.subr.mxu0 %v2803
        %6130 = vmatpush1.msra.mxu0 %v2802
        %6131 = vmatprep.subr.mxu0 %v2807
        %6132 = vmatpush1.msra.mxu0 %v2806
        %6133 = vmatprep.subr.mxu0 %v2811
        %6134 = vmatpush1.msra.mxu0 %v2810
        %6135 = vmatprep.subr.mxu0 %v2815
        %6136 = vmatpush1.msra.mxu0 %v2814
        %6137 = vmatprep.subr.mxu0 %v2819
        %6138 = vmatpush1.msra.mxu0 %v2818
        %6139 = vmatprep.subr.mxu0 %v2823
        %6140 = vmatpush1.msra.mxu0 %v2822
        %6141 = vmatprep.subr.mxu0 %v2827
        %6142 = vmatpush1.msra.mxu0 %v2826
        %6143 = vmatprep.subr.mxu0 %v2831
        %6144 = vmatpush1.msra.mxu0 %v2830
        %6145 = vmatprep.subr.mxu0 %v2835
        %6146 = vmatpush1.msra.mxu0 %v2834
        %6147 = vmatprep.subr.mxu0 %v2839
        %6148 = vmatpush1.msra.mxu0 %v2838
        %6149 = vmatprep.subr.mxu0 %v2843
        %6150 = vmatpush1.msra.mxu0 %v2842
        %6151 = vmatprep.subr.mxu0 %v2847
        %6152 = vmatpush1.msra.mxu0 %v2846
        %6153 = vmatprep.subr.mxu0 %v2851
        %6154 = vmatpush1.msra.mxu0 %v2850
        %6155 = vmatprep.mubr.f32.mxu0 %v4575
        %6156 = vmatmul.mubr.f32.gmra.mrb[0].mxu0 %v4573
        %v6157 = vpop.f32.mrb[0].mxu0
        %v6158 = vadd.f32 %v6087, %v6157
        %v6159 = vpop.f32.mrb[0].mxu0
        %v6160 = vadd.f32 %v6089, %v6159
        %6161 = vdwg.mxu0
        %6162 = vmatprep.subr.mxu0 %v2855
        %6163 = vmatpush1.msra.mxu0 %v2854
        %6164 = vmatprep.subr.mxu0 %v2859
        %6165 = vmatpush1.msra.mxu0 %v2858
        %6166 = vmatprep.subr.mxu0 %v2863
        %6167 = vmatpush1.msra.mxu0 %v2862
        %6168 = vmatprep.subr.mxu0 %v2867
        %6169 = vmatpush1.msra.mxu0 %v2866
        %6170 = vmatprep.subr.mxu0 %v2871
        %6171 = vmatpush1.msra.mxu0 %v2870
        %6172 = vmatprep.subr.mxu0 %v2875
        %6173 = vmatpush1.msra.mxu0 %v2874
        %6174 = vmatprep.subr.mxu0 %v2879
        %6175 = vmatpush1.msra.mxu0 %v2878
        %6176 = vmatprep.subr.mxu0 %v2883
        %6177 = vmatpush1.msra.mxu0 %v2882
        %6178 = vmatprep.subr.mxu0 %v2887
        %6179 = vmatpush1.msra.mxu0 %v2886
        %6180 = vmatprep.subr.mxu0 %v2891
        %6181 = vmatpush1.msra.mxu0 %v2890
        %6182 = vmatprep.subr.mxu0 %v2895
        %6183 = vmatpush1.msra.mxu0 %v2894
        %6184 = vmatprep.subr.mxu0 %v2899
        %6185 = vmatpush1.msra.mxu0 %v2898
        %6186 = vmatprep.subr.mxu0 %v2903
        %6187 = vmatpush1.msra.mxu0 %v2902
        %6188 = vmatprep.subr.mxu0 %v2907
        %6189 = vmatpush1.msra.mxu0 %v2906
        %6190 = vmatprep.subr.mxu0 %v2911
        %6191 = vmatpush1.msra.mxu0 %v2910
        %6192 = vmatprep.subr.mxu0 %v2915
        %6193 = vmatpush1.msra.mxu0 %v2914
        %6194 = vmatprep.subr.mxu0 %v2919
        %6195 = vmatpush1.msra.mxu0 %v2918
        %6196 = vmatprep.subr.mxu0 %v2923
        %6197 = vmatpush1.msra.mxu0 %v2922
        %6198 = vmatprep.subr.mxu0 %v2927
        %6199 = vmatpush1.msra.mxu0 %v2926
        %6200 = vmatprep.subr.mxu0 %v2931
        %6201 = vmatpush1.msra.mxu0 %v2930
        %6202 = vmatprep.subr.mxu0 %v2935
        %6203 = vmatpush1.msra.mxu0 %v2934
        %6204 = vmatprep.subr.mxu0 %v2939
        %6205 = vmatpush1.msra.mxu0 %v2938
        %6206 = vmatprep.subr.mxu0 %v2943
        %6207 = vmatpush1.msra.mxu0 %v2942
        %6208 = vmatprep.subr.mxu0 %v2947
        %6209 = vmatpush1.msra.mxu0 %v2946
        %6210 = vmatprep.subr.mxu0 %v2951
        %6211 = vmatpush1.msra.mxu0 %v2950
        %6212 = vmatprep.subr.mxu0 %v2955
        %6213 = vmatpush1.msra.mxu0 %v2954
        %6214 = vmatprep.subr.mxu0 %v2959
        %6215 = vmatpush1.msra.mxu0 %v2958
        %6216 = vmatprep.subr.mxu0 %v2963
        %6217 = vmatpush1.msra.mxu0 %v2962
        %6218 = vmatprep.subr.mxu0 %v2967
        %6219 = vmatpush1.msra.mxu0 %v2966
        %6220 = vmatprep.subr.mxu0 %v2971
        %6221 = vmatpush1.msra.mxu0 %v2970
        %6222 = vmatprep.subr.mxu0 %v2975
        %6223 = vmatpush1.msra.mxu0 %v2974
        %6224 = vmatprep.subr.mxu0 %v2979
        %6225 = vmatpush1.msra.mxu0 %v2978
        %6226 = vmatprep.mubr.f32.mxu0 %v4591
        %6227 = vmatmul.mubr.f32.gmra.mrb[0].mxu0 %v4583
        %v6228 = vpop.f32.mrb[0].mxu0
        %v6229 = vadd.f32 %v6158, %v6228
        %v6230 = vpop.f32.mrb[0].mxu0
        %v6231 = vadd.f32 %v6160, %v6230
        %6232 = vdwg.mxu0
        %6233 = vmatprep.subr.mxu0 %v2983
        %6234 = vmatpush1.msra.mxu0 %v2982
        %6235 = vmatprep.subr.mxu0 %v2987
        %6236 = vmatpush1.msra.mxu0 %v2986
        %6237 = vmatprep.subr.mxu0 %v2991
        %6238 = vmatpush1.msra.mxu0 %v2990
        %6239 = vmatprep.subr.mxu0 %v2995
        %6240 = vmatpush1.msra.mxu0 %v2994
        %6241 = vmatprep.subr.mxu0 %v2999
        %6242 = vmatpush1.msra.mxu0 %v2998
        %6243 = vmatprep.subr.mxu0 %v3003
        %6244 = vmatpush1.msra.mxu0 %v3002
        %6245 = vmatprep.subr.mxu0 %v3007
        %6246 = vmatpush1.msra.mxu0 %v3006
        %6247 = vmatprep.subr.mxu0 %v3011
        %6248 = vmatpush1.msra.mxu0 %v3010
        %6249 = vmatprep.subr.mxu0 %v3015
        %6250 = vmatpush1.msra.mxu0 %v3014
        %6251 = vmatprep.subr.mxu0 %v3019
        %6252 = vmatpush1.msra.mxu0 %v3018
        %6253 = vmatprep.subr.mxu0 %v3023
        %6254 = vmatpush1.msra.mxu0 %v3022
        %6255 = vmatprep.subr.mxu0 %v3027
        %6256 = vmatpush1.msra.mxu0 %v3026
        %6257 = vmatprep.subr.mxu0 %v3031
        %6258 = vmatpush1.msra.mxu0 %v3030
        %6259 = vmatprep.subr.mxu0 %v3035
        %6260 = vmatpush1.msra.mxu0 %v3034
        %6261 = vmatprep.subr.mxu0 %v3039
        %6262 = vmatpush1.msra.mxu0 %v3038
        %6263 = vmatprep.subr.mxu0 %v3043
        %6264 = vmatpush1.msra.mxu0 %v3042
        %6265 = vmatprep.subr.mxu0 %v3047
        %6266 = vmatpush1.msra.mxu0 %v3046
        %6267 = vmatprep.subr.mxu0 %v3051
        %6268 = vmatpush1.msra.mxu0 %v3050
        %6269 = vmatprep.subr.mxu0 %v3055
        %6270 = vmatpush1.msra.mxu0 %v3054
        %6271 = vmatprep.subr.mxu0 %v3059
        %6272 = vmatpush1.msra.mxu0 %v3058
        %6273 = vmatprep.subr.mxu0 %v3063
        %6274 = vmatpush1.msra.mxu0 %v3062
        %6275 = vmatprep.subr.mxu0 %v3067
        %6276 = vmatpush1.msra.mxu0 %v3066
        %6277 = vmatprep.subr.mxu0 %v3071
        %6278 = vmatpush1.msra.mxu0 %v3070
        %6279 = vmatprep.subr.mxu0 %v3075
        %6280 = vmatpush1.msra.mxu0 %v3074
        %6281 = vmatprep.subr.mxu0 %v3079
        %6282 = vmatpush1.msra.mxu0 %v3078
        %6283 = vmatprep.subr.mxu0 %v3083
        %6284 = vmatpush1.msra.mxu0 %v3082
        %6285 = vmatprep.subr.mxu0 %v3087
        %6286 = vmatpush1.msra.mxu0 %v3086
        %6287 = vmatprep.subr.mxu0 %v3091
        %6288 = vmatpush1.msra.mxu0 %v3090
        %6289 = vmatprep.subr.mxu0 %v3095
        %6290 = vmatpush1.msra.mxu0 %v3094
        %6291 = vmatprep.subr.mxu0 %v3099
        %6292 = vmatpush1.msra.mxu0 %v3098
        %6293 = vmatprep.subr.mxu0 %v3103
        %6294 = vmatpush1.msra.mxu0 %v3102
        %6295 = vmatprep.subr.mxu0 %v3107
        %6296 = vmatpush1.msra.mxu0 %v3106
        %6297 = vmatprep.mubr.f32.mxu0 %v4592
        %6298 = vmatmul.mubr.f32.gmra.mrb[0].mxu0 %v4590
        %v6299 = vpop.f32.mrb[0].mxu0
        %v6300 = vadd.f32 %v6229, %v6299
        %v6301 = vpop.f32.mrb[0].mxu0
        %v6302 = vadd.f32 %v6231, %v6301
        %6303 = vdwg.mxu0
        %6304 = vmatprep.subr.mxu0 %v3111
        %6305 = vmatpush1.msra.mxu0 %v3110
        %6306 = vmatprep.subr.mxu0 %v3115
        %6307 = vmatpush1.msra.mxu0 %v3114
        %6308 = vmatprep.subr.mxu0 %v3119
        %6309 = vmatpush1.msra.mxu0 %v3118
        %6310 = vmatprep.subr.mxu0 %v3123
        %6311 = vmatpush1.msra.mxu0 %v3122
        %6312 = vmatprep.subr.mxu0 %v3127
        %6313 = vmatpush1.msra.mxu0 %v3126
        %6314 = vmatprep.subr.mxu0 %v3131
        %6315 = vmatpush1.msra.mxu0 %v3130
        %6316 = vmatprep.subr.mxu0 %v3135
        %6317 = vmatpush1.msra.mxu0 %v3134
        %6318 = vmatprep.subr.mxu0 %v3139
        %6319 = vmatpush1.msra.mxu0 %v3138
        %6320 = vmatprep.subr.mxu0 %v3143
        %6321 = vmatpush1.msra.mxu0 %v3142
        %6322 = vmatprep.subr.mxu0 %v3147
        %6323 = vmatpush1.msra.mxu0 %v3146
        %6324 = vmatprep.subr.mxu0 %v3151
        %6325 = vmatpush1.msra.mxu0 %v3150
        %6326 = vmatprep.subr.mxu0 %v3155
        %6327 = vmatpush1.msra.mxu0 %v3154
        %6328 = vmatprep.subr.mxu0 %v3159
        %6329 = vmatpush1.msra.mxu0 %v3158
        %6330 = vmatprep.subr.mxu0 %v3163
        %6331 = vmatpush1.msra.mxu0 %v3162
        %6332 = vmatprep.subr.mxu0 %v3167
        %6333 = vmatpush1.msra.mxu0 %v3166
        %6334 = vmatprep.subr.mxu0 %v3171
        %6335 = vmatpush1.msra.mxu0 %v3170
        %6336 = vmatprep.subr.mxu0 %v3175
        %6337 = vmatpush1.msra.mxu0 %v3174
        %6338 = vmatprep.subr.mxu0 %v3179
        %6339 = vmatpush1.msra.mxu0 %v3178
        %6340 = vmatprep.subr.mxu0 %v3183
        %6341 = vmatpush1.msra.mxu0 %v3182
        %6342 = vmatprep.subr.mxu0 %v3187
        %6343 = vmatpush1.msra.mxu0 %v3186
        %6344 = vmatprep.subr.mxu0 %v3191
        %6345 = vmatpush1.msra.mxu0 %v3190
        %6346 = vmatprep.subr.mxu0 %v3195
        %6347 = vmatpush1.msra.mxu0 %v3194
        %6348 = vmatprep.subr.mxu0 %v3199
        %6349 = vmatpush1.msra.mxu0 %v3198
        %6350 = vmatprep.subr.mxu0 %v3203
        %6351 = vmatpush1.msra.mxu0 %v3202
        %6352 = vmatprep.subr.mxu0 %v3207
        %6353 = vmatpush1.msra.mxu0 %v3206
        %6354 = vmatprep.subr.mxu0 %v3211
        %6355 = vmatpush1.msra.mxu0 %v3210
        %6356 = vmatprep.subr.mxu0 %v3215
        %6357 = vmatpush1.msra.mxu0 %v3214
        %6358 = vmatprep.subr.mxu0 %v3219
        %6359 = vmatpush1.msra.mxu0 %v3218
        %6360 = vmatprep.subr.mxu0 %v3223
        %6361 = vmatpush1.msra.mxu0 %v3222
        %6362 = vmatprep.subr.mxu0 %v3227
        %6363 = vmatpush1.msra.mxu0 %v3226
        %6364 = vmatprep.subr.mxu0 %v3231
        %6365 = vmatpush1.msra.mxu0 %v3230
        %6366 = vmatprep.subr.mxu0 %v3235
        %6367 = vmatpush1.msra.mxu0 %v3234
        %6368 = vmatprep.mubr.f32.mxu0 %v4608
        %6369 = vmatmul.mubr.f32.gmra.mrb[0].mxu0 %v4600
        %v6370 = vpop.f32.mrb[0].mxu0
        %v6371 = vadd.f32 %v6300, %v6370
        %v6372 = vpop.f32.mrb[0].mxu0
        %v6373 = vadd.f32 %v6302, %v6372
        %6374 = vdwg.mxu0
        %6375 = vmatprep.subr.mxu0 %v3239
        %6376 = vmatpush1.msra.mxu0 %v3238
        %6377 = vmatprep.subr.mxu0 %v3243
        %6378 = vmatpush1.msra.mxu0 %v3242
        %6379 = vmatprep.subr.mxu0 %v3247
        %6380 = vmatpush1.msra.mxu0 %v3246
        %6381 = vmatprep.subr.mxu0 %v3251
        %6382 = vmatpush1.msra.mxu0 %v3250
        %6383 = vmatprep.subr.mxu0 %v3255
        %6384 = vmatpush1.msra.mxu0 %v3254
        %6385 = vmatprep.subr.mxu0 %v3259
        %6386 = vmatpush1.msra.mxu0 %v3258
        %6387 = vmatprep.subr.mxu0 %v3263
        %6388 = vmatpush1.msra.mxu0 %v3262
        %6389 = vmatprep.subr.mxu0 %v3267
        %6390 = vmatpush1.msra.mxu0 %v3266
        %6391 = vmatprep.subr.mxu0 %v3271
        %6392 = vmatpush1.msra.mxu0 %v3270
        %6393 = vmatprep.subr.mxu0 %v3275
        %6394 = vmatpush1.msra.mxu0 %v3274
        %6395 = vmatprep.subr.mxu0 %v3279
        %6396 = vmatpush1.msra.mxu0 %v3278
        %6397 = vmatprep.subr.mxu0 %v3283
        %6398 = vmatpush1.msra.mxu0 %v3282
        %6399 = vmatprep.subr.mxu0 %v3287
        %6400 = vmatpush1.msra.mxu0 %v3286
        %6401 = vmatprep.subr.mxu0 %v3291
        %6402 = vmatpush1.msra.mxu0 %v3290
        %6403 = vmatprep.subr.mxu0 %v3295
        %6404 = vmatpush1.msra.mxu0 %v3294
        %6405 = vmatprep.subr.mxu0 %v3299
        %6406 = vmatpush1.msra.mxu0 %v3298
        %6407 = vmatprep.subr.mxu0 %v3303
        %6408 = vmatpush1.msra.mxu0 %v3302
        %6409 = vmatprep.subr.mxu0 %v3307
        %6410 = vmatpush1.msra.mxu0 %v3306
        %6411 = vmatprep.subr.mxu0 %v3311
        %6412 = vmatpush1.msra.mxu0 %v3310
        %6413 = vmatprep.subr.mxu0 %v3315
        %6414 = vmatpush1.msra.mxu0 %v3314
        %6415 = vmatprep.subr.mxu0 %v3319
        %6416 = vmatpush1.msra.mxu0 %v3318
        %6417 = vmatprep.subr.mxu0 %v3323
        %6418 = vmatpush1.msra.mxu0 %v3322
        %6419 = vmatprep.subr.mxu0 %v3327
        %6420 = vmatpush1.msra.mxu0 %v3326
        %6421 = vmatprep.subr.mxu0 %v3331
        %6422 = vmatpush1.msra.mxu0 %v3330
        %6423 = vmatprep.subr.mxu0 %v3335
        %6424 = vmatpush1.msra.mxu0 %v3334
        %6425 = vmatprep.subr.mxu0 %v3339
        %6426 = vmatpush1.msra.mxu0 %v3338
        %6427 = vmatprep.subr.mxu0 %v3343
        %6428 = vmatpush1.msra.mxu0 %v3342
        %6429 = vmatprep.subr.mxu0 %v3347
        %6430 = vmatpush1.msra.mxu0 %v3346
        %6431 = vmatprep.subr.mxu0 %v3351
        %6432 = vmatpush1.msra.mxu0 %v3350
        %6433 = vmatprep.subr.mxu0 %v3355
        %6434 = vmatpush1.msra.mxu0 %v3354
        %6435 = vmatprep.subr.mxu0 %v3359
        %6436 = vmatpush1.msra.mxu0 %v3358
        %6437 = vmatprep.subr.mxu0 %v3363
        %6438 = vmatpush1.msra.mxu0 %v3362
        %6439 = vmatprep.mubr.f32.mxu0 %v4609
        %6440 = vmatmul.mubr.f32.gmra.mrb[0].mxu0 %v4607
        %v6441 = vpop.f32.mrb[0].mxu0
        %v6442 = vadd.f32 %v6371, %v6441
        %v6443 = vpop.f32.mrb[0].mxu0
        %v6444 = vadd.f32 %v6373, %v6443
        %6445 = vdwg.mxu0
        %6446 = vmatprep.subr.mxu0 %v3367
        %6447 = vmatpush1.msra.mxu0 %v3366
        %6448 = vmatprep.subr.mxu0 %v3371
        %6449 = vmatpush1.msra.mxu0 %v3370
        %6450 = vmatprep.subr.mxu0 %v3375
        %6451 = vmatpush1.msra.mxu0 %v3374
        %6452 = vmatprep.subr.mxu0 %v3379
        %6453 = vmatpush1.msra.mxu0 %v3378
        %6454 = vmatprep.subr.mxu0 %v3383
        %6455 = vmatpush1.msra.mxu0 %v3382
        %6456 = vmatprep.subr.mxu0 %v3387
        %6457 = vmatpush1.msra.mxu0 %v3386
        %6458 = vmatprep.subr.mxu0 %v3391
        %6459 = vmatpush1.msra.mxu0 %v3390
        %6460 = vmatprep.subr.mxu0 %v3395
        %6461 = vmatpush1.msra.mxu0 %v3394
        %6462 = vmatprep.subr.mxu0 %v3399
        %6463 = vmatpush1.msra.mxu0 %v3398
        %6464 = vmatprep.subr.mxu0 %v3403
        %6465 = vmatpush1.msra.mxu0 %v3402
        %6466 = vmatprep.subr.mxu0 %v3407
        %6467 = vmatpush1.msra.mxu0 %v3406
        %6468 = vmatprep.subr.mxu0 %v3411
        %6469 = vmatpush1.msra.mxu0 %v3410
        %6470 = vmatprep.subr.mxu0 %v3415
        %6471 = vmatpush1.msra.mxu0 %v3414
        %6472 = vmatprep.subr.mxu0 %v3419
        %6473 = vmatpush1.msra.mxu0 %v3418
        %6474 = vmatprep.subr.mxu0 %v3423
        %6475 = vmatpush1.msra.mxu0 %v3422
        %6476 = vmatprep.subr.mxu0 %v3427
        %6477 = vmatpush1.msra.mxu0 %v3426
        %6478 = vmatprep.subr.mxu0 %v3431
        %6479 = vmatpush1.msra.mxu0 %v3430
        %6480 = vmatprep.subr.mxu0 %v3435
        %6481 = vmatpush1.msra.mxu0 %v3434
        %6482 = vmatprep.subr.mxu0 %v3439
        %6483 = vmatpush1.msra.mxu0 %v3438
        %6484 = vmatprep.subr.mxu0 %v3443
        %6485 = vmatpush1.msra.mxu0 %v3442
        %6486 = vmatprep.subr.mxu0 %v3447
        %6487 = vmatpush1.msra.mxu0 %v3446
        %6488 = vmatprep.subr.mxu0 %v3451
        %6489 = vmatpush1.msra.mxu0 %v3450
        %6490 = vmatprep.subr.mxu0 %v3455
        %6491 = vmatpush1.msra.mxu0 %v3454
        %6492 = vmatprep.subr.mxu0 %v3459
        %6493 = vmatpush1.msra.mxu0 %v3458
        %6494 = vmatprep.subr.mxu0 %v3463
        %6495 = vmatpush1.msra.mxu0 %v3462
        %6496 = vmatprep.subr.mxu0 %v3467
        %6497 = vmatpush1.msra.mxu0 %v3466
        %6498 = vmatprep.subr.mxu0 %v3471
        %6499 = vmatpush1.msra.mxu0 %v3470
        %6500 = vmatprep.subr.mxu0 %v3475
        %6501 = vmatpush1.msra.mxu0 %v3474
        %6502 = vmatprep.subr.mxu0 %v3479
        %6503 = vmatpush1.msra.mxu0 %v3478
        %6504 = vmatprep.subr.mxu0 %v3483
        %6505 = vmatpush1.msra.mxu0 %v3482
        %6506 = vmatprep.subr.mxu0 %v3487
        %6507 = vmatpush1.msra.mxu0 %v3486
        %6508 = vmatprep.subr.mxu0 %v3491
        %6509 = vmatpush1.msra.mxu0 %v3490
        %6510 = vmatprep.mubr.f32.mxu0 %v4625
        %6511 = vmatmul.mubr.f32.gmra.mrb[0].mxu0 %v4617
        %v6512 = vpop.f32.mrb[0].mxu0
        %v6513 = vadd.f32 %v6442, %v6512
        %v6514 = vpop.f32.mrb[0].mxu0
        %v6515 = vadd.f32 %v6444, %v6514
        %6516 = vdwg.mxu0
        %6517 = vmatprep.subr.mxu0 %v3495
        %6518 = vmatpush1.msra.mxu0 %v3494
        %6519 = vmatprep.subr.mxu0 %v3499
        %6520 = vmatpush1.msra.mxu0 %v3498
        %6521 = vmatprep.subr.mxu0 %v3503
        %6522 = vmatpush1.msra.mxu0 %v3502
        %6523 = vmatprep.subr.mxu0 %v3507
        %6524 = vmatpush1.msra.mxu0 %v3506
        %6525 = vmatprep.subr.mxu0 %v3511
        %6526 = vmatpush1.msra.mxu0 %v3510
        %6527 = vmatprep.subr.mxu0 %v3515
        %6528 = vmatpush1.msra.mxu0 %v3514
        %6529 = vmatprep.subr.mxu0 %v3519
        %6530 = vmatpush1.msra.mxu0 %v3518
        %6531 = vmatprep.subr.mxu0 %v3523
        %6532 = vmatpush1.msra.mxu0 %v3522
        %6533 = vmatprep.subr.mxu0 %v3527
        %6534 = vmatpush1.msra.mxu0 %v3526
        %6535 = vmatprep.subr.mxu0 %v3531
        %6536 = vmatpush1.msra.mxu0 %v3530
        %6537 = vmatprep.subr.mxu0 %v3535
        %6538 = vmatpush1.msra.mxu0 %v3534
        %6539 = vmatprep.subr.mxu0 %v3539
        %6540 = vmatpush1.msra.mxu0 %v3538
        %6541 = vmatprep.subr.mxu0 %v3543
        %6542 = vmatpush1.msra.mxu0 %v3542
        %6543 = vmatprep.subr.mxu0 %v3547
        %6544 = vmatpush1.msra.mxu0 %v3546
        %6545 = vmatprep.subr.mxu0 %v3551
        %6546 = vmatpush1.msra.mxu0 %v3550
        %6547 = vmatprep.subr.mxu0 %v3555
        %6548 = vmatpush1.msra.mxu0 %v3554
        %6549 = vmatprep.subr.mxu0 %v3559
        %6550 = vmatpush1.msra.mxu0 %v3558
        %6551 = vmatprep.subr.mxu0 %v3563
        %6552 = vmatpush1.msra.mxu0 %v3562
        %6553 = vmatprep.subr.mxu0 %v3567
        %6554 = vmatpush1.msra.mxu0 %v3566
        %6555 = vmatprep.subr.mxu0 %v3571
        %6556 = vmatpush1.msra.mxu0 %v3570
        %6557 = vmatprep.subr.mxu0 %v3575
        %6558 = vmatpush1.msra.mxu0 %v3574
        %6559 = vmatprep.subr.mxu0 %v3579
        %6560 = vmatpush1.msra.mxu0 %v3578
        %6561 = vmatprep.subr.mxu0 %v3583
        %6562 = vmatpush1.msra.mxu0 %v3582
        %6563 = vmatprep.subr.mxu0 %v3587
        %6564 = vmatpush1.msra.mxu0 %v3586
        %6565 = vmatprep.subr.mxu0 %v3591
        %6566 = vmatpush1.msra.mxu0 %v3590
        %6567 = vmatprep.subr.mxu0 %v3595
        %6568 = vmatpush1.msra.mxu0 %v3594
        %6569 = vmatprep.subr.mxu0 %v3599
        %6570 = vmatpush1.msra.mxu0 %v3598
        %6571 = vmatprep.subr.mxu0 %v3603
        %6572 = vmatpush1.msra.mxu0 %v3602
        %6573 = vmatprep.subr.mxu0 %v3607
        %6574 = vmatpush1.msra.mxu0 %v3606
        %6575 = vmatprep.subr.mxu0 %v3611
        %6576 = vmatpush1.msra.mxu0 %v3610
        %6577 = vmatprep.subr.mxu0 %v3615
        %6578 = vmatpush1.msra.mxu0 %v3614
        %6579 = vmatprep.subr.mxu0 %v3619
        %6580 = vmatpush1.msra.mxu0 %v3618
        %6581 = vmatprep.mubr.f32.mxu0 %v4626
        %6582 = vmatmul.mubr.f32.gmra.mrb[0].mxu0 %v4624
        %v6583 = vpop.f32.mrb[0].mxu0
        %v6584 = vadd.f32 %v6513, %v6583
        %v6585 = vpop.f32.mrb[0].mxu0
        %v6586 = vadd.f32 %v6515, %v6585
        %6587 = vdwg.mxu0
        %6588 = vmatprep.subr.mxu0 %v3623
        %6589 = vmatpush1.msra.mxu0 %v3622
        %6590 = vmatprep.subr.mxu0 %v3627
        %6591 = vmatpush1.msra.mxu0 %v3626
        %6592 = vmatprep.subr.mxu0 %v3631
        %6593 = vmatpush1.msra.mxu0 %v3630
        %6594 = vmatprep.subr.mxu0 %v3635
        %6595 = vmatpush1.msra.mxu0 %v3634
        %6596 = vmatprep.subr.mxu0 %v3639
        %6597 = vmatpush1.msra.mxu0 %v3638
        %6598 = vmatprep.subr.mxu0 %v3643
        %6599 = vmatpush1.msra.mxu0 %v3642
        %6600 = vmatprep.subr.mxu0 %v3647
        %6601 = vmatpush1.msra.mxu0 %v3646
        %6602 = vmatprep.subr.mxu0 %v3651
        %6603 = vmatpush1.msra.mxu0 %v3650
        %6604 = vmatprep.subr.mxu0 %v3655
        %6605 = vmatpush1.msra.mxu0 %v3654
        %6606 = vmatprep.subr.mxu0 %v3659
        %6607 = vmatpush1.msra.mxu0 %v3658
        %6608 = vmatprep.subr.mxu0 %v3663
        %6609 = vmatpush1.msra.mxu0 %v3662
        %6610 = vmatprep.subr.mxu0 %v3667
        %6611 = vmatpush1.msra.mxu0 %v3666
        %6612 = vmatprep.subr.mxu0 %v3671
        %6613 = vmatpush1.msra.mxu0 %v3670
        %6614 = vmatprep.subr.mxu0 %v3675
        %6615 = vmatpush1.msra.mxu0 %v3674
        %6616 = vmatprep.subr.mxu0 %v3679
        %6617 = vmatpush1.msra.mxu0 %v3678
        %6618 = vmatprep.subr.mxu0 %v3683
        %6619 = vmatpush1.msra.mxu0 %v3682
        %6620 = vmatprep.subr.mxu0 %v3687
        %6621 = vmatpush1.msra.mxu0 %v3686
        %6622 = vmatprep.subr.mxu0 %v3691
        %6623 = vmatpush1.msra.mxu0 %v3690
        %6624 = vmatprep.subr.mxu0 %v3695
        %6625 = vmatpush1.msra.mxu0 %v3694
        %6626 = vmatprep.subr.mxu0 %v3699
        %6627 = vmatpush1.msra.mxu0 %v3698
        %6628 = vmatprep.subr.mxu0 %v3703
        %6629 = vmatpush1.msra.mxu0 %v3702
        %6630 = vmatprep.subr.mxu0 %v3707
        %6631 = vmatpush1.msra.mxu0 %v3706
        %6632 = vmatprep.subr.mxu0 %v3711
        %6633 = vmatpush1.msra.mxu0 %v3710
        %6634 = vmatprep.subr.mxu0 %v3715
        %6635 = vmatpush1.msra.mxu0 %v3714
        %6636 = vmatprep.subr.mxu0 %v3719
        %6637 = vmatpush1.msra.mxu0 %v3718
        %6638 = vmatprep.subr.mxu0 %v3723
        %6639 = vmatpush1.msra.mxu0 %v3722
        %6640 = vmatprep.subr.mxu0 %v3727
        %6641 = vmatpush1.msra.mxu0 %v3726
        %6642 = vmatprep.subr.mxu0 %v3731
        %6643 = vmatpush1.msra.mxu0 %v3730
        %6644 = vmatprep.subr.mxu0 %v3735
        %6645 = vmatpush1.msra.mxu0 %v3734
        %6646 = vmatprep.subr.mxu0 %v3739
        %6647 = vmatpush1.msra.mxu0 %v3738
        %6648 = vmatprep.subr.mxu0 %v3743
        %6649 = vmatpush1.msra.mxu0 %v3742
        %6650 = vmatprep.subr.mxu0 %v3747
        %6651 = vmatpush1.msra.mxu0 %v3746
        %6652 = vmatprep.mubr.f32.mxu0 %v4642
        %6653 = vmatmul.mubr.f32.gmra.mrb[0].mxu0 %v4634
        %v6654 = vpop.f32.mrb[0].mxu0
        %v6655 = vadd.f32 %v6584, %v6654
        %v6656 = vpop.f32.mrb[0].mxu0
        %v6657 = vadd.f32 %v6586, %v6656
        %6658 = vdwg.mxu0
        %6659 = vmatprep.subr.mxu0 %v3751
        %6660 = vmatpush1.msra.mxu0 %v3750
        %6661 = vmatprep.subr.mxu0 %v3755
        %6662 = vmatpush1.msra.mxu0 %v3754
        %6663 = vmatprep.subr.mxu0 %v3759
        %6664 = vmatpush1.msra.mxu0 %v3758
        %6665 = vmatprep.subr.mxu0 %v3763
        %6666 = vmatpush1.msra.mxu0 %v3762
        %6667 = vmatprep.subr.mxu0 %v3767
        %6668 = vmatpush1.msra.mxu0 %v3766
        %6669 = vmatprep.subr.mxu0 %v3771
        %6670 = vmatpush1.msra.mxu0 %v3770
        %6671 = vmatprep.subr.mxu0 %v3775
        %6672 = vmatpush1.msra.mxu0 %v3774
        %6673 = vmatprep.subr.mxu0 %v3779
        %6674 = vmatpush1.msra.mxu0 %v3778
        %6675 = vmatprep.subr.mxu0 %v3783
        %6676 = vmatpush1.msra.mxu0 %v3782
        %6677 = vmatprep.subr.mxu0 %v3787
        %6678 = vmatpush1.msra.mxu0 %v3786
        %6679 = vmatprep.subr.mxu0 %v3791
        %6680 = vmatpush1.msra.mxu0 %v3790
        %6681 = vmatprep.subr.mxu0 %v3795
        %6682 = vmatpush1.msra.mxu0 %v3794
        %6683 = vmatprep.subr.mxu0 %v3799
        %6684 = vmatpush1.msra.mxu0 %v3798
        %6685 = vmatprep.subr.mxu0 %v3803
        %6686 = vmatpush1.msra.mxu0 %v3802
        %6687 = vmatprep.subr.mxu0 %v3807
        %6688 = vmatpush1.msra.mxu0 %v3806
        %6689 = vmatprep.subr.mxu0 %v3811
        %6690 = vmatpush1.msra.mxu0 %v3810
        %6691 = vmatprep.subr.mxu0 %v3815
        %6692 = vmatpush1.msra.mxu0 %v3814
        %6693 = vmatprep.subr.mxu0 %v3819
        %6694 = vmatpush1.msra.mxu0 %v3818
        %6695 = vmatprep.subr.mxu0 %v3823
        %6696 = vmatpush1.msra.mxu0 %v3822
        %6697 = vmatprep.subr.mxu0 %v3827
        %6698 = vmatpush1.msra.mxu0 %v3826
        %6699 = vmatprep.subr.mxu0 %v3831
        %6700 = vmatpush1.msra.mxu0 %v3830
        %6701 = vmatprep.subr.mxu0 %v3835
        %6702 = vmatpush1.msra.mxu0 %v3834
        %6703 = vmatprep.subr.mxu0 %v3839
        %6704 = vmatpush1.msra.mxu0 %v3838
        %6705 = vmatprep.subr.mxu0 %v3843
        %6706 = vmatpush1.msra.mxu0 %v3842
        %6707 = vmatprep.subr.mxu0 %v3847
        %6708 = vmatpush1.msra.mxu0 %v3846
        %6709 = vmatprep.subr.mxu0 %v3851
        %6710 = vmatpush1.msra.mxu0 %v3850
        %6711 = vmatprep.subr.mxu0 %v3855
        %6712 = vmatpush1.msra.mxu0 %v3854
        %6713 = vmatprep.subr.mxu0 %v3859
        %6714 = vmatpush1.msra.mxu0 %v3858
        %6715 = vmatprep.subr.mxu0 %v3863
        %6716 = vmatpush1.msra.mxu0 %v3862
        %6717 = vmatprep.subr.mxu0 %v3867
        %6718 = vmatpush1.msra.mxu0 %v3866
        %6719 = vmatprep.subr.mxu0 %v3871
        %6720 = vmatpush1.msra.mxu0 %v3870
        %6721 = vmatprep.subr.mxu0 %v3875
        %6722 = vmatpush1.msra.mxu0 %v3874
        %6723 = vmatprep.mubr.f32.mxu0 %v4643
        %6724 = vmatmul.mubr.f32.gmra.mrb[0].mxu0 %v4641
        %v6725 = vpop.f32.mrb[0].mxu0
        %v6726 = vadd.f32 %v6655, %v6725
        %v6727 = vpop.f32.mrb[0].mxu0
        %v6728 = vadd.f32 %v6657, %v6727
        %6729 = vdwg.mxu0
        %6730 = vmatprep.subr.mxu0 %v3879
        %6731 = vmatpush1.msra.mxu0 %v3878
        %6732 = vmatprep.subr.mxu0 %v3883
        %6733 = vmatpush1.msra.mxu0 %v3882
        %6734 = vmatprep.subr.mxu0 %v3887
        %6735 = vmatpush1.msra.mxu0 %v3886
        %6736 = vmatprep.subr.mxu0 %v3891
        %6737 = vmatpush1.msra.mxu0 %v3890
        %6738 = vmatprep.subr.mxu0 %v3895
        %6739 = vmatpush1.msra.mxu0 %v3894
        %6740 = vmatprep.subr.mxu0 %v3899
        %6741 = vmatpush1.msra.mxu0 %v3898
        %6742 = vmatprep.subr.mxu0 %v3903
        %6743 = vmatpush1.msra.mxu0 %v3902
        %6744 = vmatprep.subr.mxu0 %v3907
        %6745 = vmatpush1.msra.mxu0 %v3906
        %6746 = vmatprep.subr.mxu0 %v3911
        %6747 = vmatpush1.msra.mxu0 %v3910
        %6748 = vmatprep.subr.mxu0 %v3915
        %6749 = vmatpush1.msra.mxu0 %v3914
        %6750 = vmatprep.subr.mxu0 %v3919
        %6751 = vmatpush1.msra.mxu0 %v3918
        %6752 = vmatprep.subr.mxu0 %v3923
        %6753 = vmatpush1.msra.mxu0 %v3922
        %6754 = vmatprep.subr.mxu0 %v3927
        %6755 = vmatpush1.msra.mxu0 %v3926
        %6756 = vmatprep.subr.mxu0 %v3931
        %6757 = vmatpush1.msra.mxu0 %v3930
        %6758 = vmatprep.subr.mxu0 %v3935
        %6759 = vmatpush1.msra.mxu0 %v3934
        %6760 = vmatprep.subr.mxu0 %v3939
        %6761 = vmatpush1.msra.mxu0 %v3938
        %6762 = vmatprep.subr.mxu0 %v3943
        %6763 = vmatpush1.msra.mxu0 %v3942
        %6764 = vmatprep.subr.mxu0 %v3947
        %6765 = vmatpush1.msra.mxu0 %v3946
        %6766 = vmatprep.subr.mxu0 %v3951
        %6767 = vmatpush1.msra.mxu0 %v3950
        %6768 = vmatprep.subr.mxu0 %v3955
        %6769 = vmatpush1.msra.mxu0 %v3954
        %6770 = vmatprep.subr.mxu0 %v3959
        %6771 = vmatpush1.msra.mxu0 %v3958
        %6772 = vmatprep.subr.mxu0 %v3963
        %6773 = vmatpush1.msra.mxu0 %v3962
        %6774 = vmatprep.subr.mxu0 %v3967
        %6775 = vmatpush1.msra.mxu0 %v3966
        %6776 = vmatprep.subr.mxu0 %v3971
        %6777 = vmatpush1.msra.mxu0 %v3970
        %6778 = vmatprep.subr.mxu0 %v3975
        %6779 = vmatpush1.msra.mxu0 %v3974
        %6780 = vmatprep.subr.mxu0 %v3979
        %6781 = vmatpush1.msra.mxu0 %v3978
        %6782 = vmatprep.subr.mxu0 %v3983
        %6783 = vmatpush1.msra.mxu0 %v3982
        %6784 = vmatprep.subr.mxu0 %v3987
        %6785 = vmatpush1.msra.mxu0 %v3986
        %6786 = vmatprep.subr.mxu0 %v3991
        %6787 = vmatpush1.msra.mxu0 %v3990
        %6788 = vmatprep.subr.mxu0 %v3995
        %6789 = vmatpush1.msra.mxu0 %v3994
        %6790 = vmatprep.subr.mxu0 %v3999
        %6791 = vmatpush1.msra.mxu0 %v3998
        %6792 = vmatprep.subr.mxu0 %v4003
        %6793 = vmatpush1.msra.mxu0 %v4002
        %6794 = vmatprep.mubr.f32.mxu0 %v4659
        %6795 = vmatmul.mubr.f32.gmra.mrb[0].mxu0 %v4651
        %v6796 = vpop.f32.mrb[0].mxu0
        %v6797 = vadd.f32 %v6726, %v6796
        %v6798 = vpop.f32.mrb[0].mxu0
        %v6799 = vadd.f32 %v6728, %v6798
        %6800 = vdwg.mxu0
        %6801 = vmatprep.subr.mxu0 %v4007
        %6802 = vmatpush1.msra.mxu0 %v4006
        %6803 = vmatprep.subr.mxu0 %v4011
        %6804 = vmatpush1.msra.mxu0 %v4010
        %6805 = vmatprep.subr.mxu0 %v4015
        %6806 = vmatpush1.msra.mxu0 %v4014
        %6807 = vmatprep.subr.mxu0 %v4019
        %6808 = vmatpush1.msra.mxu0 %v4018
        %6809 = vmatprep.subr.mxu0 %v4023
        %6810 = vmatpush1.msra.mxu0 %v4022
        %6811 = vmatprep.subr.mxu0 %v4027
        %6812 = vmatpush1.msra.mxu0 %v4026
        %6813 = vmatprep.subr.mxu0 %v4031
        %6814 = vmatpush1.msra.mxu0 %v4030
        %6815 = vmatprep.subr.mxu0 %v4035
        %6816 = vmatpush1.msra.mxu0 %v4034
        %6817 = vmatprep.subr.mxu0 %v4039
        %6818 = vmatpush1.msra.mxu0 %v4038
        %6819 = vmatprep.subr.mxu0 %v4043
        %6820 = vmatpush1.msra.mxu0 %v4042
        %6821 = vmatprep.subr.mxu0 %v4047
        %6822 = vmatpush1.msra.mxu0 %v4046
        %6823 = vmatprep.subr.mxu0 %v4051
        %6824 = vmatpush1.msra.mxu0 %v4050
        %6825 = vmatprep.subr.mxu0 %v4055
        %6826 = vmatpush1.msra.mxu0 %v4054
        %6827 = vmatprep.subr.mxu0 %v4059
        %6828 = vmatpush1.msra.mxu0 %v4058
        %6829 = vmatprep.subr.mxu0 %v4063
        %6830 = vmatpush1.msra.mxu0 %v4062
        %6831 = vmatprep.subr.mxu0 %v4067
        %6832 = vmatpush1.msra.mxu0 %v4066
        %6833 = vmatprep.subr.mxu0 %v4071
        %6834 = vmatpush1.msra.mxu0 %v4070
        %6835 = vmatprep.subr.mxu0 %v4075
        %6836 = vmatpush1.msra.mxu0 %v4074
        %6837 = vmatprep.subr.mxu0 %v4079
        %6838 = vmatpush1.msra.mxu0 %v4078
        %6839 = vmatprep.subr.mxu0 %v4083
        %6840 = vmatpush1.msra.mxu0 %v4082
        %6841 = vmatprep.subr.mxu0 %v4087
        %6842 = vmatpush1.msra.mxu0 %v4086
        %6843 = vmatprep.subr.mxu0 %v4091
        %6844 = vmatpush1.msra.mxu0 %v4090
        %6845 = vmatprep.subr.mxu0 %v4095
        %6846 = vmatpush1.msra.mxu0 %v4094
        %6847 = vmatprep.subr.mxu0 %v4099
        %6848 = vmatpush1.msra.mxu0 %v4098
        %6849 = vmatprep.subr.mxu0 %v4103
        %6850 = vmatpush1.msra.mxu0 %v4102
        %6851 = vmatprep.subr.mxu0 %v4107
        %6852 = vmatpush1.msra.mxu0 %v4106
        %6853 = vmatprep.subr.mxu0 %v4111
        %6854 = vmatpush1.msra.mxu0 %v4110
        %6855 = vmatprep.subr.mxu0 %v4115
        %6856 = vmatpush1.msra.mxu0 %v4114
        %6857 = vmatprep.subr.mxu0 %v4119
        %6858 = vmatpush1.msra.mxu0 %v4118
        %6859 = vmatprep.subr.mxu0 %v4123
        %6860 = vmatpush1.msra.mxu0 %v4122
        %6861 = vmatprep.subr.mxu0 %v4127
        %6862 = vmatpush1.msra.mxu0 %v4126
        %6863 = vmatprep.subr.mxu0 %v4131
        %6864 = vmatpush1.msra.mxu0 %v4130
        %6865 = vmatprep.mubr.f32.mxu0 %v4660
        %6866 = vmatmul.mubr.f32.gmra.mrb[0].mxu0 %v4658
        %v6867 = vpop.f32.mrb[0].mxu0
        %v6868 = vadd.f32 %v6797, %v6867
        %v6869 = vpop.f32.mrb[0].mxu0
        %v6870 = vadd.f32 %v6799, %v6869
        %6871 = vdwg.mxu0
        %6872 = vmatprep.subr.mxu0 %v4135
        %6873 = vmatpush1.msra.mxu0 %v4134
        %6874 = vmatprep.subr.mxu0 %v4139
        %6875 = vmatpush1.msra.mxu0 %v4138
        %6876 = vmatprep.subr.mxu0 %v4143
        %6877 = vmatpush1.msra.mxu0 %v4142
        %6878 = vmatprep.subr.mxu0 %v4147
        %6879 = vmatpush1.msra.mxu0 %v4146
        %6880 = vmatprep.subr.mxu0 %v4151
        %6881 = vmatpush1.msra.mxu0 %v4150
        %6882 = vmatprep.subr.mxu0 %v4155
        %6883 = vmatpush1.msra.mxu0 %v4154
        %6884 = vmatprep.subr.mxu0 %v4159
        %6885 = vmatpush1.msra.mxu0 %v4158
        %6886 = vmatprep.subr.mxu0 %v4163
        %6887 = vmatpush1.msra.mxu0 %v4162
        %6888 = vmatprep.subr.mxu0 %v4167
        %6889 = vmatpush1.msra.mxu0 %v4166
        %6890 = vmatprep.subr.mxu0 %v4171
        %6891 = vmatpush1.msra.mxu0 %v4170
        %6892 = vmatprep.subr.mxu0 %v4175
        %6893 = vmatpush1.msra.mxu0 %v4174
        %6894 = vmatprep.subr.mxu0 %v4179
        %6895 = vmatpush1.msra.mxu0 %v4178
        %6896 = vmatprep.subr.mxu0 %v4183
        %6897 = vmatpush1.msra.mxu0 %v4182
        %6898 = vmatprep.subr.mxu0 %v4187
        %6899 = vmatpush1.msra.mxu0 %v4186
        %6900 = vmatprep.subr.mxu0 %v4191
        %6901 = vmatpush1.msra.mxu0 %v4190
        %6902 = vmatprep.subr.mxu0 %v4195
        %6903 = vmatpush1.msra.mxu0 %v4194
        %6904 = vmatprep.subr.mxu0 %v4199
        %6905 = vmatpush1.msra.mxu0 %v4198
        %6906 = vmatprep.subr.mxu0 %v4203
        %6907 = vmatpush1.msra.mxu0 %v4202
        %6908 = vmatprep.subr.mxu0 %v4207
        %6909 = vmatpush1.msra.mxu0 %v4206
        %6910 = vmatprep.subr.mxu0 %v4211
        %6911 = vmatpush1.msra.mxu0 %v4210
        %6912 = vmatprep.subr.mxu0 %v4215
        %6913 = vmatpush1.msra.mxu0 %v4214
        %6914 = vmatprep.subr.mxu0 %v4219
        %6915 = vmatpush1.msra.mxu0 %v4218
        %6916 = vmatprep.subr.mxu0 %v4223
        %6917 = vmatpush1.msra.mxu0 %v4222
        %6918 = vmatprep.subr.mxu0 %v4227
        %6919 = vmatpush1.msra.mxu0 %v4226
        %6920 = vmatprep.subr.mxu0 %v4231
        %6921 = vmatpush1.msra.mxu0 %v4230
        %6922 = vmatprep.subr.mxu0 %v4235
        %6923 = vmatpush1.msra.mxu0 %v4234
        %6924 = vmatprep.subr.mxu0 %v4239
        %6925 = vmatpush1.msra.mxu0 %v4238
        %6926 = vmatprep.subr.mxu0 %v4243
        %6927 = vmatpush1.msra.mxu0 %v4242
        %6928 = vmatprep.subr.mxu0 %v4247
        %6929 = vmatpush1.msra.mxu0 %v4246
        %6930 = vmatprep.subr.mxu0 %v4251
        %6931 = vmatpush1.msra.mxu0 %v4250
        %6932 = vmatprep.subr.mxu0 %v4255
        %6933 = vmatpush1.msra.mxu0 %v4254
        %6934 = vmatprep.subr.mxu0 %v4259
        %6935 = vmatpush1.msra.mxu0 %v4258
        %6936 = vmatprep.mubr.f32.mxu0 %v4676
        %6937 = vmatmul.mubr.f32.gmra.mrb[0].mxu0 %v4668
        %v6938 = vpop.f32.mrb[0].mxu0
        %v6939 = vadd.f32 %v6868, %v6938
        %v6940 = vpop.f32.mrb[0].mxu0
        %v6941 = vadd.f32 %v6870, %v6940
        %6942 = vdwg.mxu0
        %6943 = vmatprep.subr.mxu0 %v4263
        %6944 = vmatpush1.msra.mxu0 %v4262
        %6945 = vmatprep.subr.mxu0 %v4267
        %6946 = vmatpush1.msra.mxu0 %v4266
        %6947 = vmatprep.subr.mxu0 %v4271
        %6948 = vmatpush1.msra.mxu0 %v4270
        %6949 = vmatprep.subr.mxu0 %v4275
        %6950 = vmatpush1.msra.mxu0 %v4274
        %6951 = vmatprep.subr.mxu0 %v4279
        %6952 = vmatpush1.msra.mxu0 %v4278
        %6953 = vmatprep.subr.mxu0 %v4283
        %6954 = vmatpush1.msra.mxu0 %v4282
        %6955 = vmatprep.subr.mxu0 %v4287
        %6956 = vmatpush1.msra.mxu0 %v4286
        %6957 = vmatprep.subr.mxu0 %v4291
        %6958 = vmatpush1.msra.mxu0 %v4290
        %6959 = vmatprep.subr.mxu0 %v4295
        %6960 = vmatpush1.msra.mxu0 %v4294
        %6961 = vmatprep.subr.mxu0 %v4299
        %6962 = vmatpush1.msra.mxu0 %v4298
        %6963 = vmatprep.subr.mxu0 %v4303
        %6964 = vmatpush1.msra.mxu0 %v4302
        %6965 = vmatprep.subr.mxu0 %v4307
        %6966 = vmatpush1.msra.mxu0 %v4306
        %6967 = vmatprep.subr.mxu0 %v4311
        %6968 = vmatpush1.msra.mxu0 %v4310
        %6969 = vmatprep.subr.mxu0 %v4315
        %6970 = vmatpush1.msra.mxu0 %v4314
        %6971 = vmatprep.subr.mxu0 %v4319
        %6972 = vmatpush1.msra.mxu0 %v4318
        %6973 = vmatprep.subr.mxu0 %v4323
        %6974 = vmatpush1.msra.mxu0 %v4322
        %6975 = vmatprep.subr.mxu0 %v4327
        %6976 = vmatpush1.msra.mxu0 %v4326
        %6977 = vmatprep.subr.mxu0 %v4331
        %6978 = vmatpush1.msra.mxu0 %v4330
        %6979 = vmatprep.subr.mxu0 %v4335
        %6980 = vmatpush1.msra.mxu0 %v4334
        %6981 = vmatprep.subr.mxu0 %v4339
        %6982 = vmatpush1.msra.mxu0 %v4338
        %6983 = vmatprep.subr.mxu0 %v4343
        %6984 = vmatpush1.msra.mxu0 %v4342
        %6985 = vmatprep.subr.mxu0 %v4347
        %6986 = vmatpush1.msra.mxu0 %v4346
        %6987 = vmatprep.subr.mxu0 %v4351
        %6988 = vmatpush1.msra.mxu0 %v4350
        %6989 = vmatprep.subr.mxu0 %v4355
        %6990 = vmatpush1.msra.mxu0 %v4354
        %6991 = vmatprep.subr.mxu0 %v4359
        %6992 = vmatpush1.msra.mxu0 %v4358
        %6993 = vmatprep.subr.mxu0 %v4363
        %6994 = vmatpush1.msra.mxu0 %v4362
        %6995 = vmatprep.subr.mxu0 %v4367
        %6996 = vmatpush1.msra.mxu0 %v4366
        %6997 = vmatprep.subr.mxu0 %v4371
        %6998 = vmatpush1.msra.mxu0 %v4370
        %6999 = vmatprep.subr.mxu0 %v4375
        %7000 = vmatpush1.msra.mxu0 %v4374
        %7001 = vmatprep.subr.mxu0 %v4379
        %7002 = vmatpush1.msra.mxu0 %v4378
        %7003 = vmatprep.subr.mxu0 %v4383
        %7004 = vmatpush1.msra.mxu0 %v4382
        %7005 = vmatprep.subr.mxu0 %v4387
        %7006 = vmatpush1.msra.mxu0 %v4386
        %7007 = vmatprep.mubr.f32.mxu0 %v4677
        %7008 = vmatmul.mubr.f32.gmra.mrb[0].mxu0 %v4675
        %v7009 = vpop.f32.mrb[0].mxu0
        %v7010 = vadd.f32 %v6939, %v7009
        %v7011 = vpop.f32.mrb[0].mxu0
        %v7012 = vadd.f32 %v6941, %v7011
        %7013 = vdwg.mxu0
        %7014 = vmatprep.subr.mxu0 %v297
        %7015 = vmatpush1.msra.mxu0 %v296
        %7016 = vmatprep.subr.mxu0 %v301
        %7017 = vmatpush1.msra.mxu0 %v300
        %7018 = vmatprep.subr.mxu0 %v305
        %7019 = vmatpush1.msra.mxu0 %v304
        %7020 = vmatprep.subr.mxu0 %v309
        %7021 = vmatpush1.msra.mxu0 %v308
        %7022 = vmatprep.subr.mxu0 %v313
        %7023 = vmatpush1.msra.mxu0 %v312
        %7024 = vmatprep.subr.mxu0 %v317
        %7025 = vmatpush1.msra.mxu0 %v316
        %7026 = vmatprep.subr.mxu0 %v321
        %7027 = vmatpush1.msra.mxu0 %v320
        %7028 = vmatprep.subr.mxu0 %v325
        %7029 = vmatpush1.msra.mxu0 %v324
        %7030 = vmatprep.subr.mxu0 %v329
        %7031 = vmatpush1.msra.mxu0 %v328
        %7032 = vmatprep.subr.mxu0 %v333
        %7033 = vmatpush1.msra.mxu0 %v332
        %7034 = vmatprep.subr.mxu0 %v337
        %7035 = vmatpush1.msra.mxu0 %v336
        %7036 = vmatprep.subr.mxu0 %v341
        %7037 = vmatpush1.msra.mxu0 %v340
        %7038 = vmatprep.subr.mxu0 %v345
        %7039 = vmatpush1.msra.mxu0 %v344
        %7040 = vmatprep.subr.mxu0 %v349
        %7041 = vmatpush1.msra.mxu0 %v348
        %7042 = vmatprep.subr.mxu0 %v353
        %7043 = vmatpush1.msra.mxu0 %v352
        %7044 = vmatprep.subr.mxu0 %v357
        %7045 = vmatpush1.msra.mxu0 %v356
        %7046 = vmatprep.subr.mxu0 %v361
        %7047 = vmatpush1.msra.mxu0 %v360
        %7048 = vmatprep.subr.mxu0 %v365
        %7049 = vmatpush1.msra.mxu0 %v364
        %7050 = vmatprep.subr.mxu0 %v369
        %7051 = vmatpush1.msra.mxu0 %v368
        %7052 = vmatprep.subr.mxu0 %v373
        %7053 = vmatpush1.msra.mxu0 %v372
        %7054 = vmatprep.subr.mxu0 %v377
        %7055 = vmatpush1.msra.mxu0 %v376
        %7056 = vmatprep.subr.mxu0 %v381
        %7057 = vmatpush1.msra.mxu0 %v380
        %7058 = vmatprep.subr.mxu0 %v385
        %7059 = vmatpush1.msra.mxu0 %v384
        %7060 = vmatprep.subr.mxu0 %v389
        %7061 = vmatpush1.msra.mxu0 %v388
        %7062 = vmatprep.subr.mxu0 %v393
        %7063 = vmatpush1.msra.mxu0 %v392
        %7064 = vmatprep.subr.mxu0 %v397
        %7065 = vmatpush1.msra.mxu0 %v396
        %7066 = vmatprep.subr.mxu0 %v401
        %7067 = vmatpush1.msra.mxu0 %v400
        %7068 = vmatprep.subr.mxu0 %v405
        %7069 = vmatpush1.msra.mxu0 %v404
        %7070 = vmatprep.subr.mxu0 %v409
        %7071 = vmatpush1.msra.mxu0 %v408
        %7072 = vmatprep.subr.mxu0 %v413
        %7073 = vmatpush1.msra.mxu0 %v412
        %7074 = vmatprep.subr.mxu0 %v417
        %7075 = vmatpush1.msra.mxu0 %v416
        %7076 = vmatprep.subr.mxu0 %v421
        %7077 = vmatpush1.msra.mxu0 %v420
        %7078 = vmatprep.mubr.f32.mxu0 %v4421
        %7079 = vmatmul.mubr.f32.gmra.mrb[0].mxu0 %v4413
        %v7080 = vpop.f32.mrb[0].mxu0
        %v7081 = vadd.f32 0.0, %v7080
        %v7082 = vpop.f32.mrb[0].mxu0
        %v7083 = vadd.f32 0.0, %v7082
        %7084 = vdwg.mxu0
        %7085 = vmatprep.subr.mxu0 %v425
        %7086 = vmatpush1.msra.mxu0 %v424
        %7087 = vmatprep.subr.mxu0 %v429
        %7088 = vmatpush1.msra.mxu0 %v428
        %7089 = vmatprep.subr.mxu0 %v433
        %7090 = vmatpush1.msra.mxu0 %v432
        %7091 = vmatprep.subr.mxu0 %v437
        %7092 = vmatpush1.msra.mxu0 %v436
        %7093 = vmatprep.subr.mxu0 %v441
        %7094 = vmatpush1.msra.mxu0 %v440
        %7095 = vmatprep.subr.mxu0 %v445
        %7096 = vmatpush1.msra.mxu0 %v444
        %7097 = vmatprep.subr.mxu0 %v449
        %7098 = vmatpush1.msra.mxu0 %v448
        %7099 = vmatprep.subr.mxu0 %v453
        %7100 = vmatpush1.msra.mxu0 %v452
        %7101 = vmatprep.subr.mxu0 %v457
        %7102 = vmatpush1.msra.mxu0 %v456
        %7103 = vmatprep.subr.mxu0 %v461
        %7104 = vmatpush1.msra.mxu0 %v460
        %7105 = vmatprep.subr.mxu0 %v465
        %7106 = vmatpush1.msra.mxu0 %v464
        %7107 = vmatprep.subr.mxu0 %v469
        %7108 = vmatpush1.msra.mxu0 %v468
        %7109 = vmatprep.subr.mxu0 %v473
        %7110 = vmatpush1.msra.mxu0 %v472
        %7111 = vmatprep.subr.mxu0 %v477
        %7112 = vmatpush1.msra.mxu0 %v476
        %7113 = vmatprep.subr.mxu0 %v481
        %7114 = vmatpush1.msra.mxu0 %v480
        %7115 = vmatprep.subr.mxu0 %v485
        %7116 = vmatpush1.msra.mxu0 %v484
        %7117 = vmatprep.subr.mxu0 %v489
        %7118 = vmatpush1.msra.mxu0 %v488
        %7119 = vmatprep.subr.mxu0 %v493
        %7120 = vmatpush1.msra.mxu0 %v492
        %7121 = vmatprep.subr.mxu0 %v497
        %7122 = vmatpush1.msra.mxu0 %v496
        %7123 = vmatprep.subr.mxu0 %v501
        %7124 = vmatpush1.msra.mxu0 %v500
        %7125 = vmatprep.subr.mxu0 %v505
        %7126 = vmatpush1.msra.mxu0 %v504
        %7127 = vmatprep.subr.mxu0 %v509
        %7128 = vmatpush1.msra.mxu0 %v508
        %7129 = vmatprep.subr.mxu0 %v513
        %7130 = vmatpush1.msra.mxu0 %v512
        %7131 = vmatprep.subr.mxu0 %v517
        %7132 = vmatpush1.msra.mxu0 %v516
        %7133 = vmatprep.subr.mxu0 %v521
        %7134 = vmatpush1.msra.mxu0 %v520
        %7135 = vmatprep.subr.mxu0 %v525
        %7136 = vmatpush1.msra.mxu0 %v524
        %7137 = vmatprep.subr.mxu0 %v529
        %7138 = vmatpush1.msra.mxu0 %v528
        %7139 = vmatprep.subr.mxu0 %v533
        %7140 = vmatpush1.msra.mxu0 %v532
        %7141 = vmatprep.subr.mxu0 %v537
        %7142 = vmatpush1.msra.mxu0 %v536
        %7143 = vmatprep.subr.mxu0 %v541
        %7144 = vmatpush1.msra.mxu0 %v540
        %7145 = vmatprep.subr.mxu0 %v545
        %7146 = vmatpush1.msra.mxu0 %v544
        %7147 = vmatprep.subr.mxu0 %v549
        %7148 = vmatpush1.msra.mxu0 %v548
        %7149 = vmatprep.mubr.f32.mxu0 %v4422
        %7150 = vmatmul.mubr.f32.gmra.mrb[0].mxu0 %v4420
        %v7151 = vpop.f32.mrb[0].mxu0
        %v7152 = vadd.f32 %v7081, %v7151
        %v7153 = vpop.f32.mrb[0].mxu0
        %v7154 = vadd.f32 %v7083, %v7153
        %7155 = vdwg.mxu0
        %7156 = vmatprep.subr.mxu0 %v553
        %7157 = vmatpush1.msra.mxu0 %v552
        %7158 = vmatprep.subr.mxu0 %v557
        %7159 = vmatpush1.msra.mxu0 %v556
        %7160 = vmatprep.subr.mxu0 %v561
        %7161 = vmatpush1.msra.mxu0 %v560
        %7162 = vmatprep.subr.mxu0 %v565
        %7163 = vmatpush1.msra.mxu0 %v564
        %7164 = vmatprep.subr.mxu0 %v569
        %7165 = vmatpush1.msra.mxu0 %v568
        %7166 = vmatprep.subr.mxu0 %v573
        %7167 = vmatpush1.msra.mxu0 %v572
        %7168 = vmatprep.subr.mxu0 %v577
        %7169 = vmatpush1.msra.mxu0 %v576
        %7170 = vmatprep.subr.mxu0 %v581
        %7171 = vmatpush1.msra.mxu0 %v580
        %7172 = vmatprep.subr.mxu0 %v585
        %7173 = vmatpush1.msra.mxu0 %v584
        %7174 = vmatprep.subr.mxu0 %v589
        %7175 = vmatpush1.msra.mxu0 %v588
        %7176 = vmatprep.subr.mxu0 %v593
        %7177 = vmatpush1.msra.mxu0 %v592
        %7178 = vmatprep.subr.mxu0 %v597
        %7179 = vmatpush1.msra.mxu0 %v596
        %7180 = vmatprep.subr.mxu0 %v601
        %7181 = vmatpush1.msra.mxu0 %v600
        %7182 = vmatprep.subr.mxu0 %v605
        %7183 = vmatpush1.msra.mxu0 %v604
        %7184 = vmatprep.subr.mxu0 %v609
        %7185 = vmatpush1.msra.mxu0 %v608
        %7186 = vmatprep.subr.mxu0 %v613
        %7187 = vmatpush1.msra.mxu0 %v612
        %7188 = vmatprep.subr.mxu0 %v617
        %7189 = vmatpush1.msra.mxu0 %v616
        %7190 = vmatprep.subr.mxu0 %v621
        %7191 = vmatpush1.msra.mxu0 %v620
        %7192 = vmatprep.subr.mxu0 %v625
        %7193 = vmatpush1.msra.mxu0 %v624
        %7194 = vmatprep.subr.mxu0 %v629
        %7195 = vmatpush1.msra.mxu0 %v628
        %7196 = vmatprep.subr.mxu0 %v633
        %7197 = vmatpush1.msra.mxu0 %v632
        %7198 = vmatprep.subr.mxu0 %v637
        %7199 = vmatpush1.msra.mxu0 %v636
        %7200 = vmatprep.subr.mxu0 %v641
        %7201 = vmatpush1.msra.mxu0 %v640
        %7202 = vmatprep.subr.mxu0 %v645
        %7203 = vmatpush1.msra.mxu0 %v644
        %7204 = vmatprep.subr.mxu0 %v649
        %7205 = vmatpush1.msra.mxu0 %v648
        %7206 = vmatprep.subr.mxu0 %v653
        %7207 = vmatpush1.msra.mxu0 %v652
        %7208 = vmatprep.subr.mxu0 %v657
        %7209 = vmatpush1.msra.mxu0 %v656
        %7210 = vmatprep.subr.mxu0 %v661
        %7211 = vmatpush1.msra.mxu0 %v660
        %7212 = vmatprep.subr.mxu0 %v665
        %7213 = vmatpush1.msra.mxu0 %v664
        %7214 = vmatprep.subr.mxu0 %v669
        %7215 = vmatpush1.msra.mxu0 %v668
        %7216 = vmatprep.subr.mxu0 %v673
        %7217 = vmatpush1.msra.mxu0 %v672
        %7218 = vmatprep.subr.mxu0 %v677
        %7219 = vmatpush1.msra.mxu0 %v676
        %7220 = vmatprep.mubr.f32.mxu0 %v4438
        %7221 = vmatmul.mubr.f32.gmra.mrb[0].mxu0 %v4430
        %v7222 = vpop.f32.mrb[0].mxu0
        %v7223 = vadd.f32 %v7152, %v7222
        %v7224 = vpop.f32.mrb[0].mxu0
        %v7225 = vadd.f32 %v7154, %v7224
        %7226 = vdwg.mxu0
        %7227 = vmatprep.subr.mxu0 %v681
        %7228 = vmatpush1.msra.mxu0 %v680
        %7229 = vmatprep.subr.mxu0 %v685
        %7230 = vmatpush1.msra.mxu0 %v684
        %7231 = vmatprep.subr.mxu0 %v689
        %7232 = vmatpush1.msra.mxu0 %v688
        %7233 = vmatprep.subr.mxu0 %v693
        %7234 = vmatpush1.msra.mxu0 %v692
        %7235 = vmatprep.subr.mxu0 %v697
        %7236 = vmatpush1.msra.mxu0 %v696
        %7237 = vmatprep.subr.mxu0 %v701
        %7238 = vmatpush1.msra.mxu0 %v700
        %7239 = vmatprep.subr.mxu0 %v705
        %7240 = vmatpush1.msra.mxu0 %v704
        %7241 = vmatprep.subr.mxu0 %v709
        %7242 = vmatpush1.msra.mxu0 %v708
        %7243 = vmatprep.subr.mxu0 %v713
        %7244 = vmatpush1.msra.mxu0 %v712
        %7245 = vmatprep.subr.mxu0 %v717
        %7246 = vmatpush1.msra.mxu0 %v716
        %7247 = vmatprep.subr.mxu0 %v721
        %7248 = vmatpush1.msra.mxu0 %v720
        %7249 = vmatprep.subr.mxu0 %v725
        %7250 = vmatpush1.msra.mxu0 %v724
        %7251 = vmatprep.subr.mxu0 %v729
        %7252 = vmatpush1.msra.mxu0 %v728
        %7253 = vmatprep.subr.mxu0 %v733
        %7254 = vmatpush1.msra.mxu0 %v732
        %7255 = vmatprep.subr.mxu0 %v737
        %7256 = vmatpush1.msra.mxu0 %v736
        %7257 = vmatprep.subr.mxu0 %v741
        %7258 = vmatpush1.msra.mxu0 %v740
        %7259 = vmatprep.subr.mxu0 %v745
        %7260 = vmatpush1.msra.mxu0 %v744
        %7261 = vmatprep.subr.mxu0 %v749
        %7262 = vmatpush1.msra.mxu0 %v748
        %7263 = vmatprep.subr.mxu0 %v753
        %7264 = vmatpush1.msra.mxu0 %v752
        %7265 = vmatprep.subr.mxu0 %v757
        %7266 = vmatpush1.msra.mxu0 %v756
        %7267 = vmatprep.subr.mxu0 %v761
        %7268 = vmatpush1.msra.mxu0 %v760
        %7269 = vmatprep.subr.mxu0 %v765
        %7270 = vmatpush1.msra.mxu0 %v764
        %7271 = vmatprep.subr.mxu0 %v769
        %7272 = vmatpush1.msra.mxu0 %v768
        %7273 = vmatprep.subr.mxu0 %v773
        %7274 = vmatpush1.msra.mxu0 %v772
        %7275 = vmatprep.subr.mxu0 %v777
        %7276 = vmatpush1.msra.mxu0 %v776
        %7277 = vmatprep.subr.mxu0 %v781
        %7278 = vmatpush1.msra.mxu0 %v780
        %7279 = vmatprep.subr.mxu0 %v785
        %7280 = vmatpush1.msra.mxu0 %v784
        %7281 = vmatprep.subr.mxu0 %v789
        %7282 = vmatpush1.msra.mxu0 %v788
        %7283 = vmatprep.subr.mxu0 %v793
        %7284 = vmatpush1.msra.mxu0 %v792
        %7285 = vmatprep.subr.mxu0 %v797
        %7286 = vmatpush1.msra.mxu0 %v796
        %7287 = vmatprep.subr.mxu0 %v801
        %7288 = vmatpush1.msra.mxu0 %v800
        %7289 = vmatprep.subr.mxu0 %v805
        %7290 = vmatpush1.msra.mxu0 %v804
        %7291 = vmatprep.mubr.f32.mxu0 %v4439
        %7292 = vmatmul.mubr.f32.gmra.mrb[0].mxu0 %v4437
        %v7293 = vpop.f32.mrb[0].mxu0
        %v7294 = vadd.f32 %v7223, %v7293
        %v7295 = vpop.f32.mrb[0].mxu0
        %v7296 = vadd.f32 %v7225, %v7295
        %7297 = vdwg.mxu0
        %7298 = vmatprep.subr.mxu0 %v809
        %7299 = vmatpush1.msra.mxu0 %v808
        %7300 = vmatprep.subr.mxu0 %v813
        %7301 = vmatpush1.msra.mxu0 %v812
        %7302 = vmatprep.subr.mxu0 %v817
        %7303 = vmatpush1.msra.mxu0 %v816
        %7304 = vmatprep.subr.mxu0 %v821
        %7305 = vmatpush1.msra.mxu0 %v820
        %7306 = vmatprep.subr.mxu0 %v825
        %7307 = vmatpush1.msra.mxu0 %v824
        %7308 = vmatprep.subr.mxu0 %v829
        %7309 = vmatpush1.msra.mxu0 %v828
        %7310 = vmatprep.subr.mxu0 %v833
        %7311 = vmatpush1.msra.mxu0 %v832
        %7312 = vmatprep.subr.mxu0 %v837
        %7313 = vmatpush1.msra.mxu0 %v836
        %7314 = vmatprep.subr.mxu0 %v841
        %7315 = vmatpush1.msra.mxu0 %v840
        %7316 = vmatprep.subr.mxu0 %v845
        %7317 = vmatpush1.msra.mxu0 %v844
        %7318 = vmatprep.subr.mxu0 %v849
        %7319 = vmatpush1.msra.mxu0 %v848
        %7320 = vmatprep.subr.mxu0 %v853
        %7321 = vmatpush1.msra.mxu0 %v852
        %7322 = vmatprep.subr.mxu0 %v857
        %7323 = vmatpush1.msra.mxu0 %v856
        %7324 = vmatprep.subr.mxu0 %v861
        %7325 = vmatpush1.msra.mxu0 %v860
        %7326 = vmatprep.subr.mxu0 %v865
        %7327 = vmatpush1.msra.mxu0 %v864
        %7328 = vmatprep.subr.mxu0 %v869
        %7329 = vmatpush1.msra.mxu0 %v868
        %7330 = vmatprep.subr.mxu0 %v873
        %7331 = vmatpush1.msra.mxu0 %v872
        %7332 = vmatprep.subr.mxu0 %v877
        %7333 = vmatpush1.msra.mxu0 %v876
        %7334 = vmatprep.subr.mxu0 %v881
        %7335 = vmatpush1.msra.mxu0 %v880
        %7336 = vmatprep.subr.mxu0 %v885
        %7337 = vmatpush1.msra.mxu0 %v884
        %7338 = vmatprep.subr.mxu0 %v889
        %7339 = vmatpush1.msra.mxu0 %v888
        %7340 = vmatprep.subr.mxu0 %v893
        %7341 = vmatpush1.msra.mxu0 %v892
        %7342 = vmatprep.subr.mxu0 %v897
        %7343 = vmatpush1.msra.mxu0 %v896
        %7344 = vmatprep.subr.mxu0 %v901
        %7345 = vmatpush1.msra.mxu0 %v900
        %7346 = vmatprep.subr.mxu0 %v905
        %7347 = vmatpush1.msra.mxu0 %v904
        %7348 = vmatprep.subr.mxu0 %v909
        %7349 = vmatpush1.msra.mxu0 %v908
        %7350 = vmatprep.subr.mxu0 %v913
        %7351 = vmatpush1.msra.mxu0 %v912
        %7352 = vmatprep.subr.mxu0 %v917
        %7353 = vmatpush1.msra.mxu0 %v916
        %7354 = vmatprep.subr.mxu0 %v921
        %7355 = vmatpush1.msra.mxu0 %v920
        %7356 = vmatprep.subr.mxu0 %v925
        %7357 = vmatpush1.msra.mxu0 %v924
        %7358 = vmatprep.subr.mxu0 %v929
        %7359 = vmatpush1.msra.mxu0 %v928
        %7360 = vmatprep.subr.mxu0 %v933
        %7361 = vmatpush1.msra.mxu0 %v932
        %7362 = vmatprep.mubr.f32.mxu0 %v4455
        %7363 = vmatmul.mubr.f32.gmra.mrb[0].mxu0 %v4447
        %v7364 = vpop.f32.mrb[0].mxu0
        %v7365 = vadd.f32 %v7294, %v7364
        %v7366 = vpop.f32.mrb[0].mxu0
        %v7367 = vadd.f32 %v7296, %v7366
        %7368 = vdwg.mxu0
        %7369 = vmatprep.subr.mxu0 %v937
        %7370 = vmatpush1.msra.mxu0 %v936
        %7371 = vmatprep.subr.mxu0 %v941
        %7372 = vmatpush1.msra.mxu0 %v940
        %7373 = vmatprep.subr.mxu0 %v945
        %7374 = vmatpush1.msra.mxu0 %v944
        %7375 = vmatprep.subr.mxu0 %v949
        %7376 = vmatpush1.msra.mxu0 %v948
        %7377 = vmatprep.subr.mxu0 %v953
        %7378 = vmatpush1.msra.mxu0 %v952
        %7379 = vmatprep.subr.mxu0 %v957
        %7380 = vmatpush1.msra.mxu0 %v956
        %7381 = vmatprep.subr.mxu0 %v961
        %7382 = vmatpush1.msra.mxu0 %v960
        %7383 = vmatprep.subr.mxu0 %v965
        %7384 = vmatpush1.msra.mxu0 %v964
        %7385 = vmatprep.subr.mxu0 %v969
        %7386 = vmatpush1.msra.mxu0 %v968
        %7387 = vmatprep.subr.mxu0 %v973
        %7388 = vmatpush1.msra.mxu0 %v972
        %7389 = vmatprep.subr.mxu0 %v977
        %7390 = vmatpush1.msra.mxu0 %v976
        %7391 = vmatprep.subr.mxu0 %v981
        %7392 = vmatpush1.msra.mxu0 %v980
        %7393 = vmatprep.subr.mxu0 %v985
        %7394 = vmatpush1.msra.mxu0 %v984
        %7395 = vmatprep.subr.mxu0 %v989
        %7396 = vmatpush1.msra.mxu0 %v988
        %7397 = vmatprep.subr.mxu0 %v993
        %7398 = vmatpush1.msra.mxu0 %v992
        %7399 = vmatprep.subr.mxu0 %v997
        %7400 = vmatpush1.msra.mxu0 %v996
        %7401 = vmatprep.subr.mxu0 %v1001
        %7402 = vmatpush1.msra.mxu0 %v1000
        %7403 = vmatprep.subr.mxu0 %v1005
        %7404 = vmatpush1.msra.mxu0 %v1004
        %7405 = vmatprep.subr.mxu0 %v1009
        %7406 = vmatpush1.msra.mxu0 %v1008
        %7407 = vmatprep.subr.mxu0 %v1013
        %7408 = vmatpush1.msra.mxu0 %v1012
        %7409 = vmatprep.subr.mxu0 %v1017
        %7410 = vmatpush1.msra.mxu0 %v1016
        %7411 = vmatprep.subr.mxu0 %v1021
        %7412 = vmatpush1.msra.mxu0 %v1020
        %7413 = vmatprep.subr.mxu0 %v1025
        %7414 = vmatpush1.msra.mxu0 %v1024
        %7415 = vmatprep.subr.mxu0 %v1029
        %7416 = vmatpush1.msra.mxu0 %v1028
        %7417 = vmatprep.subr.mxu0 %v1033
        %7418 = vmatpush1.msra.mxu0 %v1032
        %7419 = vmatprep.subr.mxu0 %v1037
        %7420 = vmatpush1.msra.mxu0 %v1036
        %7421 = vmatprep.subr.mxu0 %v1041
        %7422 = vmatpush1.msra.mxu0 %v1040
        %7423 = vmatprep.subr.mxu0 %v1045
        %7424 = vmatpush1.msra.mxu0 %v1044
        %7425 = vmatprep.subr.mxu0 %v1049
        %7426 = vmatpush1.msra.mxu0 %v1048
        %7427 = vmatprep.subr.mxu0 %v1053
        %7428 = vmatpush1.msra.mxu0 %v1052
        %7429 = vmatprep.subr.mxu0 %v1057
        %7430 = vmatpush1.msra.mxu0 %v1056
        %7431 = vmatprep.subr.mxu0 %v1061
        %7432 = vmatpush1.msra.mxu0 %v1060
        %7433 = vmatprep.mubr.f32.mxu0 %v4456
        %7434 = vmatmul.mubr.f32.gmra.mrb[0].mxu0 %v4454
        %v7435 = vpop.f32.mrb[0].mxu0
        %v7436 = vadd.f32 %v7365, %v7435
        %v7437 = vpop.f32.mrb[0].mxu0
        %v7438 = vadd.f32 %v7367, %v7437
        %7439 = vdwg.mxu0
        %7440 = vmatprep.subr.mxu0 %v1065
        %7441 = vmatpush1.msra.mxu0 %v1064
        %7442 = vmatprep.subr.mxu0 %v1069
        %7443 = vmatpush1.msra.mxu0 %v1068
        %7444 = vmatprep.subr.mxu0 %v1073
        %7445 = vmatpush1.msra.mxu0 %v1072
        %7446 = vmatprep.subr.mxu0 %v1077
        %7447 = vmatpush1.msra.mxu0 %v1076
        %7448 = vmatprep.subr.mxu0 %v1081
        %7449 = vmatpush1.msra.mxu0 %v1080
        %7450 = vmatprep.subr.mxu0 %v1085
        %7451 = vmatpush1.msra.mxu0 %v1084
        %7452 = vmatprep.subr.mxu0 %v1089
        %7453 = vmatpush1.msra.mxu0 %v1088
        %7454 = vmatprep.subr.mxu0 %v1093
        %7455 = vmatpush1.msra.mxu0 %v1092
        %7456 = vmatprep.subr.mxu0 %v1097
        %7457 = vmatpush1.msra.mxu0 %v1096
        %7458 = vmatprep.subr.mxu0 %v1101
        %7459 = vmatpush1.msra.mxu0 %v1100
        %7460 = vmatprep.subr.mxu0 %v1105
        %7461 = vmatpush1.msra.mxu0 %v1104
        %7462 = vmatprep.subr.mxu0 %v1109
        %7463 = vmatpush1.msra.mxu0 %v1108
        %7464 = vmatprep.subr.mxu0 %v1113
        %7465 = vmatpush1.msra.mxu0 %v1112
        %7466 = vmatprep.subr.mxu0 %v1117
        %7467 = vmatpush1.msra.mxu0 %v1116
        %7468 = vmatprep.subr.mxu0 %v1121
        %7469 = vmatpush1.msra.mxu0 %v1120
        %7470 = vmatprep.subr.mxu0 %v1125
        %7471 = vmatpush1.msra.mxu0 %v1124
        %7472 = vmatprep.subr.mxu0 %v1129
        %7473 = vmatpush1.msra.mxu0 %v1128
        %7474 = vmatprep.subr.mxu0 %v1133
        %7475 = vmatpush1.msra.mxu0 %v1132
        %7476 = vmatprep.subr.mxu0 %v1137
        %7477 = vmatpush1.msra.mxu0 %v1136
        %7478 = vmatprep.subr.mxu0 %v1141
        %7479 = vmatpush1.msra.mxu0 %v1140
        %7480 = vmatprep.subr.mxu0 %v1145
        %7481 = vmatpush1.msra.mxu0 %v1144
        %7482 = vmatprep.subr.mxu0 %v1149
        %7483 = vmatpush1.msra.mxu0 %v1148
        %7484 = vmatprep.subr.mxu0 %v1153
        %7485 = vmatpush1.msra.mxu0 %v1152
        %7486 = vmatprep.subr.mxu0 %v1157
        %7487 = vmatpush1.msra.mxu0 %v1156
        %7488 = vmatprep.subr.mxu0 %v1161
        %7489 = vmatpush1.msra.mxu0 %v1160
        %7490 = vmatprep.subr.mxu0 %v1165
        %7491 = vmatpush1.msra.mxu0 %v1164
        %7492 = vmatprep.subr.mxu0 %v1169
        %7493 = vmatpush1.msra.mxu0 %v1168
        %7494 = vmatprep.subr.mxu0 %v1173
        %7495 = vmatpush1.msra.mxu0 %v1172
        %7496 = vmatprep.subr.mxu0 %v1177
        %7497 = vmatpush1.msra.mxu0 %v1176
        %7498 = vmatprep.subr.mxu0 %v1181
        %7499 = vmatpush1.msra.mxu0 %v1180
        %7500 = vmatprep.subr.mxu0 %v1185
        %7501 = vmatpush1.msra.mxu0 %v1184
        %7502 = vmatprep.subr.mxu0 %v1189
        %7503 = vmatpush1.msra.mxu0 %v1188
        %7504 = vmatprep.mubr.f32.mxu0 %v4472
        %7505 = vmatmul.mubr.f32.gmra.mrb[0].mxu0 %v4464
        %v7506 = vpop.f32.mrb[0].mxu0
        %v7507 = vadd.f32 %v7436, %v7506
        %v7508 = vpop.f32.mrb[0].mxu0
        %v7509 = vadd.f32 %v7438, %v7508
        %7510 = vdwg.mxu0
        %7511 = vmatprep.subr.mxu0 %v1193
        %7512 = vmatpush1.msra.mxu0 %v1192
        %7513 = vmatprep.subr.mxu0 %v1197
        %7514 = vmatpush1.msra.mxu0 %v1196
        %7515 = vmatprep.subr.mxu0 %v1201
        %7516 = vmatpush1.msra.mxu0 %v1200
        %7517 = vmatprep.subr.mxu0 %v1205
        %7518 = vmatpush1.msra.mxu0 %v1204
        %7519 = vmatprep.subr.mxu0 %v1209
        %7520 = vmatpush1.msra.mxu0 %v1208
        %7521 = vmatprep.subr.mxu0 %v1213
        %7522 = vmatpush1.msra.mxu0 %v1212
        %7523 = vmatprep.subr.mxu0 %v1217
        %7524 = vmatpush1.msra.mxu0 %v1216
        %7525 = vmatprep.subr.mxu0 %v1221
        %7526 = vmatpush1.msra.mxu0 %v1220
        %7527 = vmatprep.subr.mxu0 %v1225
        %7528 = vmatpush1.msra.mxu0 %v1224
        %7529 = vmatprep.subr.mxu0 %v1229
        %7530 = vmatpush1.msra.mxu0 %v1228
        %7531 = vmatprep.subr.mxu0 %v1233
        %7532 = vmatpush1.msra.mxu0 %v1232
        %7533 = vmatprep.subr.mxu0 %v1237
        %7534 = vmatpush1.msra.mxu0 %v1236
        %7535 = vmatprep.subr.mxu0 %v1241
        %7536 = vmatpush1.msra.mxu0 %v1240
        %7537 = vmatprep.subr.mxu0 %v1245
        %7538 = vmatpush1.msra.mxu0 %v1244
        %7539 = vmatprep.subr.mxu0 %v1249
        %7540 = vmatpush1.msra.mxu0 %v1248
        %7541 = vmatprep.subr.mxu0 %v1253
        %7542 = vmatpush1.msra.mxu0 %v1252
        %7543 = vmatprep.subr.mxu0 %v1257
        %7544 = vmatpush1.msra.mxu0 %v1256
        %7545 = vmatprep.subr.mxu0 %v1261
        %7546 = vmatpush1.msra.mxu0 %v1260
        %7547 = vmatprep.subr.mxu0 %v1265
        %7548 = vmatpush1.msra.mxu0 %v1264
        %7549 = vmatprep.subr.mxu0 %v1269
        %7550 = vmatpush1.msra.mxu0 %v1268
        %7551 = vmatprep.subr.mxu0 %v1273
        %7552 = vmatpush1.msra.mxu0 %v1272
        %7553 = vmatprep.subr.mxu0 %v1277
        %7554 = vmatpush1.msra.mxu0 %v1276
        %7555 = vmatprep.subr.mxu0 %v1281
        %7556 = vmatpush1.msra.mxu0 %v1280
        %7557 = vmatprep.subr.mxu0 %v1285
        %7558 = vmatpush1.msra.mxu0 %v1284
        %7559 = vmatprep.subr.mxu0 %v1289
        %7560 = vmatpush1.msra.mxu0 %v1288
        %7561 = vmatprep.subr.mxu0 %v1293
        %7562 = vmatpush1.msra.mxu0 %v1292
        %7563 = vmatprep.subr.mxu0 %v1297
        %7564 = vmatpush1.msra.mxu0 %v1296
        %7565 = vmatprep.subr.mxu0 %v1301
        %7566 = vmatpush1.msra.mxu0 %v1300
        %7567 = vmatprep.subr.mxu0 %v1305
        %7568 = vmatpush1.msra.mxu0 %v1304
        %7569 = vmatprep.subr.mxu0 %v1309
        %7570 = vmatpush1.msra.mxu0 %v1308
        %7571 = vmatprep.subr.mxu0 %v1313
        %7572 = vmatpush1.msra.mxu0 %v1312
        %7573 = vmatprep.subr.mxu0 %v1317
        %7574 = vmatpush1.msra.mxu0 %v1316
        %7575 = vmatprep.mubr.f32.mxu0 %v4473
        %7576 = vmatmul.mubr.f32.gmra.mrb[0].mxu0 %v4471
        %v7577 = vpop.f32.mrb[0].mxu0
        %v7578 = vadd.f32 %v7507, %v7577
        %v7579 = vpop.f32.mrb[0].mxu0
        %v7580 = vadd.f32 %v7509, %v7579
        %7581 = vdwg.mxu0
        %7582 = vmatprep.subr.mxu0 %v1321
        %7583 = vmatpush1.msra.mxu0 %v1320
        %7584 = vmatprep.subr.mxu0 %v1325
        %7585 = vmatpush1.msra.mxu0 %v1324
        %7586 = vmatprep.subr.mxu0 %v1329
        %7587 = vmatpush1.msra.mxu0 %v1328
        %7588 = vmatprep.subr.mxu0 %v1333
        %7589 = vmatpush1.msra.mxu0 %v1332
        %7590 = vmatprep.subr.mxu0 %v1337
        %7591 = vmatpush1.msra.mxu0 %v1336
        %7592 = vmatprep.subr.mxu0 %v1341
        %7593 = vmatpush1.msra.mxu0 %v1340
        %7594 = vmatprep.subr.mxu0 %v1345
        %7595 = vmatpush1.msra.mxu0 %v1344
        %7596 = vmatprep.subr.mxu0 %v1349
        %7597 = vmatpush1.msra.mxu0 %v1348
        %7598 = vmatprep.subr.mxu0 %v1353
        %7599 = vmatpush1.msra.mxu0 %v1352
        %7600 = vmatprep.subr.mxu0 %v1357
        %7601 = vmatpush1.msra.mxu0 %v1356
        %7602 = vmatprep.subr.mxu0 %v1361
        %7603 = vmatpush1.msra.mxu0 %v1360
        %7604 = vmatprep.subr.mxu0 %v1365
        %7605 = vmatpush1.msra.mxu0 %v1364
        %7606 = vmatprep.subr.mxu0 %v1369
        %7607 = vmatpush1.msra.mxu0 %v1368
        %7608 = vmatprep.subr.mxu0 %v1373
        %7609 = vmatpush1.msra.mxu0 %v1372
        %7610 = vmatprep.subr.mxu0 %v1377
        %7611 = vmatpush1.msra.mxu0 %v1376
        %7612 = vmatprep.subr.mxu0 %v1381
        %7613 = vmatpush1.msra.mxu0 %v1380
        %7614 = vmatprep.subr.mxu0 %v1385
        %7615 = vmatpush1.msra.mxu0 %v1384
        %7616 = vmatprep.subr.mxu0 %v1389
        %7617 = vmatpush1.msra.mxu0 %v1388
        %7618 = vmatprep.subr.mxu0 %v1393
        %7619 = vmatpush1.msra.mxu0 %v1392
        %7620 = vmatprep.subr.mxu0 %v1397
        %7621 = vmatpush1.msra.mxu0 %v1396
        %7622 = vmatprep.subr.mxu0 %v1401
        %7623 = vmatpush1.msra.mxu0 %v1400
        %7624 = vmatprep.subr.mxu0 %v1405
        %7625 = vmatpush1.msra.mxu0 %v1404
        %7626 = vmatprep.subr.mxu0 %v1409
        %7627 = vmatpush1.msra.mxu0 %v1408
        %7628 = vmatprep.subr.mxu0 %v1413
        %7629 = vmatpush1.msra.mxu0 %v1412
        %7630 = vmatprep.subr.mxu0 %v1417
        %7631 = vmatpush1.msra.mxu0 %v1416
        %7632 = vmatprep.subr.mxu0 %v1421
        %7633 = vmatpush1.msra.mxu0 %v1420
        %7634 = vmatprep.subr.mxu0 %v1425
        %7635 = vmatpush1.msra.mxu0 %v1424
        %7636 = vmatprep.subr.mxu0 %v1429
        %7637 = vmatpush1.msra.mxu0 %v1428
        %7638 = vmatprep.subr.mxu0 %v1433
        %7639 = vmatpush1.msra.mxu0 %v1432
        %7640 = vmatprep.subr.mxu0 %v1437
        %7641 = vmatpush1.msra.mxu0 %v1436
        %7642 = vmatprep.subr.mxu0 %v1441
        %7643 = vmatpush1.msra.mxu0 %v1440
        %7644 = vmatprep.subr.mxu0 %v1445
        %7645 = vmatpush1.msra.mxu0 %v1444
        %7646 = vmatprep.mubr.f32.mxu0 %v4489
        %7647 = vmatmul.mubr.f32.gmra.mrb[0].mxu0 %v4481
        %v7648 = vpop.f32.mrb[0].mxu0
        %v7649 = vadd.f32 %v7578, %v7648
        %v7650 = vpop.f32.mrb[0].mxu0
        %v7651 = vadd.f32 %v7580, %v7650
        %7652 = vdwg.mxu0
        %7653 = vmatprep.subr.mxu0 %v1449
        %7654 = vmatpush1.msra.mxu0 %v1448
        %7655 = vmatprep.subr.mxu0 %v1453
        %7656 = vmatpush1.msra.mxu0 %v1452
        %7657 = vmatprep.subr.mxu0 %v1457
        %7658 = vmatpush1.msra.mxu0 %v1456
        %7659 = vmatprep.subr.mxu0 %v1461
        %7660 = vmatpush1.msra.mxu0 %v1460
        %7661 = vmatprep.subr.mxu0 %v1465
        %7662 = vmatpush1.msra.mxu0 %v1464
        %7663 = vmatprep.subr.mxu0 %v1469
        %7664 = vmatpush1.msra.mxu0 %v1468
        %7665 = vmatprep.subr.mxu0 %v1473
        %7666 = vmatpush1.msra.mxu0 %v1472
        %7667 = vmatprep.subr.mxu0 %v1477
        %7668 = vmatpush1.msra.mxu0 %v1476
        %7669 = vmatprep.subr.mxu0 %v1481
        %7670 = vmatpush1.msra.mxu0 %v1480
        %7671 = vmatprep.subr.mxu0 %v1485
        %7672 = vmatpush1.msra.mxu0 %v1484
        %7673 = vmatprep.subr.mxu0 %v1489
        %7674 = vmatpush1.msra.mxu0 %v1488
        %7675 = vmatprep.subr.mxu0 %v1493
        %7676 = vmatpush1.msra.mxu0 %v1492
        %7677 = vmatprep.subr.mxu0 %v1497
        %7678 = vmatpush1.msra.mxu0 %v1496
        %7679 = vmatprep.subr.mxu0 %v1501
        %7680 = vmatpush1.msra.mxu0 %v1500
        %7681 = vmatprep.subr.mxu0 %v1505
        %7682 = vmatpush1.msra.mxu0 %v1504
        %7683 = vmatprep.subr.mxu0 %v1509
        %7684 = vmatpush1.msra.mxu0 %v1508
        %7685 = vmatprep.subr.mxu0 %v1513
        %7686 = vmatpush1.msra.mxu0 %v1512
        %7687 = vmatprep.subr.mxu0 %v1517
        %7688 = vmatpush1.msra.mxu0 %v1516
        %7689 = vmatprep.subr.mxu0 %v1521
        %7690 = vmatpush1.msra.mxu0 %v1520
        %7691 = vmatprep.subr.mxu0 %v1525
        %7692 = vmatpush1.msra.mxu0 %v1524
        %7693 = vmatprep.subr.mxu0 %v1529
        %7694 = vmatpush1.msra.mxu0 %v1528
        %7695 = vmatprep.subr.mxu0 %v1533
        %7696 = vmatpush1.msra.mxu0 %v1532
        %7697 = vmatprep.subr.mxu0 %v1537
        %7698 = vmatpush1.msra.mxu0 %v1536
        %7699 = vmatprep.subr.mxu0 %v1541
        %7700 = vmatpush1.msra.mxu0 %v1540
        %7701 = vmatprep.subr.mxu0 %v1545
        %7702 = vmatpush1.msra.mxu0 %v1544
        %7703 = vmatprep.subr.mxu0 %v1549
        %7704 = vmatpush1.msra.mxu0 %v1548
        %7705 = vmatprep.subr.mxu0 %v1553
        %7706 = vmatpush1.msra.mxu0 %v1552
        %7707 = vmatprep.subr.mxu0 %v1557
        %7708 = vmatpush1.msra.mxu0 %v1556
        %7709 = vmatprep.subr.mxu0 %v1561
        %7710 = vmatpush1.msra.mxu0 %v1560
        %7711 = vmatprep.subr.mxu0 %v1565
        %7712 = vmatpush1.msra.mxu0 %v1564
        %7713 = vmatprep.subr.mxu0 %v1569
        %7714 = vmatpush1.msra.mxu0 %v1568
        %7715 = vmatprep.subr.mxu0 %v1573
        %7716 = vmatpush1.msra.mxu0 %v1572
        %7717 = vmatprep.mubr.f32.mxu0 %v4490
        %7718 = vmatmul.mubr.f32.gmra.mrb[0].mxu0 %v4488
        %v7719 = vpop.f32.mrb[0].mxu0
        %v7720 = vadd.f32 %v7649, %v7719
        %v7721 = vpop.f32.mrb[0].mxu0
        %v7722 = vadd.f32 %v7651, %v7721
        %7723 = vdwg.mxu0
        %7724 = vmatprep.subr.mxu0 %v1577
        %7725 = vmatpush1.msra.mxu0 %v1576
        %7726 = vmatprep.subr.mxu0 %v1581
        %7727 = vmatpush1.msra.mxu0 %v1580
        %7728 = vmatprep.subr.mxu0 %v1585
        %7729 = vmatpush1.msra.mxu0 %v1584
        %7730 = vmatprep.subr.mxu0 %v1589
        %7731 = vmatpush1.msra.mxu0 %v1588
        %7732 = vmatprep.subr.mxu0 %v1593
        %7733 = vmatpush1.msra.mxu0 %v1592
        %7734 = vmatprep.subr.mxu0 %v1597
        %7735 = vmatpush1.msra.mxu0 %v1596
        %7736 = vmatprep.subr.mxu0 %v1601
        %7737 = vmatpush1.msra.mxu0 %v1600
        %7738 = vmatprep.subr.mxu0 %v1605
        %7739 = vmatpush1.msra.mxu0 %v1604
        %7740 = vmatprep.subr.mxu0 %v1609
        %7741 = vmatpush1.msra.mxu0 %v1608
        %7742 = vmatprep.subr.mxu0 %v1613
        %7743 = vmatpush1.msra.mxu0 %v1612
        %7744 = vmatprep.subr.mxu0 %v1617
        %7745 = vmatpush1.msra.mxu0 %v1616
        %7746 = vmatprep.subr.mxu0 %v1621
        %7747 = vmatpush1.msra.mxu0 %v1620
        %7748 = vmatprep.subr.mxu0 %v1625
        %7749 = vmatpush1.msra.mxu0 %v1624
        %7750 = vmatprep.subr.mxu0 %v1629
        %7751 = vmatpush1.msra.mxu0 %v1628
        %7752 = vmatprep.subr.mxu0 %v1633
        %7753 = vmatpush1.msra.mxu0 %v1632
        %7754 = vmatprep.subr.mxu0 %v1637
        %7755 = vmatpush1.msra.mxu0 %v1636
        %7756 = vmatprep.subr.mxu0 %v1641
        %7757 = vmatpush1.msra.mxu0 %v1640
        %7758 = vmatprep.subr.mxu0 %v1645
        %7759 = vmatpush1.msra.mxu0 %v1644
        %7760 = vmatprep.subr.mxu0 %v1649
        %7761 = vmatpush1.msra.mxu0 %v1648
        %7762 = vmatprep.subr.mxu0 %v1653
        %7763 = vmatpush1.msra.mxu0 %v1652
        %7764 = vmatprep.subr.mxu0 %v1657
        %7765 = vmatpush1.msra.mxu0 %v1656
        %7766 = vmatprep.subr.mxu0 %v1661
        %7767 = vmatpush1.msra.mxu0 %v1660
        %7768 = vmatprep.subr.mxu0 %v1665
        %7769 = vmatpush1.msra.mxu0 %v1664
        %7770 = vmatprep.subr.mxu0 %v1669
        %7771 = vmatpush1.msra.mxu0 %v1668
        %7772 = vmatprep.subr.mxu0 %v1673
        %7773 = vmatpush1.msra.mxu0 %v1672
        %7774 = vmatprep.subr.mxu0 %v1677
        %7775 = vmatpush1.msra.mxu0 %v1676
        %7776 = vmatprep.subr.mxu0 %v1681
        %7777 = vmatpush1.msra.mxu0 %v1680
        %7778 = vmatprep.subr.mxu0 %v1685
        %7779 = vmatpush1.msra.mxu0 %v1684
        %7780 = vmatprep.subr.mxu0 %v1689
        %7781 = vmatpush1.msra.mxu0 %v1688
        %7782 = vmatprep.subr.mxu0 %v1693
        %7783 = vmatpush1.msra.mxu0 %v1692
        %7784 = vmatprep.subr.mxu0 %v1697
        %7785 = vmatpush1.msra.mxu0 %v1696
        %7786 = vmatprep.subr.mxu0 %v1701
        %7787 = vmatpush1.msra.mxu0 %v1700
        %7788 = vmatprep.mubr.f32.mxu0 %v4506
        %7789 = vmatmul.mubr.f32.gmra.mrb[0].mxu0 %v4498
        %v7790 = vpop.f32.mrb[0].mxu0
        %v7791 = vadd.f32 %v7720, %v7790
        %v7792 = vpop.f32.mrb[0].mxu0
        %v7793 = vadd.f32 %v7722, %v7792
        %7794 = vdwg.mxu0
        %7795 = vmatprep.subr.mxu0 %v1705
        %7796 = vmatpush1.msra.mxu0 %v1704
        %7797 = vmatprep.subr.mxu0 %v1709
        %7798 = vmatpush1.msra.mxu0 %v1708
        %7799 = vmatprep.subr.mxu0 %v1713
        %7800 = vmatpush1.msra.mxu0 %v1712
        %7801 = vmatprep.subr.mxu0 %v1717
        %7802 = vmatpush1.msra.mxu0 %v1716
        %7803 = vmatprep.subr.mxu0 %v1721
        %7804 = vmatpush1.msra.mxu0 %v1720
        %7805 = vmatprep.subr.mxu0 %v1725
        %7806 = vmatpush1.msra.mxu0 %v1724
        %7807 = vmatprep.subr.mxu0 %v1729
        %7808 = vmatpush1.msra.mxu0 %v1728
        %7809 = vmatprep.subr.mxu0 %v1733
        %7810 = vmatpush1.msra.mxu0 %v1732
        %7811 = vmatprep.subr.mxu0 %v1737
        %7812 = vmatpush1.msra.mxu0 %v1736
        %7813 = vmatprep.subr.mxu0 %v1741
        %7814 = vmatpush1.msra.mxu0 %v1740
        %7815 = vmatprep.subr.mxu0 %v1745
        %7816 = vmatpush1.msra.mxu0 %v1744
        %7817 = vmatprep.subr.mxu0 %v1749
        %7818 = vmatpush1.msra.mxu0 %v1748
        %7819 = vmatprep.subr.mxu0 %v1753
        %7820 = vmatpush1.msra.mxu0 %v1752
        %7821 = vmatprep.subr.mxu0 %v1757
        %7822 = vmatpush1.msra.mxu0 %v1756
        %7823 = vmatprep.subr.mxu0 %v1761
        %7824 = vmatpush1.msra.mxu0 %v1760
        %7825 = vmatprep.subr.mxu0 %v1765
        %7826 = vmatpush1.msra.mxu0 %v1764
        %7827 = vmatprep.subr.mxu0 %v1769
        %7828 = vmatpush1.msra.mxu0 %v1768
        %7829 = vmatprep.subr.mxu0 %v1773
        %7830 = vmatpush1.msra.mxu0 %v1772
        %7831 = vmatprep.subr.mxu0 %v1777
        %7832 = vmatpush1.msra.mxu0 %v1776
        %7833 = vmatprep.subr.mxu0 %v1781
        %7834 = vmatpush1.msra.mxu0 %v1780
        %7835 = vmatprep.subr.mxu0 %v1785
        %7836 = vmatpush1.msra.mxu0 %v1784
        %7837 = vmatprep.subr.mxu0 %v1789
        %7838 = vmatpush1.msra.mxu0 %v1788
        %7839 = vmatprep.subr.mxu0 %v1793
        %7840 = vmatpush1.msra.mxu0 %v1792
        %7841 = vmatprep.subr.mxu0 %v1797
        %7842 = vmatpush1.msra.mxu0 %v1796
        %7843 = vmatprep.subr.mxu0 %v1801
        %7844 = vmatpush1.msra.mxu0 %v1800
        %7845 = vmatprep.subr.mxu0 %v1805
        %7846 = vmatpush1.msra.mxu0 %v1804
        %7847 = vmatprep.subr.mxu0 %v1809
        %7848 = vmatpush1.msra.mxu0 %v1808
        %7849 = vmatprep.subr.mxu0 %v1813
        %7850 = vmatpush1.msra.mxu0 %v1812
        %7851 = vmatprep.subr.mxu0 %v1817
        %7852 = vmatpush1.msra.mxu0 %v1816
        %7853 = vmatprep.subr.mxu0 %v1821
        %7854 = vmatpush1.msra.mxu0 %v1820
        %7855 = vmatprep.subr.mxu0 %v1825
        %7856 = vmatpush1.msra.mxu0 %v1824
        %7857 = vmatprep.subr.mxu0 %v1829
        %7858 = vmatpush1.msra.mxu0 %v1828
        %7859 = vmatprep.mubr.f32.mxu0 %v4507
        %7860 = vmatmul.mubr.f32.gmra.mrb[0].mxu0 %v4505
        %v7861 = vpop.f32.mrb[0].mxu0
        %v7862 = vadd.f32 %v7791, %v7861
        %v7863 = vpop.f32.mrb[0].mxu0
        %v7864 = vadd.f32 %v7793, %v7863
        %7865 = vdwg.mxu0
        %7866 = vmatprep.subr.mxu0 %v1833
        %7867 = vmatpush1.msra.mxu0 %v1832
        %7868 = vmatprep.subr.mxu0 %v1837
        %7869 = vmatpush1.msra.mxu0 %v1836
        %7870 = vmatprep.subr.mxu0 %v1841
        %7871 = vmatpush1.msra.mxu0 %v1840
        %7872 = vmatprep.subr.mxu0 %v1845
        %7873 = vmatpush1.msra.mxu0 %v1844
        %7874 = vmatprep.subr.mxu0 %v1849
        %7875 = vmatpush1.msra.mxu0 %v1848
        %7876 = vmatprep.subr.mxu0 %v1853
        %7877 = vmatpush1.msra.mxu0 %v1852
        %7878 = vmatprep.subr.mxu0 %v1857
        %7879 = vmatpush1.msra.mxu0 %v1856
        %7880 = vmatprep.subr.mxu0 %v1861
        %7881 = vmatpush1.msra.mxu0 %v1860
        %7882 = vmatprep.subr.mxu0 %v1865
        %7883 = vmatpush1.msra.mxu0 %v1864
        %7884 = vmatprep.subr.mxu0 %v1869
        %7885 = vmatpush1.msra.mxu0 %v1868
        %7886 = vmatprep.subr.mxu0 %v1873
        %7887 = vmatpush1.msra.mxu0 %v1872
        %7888 = vmatprep.subr.mxu0 %v1877
        %7889 = vmatpush1.msra.mxu0 %v1876
        %7890 = vmatprep.subr.mxu0 %v1881
        %7891 = vmatpush1.msra.mxu0 %v1880
        %7892 = vmatprep.subr.mxu0 %v1885
        %7893 = vmatpush1.msra.mxu0 %v1884
        %7894 = vmatprep.subr.mxu0 %v1889
        %7895 = vmatpush1.msra.mxu0 %v1888
        %7896 = vmatprep.subr.mxu0 %v1893
        %7897 = vmatpush1.msra.mxu0 %v1892
        %7898 = vmatprep.subr.mxu0 %v1897
        %7899 = vmatpush1.msra.mxu0 %v1896
        %7900 = vmatprep.subr.mxu0 %v1901
        %7901 = vmatpush1.msra.mxu0 %v1900
        %7902 = vmatprep.subr.mxu0 %v1905
        %7903 = vmatpush1.msra.mxu0 %v1904
        %7904 = vmatprep.subr.mxu0 %v1909
        %7905 = vmatpush1.msra.mxu0 %v1908
        %7906 = vmatprep.subr.mxu0 %v1913
        %7907 = vmatpush1.msra.mxu0 %v1912
        %7908 = vmatprep.subr.mxu0 %v1917
        %7909 = vmatpush1.msra.mxu0 %v1916
        %7910 = vmatprep.subr.mxu0 %v1921
        %7911 = vmatpush1.msra.mxu0 %v1920
        %7912 = vmatprep.subr.mxu0 %v1925
        %7913 = vmatpush1.msra.mxu0 %v1924
        %7914 = vmatprep.subr.mxu0 %v1929
        %7915 = vmatpush1.msra.mxu0 %v1928
        %7916 = vmatprep.subr.mxu0 %v1933
        %7917 = vmatpush1.msra.mxu0 %v1932
        %7918 = vmatprep.subr.mxu0 %v1937
        %7919 = vmatpush1.msra.mxu0 %v1936
        %7920 = vmatprep.subr.mxu0 %v1941
        %7921 = vmatpush1.msra.mxu0 %v1940
        %7922 = vmatprep.subr.mxu0 %v1945
        %7923 = vmatpush1.msra.mxu0 %v1944
        %7924 = vmatprep.subr.mxu0 %v1949
        %7925 = vmatpush1.msra.mxu0 %v1948
        %7926 = vmatprep.subr.mxu0 %v1953
        %7927 = vmatpush1.msra.mxu0 %v1952
        %7928 = vmatprep.subr.mxu0 %v1957
        %7929 = vmatpush1.msra.mxu0 %v1956
        %7930 = vmatprep.mubr.f32.mxu0 %v4523
        %7931 = vmatmul.mubr.f32.gmra.mrb[0].mxu0 %v4515
        %v7932 = vpop.f32.mrb[0].mxu0
        %v7933 = vadd.f32 %v7862, %v7932
        %v7934 = vpop.f32.mrb[0].mxu0
        %v7935 = vadd.f32 %v7864, %v7934
        %7936 = vdwg.mxu0
        %7937 = vmatprep.subr.mxu0 %v1961
        %7938 = vmatpush1.msra.mxu0 %v1960
        %7939 = vmatprep.subr.mxu0 %v1965
        %7940 = vmatpush1.msra.mxu0 %v1964
        %7941 = vmatprep.subr.mxu0 %v1969
        %7942 = vmatpush1.msra.mxu0 %v1968
        %7943 = vmatprep.subr.mxu0 %v1973
        %7944 = vmatpush1.msra.mxu0 %v1972
        %7945 = vmatprep.subr.mxu0 %v1977
        %7946 = vmatpush1.msra.mxu0 %v1976
        %7947 = vmatprep.subr.mxu0 %v1981
        %7948 = vmatpush1.msra.mxu0 %v1980
        %7949 = vmatprep.subr.mxu0 %v1985
        %7950 = vmatpush1.msra.mxu0 %v1984
        %7951 = vmatprep.subr.mxu0 %v1989
        %7952 = vmatpush1.msra.mxu0 %v1988
        %7953 = vmatprep.subr.mxu0 %v1993
        %7954 = vmatpush1.msra.mxu0 %v1992
        %7955 = vmatprep.subr.mxu0 %v1997
        %7956 = vmatpush1.msra.mxu0 %v1996
        %7957 = vmatprep.subr.mxu0 %v2001
        %7958 = vmatpush1.msra.mxu0 %v2000
        %7959 = vmatprep.subr.mxu0 %v2005
        %7960 = vmatpush1.msra.mxu0 %v2004
        %7961 = vmatprep.subr.mxu0 %v2009
        %7962 = vmatpush1.msra.mxu0 %v2008
        %7963 = vmatprep.subr.mxu0 %v2013
        %7964 = vmatpush1.msra.mxu0 %v2012
        %7965 = vmatprep.subr.mxu0 %v2017
        %7966 = vmatpush1.msra.mxu0 %v2016
        %7967 = vmatprep.subr.mxu0 %v2021
        %7968 = vmatpush1.msra.mxu0 %v2020
        %7969 = vmatprep.subr.mxu0 %v2025
        %7970 = vmatpush1.msra.mxu0 %v2024
        %7971 = vmatprep.subr.mxu0 %v2029
        %7972 = vmatpush1.msra.mxu0 %v2028
        %7973 = vmatprep.subr.mxu0 %v2033
        %7974 = vmatpush1.msra.mxu0 %v2032
        %7975 = vmatprep.subr.mxu0 %v2037
        %7976 = vmatpush1.msra.mxu0 %v2036
        %7977 = vmatprep.subr.mxu0 %v2041
        %7978 = vmatpush1.msra.mxu0 %v2040
        %7979 = vmatprep.subr.mxu0 %v2045
        %7980 = vmatpush1.msra.mxu0 %v2044
        %7981 = vmatprep.subr.mxu0 %v2049
        %7982 = vmatpush1.msra.mxu0 %v2048
        %7983 = vmatprep.subr.mxu0 %v2053
        %7984 = vmatpush1.msra.mxu0 %v2052
        %7985 = vmatprep.subr.mxu0 %v2057
        %7986 = vmatpush1.msra.mxu0 %v2056
        %7987 = vmatprep.subr.mxu0 %v2061
        %7988 = vmatpush1.msra.mxu0 %v2060
        %7989 = vmatprep.subr.mxu0 %v2065
        %7990 = vmatpush1.msra.mxu0 %v2064
        %7991 = vmatprep.subr.mxu0 %v2069
        %7992 = vmatpush1.msra.mxu0 %v2068
        %7993 = vmatprep.subr.mxu0 %v2073
        %7994 = vmatpush1.msra.mxu0 %v2072
        %7995 = vmatprep.subr.mxu0 %v2077
        %7996 = vmatpush1.msra.mxu0 %v2076
        %7997 = vmatprep.subr.mxu0 %v2081
        %7998 = vmatpush1.msra.mxu0 %v2080
        %7999 = vmatprep.subr.mxu0 %v2085
        %8000 = vmatpush1.msra.mxu0 %v2084
        %8001 = vmatprep.mubr.f32.mxu0 %v4524
        %8002 = vmatmul.mubr.f32.gmra.mrb[0].mxu0 %v4522
        %v8003 = vpop.f32.mrb[0].mxu0
        %v8004 = vadd.f32 %v7933, %v8003
        %v8005 = vpop.f32.mrb[0].mxu0
        %v8006 = vadd.f32 %v7935, %v8005
        %8007 = vdwg.mxu0
        %8008 = vmatprep.subr.mxu0 %v2089
        %8009 = vmatpush1.msra.mxu0 %v2088
        %8010 = vmatprep.subr.mxu0 %v2093
        %8011 = vmatpush1.msra.mxu0 %v2092
        %8012 = vmatprep.subr.mxu0 %v2097
        %8013 = vmatpush1.msra.mxu0 %v2096
        %8014 = vmatprep.subr.mxu0 %v2101
        %8015 = vmatpush1.msra.mxu0 %v2100
        %8016 = vmatprep.subr.mxu0 %v2105
        %8017 = vmatpush1.msra.mxu0 %v2104
        %8018 = vmatprep.subr.mxu0 %v2109
        %8019 = vmatpush1.msra.mxu0 %v2108
        %8020 = vmatprep.subr.mxu0 %v2113
        %8021 = vmatpush1.msra.mxu0 %v2112
        %8022 = vmatprep.subr.mxu0 %v2117
        %8023 = vmatpush1.msra.mxu0 %v2116
        %8024 = vmatprep.subr.mxu0 %v2121
        %8025 = vmatpush1.msra.mxu0 %v2120
        %8026 = vmatprep.subr.mxu0 %v2125
        %8027 = vmatpush1.msra.mxu0 %v2124
        %8028 = vmatprep.subr.mxu0 %v2129
        %8029 = vmatpush1.msra.mxu0 %v2128
        %8030 = vmatprep.subr.mxu0 %v2133
        %8031 = vmatpush1.msra.mxu0 %v2132
        %8032 = vmatprep.subr.mxu0 %v2137
        %8033 = vmatpush1.msra.mxu0 %v2136
        %8034 = vmatprep.subr.mxu0 %v2141
        %8035 = vmatpush1.msra.mxu0 %v2140
        %8036 = vmatprep.subr.mxu0 %v2145
        %8037 = vmatpush1.msra.mxu0 %v2144
        %8038 = vmatprep.subr.mxu0 %v2149
        %8039 = vmatpush1.msra.mxu0 %v2148
        %8040 = vmatprep.subr.mxu0 %v2153
        %8041 = vmatpush1.msra.mxu0 %v2152
        %8042 = vmatprep.subr.mxu0 %v2157
        %8043 = vmatpush1.msra.mxu0 %v2156
        %8044 = vmatprep.subr.mxu0 %v2161
        %8045 = vmatpush1.msra.mxu0 %v2160
        %8046 = vmatprep.subr.mxu0 %v2165
        %8047 = vmatpush1.msra.mxu0 %v2164
        %8048 = vmatprep.subr.mxu0 %v2169
        %8049 = vmatpush1.msra.mxu0 %v2168
        %8050 = vmatprep.subr.mxu0 %v2173
        %8051 = vmatpush1.msra.mxu0 %v2172
        %8052 = vmatprep.subr.mxu0 %v2177
        %8053 = vmatpush1.msra.mxu0 %v2176
        %8054 = vmatprep.subr.mxu0 %v2181
        %8055 = vmatpush1.msra.mxu0 %v2180
        %8056 = vmatprep.subr.mxu0 %v2185
        %8057 = vmatpush1.msra.mxu0 %v2184
        %8058 = vmatprep.subr.mxu0 %v2189
        %8059 = vmatpush1.msra.mxu0 %v2188
        %8060 = vmatprep.subr.mxu0 %v2193
        %8061 = vmatpush1.msra.mxu0 %v2192
        %8062 = vmatprep.subr.mxu0 %v2197
        %8063 = vmatpush1.msra.mxu0 %v2196
        %8064 = vmatprep.subr.mxu0 %v2201
        %8065 = vmatpush1.msra.mxu0 %v2200
        %8066 = vmatprep.subr.mxu0 %v2205
        %8067 = vmatpush1.msra.mxu0 %v2204
        %8068 = vmatprep.subr.mxu0 %v2209
        %8069 = vmatpush1.msra.mxu0 %v2208
        %8070 = vmatprep.subr.mxu0 %v2213
        %8071 = vmatpush1.msra.mxu0 %v2212
        %8072 = vmatprep.mubr.f32.mxu0 %v4540
        %8073 = vmatmul.mubr.f32.gmra.mrb[0].mxu0 %v4532
        %v8074 = vpop.f32.mrb[0].mxu0
        %v8075 = vadd.f32 %v8004, %v8074
        %v8076 = vpop.f32.mrb[0].mxu0
        %v8077 = vadd.f32 %v8006, %v8076
        %8078 = vdwg.mxu0
        %8079 = vmatprep.subr.mxu0 %v2217
        %8080 = vmatpush1.msra.mxu0 %v2216
        %8081 = vmatprep.subr.mxu0 %v2221
        %8082 = vmatpush1.msra.mxu0 %v2220
        %8083 = vmatprep.subr.mxu0 %v2225
        %8084 = vmatpush1.msra.mxu0 %v2224
        %8085 = vmatprep.subr.mxu0 %v2229
        %8086 = vmatpush1.msra.mxu0 %v2228
        %8087 = vmatprep.subr.mxu0 %v2233
        %8088 = vmatpush1.msra.mxu0 %v2232
        %8089 = vmatprep.subr.mxu0 %v2237
        %8090 = vmatpush1.msra.mxu0 %v2236
        %8091 = vmatprep.subr.mxu0 %v2241
        %8092 = vmatpush1.msra.mxu0 %v2240
        %8093 = vmatprep.subr.mxu0 %v2245
        %8094 = vmatpush1.msra.mxu0 %v2244
        %8095 = vmatprep.subr.mxu0 %v2249
        %8096 = vmatpush1.msra.mxu0 %v2248
        %8097 = vmatprep.subr.mxu0 %v2253
        %8098 = vmatpush1.msra.mxu0 %v2252
        %8099 = vmatprep.subr.mxu0 %v2257
        %8100 = vmatpush1.msra.mxu0 %v2256
        %8101 = vmatprep.subr.mxu0 %v2261
        %8102 = vmatpush1.msra.mxu0 %v2260
        %8103 = vmatprep.subr.mxu0 %v2265
        %8104 = vmatpush1.msra.mxu0 %v2264
        %8105 = vmatprep.subr.mxu0 %v2269
        %8106 = vmatpush1.msra.mxu0 %v2268
        %8107 = vmatprep.subr.mxu0 %v2273
        %8108 = vmatpush1.msra.mxu0 %v2272
        %8109 = vmatprep.subr.mxu0 %v2277
        %8110 = vmatpush1.msra.mxu0 %v2276
        %8111 = vmatprep.subr.mxu0 %v2281
        %8112 = vmatpush1.msra.mxu0 %v2280
        %8113 = vmatprep.subr.mxu0 %v2285
        %8114 = vmatpush1.msra.mxu0 %v2284
        %8115 = vmatprep.subr.mxu0 %v2289
        %8116 = vmatpush1.msra.mxu0 %v2288
        %8117 = vmatprep.subr.mxu0 %v2293
        %8118 = vmatpush1.msra.mxu0 %v2292
        %8119 = vmatprep.subr.mxu0 %v2297
        %8120 = vmatpush1.msra.mxu0 %v2296
        %8121 = vmatprep.subr.mxu0 %v2301
        %8122 = vmatpush1.msra.mxu0 %v2300
        %8123 = vmatprep.subr.mxu0 %v2305
        %8124 = vmatpush1.msra.mxu0 %v2304
        %8125 = vmatprep.subr.mxu0 %v2309
        %8126 = vmatpush1.msra.mxu0 %v2308
        %8127 = vmatprep.subr.mxu0 %v2313
        %8128 = vmatpush1.msra.mxu0 %v2312
        %8129 = vmatprep.subr.mxu0 %v2317
        %8130 = vmatpush1.msra.mxu0 %v2316
        %8131 = vmatprep.subr.mxu0 %v2321
        %8132 = vmatpush1.msra.mxu0 %v2320
        %8133 = vmatprep.subr.mxu0 %v2325
        %8134 = vmatpush1.msra.mxu0 %v2324
        %8135 = vmatprep.subr.mxu0 %v2329
        %8136 = vmatpush1.msra.mxu0 %v2328
        %8137 = vmatprep.subr.mxu0 %v2333
        %8138 = vmatpush1.msra.mxu0 %v2332
        %8139 = vmatprep.subr.mxu0 %v2337
        %8140 = vmatpush1.msra.mxu0 %v2336
        %8141 = vmatprep.subr.mxu0 %v2341
        %8142 = vmatpush1.msra.mxu0 %v2340
        %8143 = vmatprep.mubr.f32.mxu0 %v4541
        %8144 = vmatmul.mubr.f32.gmra.mrb[0].mxu0 %v4539
        %v8145 = vpop.f32.mrb[0].mxu0
        %v8146 = vadd.f32 %v8075, %v8145
        %v8147 = vpop.f32.mrb[0].mxu0
        %v8148 = vadd.f32 %v8077, %v8147
        %8149 = vdwg.mxu0
        %8150 = vmatprep.subr.mxu0 %v2345
        %8151 = vmatpush1.msra.mxu0 %v2344
        %8152 = vmatprep.subr.mxu0 %v2349
        %8153 = vmatpush1.msra.mxu0 %v2348
        %8154 = vmatprep.subr.mxu0 %v2353
        %8155 = vmatpush1.msra.mxu0 %v2352
        %8156 = vmatprep.subr.mxu0 %v2357
        %8157 = vmatpush1.msra.mxu0 %v2356
        %8158 = vmatprep.subr.mxu0 %v2361
        %8159 = vmatpush1.msra.mxu0 %v2360
        %8160 = vmatprep.subr.mxu0 %v2365
        %8161 = vmatpush1.msra.mxu0 %v2364
        %8162 = vmatprep.subr.mxu0 %v2369
        %8163 = vmatpush1.msra.mxu0 %v2368
        %8164 = vmatprep.subr.mxu0 %v2373
        %8165 = vmatpush1.msra.mxu0 %v2372
        %8166 = vmatprep.subr.mxu0 %v2377
        %8167 = vmatpush1.msra.mxu0 %v2376
        %8168 = vmatprep.subr.mxu0 %v2381
        %8169 = vmatpush1.msra.mxu0 %v2380
        %8170 = vmatprep.subr.mxu0 %v2385
        %8171 = vmatpush1.msra.mxu0 %v2384
        %8172 = vmatprep.subr.mxu0 %v2389
        %8173 = vmatpush1.msra.mxu0 %v2388
        %8174 = vmatprep.subr.mxu0 %v2393
        %8175 = vmatpush1.msra.mxu0 %v2392
        %8176 = vmatprep.subr.mxu0 %v2397
        %8177 = vmatpush1.msra.mxu0 %v2396
        %8178 = vmatprep.subr.mxu0 %v2401
        %8179 = vmatpush1.msra.mxu0 %v2400
        %8180 = vmatprep.subr.mxu0 %v2405
        %8181 = vmatpush1.msra.mxu0 %v2404
        %8182 = vmatprep.subr.mxu0 %v2409
        %8183 = vmatpush1.msra.mxu0 %v2408
        %8184 = vmatprep.subr.mxu0 %v2413
        %8185 = vmatpush1.msra.mxu0 %v2412
        %8186 = vmatprep.subr.mxu0 %v2417
        %8187 = vmatpush1.msra.mxu0 %v2416
        %8188 = vmatprep.subr.mxu0 %v2421
        %8189 = vmatpush1.msra.mxu0 %v2420
        %8190 = vmatprep.subr.mxu0 %v2425
        %8191 = vmatpush1.msra.mxu0 %v2424
        %8192 = vmatprep.subr.mxu0 %v2429
        %8193 = vmatpush1.msra.mxu0 %v2428
        %8194 = vmatprep.subr.mxu0 %v2433
        %8195 = vmatpush1.msra.mxu0 %v2432
        %8196 = vmatprep.subr.mxu0 %v2437
        %8197 = vmatpush1.msra.mxu0 %v2436
        %8198 = vmatprep.subr.mxu0 %v2441
        %8199 = vmatpush1.msra.mxu0 %v2440
        %8200 = vmatprep.subr.mxu0 %v2445
        %8201 = vmatpush1.msra.mxu0 %v2444
        %8202 = vmatprep.subr.mxu0 %v2449
        %8203 = vmatpush1.msra.mxu0 %v2448
        %8204 = vmatprep.subr.mxu0 %v2453
        %8205 = vmatpush1.msra.mxu0 %v2452
        %8206 = vmatprep.subr.mxu0 %v2457
        %8207 = vmatpush1.msra.mxu0 %v2456
        %8208 = vmatprep.subr.mxu0 %v2461
        %8209 = vmatpush1.msra.mxu0 %v2460
        %8210 = vmatprep.subr.mxu0 %v2465
        %8211 = vmatpush1.msra.mxu0 %v2464
        %8212 = vmatprep.subr.mxu0 %v2469
        %8213 = vmatpush1.msra.mxu0 %v2468
        %8214 = vmatprep.mubr.f32.mxu0 %v4557
        %8215 = vmatmul.mubr.f32.gmra.mrb[0].mxu0 %v4549
        %v8216 = vpop.f32.mrb[0].mxu0
        %v8217 = vadd.f32 %v8146, %v8216
        %v8218 = vpop.f32.mrb[0].mxu0
        %v8219 = vadd.f32 %v8148, %v8218
        %8220 = vdwg.mxu0
        %8221 = vmatprep.subr.mxu0 %v2473
        %8222 = vmatpush1.msra.mxu0 %v2472
        %8223 = vmatprep.subr.mxu0 %v2477
        %8224 = vmatpush1.msra.mxu0 %v2476
        %8225 = vmatprep.subr.mxu0 %v2481
        %8226 = vmatpush1.msra.mxu0 %v2480
        %8227 = vmatprep.subr.mxu0 %v2485
        %8228 = vmatpush1.msra.mxu0 %v2484
        %8229 = vmatprep.subr.mxu0 %v2489
        %8230 = vmatpush1.msra.mxu0 %v2488
        %8231 = vmatprep.subr.mxu0 %v2493
        %8232 = vmatpush1.msra.mxu0 %v2492
        %8233 = vmatprep.subr.mxu0 %v2497
        %8234 = vmatpush1.msra.mxu0 %v2496
        %8235 = vmatprep.subr.mxu0 %v2501
        %8236 = vmatpush1.msra.mxu0 %v2500
        %8237 = vmatprep.subr.mxu0 %v2505
        %8238 = vmatpush1.msra.mxu0 %v2504
        %8239 = vmatprep.subr.mxu0 %v2509
        %8240 = vmatpush1.msra.mxu0 %v2508
        %8241 = vmatprep.subr.mxu0 %v2513
        %8242 = vmatpush1.msra.mxu0 %v2512
        %8243 = vmatprep.subr.mxu0 %v2517
        %8244 = vmatpush1.msra.mxu0 %v2516
        %8245 = vmatprep.subr.mxu0 %v2521
        %8246 = vmatpush1.msra.mxu0 %v2520
        %8247 = vmatprep.subr.mxu0 %v2525
        %8248 = vmatpush1.msra.mxu0 %v2524
        %8249 = vmatprep.subr.mxu0 %v2529
        %8250 = vmatpush1.msra.mxu0 %v2528
        %8251 = vmatprep.subr.mxu0 %v2533
        %8252 = vmatpush1.msra.mxu0 %v2532
        %8253 = vmatprep.subr.mxu0 %v2537
        %8254 = vmatpush1.msra.mxu0 %v2536
        %8255 = vmatprep.subr.mxu0 %v2541
        %8256 = vmatpush1.msra.mxu0 %v2540
        %8257 = vmatprep.subr.mxu0 %v2545
        %8258 = vmatpush1.msra.mxu0 %v2544
        %8259 = vmatprep.subr.mxu0 %v2549
        %8260 = vmatpush1.msra.mxu0 %v2548
        %8261 = vmatprep.subr.mxu0 %v2553
        %8262 = vmatpush1.msra.mxu0 %v2552
        %8263 = vmatprep.subr.mxu0 %v2557
        %8264 = vmatpush1.msra.mxu0 %v2556
        %8265 = vmatprep.subr.mxu0 %v2561
        %8266 = vmatpush1.msra.mxu0 %v2560
        %8267 = vmatprep.subr.mxu0 %v2565
        %8268 = vmatpush1.msra.mxu0 %v2564
        %8269 = vmatprep.subr.mxu0 %v2569
        %8270 = vmatpush1.msra.mxu0 %v2568
        %8271 = vmatprep.subr.mxu0 %v2573
        %8272 = vmatpush1.msra.mxu0 %v2572
        %8273 = vmatprep.subr.mxu0 %v2577
        %8274 = vmatpush1.msra.mxu0 %v2576
        %8275 = vmatprep.subr.mxu0 %v2581
        %8276 = vmatpush1.msra.mxu0 %v2580
        %8277 = vmatprep.subr.mxu0 %v2585
        %8278 = vmatpush1.msra.mxu0 %v2584
        %8279 = vmatprep.subr.mxu0 %v2589
        %8280 = vmatpush1.msra.mxu0 %v2588
        %8281 = vmatprep.subr.mxu0 %v2593
        %8282 = vmatpush1.msra.mxu0 %v2592
        %8283 = vmatprep.subr.mxu0 %v2597
        %8284 = vmatpush1.msra.mxu0 %v2596
        %8285 = vmatprep.mubr.f32.mxu0 %v4558
        %8286 = vmatmul.mubr.f32.gmra.mrb[0].mxu0 %v4556
        %v8287 = vpop.f32.mrb[0].mxu0
        %v8288 = vadd.f32 %v8217, %v8287
        %v8289 = vpop.f32.mrb[0].mxu0
        %v8290 = vadd.f32 %v8219, %v8289
        %8291 = vdwg.mxu0
        %8292 = vmatprep.subr.mxu0 %v2601
        %8293 = vmatpush1.msra.mxu0 %v2600
        %8294 = vmatprep.subr.mxu0 %v2605
        %8295 = vmatpush1.msra.mxu0 %v2604
        %8296 = vmatprep.subr.mxu0 %v2609
        %8297 = vmatpush1.msra.mxu0 %v2608
        %8298 = vmatprep.subr.mxu0 %v2613
        %8299 = vmatpush1.msra.mxu0 %v2612
        %8300 = vmatprep.subr.mxu0 %v2617
        %8301 = vmatpush1.msra.mxu0 %v2616
        %8302 = vmatprep.subr.mxu0 %v2621
        %8303 = vmatpush1.msra.mxu0 %v2620
        %8304 = vmatprep.subr.mxu0 %v2625
        %8305 = vmatpush1.msra.mxu0 %v2624
        %8306 = vmatprep.subr.mxu0 %v2629
        %8307 = vmatpush1.msra.mxu0 %v2628
        %8308 = vmatprep.subr.mxu0 %v2633
        %8309 = vmatpush1.msra.mxu0 %v2632
        %8310 = vmatprep.subr.mxu0 %v2637
        %8311 = vmatpush1.msra.mxu0 %v2636
        %8312 = vmatprep.subr.mxu0 %v2641
        %8313 = vmatpush1.msra.mxu0 %v2640
        %8314 = vmatprep.subr.mxu0 %v2645
        %8315 = vmatpush1.msra.mxu0 %v2644
        %8316 = vmatprep.subr.mxu0 %v2649
        %8317 = vmatpush1.msra.mxu0 %v2648
        %8318 = vmatprep.subr.mxu0 %v2653
        %8319 = vmatpush1.msra.mxu0 %v2652
        %8320 = vmatprep.subr.mxu0 %v2657
        %8321 = vmatpush1.msra.mxu0 %v2656
        %8322 = vmatprep.subr.mxu0 %v2661
        %8323 = vmatpush1.msra.mxu0 %v2660
        %8324 = vmatprep.subr.mxu0 %v2665
        %8325 = vmatpush1.msra.mxu0 %v2664
        %8326 = vmatprep.subr.mxu0 %v2669
        %8327 = vmatpush1.msra.mxu0 %v2668
        %8328 = vmatprep.subr.mxu0 %v2673
        %8329 = vmatpush1.msra.mxu0 %v2672
        %8330 = vmatprep.subr.mxu0 %v2677
        %8331 = vmatpush1.msra.mxu0 %v2676
        %8332 = vmatprep.subr.mxu0 %v2681
        %8333 = vmatpush1.msra.mxu0 %v2680
        %8334 = vmatprep.subr.mxu0 %v2685
        %8335 = vmatpush1.msra.mxu0 %v2684
        %8336 = vmatprep.subr.mxu0 %v2689
        %8337 = vmatpush1.msra.mxu0 %v2688
        %8338 = vmatprep.subr.mxu0 %v2693
        %8339 = vmatpush1.msra.mxu0 %v2692
        %8340 = vmatprep.subr.mxu0 %v2697
        %8341 = vmatpush1.msra.mxu0 %v2696
        %8342 = vmatprep.subr.mxu0 %v2701
        %8343 = vmatpush1.msra.mxu0 %v2700
        %8344 = vmatprep.subr.mxu0 %v2705
        %8345 = vmatpush1.msra.mxu0 %v2704
        %8346 = vmatprep.subr.mxu0 %v2709
        %8347 = vmatpush1.msra.mxu0 %v2708
        %8348 = vmatprep.subr.mxu0 %v2713
        %8349 = vmatpush1.msra.mxu0 %v2712
        %8350 = vmatprep.subr.mxu0 %v2717
        %8351 = vmatpush1.msra.mxu0 %v2716
        %8352 = vmatprep.subr.mxu0 %v2721
        %8353 = vmatpush1.msra.mxu0 %v2720
        %8354 = vmatprep.subr.mxu0 %v2725
        %8355 = vmatpush1.msra.mxu0 %v2724
        %8356 = vmatprep.mubr.f32.mxu0 %v4574
        %8357 = vmatmul.mubr.f32.gmra.mrb[0].mxu0 %v4566
        %v8358 = vpop.f32.mrb[0].mxu0
        %v8359 = vadd.f32 %v8288, %v8358
        %v8360 = vpop.f32.mrb[0].mxu0
        %v8361 = vadd.f32 %v8290, %v8360
        %8362 = vdwg.mxu0
        %8363 = vmatprep.subr.mxu0 %v2729
        %8364 = vmatpush1.msra.mxu0 %v2728
        %8365 = vmatprep.subr.mxu0 %v2733
        %8366 = vmatpush1.msra.mxu0 %v2732
        %8367 = vmatprep.subr.mxu0 %v2737
        %8368 = vmatpush1.msra.mxu0 %v2736
        %8369 = vmatprep.subr.mxu0 %v2741
        %8370 = vmatpush1.msra.mxu0 %v2740
        %8371 = vmatprep.subr.mxu0 %v2745
        %8372 = vmatpush1.msra.mxu0 %v2744
        %8373 = vmatprep.subr.mxu0 %v2749
        %8374 = vmatpush1.msra.mxu0 %v2748
        %8375 = vmatprep.subr.mxu0 %v2753
        %8376 = vmatpush1.msra.mxu0 %v2752
        %8377 = vmatprep.subr.mxu0 %v2757
        %8378 = vmatpush1.msra.mxu0 %v2756
        %8379 = vmatprep.subr.mxu0 %v2761
        %8380 = vmatpush1.msra.mxu0 %v2760
        %8381 = vmatprep.subr.mxu0 %v2765
        %8382 = vmatpush1.msra.mxu0 %v2764
        %8383 = vmatprep.subr.mxu0 %v2769
        %8384 = vmatpush1.msra.mxu0 %v2768
        %8385 = vmatprep.subr.mxu0 %v2773
        %8386 = vmatpush1.msra.mxu0 %v2772
        %8387 = vmatprep.subr.mxu0 %v2777
        %8388 = vmatpush1.msra.mxu0 %v2776
        %8389 = vmatprep.subr.mxu0 %v2781
        %8390 = vmatpush1.msra.mxu0 %v2780
        %8391 = vmatprep.subr.mxu0 %v2785
        %8392 = vmatpush1.msra.mxu0 %v2784
        %8393 = vmatprep.subr.mxu0 %v2789
        %8394 = vmatpush1.msra.mxu0 %v2788
        %8395 = vmatprep.subr.mxu0 %v2793
        %8396 = vmatpush1.msra.mxu0 %v2792
        %8397 = vmatprep.subr.mxu0 %v2797
        %8398 = vmatpush1.msra.mxu0 %v2796
        %8399 = vmatprep.subr.mxu0 %v2801
        %8400 = vmatpush1.msra.mxu0 %v2800
        %8401 = vmatprep.subr.mxu0 %v2805
        %8402 = vmatpush1.msra.mxu0 %v2804
        %8403 = vmatprep.subr.mxu0 %v2809
        %8404 = vmatpush1.msra.mxu0 %v2808
        %8405 = vmatprep.subr.mxu0 %v2813
        %8406 = vmatpush1.msra.mxu0 %v2812
        %8407 = vmatprep.subr.mxu0 %v2817
        %8408 = vmatpush1.msra.mxu0 %v2816
        %8409 = vmatprep.subr.mxu0 %v2821
        %8410 = vmatpush1.msra.mxu0 %v2820
        %8411 = vmatprep.subr.mxu0 %v2825
        %8412 = vmatpush1.msra.mxu0 %v2824
        %8413 = vmatprep.subr.mxu0 %v2829
        %8414 = vmatpush1.msra.mxu0 %v2828
        %8415 = vmatprep.subr.mxu0 %v2833
        %8416 = vmatpush1.msra.mxu0 %v2832
        %8417 = vmatprep.subr.mxu0 %v2837
        %8418 = vmatpush1.msra.mxu0 %v2836
        %8419 = vmatprep.subr.mxu0 %v2841
        %8420 = vmatpush1.msra.mxu0 %v2840
        %8421 = vmatprep.subr.mxu0 %v2845
        %8422 = vmatpush1.msra.mxu0 %v2844
        %8423 = vmatprep.subr.mxu0 %v2849
        %8424 = vmatpush1.msra.mxu0 %v2848
        %8425 = vmatprep.subr.mxu0 %v2853
        %8426 = vmatpush1.msra.mxu0 %v2852
        %8427 = vmatprep.mubr.f32.mxu0 %v4575
        %8428 = vmatmul.mubr.f32.gmra.mrb[0].mxu0 %v4573
        %v8429 = vpop.f32.mrb[0].mxu0
        %v8430 = vadd.f32 %v8359, %v8429
        %v8431 = vpop.f32.mrb[0].mxu0
        %v8432 = vadd.f32 %v8361, %v8431
        %8433 = vdwg.mxu0
        %8434 = vmatprep.subr.mxu0 %v2857
        %8435 = vmatpush1.msra.mxu0 %v2856
        %8436 = vmatprep.subr.mxu0 %v2861
        %8437 = vmatpush1.msra.mxu0 %v2860
        %8438 = vmatprep.subr.mxu0 %v2865
        %8439 = vmatpush1.msra.mxu0 %v2864
        %8440 = vmatprep.subr.mxu0 %v2869
        %8441 = vmatpush1.msra.mxu0 %v2868
        %8442 = vmatprep.subr.mxu0 %v2873
        %8443 = vmatpush1.msra.mxu0 %v2872
        %8444 = vmatprep.subr.mxu0 %v2877
        %8445 = vmatpush1.msra.mxu0 %v2876
        %8446 = vmatprep.subr.mxu0 %v2881
        %8447 = vmatpush1.msra.mxu0 %v2880
        %8448 = vmatprep.subr.mxu0 %v2885
        %8449 = vmatpush1.msra.mxu0 %v2884
        %8450 = vmatprep.subr.mxu0 %v2889
        %8451 = vmatpush1.msra.mxu0 %v2888
        %8452 = vmatprep.subr.mxu0 %v2893
        %8453 = vmatpush1.msra.mxu0 %v2892
        %8454 = vmatprep.subr.mxu0 %v2897
        %8455 = vmatpush1.msra.mxu0 %v2896
        %8456 = vmatprep.subr.mxu0 %v2901
        %8457 = vmatpush1.msra.mxu0 %v2900
        %8458 = vmatprep.subr.mxu0 %v2905
        %8459 = vmatpush1.msra.mxu0 %v2904
        %8460 = vmatprep.subr.mxu0 %v2909
        %8461 = vmatpush1.msra.mxu0 %v2908
        %8462 = vmatprep.subr.mxu0 %v2913
        %8463 = vmatpush1.msra.mxu0 %v2912
        %8464 = vmatprep.subr.mxu0 %v2917
        %8465 = vmatpush1.msra.mxu0 %v2916
        %8466 = vmatprep.subr.mxu0 %v2921
        %8467 = vmatpush1.msra.mxu0 %v2920
        %8468 = vmatprep.subr.mxu0 %v2925
        %8469 = vmatpush1.msra.mxu0 %v2924
        %8470 = vmatprep.subr.mxu0 %v2929
        %8471 = vmatpush1.msra.mxu0 %v2928
        %8472 = vmatprep.subr.mxu0 %v2933
        %8473 = vmatpush1.msra.mxu0 %v2932
        %8474 = vmatprep.subr.mxu0 %v2937
        %8475 = vmatpush1.msra.mxu0 %v2936
        %8476 = vmatprep.subr.mxu0 %v2941
        %8477 = vmatpush1.msra.mxu0 %v2940
        %8478 = vmatprep.subr.mxu0 %v2945
        %8479 = vmatpush1.msra.mxu0 %v2944
        %8480 = vmatprep.subr.mxu0 %v2949
        %8481 = vmatpush1.msra.mxu0 %v2948
        %8482 = vmatprep.subr.mxu0 %v2953
        %8483 = vmatpush1.msra.mxu0 %v2952
        %8484 = vmatprep.subr.mxu0 %v2957
        %8485 = vmatpush1.msra.mxu0 %v2956
        %8486 = vmatprep.subr.mxu0 %v2961
        %8487 = vmatpush1.msra.mxu0 %v2960
        %8488 = vmatprep.subr.mxu0 %v2965
        %8489 = vmatpush1.msra.mxu0 %v2964
        %8490 = vmatprep.subr.mxu0 %v2969
        %8491 = vmatpush1.msra.mxu0 %v2968
        %8492 = vmatprep.subr.mxu0 %v2973
        %8493 = vmatpush1.msra.mxu0 %v2972
        %8494 = vmatprep.subr.mxu0 %v2977
        %8495 = vmatpush1.msra.mxu0 %v2976
        %8496 = vmatprep.subr.mxu0 %v2981
        %8497 = vmatpush1.msra.mxu0 %v2980
        %8498 = vmatprep.mubr.f32.mxu0 %v4591
        %8499 = vmatmul.mubr.f32.gmra.mrb[0].mxu0 %v4583
        %v8500 = vpop.f32.mrb[0].mxu0
        %v8501 = vadd.f32 %v8430, %v8500
        %v8502 = vpop.f32.mrb[0].mxu0
        %v8503 = vadd.f32 %v8432, %v8502
        %8504 = vdwg.mxu0
        %8505 = vmatprep.subr.mxu0 %v2985
        %8506 = vmatpush1.msra.mxu0 %v2984
        %8507 = vmatprep.subr.mxu0 %v2989
        %8508 = vmatpush1.msra.mxu0 %v2988
        %8509 = vmatprep.subr.mxu0 %v2993
        %8510 = vmatpush1.msra.mxu0 %v2992
        %8511 = vmatprep.subr.mxu0 %v2997
        %8512 = vmatpush1.msra.mxu0 %v2996
        %8513 = vmatprep.subr.mxu0 %v3001
        %8514 = vmatpush1.msra.mxu0 %v3000
        %8515 = vmatprep.subr.mxu0 %v3005
        %8516 = vmatpush1.msra.mxu0 %v3004
        %8517 = vmatprep.subr.mxu0 %v3009
        %8518 = vmatpush1.msra.mxu0 %v3008
        %8519 = vmatprep.subr.mxu0 %v3013
        %8520 = vmatpush1.msra.mxu0 %v3012
        %8521 = vmatprep.subr.mxu0 %v3017
        %8522 = vmatpush1.msra.mxu0 %v3016
        %8523 = vmatprep.subr.mxu0 %v3021
        %8524 = vmatpush1.msra.mxu0 %v3020
        %8525 = vmatprep.subr.mxu0 %v3025
        %8526 = vmatpush1.msra.mxu0 %v3024
        %8527 = vmatprep.subr.mxu0 %v3029
        %8528 = vmatpush1.msra.mxu0 %v3028
        %8529 = vmatprep.subr.mxu0 %v3033
        %8530 = vmatpush1.msra.mxu0 %v3032
        %8531 = vmatprep.subr.mxu0 %v3037
        %8532 = vmatpush1.msra.mxu0 %v3036
        %8533 = vmatprep.subr.mxu0 %v3041
        %8534 = vmatpush1.msra.mxu0 %v3040
        %8535 = vmatprep.subr.mxu0 %v3045
        %8536 = vmatpush1.msra.mxu0 %v3044
        %8537 = vmatprep.subr.mxu0 %v3049
        %8538 = vmatpush1.msra.mxu0 %v3048
        %8539 = vmatprep.subr.mxu0 %v3053
        %8540 = vmatpush1.msra.mxu0 %v3052
        %8541 = vmatprep.subr.mxu0 %v3057
        %8542 = vmatpush1.msra.mxu0 %v3056
        %8543 = vmatprep.subr.mxu0 %v3061
        %8544 = vmatpush1.msra.mxu0 %v3060
        %8545 = vmatprep.subr.mxu0 %v3065
        %8546 = vmatpush1.msra.mxu0 %v3064
        %8547 = vmatprep.subr.mxu0 %v3069
        %8548 = vmatpush1.msra.mxu0 %v3068
        %8549 = vmatprep.subr.mxu0 %v3073
        %8550 = vmatpush1.msra.mxu0 %v3072
        %8551 = vmatprep.subr.mxu0 %v3077
        %8552 = vmatpush1.msra.mxu0 %v3076
        %8553 = vmatprep.subr.mxu0 %v3081
        %8554 = vmatpush1.msra.mxu0 %v3080
        %8555 = vmatprep.subr.mxu0 %v3085
        %8556 = vmatpush1.msra.mxu0 %v3084
        %8557 = vmatprep.subr.mxu0 %v3089
        %8558 = vmatpush1.msra.mxu0 %v3088
        %8559 = vmatprep.subr.mxu0 %v3093
        %8560 = vmatpush1.msra.mxu0 %v3092
        %8561 = vmatprep.subr.mxu0 %v3097
        %8562 = vmatpush1.msra.mxu0 %v3096
        %8563 = vmatprep.subr.mxu0 %v3101
        %8564 = vmatpush1.msra.mxu0 %v3100
        %8565 = vmatprep.subr.mxu0 %v3105
        %8566 = vmatpush1.msra.mxu0 %v3104
        %8567 = vmatprep.subr.mxu0 %v3109
        %8568 = vmatpush1.msra.mxu0 %v3108
        %8569 = vmatprep.mubr.f32.mxu0 %v4592
        %8570 = vmatmul.mubr.f32.gmra.mrb[0].mxu0 %v4590
        %v8571 = vpop.f32.mrb[0].mxu0
        %v8572 = vadd.f32 %v8501, %v8571
        %v8573 = vpop.f32.mrb[0].mxu0
        %v8574 = vadd.f32 %v8503, %v8573
        %8575 = vdwg.mxu0
        %8576 = vmatprep.subr.mxu0 %v3113
        %8577 = vmatpush1.msra.mxu0 %v3112
        %8578 = vmatprep.subr.mxu0 %v3117
        %8579 = vmatpush1.msra.mxu0 %v3116
        %8580 = vmatprep.subr.mxu0 %v3121
        %8581 = vmatpush1.msra.mxu0 %v3120
        %8582 = vmatprep.subr.mxu0 %v3125
        %8583 = vmatpush1.msra.mxu0 %v3124
        %8584 = vmatprep.subr.mxu0 %v3129
        %8585 = vmatpush1.msra.mxu0 %v3128
        %8586 = vmatprep.subr.mxu0 %v3133
        %8587 = vmatpush1.msra.mxu0 %v3132
        %8588 = vmatprep.subr.mxu0 %v3137
        %8589 = vmatpush1.msra.mxu0 %v3136
        %8590 = vmatprep.subr.mxu0 %v3141
        %8591 = vmatpush1.msra.mxu0 %v3140
        %8592 = vmatprep.subr.mxu0 %v3145
        %8593 = vmatpush1.msra.mxu0 %v3144
        %8594 = vmatprep.subr.mxu0 %v3149
        %8595 = vmatpush1.msra.mxu0 %v3148
        %8596 = vmatprep.subr.mxu0 %v3153
        %8597 = vmatpush1.msra.mxu0 %v3152
        %8598 = vmatprep.subr.mxu0 %v3157
        %8599 = vmatpush1.msra.mxu0 %v3156
        %8600 = vmatprep.subr.mxu0 %v3161
        %8601 = vmatpush1.msra.mxu0 %v3160
        %8602 = vmatprep.subr.mxu0 %v3165
        %8603 = vmatpush1.msra.mxu0 %v3164
        %8604 = vmatprep.subr.mxu0 %v3169
        %8605 = vmatpush1.msra.mxu0 %v3168
        %8606 = vmatprep.subr.mxu0 %v3173
        %8607 = vmatpush1.msra.mxu0 %v3172
        %8608 = vmatprep.subr.mxu0 %v3177
        %8609 = vmatpush1.msra.mxu0 %v3176
        %8610 = vmatprep.subr.mxu0 %v3181
        %8611 = vmatpush1.msra.mxu0 %v3180
        %8612 = vmatprep.subr.mxu0 %v3185
        %8613 = vmatpush1.msra.mxu0 %v3184
        %8614 = vmatprep.subr.mxu0 %v3189
        %8615 = vmatpush1.msra.mxu0 %v3188
        %8616 = vmatprep.subr.mxu0 %v3193
        %8617 = vmatpush1.msra.mxu0 %v3192
        %8618 = vmatprep.subr.mxu0 %v3197
        %8619 = vmatpush1.msra.mxu0 %v3196
        %8620 = vmatprep.subr.mxu0 %v3201
        %8621 = vmatpush1.msra.mxu0 %v3200
        %8622 = vmatprep.subr.mxu0 %v3205
        %8623 = vmatpush1.msra.mxu0 %v3204
        %8624 = vmatprep.subr.mxu0 %v3209
        %8625 = vmatpush1.msra.mxu0 %v3208
        %8626 = vmatprep.subr.mxu0 %v3213
        %8627 = vmatpush1.msra.mxu0 %v3212
        %8628 = vmatprep.subr.mxu0 %v3217
        %8629 = vmatpush1.msra.mxu0 %v3216
        %8630 = vmatprep.subr.mxu0 %v3221
        %8631 = vmatpush1.msra.mxu0 %v3220
        %8632 = vmatprep.subr.mxu0 %v3225
        %8633 = vmatpush1.msra.mxu0 %v3224
        %8634 = vmatprep.subr.mxu0 %v3229
        %8635 = vmatpush1.msra.mxu0 %v3228
        %8636 = vmatprep.subr.mxu0 %v3233
        %8637 = vmatpush1.msra.mxu0 %v3232
        %8638 = vmatprep.subr.mxu0 %v3237
        %8639 = vmatpush1.msra.mxu0 %v3236
        %8640 = vmatprep.mubr.f32.mxu0 %v4608
        %8641 = vmatmul.mubr.f32.gmra.mrb[0].mxu0 %v4600
        %v8642 = vpop.f32.mrb[0].mxu0
        %v8643 = vadd.f32 %v8572, %v8642
        %v8644 = vpop.f32.mrb[0].mxu0
        %v8645 = vadd.f32 %v8574, %v8644
        %8646 = vdwg.mxu0
        %8647 = vmatprep.subr.mxu0 %v3241
        %8648 = vmatpush1.msra.mxu0 %v3240
        %8649 = vmatprep.subr.mxu0 %v3245
        %8650 = vmatpush1.msra.mxu0 %v3244
        %8651 = vmatprep.subr.mxu0 %v3249
        %8652 = vmatpush1.msra.mxu0 %v3248
        %8653 = vmatprep.subr.mxu0 %v3253
        %8654 = vmatpush1.msra.mxu0 %v3252
        %8655 = vmatprep.subr.mxu0 %v3257
        %8656 = vmatpush1.msra.mxu0 %v3256
        %8657 = vmatprep.subr.mxu0 %v3261
        %8658 = vmatpush1.msra.mxu0 %v3260
        %8659 = vmatprep.subr.mxu0 %v3265
        %8660 = vmatpush1.msra.mxu0 %v3264
        %8661 = vmatprep.subr.mxu0 %v3269
        %8662 = vmatpush1.msra.mxu0 %v3268
        %8663 = vmatprep.subr.mxu0 %v3273
        %8664 = vmatpush1.msra.mxu0 %v3272
        %8665 = vmatprep.subr.mxu0 %v3277
        %8666 = vmatpush1.msra.mxu0 %v3276
        %8667 = vmatprep.subr.mxu0 %v3281
        %8668 = vmatpush1.msra.mxu0 %v3280
        %8669 = vmatprep.subr.mxu0 %v3285
        %8670 = vmatpush1.msra.mxu0 %v3284
        %8671 = vmatprep.subr.mxu0 %v3289
        %8672 = vmatpush1.msra.mxu0 %v3288
        %8673 = vmatprep.subr.mxu0 %v3293
        %8674 = vmatpush1.msra.mxu0 %v3292
        %8675 = vmatprep.subr.mxu0 %v3297
        %8676 = vmatpush1.msra.mxu0 %v3296
        %8677 = vmatprep.subr.mxu0 %v3301
        %8678 = vmatpush1.msra.mxu0 %v3300
        %8679 = vmatprep.subr.mxu0 %v3305
        %8680 = vmatpush1.msra.mxu0 %v3304
        %8681 = vmatprep.subr.mxu0 %v3309
        %8682 = vmatpush1.msra.mxu0 %v3308
        %8683 = vmatprep.subr.mxu0 %v3313
        %8684 = vmatpush1.msra.mxu0 %v3312
        %8685 = vmatprep.subr.mxu0 %v3317
        %8686 = vmatpush1.msra.mxu0 %v3316
        %8687 = vmatprep.subr.mxu0 %v3321
        %8688 = vmatpush1.msra.mxu0 %v3320
        %8689 = vmatprep.subr.mxu0 %v3325
        %8690 = vmatpush1.msra.mxu0 %v3324
        %8691 = vmatprep.subr.mxu0 %v3329
        %8692 = vmatpush1.msra.mxu0 %v3328
        %8693 = vmatprep.subr.mxu0 %v3333
        %8694 = vmatpush1.msra.mxu0 %v3332
        %8695 = vmatprep.subr.mxu0 %v3337
        %8696 = vmatpush1.msra.mxu0 %v3336
        %8697 = vmatprep.subr.mxu0 %v3341
        %8698 = vmatpush1.msra.mxu0 %v3340
        %8699 = vmatprep.subr.mxu0 %v3345
        %8700 = vmatpush1.msra.mxu0 %v3344
        %8701 = vmatprep.subr.mxu0 %v3349
        %8702 = vmatpush1.msra.mxu0 %v3348
        %8703 = vmatprep.subr.mxu0 %v3353
        %8704 = vmatpush1.msra.mxu0 %v3352
        %8705 = vmatprep.subr.mxu0 %v3357
        %8706 = vmatpush1.msra.mxu0 %v3356
        %8707 = vmatprep.subr.mxu0 %v3361
        %8708 = vmatpush1.msra.mxu0 %v3360
        %8709 = vmatprep.subr.mxu0 %v3365
        %8710 = vmatpush1.msra.mxu0 %v3364
        %8711 = vmatprep.mubr.f32.mxu0 %v4609
        %8712 = vmatmul.mubr.f32.gmra.mrb[0].mxu0 %v4607
        %v8713 = vpop.f32.mrb[0].mxu0
        %v8714 = vadd.f32 %v8643, %v8713
        %v8715 = vpop.f32.mrb[0].mxu0
        %v8716 = vadd.f32 %v8645, %v8715
        %8717 = vdwg.mxu0
        %8718 = vmatprep.subr.mxu0 %v3369
        %8719 = vmatpush1.msra.mxu0 %v3368
        %8720 = vmatprep.subr.mxu0 %v3373
        %8721 = vmatpush1.msra.mxu0 %v3372
        %8722 = vmatprep.subr.mxu0 %v3377
        %8723 = vmatpush1.msra.mxu0 %v3376
        %8724 = vmatprep.subr.mxu0 %v3381
        %8725 = vmatpush1.msra.mxu0 %v3380
        %8726 = vmatprep.subr.mxu0 %v3385
        %8727 = vmatpush1.msra.mxu0 %v3384
        %8728 = vmatprep.subr.mxu0 %v3389
        %8729 = vmatpush1.msra.mxu0 %v3388
        %8730 = vmatprep.subr.mxu0 %v3393
        %8731 = vmatpush1.msra.mxu0 %v3392
        %8732 = vmatprep.subr.mxu0 %v3397
        %8733 = vmatpush1.msra.mxu0 %v3396
        %8734 = vmatprep.subr.mxu0 %v3401
        %8735 = vmatpush1.msra.mxu0 %v3400
        %8736 = vmatprep.subr.mxu0 %v3405
        %8737 = vmatpush1.msra.mxu0 %v3404
        %8738 = vmatprep.subr.mxu0 %v3409
        %8739 = vmatpush1.msra.mxu0 %v3408
        %8740 = vmatprep.subr.mxu0 %v3413
        %8741 = vmatpush1.msra.mxu0 %v3412
        %8742 = vmatprep.subr.mxu0 %v3417
        %8743 = vmatpush1.msra.mxu0 %v3416
        %8744 = vmatprep.subr.mxu0 %v3421
        %8745 = vmatpush1.msra.mxu0 %v3420
        %8746 = vmatprep.subr.mxu0 %v3425
        %8747 = vmatpush1.msra.mxu0 %v3424
        %8748 = vmatprep.subr.mxu0 %v3429
        %8749 = vmatpush1.msra.mxu0 %v3428
        %8750 = vmatprep.subr.mxu0 %v3433
        %8751 = vmatpush1.msra.mxu0 %v3432
        %8752 = vmatprep.subr.mxu0 %v3437
        %8753 = vmatpush1.msra.mxu0 %v3436
        %8754 = vmatprep.subr.mxu0 %v3441
        %8755 = vmatpush1.msra.mxu0 %v3440
        %8756 = vmatprep.subr.mxu0 %v3445
        %8757 = vmatpush1.msra.mxu0 %v3444
        %8758 = vmatprep.subr.mxu0 %v3449
        %8759 = vmatpush1.msra.mxu0 %v3448
        %8760 = vmatprep.subr.mxu0 %v3453
        %8761 = vmatpush1.msra.mxu0 %v3452
        %8762 = vmatprep.subr.mxu0 %v3457
        %8763 = vmatpush1.msra.mxu0 %v3456
        %8764 = vmatprep.subr.mxu0 %v3461
        %8765 = vmatpush1.msra.mxu0 %v3460
        %8766 = vmatprep.subr.mxu0 %v3465
        %8767 = vmatpush1.msra.mxu0 %v3464
        %8768 = vmatprep.subr.mxu0 %v3469
        %8769 = vmatpush1.msra.mxu0 %v3468
        %8770 = vmatprep.subr.mxu0 %v3473
        %8771 = vmatpush1.msra.mxu0 %v3472
        %8772 = vmatprep.subr.mxu0 %v3477
        %8773 = vmatpush1.msra.mxu0 %v3476
        %8774 = vmatprep.subr.mxu0 %v3481
        %8775 = vmatpush1.msra.mxu0 %v3480
        %8776 = vmatprep.subr.mxu0 %v3485
        %8777 = vmatpush1.msra.mxu0 %v3484
        %8778 = vmatprep.subr.mxu0 %v3489
        %8779 = vmatpush1.msra.mxu0 %v3488
        %8780 = vmatprep.subr.mxu0 %v3493
        %8781 = vmatpush1.msra.mxu0 %v3492
        %8782 = vmatprep.mubr.f32.mxu0 %v4625
        %8783 = vmatmul.mubr.f32.gmra.mrb[0].mxu0 %v4617
        %v8784 = vpop.f32.mrb[0].mxu0
        %v8785 = vadd.f32 %v8714, %v8784
        %v8786 = vpop.f32.mrb[0].mxu0
        %v8787 = vadd.f32 %v8716, %v8786
        %8788 = vdwg.mxu0
        %8789 = vmatprep.subr.mxu0 %v3497
        %8790 = vmatpush1.msra.mxu0 %v3496
        %8791 = vmatprep.subr.mxu0 %v3501
        %8792 = vmatpush1.msra.mxu0 %v3500
        %8793 = vmatprep.subr.mxu0 %v3505
        %8794 = vmatpush1.msra.mxu0 %v3504
        %8795 = vmatprep.subr.mxu0 %v3509
        %8796 = vmatpush1.msra.mxu0 %v3508
        %8797 = vmatprep.subr.mxu0 %v3513
        %8798 = vmatpush1.msra.mxu0 %v3512
        %8799 = vmatprep.subr.mxu0 %v3517
        %8800 = vmatpush1.msra.mxu0 %v3516
        %8801 = vmatprep.subr.mxu0 %v3521
        %8802 = vmatpush1.msra.mxu0 %v3520
        %8803 = vmatprep.subr.mxu0 %v3525
        %8804 = vmatpush1.msra.mxu0 %v3524
        %8805 = vmatprep.subr.mxu0 %v3529
        %8806 = vmatpush1.msra.mxu0 %v3528
        %8807 = vmatprep.subr.mxu0 %v3533
        %8808 = vmatpush1.msra.mxu0 %v3532
        %8809 = vmatprep.subr.mxu0 %v3537
        %8810 = vmatpush1.msra.mxu0 %v3536
        %8811 = vmatprep.subr.mxu0 %v3541
        %8812 = vmatpush1.msra.mxu0 %v3540
        %8813 = vmatprep.subr.mxu0 %v3545
        %8814 = vmatpush1.msra.mxu0 %v3544
        %8815 = vmatprep.subr.mxu0 %v3549
        %8816 = vmatpush1.msra.mxu0 %v3548
        %8817 = vmatprep.subr.mxu0 %v3553
        %8818 = vmatpush1.msra.mxu0 %v3552
        %8819 = vmatprep.subr.mxu0 %v3557
        %8820 = vmatpush1.msra.mxu0 %v3556
        %8821 = vmatprep.subr.mxu0 %v3561
        %8822 = vmatpush1.msra.mxu0 %v3560
        %8823 = vmatprep.subr.mxu0 %v3565
        %8824 = vmatpush1.msra.mxu0 %v3564
        %8825 = vmatprep.subr.mxu0 %v3569
        %8826 = vmatpush1.msra.mxu0 %v3568
        %8827 = vmatprep.subr.mxu0 %v3573
        %8828 = vmatpush1.msra.mxu0 %v3572
        %8829 = vmatprep.subr.mxu0 %v3577
        %8830 = vmatpush1.msra.mxu0 %v3576
        %8831 = vmatprep.subr.mxu0 %v3581
        %8832 = vmatpush1.msra.mxu0 %v3580
        %8833 = vmatprep.subr.mxu0 %v3585
        %8834 = vmatpush1.msra.mxu0 %v3584
        %8835 = vmatprep.subr.mxu0 %v3589
        %8836 = vmatpush1.msra.mxu0 %v3588
        %8837 = vmatprep.subr.mxu0 %v3593
        %8838 = vmatpush1.msra.mxu0 %v3592
        %8839 = vmatprep.subr.mxu0 %v3597
        %8840 = vmatpush1.msra.mxu0 %v3596
        %8841 = vmatprep.subr.mxu0 %v3601
        %8842 = vmatpush1.msra.mxu0 %v3600
        %8843 = vmatprep.subr.mxu0 %v3605
        %8844 = vmatpush1.msra.mxu0 %v3604
        %8845 = vmatprep.subr.mxu0 %v3609
        %8846 = vmatpush1.msra.mxu0 %v3608
        %8847 = vmatprep.subr.mxu0 %v3613
        %8848 = vmatpush1.msra.mxu0 %v3612
        %8849 = vmatprep.subr.mxu0 %v3617
        %8850 = vmatpush1.msra.mxu0 %v3616
        %8851 = vmatprep.subr.mxu0 %v3621
        %8852 = vmatpush1.msra.mxu0 %v3620
        %8853 = vmatprep.mubr.f32.mxu0 %v4626
        %8854 = vmatmul.mubr.f32.gmra.mrb[0].mxu0 %v4624
        %v8855 = vpop.f32.mrb[0].mxu0
        %v8856 = vadd.f32 %v8785, %v8855
        %v8857 = vpop.f32.mrb[0].mxu0
        %v8858 = vadd.f32 %v8787, %v8857
        %8859 = vdwg.mxu0
        %8860 = vmatprep.subr.mxu0 %v3625
        %8861 = vmatpush1.msra.mxu0 %v3624
        %8862 = vmatprep.subr.mxu0 %v3629
        %8863 = vmatpush1.msra.mxu0 %v3628
        %8864 = vmatprep.subr.mxu0 %v3633
        %8865 = vmatpush1.msra.mxu0 %v3632
        %8866 = vmatprep.subr.mxu0 %v3637
        %8867 = vmatpush1.msra.mxu0 %v3636
        %8868 = vmatprep.subr.mxu0 %v3641
        %8869 = vmatpush1.msra.mxu0 %v3640
        %8870 = vmatprep.subr.mxu0 %v3645
        %8871 = vmatpush1.msra.mxu0 %v3644
        %8872 = vmatprep.subr.mxu0 %v3649
        %8873 = vmatpush1.msra.mxu0 %v3648
        %8874 = vmatprep.subr.mxu0 %v3653
        %8875 = vmatpush1.msra.mxu0 %v3652
        %8876 = vmatprep.subr.mxu0 %v3657
        %8877 = vmatpush1.msra.mxu0 %v3656
        %8878 = vmatprep.subr.mxu0 %v3661
        %8879 = vmatpush1.msra.mxu0 %v3660
        %8880 = vmatprep.subr.mxu0 %v3665
        %8881 = vmatpush1.msra.mxu0 %v3664
        %8882 = vmatprep.subr.mxu0 %v3669
        %8883 = vmatpush1.msra.mxu0 %v3668
        %8884 = vmatprep.subr.mxu0 %v3673
        %8885 = vmatpush1.msra.mxu0 %v3672
        %8886 = vmatprep.subr.mxu0 %v3677
        %8887 = vmatpush1.msra.mxu0 %v3676
        %8888 = vmatprep.subr.mxu0 %v3681
        %8889 = vmatpush1.msra.mxu0 %v3680
        %8890 = vmatprep.subr.mxu0 %v3685
        %8891 = vmatpush1.msra.mxu0 %v3684
        %8892 = vmatprep.subr.mxu0 %v3689
        %8893 = vmatpush1.msra.mxu0 %v3688
        %8894 = vmatprep.subr.mxu0 %v3693
        %8895 = vmatpush1.msra.mxu0 %v3692
        %8896 = vmatprep.subr.mxu0 %v3697
        %8897 = vmatpush1.msra.mxu0 %v3696
        %8898 = vmatprep.subr.mxu0 %v3701
        %8899 = vmatpush1.msra.mxu0 %v3700
        %8900 = vmatprep.subr.mxu0 %v3705
        %8901 = vmatpush1.msra.mxu0 %v3704
        %8902 = vmatprep.subr.mxu0 %v3709
        %8903 = vmatpush1.msra.mxu0 %v3708
        %8904 = vmatprep.subr.mxu0 %v3713
        %8905 = vmatpush1.msra.mxu0 %v3712
        %8906 = vmatprep.subr.mxu0 %v3717
        %8907 = vmatpush1.msra.mxu0 %v3716
        %8908 = vmatprep.subr.mxu0 %v3721
        %8909 = vmatpush1.msra.mxu0 %v3720
        %8910 = vmatprep.subr.mxu0 %v3725
        %8911 = vmatpush1.msra.mxu0 %v3724
        %8912 = vmatprep.subr.mxu0 %v3729
        %8913 = vmatpush1.msra.mxu0 %v3728
        %8914 = vmatprep.subr.mxu0 %v3733
        %8915 = vmatpush1.msra.mxu0 %v3732
        %8916 = vmatprep.subr.mxu0 %v3737
        %8917 = vmatpush1.msra.mxu0 %v3736
        %8918 = vmatprep.subr.mxu0 %v3741
        %8919 = vmatpush1.msra.mxu0 %v3740
        %8920 = vmatprep.subr.mxu0 %v3745
        %8921 = vmatpush1.msra.mxu0 %v3744
        %8922 = vmatprep.subr.mxu0 %v3749
        %8923 = vmatpush1.msra.mxu0 %v3748
        %8924 = vmatprep.mubr.f32.mxu0 %v4642
        %8925 = vmatmul.mubr.f32.gmra.mrb[0].mxu0 %v4634
        %v8926 = vpop.f32.mrb[0].mxu0
        %v8927 = vadd.f32 %v8856, %v8926
        %v8928 = vpop.f32.mrb[0].mxu0
        %v8929 = vadd.f32 %v8858, %v8928
        %8930 = vdwg.mxu0
        %8931 = vmatprep.subr.mxu0 %v3753
        %8932 = vmatpush1.msra.mxu0 %v3752
        %8933 = vmatprep.subr.mxu0 %v3757
        %8934 = vmatpush1.msra.mxu0 %v3756
        %8935 = vmatprep.subr.mxu0 %v3761
        %8936 = vmatpush1.msra.mxu0 %v3760
        %8937 = vmatprep.subr.mxu0 %v3765
        %8938 = vmatpush1.msra.mxu0 %v3764
        %8939 = vmatprep.subr.mxu0 %v3769
        %8940 = vmatpush1.msra.mxu0 %v3768
        %8941 = vmatprep.subr.mxu0 %v3773
        %8942 = vmatpush1.msra.mxu0 %v3772
        %8943 = vmatprep.subr.mxu0 %v3777
        %8944 = vmatpush1.msra.mxu0 %v3776
        %8945 = vmatprep.subr.mxu0 %v3781
        %8946 = vmatpush1.msra.mxu0 %v3780
        %8947 = vmatprep.subr.mxu0 %v3785
        %8948 = vmatpush1.msra.mxu0 %v3784
        %8949 = vmatprep.subr.mxu0 %v3789
        %8950 = vmatpush1.msra.mxu0 %v3788
        %8951 = vmatprep.subr.mxu0 %v3793
        %8952 = vmatpush1.msra.mxu0 %v3792
        %8953 = vmatprep.subr.mxu0 %v3797
        %8954 = vmatpush1.msra.mxu0 %v3796
        %8955 = vmatprep.subr.mxu0 %v3801
        %8956 = vmatpush1.msra.mxu0 %v3800
        %8957 = vmatprep.subr.mxu0 %v3805
        %8958 = vmatpush1.msra.mxu0 %v3804
        %8959 = vmatprep.subr.mxu0 %v3809
        %8960 = vmatpush1.msra.mxu0 %v3808
        %8961 = vmatprep.subr.mxu0 %v3813
        %8962 = vmatpush1.msra.mxu0 %v3812
        %8963 = vmatprep.subr.mxu0 %v3817
        %8964 = vmatpush1.msra.mxu0 %v3816
        %8965 = vmatprep.subr.mxu0 %v3821
        %8966 = vmatpush1.msra.mxu0 %v3820
        %8967 = vmatprep.subr.mxu0 %v3825
        %8968 = vmatpush1.msra.mxu0 %v3824
        %8969 = vmatprep.subr.mxu0 %v3829
        %8970 = vmatpush1.msra.mxu0 %v3828
        %8971 = vmatprep.subr.mxu0 %v3833
        %8972 = vmatpush1.msra.mxu0 %v3832
        %8973 = vmatprep.subr.mxu0 %v3837
        %8974 = vmatpush1.msra.mxu0 %v3836
        %8975 = vmatprep.subr.mxu0 %v3841
        %8976 = vmatpush1.msra.mxu0 %v3840
        %8977 = vmatprep.subr.mxu0 %v3845
        %8978 = vmatpush1.msra.mxu0 %v3844
        %8979 = vmatprep.subr.mxu0 %v3849
        %8980 = vmatpush1.msra.mxu0 %v3848
        %8981 = vmatprep.subr.mxu0 %v3853
        %8982 = vmatpush1.msra.mxu0 %v3852
        %8983 = vmatprep.subr.mxu0 %v3857
        %8984 = vmatpush1.msra.mxu0 %v3856
        %8985 = vmatprep.subr.mxu0 %v3861
        %8986 = vmatpush1.msra.mxu0 %v3860
        %8987 = vmatprep.subr.mxu0 %v3865
        %8988 = vmatpush1.msra.mxu0 %v3864
        %8989 = vmatprep.subr.mxu0 %v3869
        %8990 = vmatpush1.msra.mxu0 %v3868
        %8991 = vmatprep.subr.mxu0 %v3873
        %8992 = vmatpush1.msra.mxu0 %v3872
        %8993 = vmatprep.subr.mxu0 %v3877
        %8994 = vmatpush1.msra.mxu0 %v3876
        %8995 = vmatprep.mubr.f32.mxu0 %v4643
        %8996 = vmatmul.mubr.f32.gmra.mrb[0].mxu0 %v4641
        %v8997 = vpop.f32.mrb[0].mxu0
        %v8998 = vadd.f32 %v8927, %v8997
        %v8999 = vpop.f32.mrb[0].mxu0
        %v9000 = vadd.f32 %v8929, %v8999
        %9001 = vdwg.mxu0
        %9002 = vmatprep.subr.mxu0 %v3881
        %9003 = vmatpush1.msra.mxu0 %v3880
        %9004 = vmatprep.subr.mxu0 %v3885
        %9005 = vmatpush1.msra.mxu0 %v3884
        %9006 = vmatprep.subr.mxu0 %v3889
        %9007 = vmatpush1.msra.mxu0 %v3888
        %9008 = vmatprep.subr.mxu0 %v3893
        %9009 = vmatpush1.msra.mxu0 %v3892
        %9010 = vmatprep.subr.mxu0 %v3897
        %9011 = vmatpush1.msra.mxu0 %v3896
        %9012 = vmatprep.subr.mxu0 %v3901
        %9013 = vmatpush1.msra.mxu0 %v3900
        %9014 = vmatprep.subr.mxu0 %v3905
        %9015 = vmatpush1.msra.mxu0 %v3904
        %9016 = vmatprep.subr.mxu0 %v3909
        %9017 = vmatpush1.msra.mxu0 %v3908
        %9018 = vmatprep.subr.mxu0 %v3913
        %9019 = vmatpush1.msra.mxu0 %v3912
        %9020 = vmatprep.subr.mxu0 %v3917
        %9021 = vmatpush1.msra.mxu0 %v3916
        %9022 = vmatprep.subr.mxu0 %v3921
        %9023 = vmatpush1.msra.mxu0 %v3920
        %9024 = vmatprep.subr.mxu0 %v3925
        %9025 = vmatpush1.msra.mxu0 %v3924
        %9026 = vmatprep.subr.mxu0 %v3929
        %9027 = vmatpush1.msra.mxu0 %v3928
        %9028 = vmatprep.subr.mxu0 %v3933
        %9029 = vmatpush1.msra.mxu0 %v3932
        %9030 = vmatprep.subr.mxu0 %v3937
        %9031 = vmatpush1.msra.mxu0 %v3936
        %9032 = vmatprep.subr.mxu0 %v3941
        %9033 = vmatpush1.msra.mxu0 %v3940
        %9034 = vmatprep.subr.mxu0 %v3945
        %9035 = vmatpush1.msra.mxu0 %v3944
        %9036 = vmatprep.subr.mxu0 %v3949
        %9037 = vmatpush1.msra.mxu0 %v3948
        %9038 = vmatprep.subr.mxu0 %v3953
        %9039 = vmatpush1.msra.mxu0 %v3952
        %9040 = vmatprep.subr.mxu0 %v3957
        %9041 = vmatpush1.msra.mxu0 %v3956
        %9042 = vmatprep.subr.mxu0 %v3961
        %9043 = vmatpush1.msra.mxu0 %v3960
        %9044 = vmatprep.subr.mxu0 %v3965
        %9045 = vmatpush1.msra.mxu0 %v3964
        %9046 = vmatprep.subr.mxu0 %v3969
        %9047 = vmatpush1.msra.mxu0 %v3968
        %9048 = vmatprep.subr.mxu0 %v3973
        %9049 = vmatpush1.msra.mxu0 %v3972
        %9050 = vmatprep.subr.mxu0 %v3977
        %9051 = vmatpush1.msra.mxu0 %v3976
        %9052 = vmatprep.subr.mxu0 %v3981
        %9053 = vmatpush1.msra.mxu0 %v3980
        %9054 = vmatprep.subr.mxu0 %v3985
        %9055 = vmatpush1.msra.mxu0 %v3984
        %9056 = vmatprep.subr.mxu0 %v3989
        %9057 = vmatpush1.msra.mxu0 %v3988
        %9058 = vmatprep.subr.mxu0 %v3993
        %9059 = vmatpush1.msra.mxu0 %v3992
        %9060 = vmatprep.subr.mxu0 %v3997
        %9061 = vmatpush1.msra.mxu0 %v3996
        %9062 = vmatprep.subr.mxu0 %v4001
        %9063 = vmatpush1.msra.mxu0 %v4000
        %9064 = vmatprep.subr.mxu0 %v4005
        %9065 = vmatpush1.msra.mxu0 %v4004
        %9066 = vmatprep.mubr.f32.mxu0 %v4659
        %9067 = vmatmul.mubr.f32.gmra.mrb[0].mxu0 %v4651
        %v9068 = vpop.f32.mrb[0].mxu0
        %v9069 = vadd.f32 %v8998, %v9068
        %v9070 = vpop.f32.mrb[0].mxu0
        %v9071 = vadd.f32 %v9000, %v9070
        %9072 = vdwg.mxu0
        %9073 = vmatprep.subr.mxu0 %v4009
        %9074 = vmatpush1.msra.mxu0 %v4008
        %9075 = vmatprep.subr.mxu0 %v4013
        %9076 = vmatpush1.msra.mxu0 %v4012
        %9077 = vmatprep.subr.mxu0 %v4017
        %9078 = vmatpush1.msra.mxu0 %v4016
        %9079 = vmatprep.subr.mxu0 %v4021
        %9080 = vmatpush1.msra.mxu0 %v4020
        %9081 = vmatprep.subr.mxu0 %v4025
        %9082 = vmatpush1.msra.mxu0 %v4024
        %9083 = vmatprep.subr.mxu0 %v4029
        %9084 = vmatpush1.msra.mxu0 %v4028
        %9085 = vmatprep.subr.mxu0 %v4033
        %9086 = vmatpush1.msra.mxu0 %v4032
        %9087 = vmatprep.subr.mxu0 %v4037
        %9088 = vmatpush1.msra.mxu0 %v4036
        %9089 = vmatprep.subr.mxu0 %v4041
        %9090 = vmatpush1.msra.mxu0 %v4040
        %9091 = vmatprep.subr.mxu0 %v4045
        %9092 = vmatpush1.msra.mxu0 %v4044
        %9093 = vmatprep.subr.mxu0 %v4049
        %9094 = vmatpush1.msra.mxu0 %v4048
        %9095 = vmatprep.subr.mxu0 %v4053
        %9096 = vmatpush1.msra.mxu0 %v4052
        %9097 = vmatprep.subr.mxu0 %v4057
        %9098 = vmatpush1.msra.mxu0 %v4056
        %9099 = vmatprep.subr.mxu0 %v4061
        %9100 = vmatpush1.msra.mxu0 %v4060
        %9101 = vmatprep.subr.mxu0 %v4065
        %9102 = vmatpush1.msra.mxu0 %v4064
        %9103 = vmatprep.subr.mxu0 %v4069
        %9104 = vmatpush1.msra.mxu0 %v4068
        %9105 = vmatprep.subr.mxu0 %v4073
        %9106 = vmatpush1.msra.mxu0 %v4072
        %9107 = vmatprep.subr.mxu0 %v4077
        %9108 = vmatpush1.msra.mxu0 %v4076
        %9109 = vmatprep.subr.mxu0 %v4081
        %9110 = vmatpush1.msra.mxu0 %v4080
        %9111 = vmatprep.subr.mxu0 %v4085
        %9112 = vmatpush1.msra.mxu0 %v4084
        %9113 = vmatprep.subr.mxu0 %v4089
        %9114 = vmatpush1.msra.mxu0 %v4088
        %9115 = vmatprep.subr.mxu0 %v4093
        %9116 = vmatpush1.msra.mxu0 %v4092
        %9117 = vmatprep.subr.mxu0 %v4097
        %9118 = vmatpush1.msra.mxu0 %v4096
        %9119 = vmatprep.subr.mxu0 %v4101
        %9120 = vmatpush1.msra.mxu0 %v4100
        %9121 = vmatprep.subr.mxu0 %v4105
        %9122 = vmatpush1.msra.mxu0 %v4104
        %9123 = vmatprep.subr.mxu0 %v4109
        %9124 = vmatpush1.msra.mxu0 %v4108
        %9125 = vmatprep.subr.mxu0 %v4113
        %9126 = vmatpush1.msra.mxu0 %v4112
        %9127 = vmatprep.subr.mxu0 %v4117
        %9128 = vmatpush1.msra.mxu0 %v4116
        %9129 = vmatprep.subr.mxu0 %v4121
        %9130 = vmatpush1.msra.mxu0 %v4120
        %9131 = vmatprep.subr.mxu0 %v4125
        %9132 = vmatpush1.msra.mxu0 %v4124
        %9133 = vmatprep.subr.mxu0 %v4129
        %9134 = vmatpush1.msra.mxu0 %v4128
        %9135 = vmatprep.subr.mxu0 %v4133
        %9136 = vmatpush1.msra.mxu0 %v4132
        %9137 = vmatprep.mubr.f32.mxu0 %v4660
        %9138 = vmatmul.mubr.f32.gmra.mrb[0].mxu0 %v4658
        %v9139 = vpop.f32.mrb[0].mxu0
        %v9140 = vadd.f32 %v9069, %v9139
        %v9141 = vpop.f32.mrb[0].mxu0
        %v9142 = vadd.f32 %v9071, %v9141
        %9143 = vdwg.mxu0
        %9144 = vmatprep.subr.mxu0 %v4137
        %9145 = vmatpush1.msra.mxu0 %v4136
        %9146 = vmatprep.subr.mxu0 %v4141
        %9147 = vmatpush1.msra.mxu0 %v4140
        %9148 = vmatprep.subr.mxu0 %v4145
        %9149 = vmatpush1.msra.mxu0 %v4144
        %9150 = vmatprep.subr.mxu0 %v4149
        %9151 = vmatpush1.msra.mxu0 %v4148
        %9152 = vmatprep.subr.mxu0 %v4153
        %9153 = vmatpush1.msra.mxu0 %v4152
        %9154 = vmatprep.subr.mxu0 %v4157
        %9155 = vmatpush1.msra.mxu0 %v4156
        %9156 = vmatprep.subr.mxu0 %v4161
        %9157 = vmatpush1.msra.mxu0 %v4160
        %9158 = vmatprep.subr.mxu0 %v4165
        %9159 = vmatpush1.msra.mxu0 %v4164
        %9160 = vmatprep.subr.mxu0 %v4169
        %9161 = vmatpush1.msra.mxu0 %v4168
        %9162 = vmatprep.subr.mxu0 %v4173
        %9163 = vmatpush1.msra.mxu0 %v4172
        %9164 = vmatprep.subr.mxu0 %v4177
        %9165 = vmatpush1.msra.mxu0 %v4176
        %9166 = vmatprep.subr.mxu0 %v4181
        %9167 = vmatpush1.msra.mxu0 %v4180
        %9168 = vmatprep.subr.mxu0 %v4185
        %9169 = vmatpush1.msra.mxu0 %v4184
        %9170 = vmatprep.subr.mxu0 %v4189
        %9171 = vmatpush1.msra.mxu0 %v4188
        %9172 = vmatprep.subr.mxu0 %v4193
        %9173 = vmatpush1.msra.mxu0 %v4192
        %9174 = vmatprep.subr.mxu0 %v4197
        %9175 = vmatpush1.msra.mxu0 %v4196
        %9176 = vmatprep.subr.mxu0 %v4201
        %9177 = vmatpush1.msra.mxu0 %v4200
        %9178 = vmatprep.subr.mxu0 %v4205
        %9179 = vmatpush1.msra.mxu0 %v4204
        %9180 = vmatprep.subr.mxu0 %v4209
        %9181 = vmatpush1.msra.mxu0 %v4208
        %9182 = vmatprep.subr.mxu0 %v4213
        %9183 = vmatpush1.msra.mxu0 %v4212
        %9184 = vmatprep.subr.mxu0 %v4217
        %9185 = vmatpush1.msra.mxu0 %v4216
        %9186 = vmatprep.subr.mxu0 %v4221
        %9187 = vmatpush1.msra.mxu0 %v4220
        %9188 = vmatprep.subr.mxu0 %v4225
        %9189 = vmatpush1.msra.mxu0 %v4224
        %9190 = vmatprep.subr.mxu0 %v4229
        %9191 = vmatpush1.msra.mxu0 %v4228
        %9192 = vmatprep.subr.mxu0 %v4233
        %9193 = vmatpush1.msra.mxu0 %v4232
        %9194 = vmatprep.subr.mxu0 %v4237
        %9195 = vmatpush1.msra.mxu0 %v4236
        %9196 = vmatprep.subr.mxu0 %v4241
        %9197 = vmatpush1.msra.mxu0 %v4240
        %9198 = vmatprep.subr.mxu0 %v4245
        %9199 = vmatpush1.msra.mxu0 %v4244
        %9200 = vmatprep.subr.mxu0 %v4249
        %9201 = vmatpush1.msra.mxu0 %v4248
        %9202 = vmatprep.subr.mxu0 %v4253
        %9203 = vmatpush1.msra.mxu0 %v4252
        %9204 = vmatprep.subr.mxu0 %v4257
        %9205 = vmatpush1.msra.mxu0 %v4256
        %9206 = vmatprep.subr.mxu0 %v4261
        %9207 = vmatpush1.msra.mxu0 %v4260
        %9208 = vmatprep.mubr.f32.mxu0 %v4676
        %9209 = vmatmul.mubr.f32.gmra.mrb[0].mxu0 %v4668
        %v9210 = vpop.f32.mrb[0].mxu0
        %v9211 = vadd.f32 %v9140, %v9210
        %v9212 = vpop.f32.mrb[0].mxu0
        %v9213 = vadd.f32 %v9142, %v9212
        %9214 = vdwg.mxu0
        %9215 = vmatprep.subr.mxu0 %v4265
        %9216 = vmatpush1.msra.mxu0 %v4264
        %9217 = vmatprep.subr.mxu0 %v4269
        %9218 = vmatpush1.msra.mxu0 %v4268
        %9219 = vmatprep.subr.mxu0 %v4273
        %9220 = vmatpush1.msra.mxu0 %v4272
        %9221 = vmatprep.subr.mxu0 %v4277
        %9222 = vmatpush1.msra.mxu0 %v4276
        %9223 = vmatprep.subr.mxu0 %v4281
        %9224 = vmatpush1.msra.mxu0 %v4280
        %9225 = vmatprep.subr.mxu0 %v4285
        %9226 = vmatpush1.msra.mxu0 %v4284
        %9227 = vmatprep.subr.mxu0 %v4289
        %9228 = vmatpush1.msra.mxu0 %v4288
        %9229 = vmatprep.subr.mxu0 %v4293
        %9230 = vmatpush1.msra.mxu0 %v4292
        %9231 = vmatprep.subr.mxu0 %v4297
        %9232 = vmatpush1.msra.mxu0 %v4296
        %9233 = vmatprep.subr.mxu0 %v4301
        %9234 = vmatpush1.msra.mxu0 %v4300
        %9235 = vmatprep.subr.mxu0 %v4305
        %9236 = vmatpush1.msra.mxu0 %v4304
        %9237 = vmatprep.subr.mxu0 %v4309
        %9238 = vmatpush1.msra.mxu0 %v4308
        %9239 = vmatprep.subr.mxu0 %v4313
        %9240 = vmatpush1.msra.mxu0 %v4312
        %9241 = vmatprep.subr.mxu0 %v4317
        %9242 = vmatpush1.msra.mxu0 %v4316
        %9243 = vmatprep.subr.mxu0 %v4321
        %9244 = vmatpush1.msra.mxu0 %v4320
        %9245 = vmatprep.subr.mxu0 %v4325
        %9246 = vmatpush1.msra.mxu0 %v4324
        %9247 = vmatprep.subr.mxu0 %v4329
        %9248 = vmatpush1.msra.mxu0 %v4328
        %9249 = vmatprep.subr.mxu0 %v4333
        %9250 = vmatpush1.msra.mxu0 %v4332
        %9251 = vmatprep.subr.mxu0 %v4337
        %9252 = vmatpush1.msra.mxu0 %v4336
        %9253 = vmatprep.subr.mxu0 %v4341
        %9254 = vmatpush1.msra.mxu0 %v4340
        %9255 = vmatprep.subr.mxu0 %v4345
        %9256 = vmatpush1.msra.mxu0 %v4344
        %9257 = vmatprep.subr.mxu0 %v4349
        %9258 = vmatpush1.msra.mxu0 %v4348
        %9259 = vmatprep.subr.mxu0 %v4353
        %9260 = vmatpush1.msra.mxu0 %v4352
        %9261 = vmatprep.subr.mxu0 %v4357
        %9262 = vmatpush1.msra.mxu0 %v4356
        %9263 = vmatprep.subr.mxu0 %v4361
        %9264 = vmatpush1.msra.mxu0 %v4360
        %9265 = vmatprep.subr.mxu0 %v4365
        %9266 = vmatpush1.msra.mxu0 %v4364
        %9267 = vmatprep.subr.mxu0 %v4369
        %9268 = vmatpush1.msra.mxu0 %v4368
        %9269 = vmatprep.subr.mxu0 %v4373
        %9270 = vmatpush1.msra.mxu0 %v4372
        %9271 = vmatprep.subr.mxu0 %v4377
        %9272 = vmatpush1.msra.mxu0 %v4376
        %9273 = vmatprep.subr.mxu0 %v4381
        %9274 = vmatpush1.msra.mxu0 %v4380
        %9275 = vmatprep.subr.mxu0 %v4385
        %9276 = vmatpush1.msra.mxu0 %v4384
        %9277 = vmatprep.subr.mxu0 %v4389
        %9278 = vmatpush1.msra.mxu0 %v4388
        %9279 = vmatprep.mubr.f32.mxu0 %v4677
        %9280 = vmatmul.mubr.f32.gmra.mrb[0].mxu0 %v4675
        %v9281 = vpop.f32.mrb[0].mxu0
        %v9282 = vadd.f32 %v9211, %v9281
        %v9283 = vpop.f32.mrb[0].mxu0
        %v9284 = vadd.f32 %v9213, %v9283
        %9285 = vdwg.mxu0
        %v9290 = vcombine.low %v7010, %v7012
        %v9291 = vcombine.low %v9282, %v9284
        %v9293 = vunpack.c.l.s4 1983009808
        %v9294 = vunpack.c.0.s8 %v9293
        %v9295 = vlaneseq
        %v9296 = vshrl.u32 %v9295, 7
        %v9297 = vsub.s32 %v9294, %v9296
        %v9298 = vrot.slane %v9290, %v9297
        %v9300 = vunpack.c.l.s4 1983009808
        %v9301 = vunpack.c.0.s8 %v9300
        %v9302 = vlaneseq
        %v9303 = vshrl.u32 %v9302, 7
        %v9304 = vsub.s32 %v9301, %v9303
        %v9305 = vrot.slane %v9291, %v9304
        %v9306 = vcombine.low %v9298, %v9305
        %v9308 = vadd.f32 %v277, %v9306
        %9309 = vst [vmem:[#allocation2] sm:$0xff] %v9308
        %p9310 = scmp.eq.s32.totalorder %s25, 15
        // Predicated region
        $region45: #{network_forward.2} parent=31 // pred_check
          %p9311 = pneg %p9310
        $region46: #{network_forward.2} parent=31 // pred_check_branch
          %9313 = sbr.rel (%p9311) target = $region48
        $region47: #{network_forward.2} parent=31 // pred_region
          %v9314 = vld [vmem:[#allocation2] sm:$0xff]
          %v9315 = vld [vmem:[%s224] sm:$0xf]
          %v9317 = vlaneseq
          %v9318 = vshrl.u32 %v9317, 7
          %v9319 = vsub.s32 0, %v9318
          %v9320 = vrot.slane %v9315, %v9319
          %v9321 = vlaneseq
          %v9322 = vshrl.u32 %v9321, 7
          %v9323 = vsub.s32 1, %v9322
          %v9324 = vrot.slane %v9315, %v9323
          %v9325 = vlaneseq
          %v9326 = vshrl.u32 %v9325, 7
          %v9327 = vsub.s32 2, %v9326
          %v9328 = vrot.slane %v9315, %v9327
          %v9329 = vlaneseq
          %v9330 = vshrl.u32 %v9329, 7
          %v9331 = vsub.s32 3, %v9330
          %v9332 = vrot.slane %v9315, %v9331
          %v9333 = vcombine.low %v9320, %v9324
          %v9334 = vcombine.low %v9328, %v9332
          %v9336 = vunpack.c.l.s4 1983009808
          %v9337 = vunpack.c.0.s8 %v9336
          %v9338 = vlaneseq
          %v9339 = vshrl.u32 %v9338, 7
          %v9340 = vsub.s32 %v9337, %v9339
          %v9341 = vrot.slane %v9333, %v9340
          %v9343 = vunpack.c.l.s4 1983009808
          %v9344 = vunpack.c.0.s8 %v9343
          %v9345 = vlaneseq
          %v9346 = vshrl.u32 %v9345, 7
          %v9347 = vsub.s32 %v9344, %v9346
          %v9348 = vrot.slane %v9334, %v9347
          %v9349 = vcombine.low %v9341, %v9348
          %v9351 = vadd.f32 %v9314, %v9349
          %v9352 = vmax.f32 %v9351, 0.0
          %9353 = vst [vmem:[%s270] sm:$0xff] %v9352
        $region48: #{network_forward.2} parent=31 // pred_fallthru
          _
        %s9354 = smul.u32 4, %s24
        %p9355 = scmp.lt.s32.totalorder %s9354, 7
        %s9356 = scalar_select %p9355, %s9354, 7
        %s9357 = smul.addr %s9356, 2
        %s9358 = scalar_lea.vmem %s3, %s9357
        // Predicated region
        $region49: #{network_forward.2} parent=31 // pred_check
          %p9359 = pneg %p130
        $region50: #{network_forward.2} parent=31 // pred_check_branch
          %9361 = sbr.rel (%p9359) target = $region52
        $region51: #{network_forward.2} parent=31 // pred_region
          %s9362 = smul.u32 4, %s24
        $region52: #{network_forward.2} parent=31 // pred_fallthru
          _
      $region32: #{network_forward.2} parent=5 // pred_fallthru
        _
      %p9363 = scmp.le.s32.totalorder 2, %s15
      // Predicated region
      $region53: #{network_forward.2} parent=5 // pred_check
        %p9364 = pneg %p9363
      $region54: #{network_forward.2} parent=5 // pred_check_branch
        %9366 = sbr.rel (%p9364) target = $region56
      $region55: #{network_forward.2} parent=5 // pred_region
        %s9367 = ssub.s32 %s15, 2
        // Predicated region
        $region57: #{network_forward.2} parent=55 // pred_check
          %p9368 = pneg %p136
        $region58: #{network_forward.2} parent=55 // pred_check_branch
          %9370 = sbr.rel (%p9368) target = $region60
        $region59: #{network_forward.2} parent=55 // pred_region
          %s9371 = smul.u32 4, %s26
          %p9372 = scmp.lt.s32.totalorder %s9371, 7
          %s9373 = scalar_select %p9372, %s9371, 7
          %s9374 = smul.addr %s9373, 2
          %s9375 = scalar_lea.vmem %s3, %s9374
        $region60: #{network_forward.2} parent=55 // pred_fallthru
          _
      $region56: #{network_forward.2} parent=5 // pred_fallthru
        _
    $region6: #{network_forward.2} parent=1 // loop_footer
      %s19 = sadd.s32 1, %s15
    $region7: #{network_forward.2} parent=1 // loop_footer_branch
      %14 = sbr.rel target = $region3
    $region8: #{network_forward.2} parent=1 // loop_exit
      _
    %9376 = vsyncpa [#allocation4], 1
    %s9377 = scalar_lea.sflag [#allocation4], 1
    %9378 = vsyncpa %s9377, 1
    %9379 = vsyncpa [#allocation6], 1
    %s9380 = scalar_lea.sflag [#allocation6], 1
    %9381 = vsyncpa %s9380, 1

</llo_original>
